<compile_context>
chip_gen: v6e
topology: v6e:2x2x1
jax: 0.10.0
libtpu: 0.0.40
codegen_flags: <defaults>
</compile_context>

<pallas_src>
import functools

import jax
import jax.numpy as jnp
from jax.experimental import pallas as pl
from jax.experimental.pallas import tpu as pltpu  # noqa: F401  (TPU backend)

# ----------------------------- model config ---------------------------------
VOCAB = 100
VOCAB_PAD = 128          # lane-friendly padded vocab (extra rows are zero, never hit)
MAX_POS = 64
HIDDEN = 32
N_HEADS = 4
HEAD_DIM = HIDDEN // N_HEADS
FFN = 4 * HIDDEN
N_LAYERS = 2
NUM_CLASSES = 3
LN_EPS = 1e-5


# ----------------------------- fused Pallas kernel --------------------------
def _fused_forward_kernel(
    ids_ref, pos_ref, wemb_ref, eg_ref, eb_ref,
    maskb_ref, lab_ref, cw_ref,
    cdw_ref, cdb_ref, cow_ref, cob_ref,
    *rest,
    B, S, D, H, Dh, n_layers, num_classes, vocab_pad,
):
    n_lp = 12 * n_layers
    layer_refs = rest[:n_lp]
    loss_ref = rest[n_lp]
    logits_ref = rest[n_lp + 1]

    f32 = jnp.float32
    BS = B * S

    def layer_norm(x, g, b):
        mean = jnp.mean(x, axis=-1, keepdims=True)
        cen = x - mean
        var = jnp.mean(cen * cen, axis=-1, keepdims=True)
        return cen * jax.lax.rsqrt(var + LN_EPS) * g + b

    def gelu(x):
        # TODO(synk): HF BERT/RoBERTa default is exact erf-GELU; tanh approximation used here.
        c = 0.7978845608028654  # sqrt(2/pi)
        return 0.5 * x * (1.0 + jnp.tanh(c * (x + 0.044715 * x * x * x)))

    # ---- embeddings: one-hot(ids) @ word_emb + positional slab, LayerNorm ----
    ids = ids_ref[...]                                              # (BS, 1) int32
    vocab_iota = jax.lax.broadcasted_iota(jnp.int32, (BS, vocab_pad), 1)
    tok_onehot = (vocab_iota == ids).astype(f32)                    # (BS, Vp)
    h = jnp.dot(tok_onehot, wemb_ref[...], preferred_element_type=f32) + pos_ref[...]
    h = layer_norm(h, eg_ref[...], eb_ref[...])                     # (BS, D)

    mask_bias = maskb_ref[...]                                      # (B, S) additive

    for li in range(n_layers):
        (wqkv_r, bqkv_r, wo_r, bo_r, g1_r, b1_r,
         wf1_r, bf1_r, wf2_r, bf2_r, g2_r, b2_r) = layer_refs[12 * li:12 * (li + 1)]

        # fused QKV projection (1/sqrt(Dh) already folded into the Q columns)
        qkv = jnp.dot(h, wqkv_r[...], preferred_element_type=f32) + bqkv_r[...]  # (BS, 3D)
        wo = wo_r[...]                                              # (D, D)

        attn_rows = []
        for bi in range(B):
            r0 = bi * S
            qkv_b = qkv[r0:r0 + S, :]                               # (S, 3D)
            bias_b = mask_bias[bi:bi + 1, :]                        # (1, S)
            acc = jnp.zeros((S, D), f32)
            for hh in range(H):
                q_h = qkv_b[:, hh * Dh:(hh + 1) * Dh]               # (S, Dh)
                k_h = qkv_b[:, D + hh * Dh:D + (hh + 1) * Dh]
                v_h = qkv_b[:, 2 * D + hh * Dh:2 * D + (hh + 1) * Dh]
                s = jnp.einsum("qd,kd->qk", q_h, k_h,
                               preferred_element_type=f32) + bias_b  # (S, S)
                m = jnp.max(s, axis=-1, keepdims=True)
                p = jnp.exp(s - m)
                p = p * pl.reciprocal(jnp.sum(p, axis=-1, keepdims=True),
                                      approx=True)
                ctx_h = jnp.dot(p, v_h, preferred_element_type=f32)  # (S, Dh)
                # per-head slice of the output projection == concat(heads) @ wo
                acc = acc + jnp.dot(ctx_h, wo[hh * Dh:(hh + 1) * Dh, :],
                                    preferred_element_type=f32)
            attn_rows.append(acc)
        attn_out = jnp.concatenate(attn_rows, axis=0) + bo_r[...]    # (BS, D)

        # residual fused into LayerNorm
        h = layer_norm(h + attn_out, g1_r[...], b1_r[...])

        # feed-forward
        ff = gelu(jnp.dot(h, wf1_r[...], preferred_element_type=f32) + bf1_r[...])
        ff = jnp.dot(ff, wf2_r[...], preferred_element_type=f32) + bf2_r[...]
        h = layer_norm(h + ff, g2_r[...], b2_r[...])

    # ---- classification head: first token of each sequence ----
    cls = jnp.concatenate([h[bi * S:bi * S + 1, :] for bi in range(B)], axis=0)  # (B, D)
    cls = jnp.tanh(jnp.dot(cls, cdw_ref[...], preferred_element_type=f32)
                   + cdb_ref[...])
    logits = jnp.dot(cls, cow_ref[...], preferred_element_type=f32) + cob_ref[...]  # (B, C)
    logits_ref[...] = logits

    # ---- weighted cross-entropy, reduction='mean' (PyTorch semantics) ----
    labels = lab_ref[...]                                           # (B, 1) int32
    cls_iota = jax.lax.broadcasted_iota(jnp.int32, (B, num_classes), 1)
    y_onehot = (cls_iota == labels).astype(f32)                     # (B, C)
    w = cw_ref[...]                                                 # (1, C)
    m = jnp.max(logits, axis=-1, keepdims=True)
    lse = m + jnp.log(jnp.sum(jnp.exp(logits - m), axis=-1, keepdims=True))  # (B,1)
    logit_true = jnp.sum(logits * y_onehot, axis=-1, keepdims=True)          # (B,1)
    w_i = jnp.sum(y_onehot * w, axis=-1, keepdims=True)                      # (B,1)
    num = jnp.sum((lse - logit_true) * w_i, axis=0, keepdims=True)           # (1,1)
    den = jnp.sum(w_i, axis=0, keepdims=True)                                # (1,1)
    loss_ref[...] = num / den


# ----------------------------- params / wrapper ------------------------------
def init_params(key):
    def normal(key, shape, scale=0.02):
        return scale * jax.random.normal(key, shape, dtype=jnp.float32)

    keys = iter(jax.random.split(key, 64))
    p = {
        "word_emb": normal(next(keys), (VOCAB, HIDDEN)),
        "pos_emb": normal(next(keys), (MAX_POS, HIDDEN)),
        "emb_ln_g": jnp.ones((1, HIDDEN), jnp.float32),
        "emb_ln_b": jnp.zeros((1, HIDDEN), jnp.float32),
        "layers": [],
        # RoBERTa classification head: dense (D->D) + tanh, then out_proj (D->C)
        "cls_dense_w": normal(next(keys), (HIDDEN, HIDDEN)),
        "cls_dense_b": jnp.zeros((1, HIDDEN), jnp.float32),
        "cls_out_w": normal(next(keys), (HIDDEN, NUM_CLASSES)),
        "cls_out_b": jnp.zeros((1, NUM_CLASSES), jnp.float32),
    }
    for _ in range(N_LAYERS):
        layer = {
            "wq": normal(next(keys), (HIDDEN, HIDDEN)),
            "bq": jnp.zeros((1, HIDDEN), jnp.float32),
            "wk": normal(next(keys), (HIDDEN, HIDDEN)),
            "bk": jnp.zeros((1, HIDDEN), jnp.float32),
            "wv": normal(next(keys), (HIDDEN, HIDDEN)),
            "bv": jnp.zeros((1, HIDDEN), jnp.float32),
            "wo": normal(next(keys), (HIDDEN, HIDDEN)),
            "bo": jnp.zeros((1, HIDDEN), jnp.float32),
            "ln1_g": jnp.ones((1, HIDDEN), jnp.float32),
            "ln1_b": jnp.zeros((1, HIDDEN), jnp.float32),
            "w_ff1": normal(next(keys), (HIDDEN, FFN)),
            "b_ff1": jnp.zeros((1, FFN), jnp.float32),
            "w_ff2": normal(next(keys), (FFN, HIDDEN)),
            "b_ff2": jnp.zeros((1, HIDDEN), jnp.float32),
            "ln2_g": jnp.ones((1, HIDDEN), jnp.float32),
            "ln2_b": jnp.zeros((1, HIDDEN), jnp.float32),
        }
        p["layers"].append(layer)
    return p


def transformer_classifier_forward(params, input_ids, attention_mask, labels,
                                   class_weights):
    """Mirrors TransformerClassifier.forward: returns (loss, logits)."""
    B, S = input_ids.shape
    D, H, Dh, C = HIDDEN, N_HEADS, HEAD_DIM, NUM_CLASSES
    n_layers = len(params["layers"])
    scale = 1.0 / float(Dh) ** 0.5

    # Parameter-derived constants (folded at jit-compile time).
    word_emb_pad = jnp.pad(params["word_emb"], ((0, VOCAB_PAD - VOCAB), (0, 0)))
    pos_slab = jnp.broadcast_to(params["pos_emb"][:S][None, :, :],
                                (B, S, D)).reshape(B * S, D)

    # Additive attention-mask bias computed once (0 for attend, -1e9 for pad).
    mask_bias = (1.0 - attention_mask.astype(jnp.float32)) * (-1e9)   # (B, S)

    operands = [
        input_ids.reshape(B * S, 1).astype(jnp.int32),
        pos_slab,
        word_emb_pad,
        params["emb_ln_g"], params["emb_ln_b"],
        mask_bias,
        labels.reshape(B, 1).astype(jnp.int32),
        class_weights.reshape(1, C).astype(jnp.float32),
        params["cls_dense_w"], params["cls_dense_b"],
        params["cls_out_w"], params["cls_out_b"],
    ]
    for layer in params["layers"]:
        # Fuse Q|K|V into one (D, 3D) weight; fold 1/sqrt(Dh) into the Q part.
        w_qkv = jnp.concatenate([layer["wq"] * scale, layer["wk"], layer["wv"]],
                                axis=1)
        b_qkv = jnp.concatenate([layer["bq"] * scale, layer["bk"], layer["bv"]],
                                axis=1)
        operands += [
            w_qkv, b_qkv,
            layer["wo"], layer["bo"],
            layer["ln1_g"], layer["ln1_b"],
            layer["w_ff1"], layer["b_ff1"],
            layer["w_ff2"], layer["b_ff2"],
            layer["ln2_g"], layer["ln2_b"],
        ]

    kernel = functools.partial(
        _fused_forward_kernel,
        B=B, S=S, D=D, H=H, Dh=Dh,
        n_layers=n_layers, num_classes=C, vocab_pad=VOCAB_PAD,
    )
    # Single fused kernel, no grid: everything (params ~50 KB + activations ~2 KB)
    # lives in VMEM; only the (1,1) loss and (B,C) logits are written back.
    loss, logits = pl.pallas_call(
        kernel,
        out_shape=(jax.ShapeDtypeStruct((1, 1), jnp.float32),
                   jax.ShapeDtypeStruct((B, C), jnp.float32)),
    )(*operands)
    return loss[0, 0], logits


# ---------------------------------- main --------------------------------------
if __name__ == "__main__":
    key = jax.random.PRNGKey(0)
    k_param, k_ids, k_lbl = jax.random.split(key, 3)

    params = init_params(k_param)

    B, S = 2, 8
    input_ids = jax.random.randint(k_ids, (B, S), 0, VOCAB, dtype=jnp.int32)
    attention_mask = jnp.ones((B, S), dtype=jnp.int32)
    labels = jax.random.randint(k_lbl, (B,), 0, NUM_CLASSES, dtype=jnp.int32)
    class_weights = jnp.array([1.0, 2.0, 0.5], dtype=jnp.float32)

    fwd = jax.jit(functools.partial(transformer_classifier_forward, params))
    loss, logits = fwd(input_ids, attention_mask, labels, class_weights)
    jax.block_until_ready((loss, logits))

    assert logits.shape == (B, NUM_CLASSES)
    assert loss.shape == ()
    assert bool(jnp.isfinite(loss)), "loss is not finite"
    print("KERNEL_OK")
</pallas_src>

<mosaic_0001>
module attributes {stable_mosaic.version = 11 : i64} {
  func.func @_fused_forward_kernel(%arg0: memref<16x1xi32, #tpu.memory_space<vmem>>, %arg1: memref<16x32xf32, #tpu.memory_space<vmem>>, %arg2: memref<128x32xf32, #tpu.memory_space<vmem>>, %arg3: memref<1x32xf32, #tpu.memory_space<vmem>>, %arg4: memref<1x32xf32, #tpu.memory_space<vmem>>, %arg5: memref<2x8xf32, #tpu.memory_space<vmem>>, %arg6: memref<2x1xi32, #tpu.memory_space<vmem>>, %arg7: memref<1x3xf32, #tpu.memory_space<vmem>>, %arg8: memref<32x32xf32, #tpu.memory_space<vmem>>, %arg9: memref<1x32xf32, #tpu.memory_space<vmem>>, %arg10: memref<32x3xf32, #tpu.memory_space<vmem>>, %arg11: memref<1x3xf32, #tpu.memory_space<vmem>>, %arg12: memref<32x96xf32, #tpu.memory_space<vmem>>, %arg13: memref<1x96xf32, #tpu.memory_space<vmem>>, %arg14: memref<32x32xf32, #tpu.memory_space<vmem>>, %arg15: memref<1x32xf32, #tpu.memory_space<vmem>>, %arg16: memref<1x32xf32, #tpu.memory_space<vmem>>, %arg17: memref<1x32xf32, #tpu.memory_space<vmem>>, %arg18: memref<32x128xf32, #tpu.memory_space<vmem>>, %arg19: memref<1x128xf32, #tpu.memory_space<vmem>>, %arg20: memref<128x32xf32, #tpu.memory_space<vmem>>, %arg21: memref<1x32xf32, #tpu.memory_space<vmem>>, %arg22: memref<1x32xf32, #tpu.memory_space<vmem>>, %arg23: memref<1x32xf32, #tpu.memory_space<vmem>>, %arg24: memref<32x96xf32, #tpu.memory_space<vmem>>, %arg25: memref<1x96xf32, #tpu.memory_space<vmem>>, %arg26: memref<32x32xf32, #tpu.memory_space<vmem>>, %arg27: memref<1x32xf32, #tpu.memory_space<vmem>>, %arg28: memref<1x32xf32, #tpu.memory_space<vmem>>, %arg29: memref<1x32xf32, #tpu.memory_space<vmem>>, %arg30: memref<32x128xf32, #tpu.memory_space<vmem>>, %arg31: memref<1x128xf32, #tpu.memory_space<vmem>>, %arg32: memref<128x32xf32, #tpu.memory_space<vmem>>, %arg33: memref<1x32xf32, #tpu.memory_space<vmem>>, %arg34: memref<1x32xf32, #tpu.memory_space<vmem>>, %arg35: memref<1x32xf32, #tpu.memory_space<vmem>>, %arg36: memref<1x1xf32, #tpu.memory_space<vmem>>, %arg37: memref<2x3xf32, #tpu.memory_space<vmem>>) attributes {dimension_semantics = [], scalar_prefetch = 0 : i64, scratch_operands = 0 : i64, tpu.core_type = #tpu.core_type<tc>} {
    %c0 = arith.constant 0 : index
    %c0_0 = arith.constant 0 : index
    %0 = vector.load %arg0[%c0, %c0_0] : memref<16x1xi32, #tpu.memory_space<vmem>>, vector<16x1xi32>
    %1 = tpu.iota {dimensions = array<i32: 1>} : vector<16x128xi32>
    %2 = vector.broadcast %0 : vector<16x1xi32> to vector<16x128xi32>
    %3 = arith.cmpi eq, %1, %2 : vector<16x128xi32>
    %4 = arith.extui %3 : vector<16x128xi1> to vector<16x128xi32>
    %5 = arith.sitofp %4 : vector<16x128xi32> to vector<16x128xf32>
    %c0_1 = arith.constant 0 : index
    %c0_2 = arith.constant 0 : index
    %6 = vector.load %arg2[%c0_1, %c0_2] : memref<128x32xf32, #tpu.memory_space<vmem>>, vector<128x32xf32>
    %cst = arith.constant dense<0.000000e+00> : vector<16x32xf32>
    %7 = tpu.matmul %5, %6, %cst {dimension_numbers = #tpu.dot_dimension_numbers<[1], [0], [0], [1], [0, 0, 1, 1], [], []>} : vector<16x128xf32>, vector<128x32xf32>, vector<16x32xf32> -> vector<16x32xf32>
    %c0_3 = arith.constant 0 : index
    %c0_4 = arith.constant 0 : index
    %8 = vector.load %arg1[%c0_3, %c0_4] : memref<16x32xf32, #tpu.memory_space<vmem>>, vector<16x32xf32>
    %9 = arith.addf %7, %8 : vector<16x32xf32>
    %c0_5 = arith.constant 0 : index
    %c0_6 = arith.constant 0 : index
    %10 = vector.load %arg3[%c0_5, %c0_6] : memref<1x32xf32, #tpu.memory_space<vmem>>, vector<1x32xf32>
    %c0_7 = arith.constant 0 : index
    %c0_8 = arith.constant 0 : index
    %11 = vector.load %arg4[%c0_7, %c0_8] : memref<1x32xf32, #tpu.memory_space<vmem>>, vector<1x32xf32>
    %cst_9 = arith.constant dense<0.000000e+00> : vector<16xf32>
    %12 = vector.multi_reduction <add>, %9, %cst_9 [1] : vector<16x32xf32> to vector<16xf32>
    %13 = vector.shape_cast %12 : vector<16xf32> to vector<16x1xf32>
    %cst_10 = arith.constant 3.200000e+01 : f32
    %14 = vector.broadcast %cst_10 : f32 to vector<16x1xf32>
    %15 = arith.divf %13, %14 : vector<16x1xf32>
    %16 = vector.broadcast %15 : vector<16x1xf32> to vector<16x32xf32>
    %17 = arith.subf %9, %16 : vector<16x32xf32>
    %18 = arith.mulf %17, %17 : vector<16x32xf32>
    %cst_11 = arith.constant dense<0.000000e+00> : vector<16xf32>
    %19 = vector.multi_reduction <add>, %18, %cst_11 [1] : vector<16x32xf32> to vector<16xf32>
    %20 = vector.shape_cast %19 : vector<16xf32> to vector<16x1xf32>
    %cst_12 = arith.constant 3.200000e+01 : f32
    %21 = vector.broadcast %cst_12 : f32 to vector<16x1xf32>
    %22 = arith.divf %20, %21 : vector<16x1xf32>
    %cst_13 = arith.constant 9.99999974E-6 : f32
    %23 = vector.broadcast %cst_13 : f32 to vector<16x1xf32>
    %24 = arith.addf %22, %23 : vector<16x1xf32>
    %25 = math.rsqrt %24 : vector<16x1xf32>
    %26 = vector.broadcast %25 : vector<16x1xf32> to vector<16x32xf32>
    %27 = arith.mulf %17, %26 : vector<16x32xf32>
    %28 = vector.broadcast %10 : vector<1x32xf32> to vector<16x32xf32>
    %29 = arith.mulf %27, %28 : vector<16x32xf32>
    %30 = vector.broadcast %11 : vector<1x32xf32> to vector<16x32xf32>
    %31 = arith.addf %29, %30 : vector<16x32xf32>
    %c0_14 = arith.constant 0 : index
    %c0_15 = arith.constant 0 : index
    %32 = vector.load %arg5[%c0_14, %c0_15] : memref<2x8xf32, #tpu.memory_space<vmem>>, vector<2x8xf32>
    %c0_16 = arith.constant 0 : index
    %c0_17 = arith.constant 0 : index
    %33 = vector.load %arg12[%c0_16, %c0_17] : memref<32x96xf32, #tpu.memory_space<vmem>>, vector<32x96xf32>
    %cst_18 = arith.constant dense<0.000000e+00> : vector<16x96xf32>
    %34 = tpu.matmul %31, %33, %cst_18 {dimension_numbers = #tpu.dot_dimension_numbers<[1], [0], [0], [1], [0, 0, 1, 1], [], []>} : vector<16x32xf32>, vector<32x96xf32>, vector<16x96xf32> -> vector<16x96xf32>
    %c0_19 = arith.constant 0 : index
    %c0_20 = arith.constant 0 : index
    %35 = vector.load %arg13[%c0_19, %c0_20] : memref<1x96xf32, #tpu.memory_space<vmem>>, vector<1x96xf32>
    %36 = vector.broadcast %35 : vector<1x96xf32> to vector<16x96xf32>
    %37 = arith.addf %34, %36 : vector<16x96xf32>
    %c0_21 = arith.constant 0 : index
    %c0_22 = arith.constant 0 : index
    %38 = vector.load %arg14[%c0_21, %c0_22] : memref<32x32xf32, #tpu.memory_space<vmem>>, vector<32x32xf32>
    %39 = vector.extract_strided_slice %37 {offsets = [0, 0], sizes = [8, 96], strides = [1, 1]} : vector<16x96xf32> to vector<8x96xf32>
    %40 = vector.extract_strided_slice %32 {offsets = [0, 0], sizes = [1, 8], strides = [1, 1]} : vector<2x8xf32> to vector<1x8xf32>
    %cst_23 = arith.constant 0.000000e+00 : f32
    %41 = vector.broadcast %cst_23 : f32 to vector<8x32xf32>
    %42 = vector.extract_strided_slice %39 {offsets = [0, 0], sizes = [8, 8], strides = [1, 1]} : vector<8x96xf32> to vector<8x8xf32>
    %43 = vector.extract_strided_slice %39 {offsets = [0, 32], sizes = [8, 8], strides = [1, 1]} : vector<8x96xf32> to vector<8x8xf32>
    %44 = vector.extract_strided_slice %39 {offsets = [0, 64], sizes = [8, 8], strides = [1, 1]} : vector<8x96xf32> to vector<8x8xf32>
    "tpu.trace_start"() <{level = 10 : i32, message = "qd,kd->qk"}> : () -> ()
    %cst_24 = arith.constant dense<0.000000e+00> : vector<8x8xf32>
    %45 = tpu.matmul %42, %43, %cst_24 {dimension_numbers = #tpu.dot_dimension_numbers<[1], [1], [0], [0], [0, 0, 1, 0], [], []>} : vector<8x8xf32>, vector<8x8xf32>, vector<8x8xf32> -> vector<8x8xf32>
    "tpu.trace_stop"() : () -> ()
    %46 = vector.broadcast %40 : vector<1x8xf32> to vector<8x8xf32>
    %47 = arith.addf %45, %46 : vector<8x8xf32>
    %cst_25 = arith.constant dense<0xFF800000> : vector<8xf32>
    %48 = vector.multi_reduction <maximumf>, %47, %cst_25 [1] : vector<8x8xf32> to vector<8xf32>
    %49 = vector.shape_cast %48 : vector<8xf32> to vector<8x1xf32>
    %50 = vector.broadcast %49 : vector<8x1xf32> to vector<8x8xf32>
    %51 = arith.subf %47, %50 : vector<8x8xf32>
    %52 = math.exp %51 : vector<8x8xf32>
    %cst_26 = arith.constant dense<0.000000e+00> : vector<8xf32>
    %53 = vector.multi_reduction <add>, %52, %cst_26 [1] : vector<8x8xf32> to vector<8xf32>
    %54 = vector.shape_cast %53 : vector<8xf32> to vector<8x1xf32>
    %55 = tpu.reciprocal %54 {approx = true} : vector<8x1xf32> -> vector<8x1xf32>
    %56 = vector.broadcast %55 : vector<8x1xf32> to vector<8x8xf32>
    %57 = arith.mulf %52, %56 : vector<8x8xf32>
    %cst_27 = arith.constant dense<0.000000e+00> : vector<8x8xf32>
    %58 = tpu.matmul %57, %44, %cst_27 {dimension_numbers = #tpu.dot_dimension_numbers<[1], [0], [0], [1], [0, 0, 1, 1], [], []>} : vector<8x8xf32>, vector<8x8xf32>, vector<8x8xf32> -> vector<8x8xf32>
    %59 = vector.extract_strided_slice %38 {offsets = [0, 0], sizes = [8, 32], strides = [1, 1]} : vector<32x32xf32> to vector<8x32xf32>
    %cst_28 = arith.constant dense<0.000000e+00> : vector<8x32xf32>
    %60 = tpu.matmul %58, %59, %cst_28 {dimension_numbers = #tpu.dot_dimension_numbers<[1], [0], [0], [1], [0, 0, 1, 1], [], []>} : vector<8x8xf32>, vector<8x32xf32>, vector<8x32xf32> -> vector<8x32xf32>
    %61 = arith.addf %41, %60 : vector<8x32xf32>
    %62 = vector.extract_strided_slice %39 {offsets = [0, 8], sizes = [8, 8], strides = [1, 1]} : vector<8x96xf32> to vector<8x8xf32>
    %63 = vector.extract_strided_slice %39 {offsets = [0, 40], sizes = [8, 8], strides = [1, 1]} : vector<8x96xf32> to vector<8x8xf32>
    %64 = vector.extract_strided_slice %39 {offsets = [0, 72], sizes = [8, 8], strides = [1, 1]} : vector<8x96xf32> to vector<8x8xf32>
    "tpu.trace_start"() <{level = 10 : i32, message = "qd,kd->qk"}> : () -> ()
    %cst_29 = arith.constant dense<0.000000e+00> : vector<8x8xf32>
    %65 = tpu.matmul %62, %63, %cst_29 {dimension_numbers = #tpu.dot_dimension_numbers<[1], [1], [0], [0], [0, 0, 1, 0], [], []>} : vector<8x8xf32>, vector<8x8xf32>, vector<8x8xf32> -> vector<8x8xf32>
    "tpu.trace_stop"() : () -> ()
    %66 = vector.broadcast %40 : vector<1x8xf32> to vector<8x8xf32>
    %67 = arith.addf %65, %66 : vector<8x8xf32>
    %cst_30 = arith.constant dense<0xFF800000> : vector<8xf32>
    %68 = vector.multi_reduction <maximumf>, %67, %cst_30 [1] : vector<8x8xf32> to vector<8xf32>
    %69 = vector.shape_cast %68 : vector<8xf32> to vector<8x1xf32>
    %70 = vector.broadcast %69 : vector<8x1xf32> to vector<8x8xf32>
    %71 = arith.subf %67, %70 : vector<8x8xf32>
    %72 = math.exp %71 : vector<8x8xf32>
    %cst_31 = arith.constant dense<0.000000e+00> : vector<8xf32>
    %73 = vector.multi_reduction <add>, %72, %cst_31 [1] : vector<8x8xf32> to vector<8xf32>
    %74 = vector.shape_cast %73 : vector<8xf32> to vector<8x1xf32>
    %75 = tpu.reciprocal %74 {approx = true} : vector<8x1xf32> -> vector<8x1xf32>
    %76 = vector.broadcast %75 : vector<8x1xf32> to vector<8x8xf32>
    %77 = arith.mulf %72, %76 : vector<8x8xf32>
    %cst_32 = arith.constant dense<0.000000e+00> : vector<8x8xf32>
    %78 = tpu.matmul %77, %64, %cst_32 {dimension_numbers = #tpu.dot_dimension_numbers<[1], [0], [0], [1], [0, 0, 1, 1], [], []>} : vector<8x8xf32>, vector<8x8xf32>, vector<8x8xf32> -> vector<8x8xf32>
    %79 = vector.extract_strided_slice %38 {offsets = [8, 0], sizes = [8, 32], strides = [1, 1]} : vector<32x32xf32> to vector<8x32xf32>
    %cst_33 = arith.constant dense<0.000000e+00> : vector<8x32xf32>
    %80 = tpu.matmul %78, %79, %cst_33 {dimension_numbers = #tpu.dot_dimension_numbers<[1], [0], [0], [1], [0, 0, 1, 1], [], []>} : vector<8x8xf32>, vector<8x32xf32>, vector<8x32xf32> -> vector<8x32xf32>
    %81 = arith.addf %61, %80 : vector<8x32xf32>
    %82 = vector.extract_strided_slice %39 {offsets = [0, 16], sizes = [8, 8], strides = [1, 1]} : vector<8x96xf32> to vector<8x8xf32>
    %83 = vector.extract_strided_slice %39 {offsets = [0, 48], sizes = [8, 8], strides = [1, 1]} : vector<8x96xf32> to vector<8x8xf32>
    %84 = vector.extract_strided_slice %39 {offsets = [0, 80], sizes = [8, 8], strides = [1, 1]} : vector<8x96xf32> to vector<8x8xf32>
    "tpu.trace_start"() <{level = 10 : i32, message = "qd,kd->qk"}> : () -> ()
    %cst_34 = arith.constant dense<0.000000e+00> : vector<8x8xf32>
    %85 = tpu.matmul %82, %83, %cst_34 {dimension_numbers = #tpu.dot_dimension_numbers<[1], [1], [0], [0], [0, 0, 1, 0], [], []>} : vector<8x8xf32>, vector<8x8xf32>, vector<8x8xf32> -> vector<8x8xf32>
    "tpu.trace_stop"() : () -> ()
    %86 = vector.broadcast %40 : vector<1x8xf32> to vector<8x8xf32>
    %87 = arith.addf %85, %86 : vector<8x8xf32>
    %cst_35 = arith.constant dense<0xFF800000> : vector<8xf32>
    %88 = vector.multi_reduction <maximumf>, %87, %cst_35 [1] : vector<8x8xf32> to vector<8xf32>
    %89 = vector.shape_cast %88 : vector<8xf32> to vector<8x1xf32>
    %90 = vector.broadcast %89 : vector<8x1xf32> to vector<8x8xf32>
    %91 = arith.subf %87, %90 : vector<8x8xf32>
    %92 = math.exp %91 : vector<8x8xf32>
    %cst_36 = arith.constant dense<0.000000e+00> : vector<8xf32>
    %93 = vector.multi_reduction <add>, %92, %cst_36 [1] : vector<8x8xf32> to vector<8xf32>
    %94 = vector.shape_cast %93 : vector<8xf32> to vector<8x1xf32>
    %95 = tpu.reciprocal %94 {approx = true} : vector<8x1xf32> -> vector<8x1xf32>
    %96 = vector.broadcast %95 : vector<8x1xf32> to vector<8x8xf32>
    %97 = arith.mulf %92, %96 : vector<8x8xf32>
    %cst_37 = arith.constant dense<0.000000e+00> : vector<8x8xf32>
    %98 = tpu.matmul %97, %84, %cst_37 {dimension_numbers = #tpu.dot_dimension_numbers<[1], [0], [0], [1], [0, 0, 1, 1], [], []>} : vector<8x8xf32>, vector<8x8xf32>, vector<8x8xf32> -> vector<8x8xf32>
    %99 = vector.extract_strided_slice %38 {offsets = [16, 0], sizes = [8, 32], strides = [1, 1]} : vector<32x32xf32> to vector<8x32xf32>
    %cst_38 = arith.constant dense<0.000000e+00> : vector<8x32xf32>
    %100 = tpu.matmul %98, %99, %cst_38 {dimension_numbers = #tpu.dot_dimension_numbers<[1], [0], [0], [1], [0, 0, 1, 1], [], []>} : vector<8x8xf32>, vector<8x32xf32>, vector<8x32xf32> -> vector<8x32xf32>
    %101 = arith.addf %81, %100 : vector<8x32xf32>
    %102 = vector.extract_strided_slice %39 {offsets = [0, 24], sizes = [8, 8], strides = [1, 1]} : vector<8x96xf32> to vector<8x8xf32>
    %103 = vector.extract_strided_slice %39 {offsets = [0, 56], sizes = [8, 8], strides = [1, 1]} : vector<8x96xf32> to vector<8x8xf32>
    %104 = vector.extract_strided_slice %39 {offsets = [0, 88], sizes = [8, 8], strides = [1, 1]} : vector<8x96xf32> to vector<8x8xf32>
    "tpu.trace_start"() <{level = 10 : i32, message = "qd,kd->qk"}> : () -> ()
    %cst_39 = arith.constant dense<0.000000e+00> : vector<8x8xf32>
    %105 = tpu.matmul %102, %103, %cst_39 {dimension_numbers = #tpu.dot_dimension_numbers<[1], [1], [0], [0], [0, 0, 1, 0], [], []>} : vector<8x8xf32>, vector<8x8xf32>, vector<8x8xf32> -> vector<8x8xf32>
    "tpu.trace_stop"() : () -> ()
    %106 = vector.broadcast %40 : vector<1x8xf32> to vector<8x8xf32>
    %107 = arith.addf %105, %106 : vector<8x8xf32>
    %cst_40 = arith.constant dense<0xFF800000> : vector<8xf32>
    %108 = vector.multi_reduction <maximumf>, %107, %cst_40 [1] : vector<8x8xf32> to vector<8xf32>
    %109 = vector.shape_cast %108 : vector<8xf32> to vector<8x1xf32>
    %110 = vector.broadcast %109 : vector<8x1xf32> to vector<8x8xf32>
    %111 = arith.subf %107, %110 : vector<8x8xf32>
    %112 = math.exp %111 : vector<8x8xf32>
    %cst_41 = arith.constant dense<0.000000e+00> : vector<8xf32>
    %113 = vector.multi_reduction <add>, %112, %cst_41 [1] : vector<8x8xf32> to vector<8xf32>
    %114 = vector.shape_cast %113 : vector<8xf32> to vector<8x1xf32>
    %115 = tpu.reciprocal %114 {approx = true} : vector<8x1xf32> -> vector<8x1xf32>
    %116 = vector.broadcast %115 : vector<8x1xf32> to vector<8x8xf32>
    %117 = arith.mulf %112, %116 : vector<8x8xf32>
    %cst_42 = arith.constant dense<0.000000e+00> : vector<8x8xf32>
    %118 = tpu.matmul %117, %104, %cst_42 {dimension_numbers = #tpu.dot_dimension_numbers<[1], [0], [0], [1], [0, 0, 1, 1], [], []>} : vector<8x8xf32>, vector<8x8xf32>, vector<8x8xf32> -> vector<8x8xf32>
    %119 = vector.extract_strided_slice %38 {offsets = [24, 0], sizes = [8, 32], strides = [1, 1]} : vector<32x32xf32> to vector<8x32xf32>
    %cst_43 = arith.constant dense<0.000000e+00> : vector<8x32xf32>
    %120 = tpu.matmul %118, %119, %cst_43 {dimension_numbers = #tpu.dot_dimension_numbers<[1], [0], [0], [1], [0, 0, 1, 1], [], []>} : vector<8x8xf32>, vector<8x32xf32>, vector<8x32xf32> -> vector<8x32xf32>
    %121 = arith.addf %101, %120 : vector<8x32xf32>
    %122 = vector.extract_strided_slice %37 {offsets = [8, 0], sizes = [8, 96], strides = [1, 1]} : vector<16x96xf32> to vector<8x96xf32>
    %123 = vector.extract_strided_slice %32 {offsets = [1, 0], sizes = [1, 8], strides = [1, 1]} : vector<2x8xf32> to vector<1x8xf32>
    %cst_44 = arith.constant 0.000000e+00 : f32
    %124 = vector.broadcast %cst_44 : f32 to vector<8x32xf32>
    %125 = vector.extract_strided_slice %122 {offsets = [0, 0], sizes = [8, 8], strides = [1, 1]} : vector<8x96xf32> to vector<8x8xf32>
    %126 = vector.extract_strided_slice %122 {offsets = [0, 32], sizes = [8, 8], strides = [1, 1]} : vector<8x96xf32> to vector<8x8xf32>
    %127 = vector.extract_strided_slice %122 {offsets = [0, 64], sizes = [8, 8], strides = [1, 1]} : vector<8x96xf32> to vector<8x8xf32>
    "tpu.trace_start"() <{level = 10 : i32, message = "qd,kd->qk"}> : () -> ()
    %cst_45 = arith.constant dense<0.000000e+00> : vector<8x8xf32>
    %128 = tpu.matmul %125, %126, %cst_45 {dimension_numbers = #tpu.dot_dimension_numbers<[1], [1], [0], [0], [0, 0, 1, 0], [], []>} : vector<8x8xf32>, vector<8x8xf32>, vector<8x8xf32> -> vector<8x8xf32>
    "tpu.trace_stop"() : () -> ()
    %129 = vector.broadcast %123 : vector<1x8xf32> to vector<8x8xf32>
    %130 = arith.addf %128, %129 : vector<8x8xf32>
    %cst_46 = arith.constant dense<0xFF800000> : vector<8xf32>
    %131 = vector.multi_reduction <maximumf>, %130, %cst_46 [1] : vector<8x8xf32> to vector<8xf32>
    %132 = vector.shape_cast %131 : vector<8xf32> to vector<8x1xf32>
    %133 = vector.broadcast %132 : vector<8x1xf32> to vector<8x8xf32>
    %134 = arith.subf %130, %133 : vector<8x8xf32>
    %135 = math.exp %134 : vector<8x8xf32>
    %cst_47 = arith.constant dense<0.000000e+00> : vector<8xf32>
    %136 = vector.multi_reduction <add>, %135, %cst_47 [1] : vector<8x8xf32> to vector<8xf32>
    %137 = vector.shape_cast %136 : vector<8xf32> to vector<8x1xf32>
    %138 = tpu.reciprocal %137 {approx = true} : vector<8x1xf32> -> vector<8x1xf32>
    %139 = vector.broadcast %138 : vector<8x1xf32> to vector<8x8xf32>
    %140 = arith.mulf %135, %139 : vector<8x8xf32>
    %cst_48 = arith.constant dense<0.000000e+00> : vector<8x8xf32>
    %141 = tpu.matmul %140, %127, %cst_48 {dimension_numbers = #tpu.dot_dimension_numbers<[1], [0], [0], [1], [0, 0, 1, 1], [], []>} : vector<8x8xf32>, vector<8x8xf32>, vector<8x8xf32> -> vector<8x8xf32>
    %142 = vector.extract_strided_slice %38 {offsets = [0, 0], sizes = [8, 32], strides = [1, 1]} : vector<32x32xf32> to vector<8x32xf32>
    %cst_49 = arith.constant dense<0.000000e+00> : vector<8x32xf32>
    %143 = tpu.matmul %141, %142, %cst_49 {dimension_numbers = #tpu.dot_dimension_numbers<[1], [0], [0], [1], [0, 0, 1, 1], [], []>} : vector<8x8xf32>, vector<8x32xf32>, vector<8x32xf32> -> vector<8x32xf32>
    %144 = arith.addf %124, %143 : vector<8x32xf32>
    %145 = vector.extract_strided_slice %122 {offsets = [0, 8], sizes = [8, 8], strides = [1, 1]} : vector<8x96xf32> to vector<8x8xf32>
    %146 = vector.extract_strided_slice %122 {offsets = [0, 40], sizes = [8, 8], strides = [1, 1]} : vector<8x96xf32> to vector<8x8xf32>
    %147 = vector.extract_strided_slice %122 {offsets = [0, 72], sizes = [8, 8], strides = [1, 1]} : vector<8x96xf32> to vector<8x8xf32>
    "tpu.trace_start"() <{level = 10 : i32, message = "qd,kd->qk"}> : () -> ()
    %cst_50 = arith.constant dense<0.000000e+00> : vector<8x8xf32>
    %148 = tpu.matmul %145, %146, %cst_50 {dimension_numbers = #tpu.dot_dimension_numbers<[1], [1], [0], [0], [0, 0, 1, 0], [], []>} : vector<8x8xf32>, vector<8x8xf32>, vector<8x8xf32> -> vector<8x8xf32>
    "tpu.trace_stop"() : () -> ()
    %149 = vector.broadcast %123 : vector<1x8xf32> to vector<8x8xf32>
    %150 = arith.addf %148, %149 : vector<8x8xf32>
    %cst_51 = arith.constant dense<0xFF800000> : vector<8xf32>
    %151 = vector.multi_reduction <maximumf>, %150, %cst_51 [1] : vector<8x8xf32> to vector<8xf32>
    %152 = vector.shape_cast %151 : vector<8xf32> to vector<8x1xf32>
    %153 = vector.broadcast %152 : vector<8x1xf32> to vector<8x8xf32>
    %154 = arith.subf %150, %153 : vector<8x8xf32>
    %155 = math.exp %154 : vector<8x8xf32>
    %cst_52 = arith.constant dense<0.000000e+00> : vector<8xf32>
    %156 = vector.multi_reduction <add>, %155, %cst_52 [1] : vector<8x8xf32> to vector<8xf32>
    %157 = vector.shape_cast %156 : vector<8xf32> to vector<8x1xf32>
    %158 = tpu.reciprocal %157 {approx = true} : vector<8x1xf32> -> vector<8x1xf32>
    %159 = vector.broadcast %158 : vector<8x1xf32> to vector<8x8xf32>
    %160 = arith.mulf %155, %159 : vector<8x8xf32>
    %cst_53 = arith.constant dense<0.000000e+00> : vector<8x8xf32>
    %161 = tpu.matmul %160, %147, %cst_53 {dimension_numbers = #tpu.dot_dimension_numbers<[1], [0], [0], [1], [0, 0, 1, 1], [], []>} : vector<8x8xf32>, vector<8x8xf32>, vector<8x8xf32> -> vector<8x8xf32>
    %162 = vector.extract_strided_slice %38 {offsets = [8, 0], sizes = [8, 32], strides = [1, 1]} : vector<32x32xf32> to vector<8x32xf32>
    %cst_54 = arith.constant dense<0.000000e+00> : vector<8x32xf32>
    %163 = tpu.matmul %161, %162, %cst_54 {dimension_numbers = #tpu.dot_dimension_numbers<[1], [0], [0], [1], [0, 0, 1, 1], [], []>} : vector<8x8xf32>, vector<8x32xf32>, vector<8x32xf32> -> vector<8x32xf32>
    %164 = arith.addf %144, %163 : vector<8x32xf32>
    %165 = vector.extract_strided_slice %122 {offsets = [0, 16], sizes = [8, 8], strides = [1, 1]} : vector<8x96xf32> to vector<8x8xf32>
    %166 = vector.extract_strided_slice %122 {offsets = [0, 48], sizes = [8, 8], strides = [1, 1]} : vector<8x96xf32> to vector<8x8xf32>
    %167 = vector.extract_strided_slice %122 {offsets = [0, 80], sizes = [8, 8], strides = [1, 1]} : vector<8x96xf32> to vector<8x8xf32>
    "tpu.trace_start"() <{level = 10 : i32, message = "qd,kd->qk"}> : () -> ()
    %cst_55 = arith.constant dense<0.000000e+00> : vector<8x8xf32>
    %168 = tpu.matmul %165, %166, %cst_55 {dimension_numbers = #tpu.dot_dimension_numbers<[1], [1], [0], [0], [0, 0, 1, 0], [], []>} : vector<8x8xf32>, vector<8x8xf32>, vector<8x8xf32> -> vector<8x8xf32>
    "tpu.trace_stop"() : () -> ()
    %169 = vector.broadcast %123 : vector<1x8xf32> to vector<8x8xf32>
    %170 = arith.addf %168, %169 : vector<8x8xf32>
    %cst_56 = arith.constant dense<0xFF800000> : vector<8xf32>
    %171 = vector.multi_reduction <maximumf>, %170, %cst_56 [1] : vector<8x8xf32> to vector<8xf32>
    %172 = vector.shape_cast %171 : vector<8xf32> to vector<8x1xf32>
    %173 = vector.broadcast %172 : vector<8x1xf32> to vector<8x8xf32>
    %174 = arith.subf %170, %173 : vector<8x8xf32>
    %175 = math.exp %174 : vector<8x8xf32>
    %cst_57 = arith.constant dense<0.000000e+00> : vector<8xf32>
    %176 = vector.multi_reduction <add>, %175, %cst_57 [1] : vector<8x8xf32> to vector<8xf32>
    %177 = vector.shape_cast %176 : vector<8xf32> to vector<8x1xf32>
    %178 = tpu.reciprocal %177 {approx = true} : vector<8x1xf32> -> vector<8x1xf32>
    %179 = vector.broadcast %178 : vector<8x1xf32> to vector<8x8xf32>
    %180 = arith.mulf %175, %179 : vector<8x8xf32>
    %cst_58 = arith.constant dense<0.000000e+00> : vector<8x8xf32>
    %181 = tpu.matmul %180, %167, %cst_58 {dimension_numbers = #tpu.dot_dimension_numbers<[1], [0], [0], [1], [0, 0, 1, 1], [], []>} : vector<8x8xf32>, vector<8x8xf32>, vector<8x8xf32> -> vector<8x8xf32>
    %182 = vector.extract_strided_slice %38 {offsets = [16, 0], sizes = [8, 32], strides = [1, 1]} : vector<32x32xf32> to vector<8x32xf32>
    %cst_59 = arith.constant dense<0.000000e+00> : vector<8x32xf32>
    %183 = tpu.matmul %181, %182, %cst_59 {dimension_numbers = #tpu.dot_dimension_numbers<[1], [0], [0], [1], [0, 0, 1, 1], [], []>} : vector<8x8xf32>, vector<8x32xf32>, vector<8x32xf32> -> vector<8x32xf32>
    %184 = arith.addf %164, %183 : vector<8x32xf32>
    %185 = vector.extract_strided_slice %122 {offsets = [0, 24], sizes = [8, 8], strides = [1, 1]} : vector<8x96xf32> to vector<8x8xf32>
    %186 = vector.extract_strided_slice %122 {offsets = [0, 56], sizes = [8, 8], strides = [1, 1]} : vector<8x96xf32> to vector<8x8xf32>
    %187 = vector.extract_strided_slice %122 {offsets = [0, 88], sizes = [8, 8], strides = [1, 1]} : vector<8x96xf32> to vector<8x8xf32>
    "tpu.trace_start"() <{level = 10 : i32, message = "qd,kd->qk"}> : () -> ()
    %cst_60 = arith.constant dense<0.000000e+00> : vector<8x8xf32>
    %188 = tpu.matmul %185, %186, %cst_60 {dimension_numbers = #tpu.dot_dimension_numbers<[1], [1], [0], [0], [0, 0, 1, 0], [], []>} : vector<8x8xf32>, vector<8x8xf32>, vector<8x8xf32> -> vector<8x8xf32>
    "tpu.trace_stop"() : () -> ()
    %189 = vector.broadcast %123 : vector<1x8xf32> to vector<8x8xf32>
    %190 = arith.addf %188, %189 : vector<8x8xf32>
    %cst_61 = arith.constant dense<0xFF800000> : vector<8xf32>
    %191 = vector.multi_reduction <maximumf>, %190, %cst_61 [1] : vector<8x8xf32> to vector<8xf32>
    %192 = vector.shape_cast %191 : vector<8xf32> to vector<8x1xf32>
    %193 = vector.broadcast %192 : vector<8x1xf32> to vector<8x8xf32>
    %194 = arith.subf %190, %193 : vector<8x8xf32>
    %195 = math.exp %194 : vector<8x8xf32>
    %cst_62 = arith.constant dense<0.000000e+00> : vector<8xf32>
    %196 = vector.multi_reduction <add>, %195, %cst_62 [1] : vector<8x8xf32> to vector<8xf32>
    %197 = vector.shape_cast %196 : vector<8xf32> to vector<8x1xf32>
    %198 = tpu.reciprocal %197 {approx = true} : vector<8x1xf32> -> vector<8x1xf32>
    %199 = vector.broadcast %198 : vector<8x1xf32> to vector<8x8xf32>
    %200 = arith.mulf %195, %199 : vector<8x8xf32>
    %cst_63 = arith.constant dense<0.000000e+00> : vector<8x8xf32>
    %201 = tpu.matmul %200, %187, %cst_63 {dimension_numbers = #tpu.dot_dimension_numbers<[1], [0], [0], [1], [0, 0, 1, 1], [], []>} : vector<8x8xf32>, vector<8x8xf32>, vector<8x8xf32> -> vector<8x8xf32>
    %202 = vector.extract_strided_slice %38 {offsets = [24, 0], sizes = [8, 32], strides = [1, 1]} : vector<32x32xf32> to vector<8x32xf32>
    %cst_64 = arith.constant dense<0.000000e+00> : vector<8x32xf32>
    %203 = tpu.matmul %201, %202, %cst_64 {dimension_numbers = #tpu.dot_dimension_numbers<[1], [0], [0], [1], [0, 0, 1, 1], [], []>} : vector<8x8xf32>, vector<8x32xf32>, vector<8x32xf32> -> vector<8x32xf32>
    %204 = arith.addf %184, %203 : vector<8x32xf32>
    %205 = tpu.concatenate %121, %204 in 0 : vector<8x32xf32>, vector<8x32xf32> -> vector<16x32xf32>
    %c0_65 = arith.constant 0 : index
    %c0_66 = arith.constant 0 : index
    %206 = vector.load %arg15[%c0_65, %c0_66] : memref<1x32xf32, #tpu.memory_space<vmem>>, vector<1x32xf32>
    %207 = vector.broadcast %206 : vector<1x32xf32> to vector<16x32xf32>
    %208 = arith.addf %205, %207 : vector<16x32xf32>
    %209 = arith.addf %31, %208 : vector<16x32xf32>
    %c0_67 = arith.constant 0 : index
    %c0_68 = arith.constant 0 : index
    %210 = vector.load %arg16[%c0_67, %c0_68] : memref<1x32xf32, #tpu.memory_space<vmem>>, vector<1x32xf32>
    %c0_69 = arith.constant 0 : index
    %c0_70 = arith.constant 0 : index
    %211 = vector.load %arg17[%c0_69, %c0_70] : memref<1x32xf32, #tpu.memory_space<vmem>>, vector<1x32xf32>
    %cst_71 = arith.constant dense<0.000000e+00> : vector<16xf32>
    %212 = vector.multi_reduction <add>, %209, %cst_71 [1] : vector<16x32xf32> to vector<16xf32>
    %213 = vector.shape_cast %212 : vector<16xf32> to vector<16x1xf32>
    %cst_72 = arith.constant 3.200000e+01 : f32
    %214 = vector.broadcast %cst_72 : f32 to vector<16x1xf32>
    %215 = arith.divf %213, %214 : vector<16x1xf32>
    %216 = vector.broadcast %215 : vector<16x1xf32> to vector<16x32xf32>
    %217 = arith.subf %209, %216 : vector<16x32xf32>
    %218 = arith.mulf %217, %217 : vector<16x32xf32>
    %cst_73 = arith.constant dense<0.000000e+00> : vector<16xf32>
    %219 = vector.multi_reduction <add>, %218, %cst_73 [1] : vector<16x32xf32> to vector<16xf32>
    %220 = vector.shape_cast %219 : vector<16xf32> to vector<16x1xf32>
    %cst_74 = arith.constant 3.200000e+01 : f32
    %221 = vector.broadcast %cst_74 : f32 to vector<16x1xf32>
    %222 = arith.divf %220, %221 : vector<16x1xf32>
    %cst_75 = arith.constant 9.99999974E-6 : f32
    %223 = vector.broadcast %cst_75 : f32 to vector<16x1xf32>
    %224 = arith.addf %222, %223 : vector<16x1xf32>
    %225 = math.rsqrt %224 : vector<16x1xf32>
    %226 = vector.broadcast %225 : vector<16x1xf32> to vector<16x32xf32>
    %227 = arith.mulf %217, %226 : vector<16x32xf32>
    %228 = vector.broadcast %210 : vector<1x32xf32> to vector<16x32xf32>
    %229 = arith.mulf %227, %228 : vector<16x32xf32>
    %230 = vector.broadcast %211 : vector<1x32xf32> to vector<16x32xf32>
    %231 = arith.addf %229, %230 : vector<16x32xf32>
    %c0_76 = arith.constant 0 : index
    %c0_77 = arith.constant 0 : index
    %232 = vector.load %arg18[%c0_76, %c0_77] : memref<32x128xf32, #tpu.memory_space<vmem>>, vector<32x128xf32>
    %cst_78 = arith.constant dense<0.000000e+00> : vector<16x128xf32>
    %233 = tpu.matmul %231, %232, %cst_78 {dimension_numbers = #tpu.dot_dimension_numbers<[1], [0], [0], [1], [0, 0, 1, 1], [], []>} : vector<16x32xf32>, vector<32x128xf32>, vector<16x128xf32> -> vector<16x128xf32>
    %c0_79 = arith.constant 0 : index
    %c0_80 = arith.constant 0 : index
    %234 = vector.load %arg19[%c0_79, %c0_80] : memref<1x128xf32, #tpu.memory_space<vmem>>, vector<1x128xf32>
    %235 = vector.broadcast %234 : vector<1x128xf32> to vector<16x128xf32>
    %236 = arith.addf %233, %235 : vector<16x128xf32>
    %cst_81 = arith.constant 5.000000e-01 : f32
    %237 = vector.broadcast %cst_81 : f32 to vector<16x128xf32>
    %238 = arith.mulf %237, %236 : vector<16x128xf32>
    %cst_82 = arith.constant 4.471500e-02 : f32
    %239 = vector.broadcast %cst_82 : f32 to vector<16x128xf32>
    %240 = arith.mulf %239, %236 : vector<16x128xf32>
    %241 = arith.mulf %240, %236 : vector<16x128xf32>
    %242 = arith.mulf %241, %236 : vector<16x128xf32>
    %243 = arith.addf %236, %242 : vector<16x128xf32>
    %cst_83 = arith.constant 0.797884583 : f32
    %244 = vector.broadcast %cst_83 : f32 to vector<16x128xf32>
    %245 = arith.mulf %244, %243 : vector<16x128xf32>
    %246 = math.tanh %245 : vector<16x128xf32>
    %cst_84 = arith.constant 1.000000e+00 : f32
    %247 = vector.broadcast %cst_84 : f32 to vector<16x128xf32>
    %248 = arith.addf %247, %246 : vector<16x128xf32>
    %249 = arith.mulf %238, %248 : vector<16x128xf32>
    %c0_85 = arith.constant 0 : index
    %c0_86 = arith.constant 0 : index
    %250 = vector.load %arg20[%c0_85, %c0_86] : memref<128x32xf32, #tpu.memory_space<vmem>>, vector<128x32xf32>
    %cst_87 = arith.constant dense<0.000000e+00> : vector<16x32xf32>
    %251 = tpu.matmul %249, %250, %cst_87 {dimension_numbers = #tpu.dot_dimension_numbers<[1], [0], [0], [1], [0, 0, 1, 1], [], []>} : vector<16x128xf32>, vector<128x32xf32>, vector<16x32xf32> -> vector<16x32xf32>
    %c0_88 = arith.constant 0 : index
    %c0_89 = arith.constant 0 : index
    %252 = vector.load %arg21[%c0_88, %c0_89] : memref<1x32xf32, #tpu.memory_space<vmem>>, vector<1x32xf32>
    %253 = vector.broadcast %252 : vector<1x32xf32> to vector<16x32xf32>
    %254 = arith.addf %251, %253 : vector<16x32xf32>
    %255 = arith.addf %231, %254 : vector<16x32xf32>
    %c0_90 = arith.constant 0 : index
    %c0_91 = arith.constant 0 : index
    %256 = vector.load %arg22[%c0_90, %c0_91] : memref<1x32xf32, #tpu.memory_space<vmem>>, vector<1x32xf32>
    %c0_92 = arith.constant 0 : index
    %c0_93 = arith.constant 0 : index
    %257 = vector.load %arg23[%c0_92, %c0_93] : memref<1x32xf32, #tpu.memory_space<vmem>>, vector<1x32xf32>
    %cst_94 = arith.constant dense<0.000000e+00> : vector<16xf32>
    %258 = vector.multi_reduction <add>, %255, %cst_94 [1] : vector<16x32xf32> to vector<16xf32>
    %259 = vector.shape_cast %258 : vector<16xf32> to vector<16x1xf32>
    %cst_95 = arith.constant 3.200000e+01 : f32
    %260 = vector.broadcast %cst_95 : f32 to vector<16x1xf32>
    %261 = arith.divf %259, %260 : vector<16x1xf32>
    %262 = vector.broadcast %261 : vector<16x1xf32> to vector<16x32xf32>
    %263 = arith.subf %255, %262 : vector<16x32xf32>
    %264 = arith.mulf %263, %263 : vector<16x32xf32>
    %cst_96 = arith.constant dense<0.000000e+00> : vector<16xf32>
    %265 = vector.multi_reduction <add>, %264, %cst_96 [1] : vector<16x32xf32> to vector<16xf32>
    %266 = vector.shape_cast %265 : vector<16xf32> to vector<16x1xf32>
    %cst_97 = arith.constant 3.200000e+01 : f32
    %267 = vector.broadcast %cst_97 : f32 to vector<16x1xf32>
    %268 = arith.divf %266, %267 : vector<16x1xf32>
    %cst_98 = arith.constant 9.99999974E-6 : f32
    %269 = vector.broadcast %cst_98 : f32 to vector<16x1xf32>
    %270 = arith.addf %268, %269 : vector<16x1xf32>
    %271 = math.rsqrt %270 : vector<16x1xf32>
    %272 = vector.broadcast %271 : vector<16x1xf32> to vector<16x32xf32>
    %273 = arith.mulf %263, %272 : vector<16x32xf32>
    %274 = vector.broadcast %256 : vector<1x32xf32> to vector<16x32xf32>
    %275 = arith.mulf %273, %274 : vector<16x32xf32>
    %276 = vector.broadcast %257 : vector<1x32xf32> to vector<16x32xf32>
    %277 = arith.addf %275, %276 : vector<16x32xf32>
    %c0_99 = arith.constant 0 : index
    %c0_100 = arith.constant 0 : index
    %278 = vector.load %arg24[%c0_99, %c0_100] : memref<32x96xf32, #tpu.memory_space<vmem>>, vector<32x96xf32>
    %cst_101 = arith.constant dense<0.000000e+00> : vector<16x96xf32>
    %279 = tpu.matmul %277, %278, %cst_101 {dimension_numbers = #tpu.dot_dimension_numbers<[1], [0], [0], [1], [0, 0, 1, 1], [], []>} : vector<16x32xf32>, vector<32x96xf32>, vector<16x96xf32> -> vector<16x96xf32>
    %c0_102 = arith.constant 0 : index
    %c0_103 = arith.constant 0 : index
    %280 = vector.load %arg25[%c0_102, %c0_103] : memref<1x96xf32, #tpu.memory_space<vmem>>, vector<1x96xf32>
    %281 = vector.broadcast %280 : vector<1x96xf32> to vector<16x96xf32>
    %282 = arith.addf %279, %281 : vector<16x96xf32>
    %c0_104 = arith.constant 0 : index
    %c0_105 = arith.constant 0 : index
    %283 = vector.load %arg26[%c0_104, %c0_105] : memref<32x32xf32, #tpu.memory_space<vmem>>, vector<32x32xf32>
    %284 = vector.extract_strided_slice %282 {offsets = [0, 0], sizes = [8, 96], strides = [1, 1]} : vector<16x96xf32> to vector<8x96xf32>
    %285 = vector.extract_strided_slice %32 {offsets = [0, 0], sizes = [1, 8], strides = [1, 1]} : vector<2x8xf32> to vector<1x8xf32>
    %cst_106 = arith.constant 0.000000e+00 : f32
    %286 = vector.broadcast %cst_106 : f32 to vector<8x32xf32>
    %287 = vector.extract_strided_slice %284 {offsets = [0, 0], sizes = [8, 8], strides = [1, 1]} : vector<8x96xf32> to vector<8x8xf32>
    %288 = vector.extract_strided_slice %284 {offsets = [0, 32], sizes = [8, 8], strides = [1, 1]} : vector<8x96xf32> to vector<8x8xf32>
    %289 = vector.extract_strided_slice %284 {offsets = [0, 64], sizes = [8, 8], strides = [1, 1]} : vector<8x96xf32> to vector<8x8xf32>
    "tpu.trace_start"() <{level = 10 : i32, message = "qd,kd->qk"}> : () -> ()
    %cst_107 = arith.constant dense<0.000000e+00> : vector<8x8xf32>
    %290 = tpu.matmul %287, %288, %cst_107 {dimension_numbers = #tpu.dot_dimension_numbers<[1], [1], [0], [0], [0, 0, 1, 0], [], []>} : vector<8x8xf32>, vector<8x8xf32>, vector<8x8xf32> -> vector<8x8xf32>
    "tpu.trace_stop"() : () -> ()
    %291 = vector.broadcast %285 : vector<1x8xf32> to vector<8x8xf32>
    %292 = arith.addf %290, %291 : vector<8x8xf32>
    %cst_108 = arith.constant dense<0xFF800000> : vector<8xf32>
    %293 = vector.multi_reduction <maximumf>, %292, %cst_108 [1] : vector<8x8xf32> to vector<8xf32>
    %294 = vector.shape_cast %293 : vector<8xf32> to vector<8x1xf32>
    %295 = vector.broadcast %294 : vector<8x1xf32> to vector<8x8xf32>
    %296 = arith.subf %292, %295 : vector<8x8xf32>
    %297 = math.exp %296 : vector<8x8xf32>
    %cst_109 = arith.constant dense<0.000000e+00> : vector<8xf32>
    %298 = vector.multi_reduction <add>, %297, %cst_109 [1] : vector<8x8xf32> to vector<8xf32>
    %299 = vector.shape_cast %298 : vector<8xf32> to vector<8x1xf32>
    %300 = tpu.reciprocal %299 {approx = true} : vector<8x1xf32> -> vector<8x1xf32>
    %301 = vector.broadcast %300 : vector<8x1xf32> to vector<8x8xf32>
    %302 = arith.mulf %297, %301 : vector<8x8xf32>
    %cst_110 = arith.constant dense<0.000000e+00> : vector<8x8xf32>
    %303 = tpu.matmul %302, %289, %cst_110 {dimension_numbers = #tpu.dot_dimension_numbers<[1], [0], [0], [1], [0, 0, 1, 1], [], []>} : vector<8x8xf32>, vector<8x8xf32>, vector<8x8xf32> -> vector<8x8xf32>
    %304 = vector.extract_strided_slice %283 {offsets = [0, 0], sizes = [8, 32], strides = [1, 1]} : vector<32x32xf32> to vector<8x32xf32>
    %cst_111 = arith.constant dense<0.000000e+00> : vector<8x32xf32>
    %305 = tpu.matmul %303, %304, %cst_111 {dimension_numbers = #tpu.dot_dimension_numbers<[1], [0], [0], [1], [0, 0, 1, 1], [], []>} : vector<8x8xf32>, vector<8x32xf32>, vector<8x32xf32> -> vector<8x32xf32>
    %306 = arith.addf %286, %305 : vector<8x32xf32>
    %307 = vector.extract_strided_slice %284 {offsets = [0, 8], sizes = [8, 8], strides = [1, 1]} : vector<8x96xf32> to vector<8x8xf32>
    %308 = vector.extract_strided_slice %284 {offsets = [0, 40], sizes = [8, 8], strides = [1, 1]} : vector<8x96xf32> to vector<8x8xf32>
    %309 = vector.extract_strided_slice %284 {offsets = [0, 72], sizes = [8, 8], strides = [1, 1]} : vector<8x96xf32> to vector<8x8xf32>
    "tpu.trace_start"() <{level = 10 : i32, message = "qd,kd->qk"}> : () -> ()
    %cst_112 = arith.constant dense<0.000000e+00> : vector<8x8xf32>
    %310 = tpu.matmul %307, %308, %cst_112 {dimension_numbers = #tpu.dot_dimension_numbers<[1], [1], [0], [0], [0, 0, 1, 0], [], []>} : vector<8x8xf32>, vector<8x8xf32>, vector<8x8xf32> -> vector<8x8xf32>
    "tpu.trace_stop"() : () -> ()
    %311 = vector.broadcast %285 : vector<1x8xf32> to vector<8x8xf32>
    %312 = arith.addf %310, %311 : vector<8x8xf32>
    %cst_113 = arith.constant dense<0xFF800000> : vector<8xf32>
    %313 = vector.multi_reduction <maximumf>, %312, %cst_113 [1] : vector<8x8xf32> to vector<8xf32>
    %314 = vector.shape_cast %313 : vector<8xf32> to vector<8x1xf32>
    %315 = vector.broadcast %314 : vector<8x1xf32> to vector<8x8xf32>
    %316 = arith.subf %312, %315 : vector<8x8xf32>
    %317 = math.exp %316 : vector<8x8xf32>
    %cst_114 = arith.constant dense<0.000000e+00> : vector<8xf32>
    %318 = vector.multi_reduction <add>, %317, %cst_114 [1] : vector<8x8xf32> to vector<8xf32>
    %319 = vector.shape_cast %318 : vector<8xf32> to vector<8x1xf32>
    %320 = tpu.reciprocal %319 {approx = true} : vector<8x1xf32> -> vector<8x1xf32>
    %321 = vector.broadcast %320 : vector<8x1xf32> to vector<8x8xf32>
    %322 = arith.mulf %317, %321 : vector<8x8xf32>
    %cst_115 = arith.constant dense<0.000000e+00> : vector<8x8xf32>
    %323 = tpu.matmul %322, %309, %cst_115 {dimension_numbers = #tpu.dot_dimension_numbers<[1], [0], [0], [1], [0, 0, 1, 1], [], []>} : vector<8x8xf32>, vector<8x8xf32>, vector<8x8xf32> -> vector<8x8xf32>
    %324 = vector.extract_strided_slice %283 {offsets = [8, 0], sizes = [8, 32], strides = [1, 1]} : vector<32x32xf32> to vector<8x32xf32>
    %cst_116 = arith.constant dense<0.000000e+00> : vector<8x32xf32>
    %325 = tpu.matmul %323, %324, %cst_116 {dimension_numbers = #tpu.dot_dimension_numbers<[1], [0], [0], [1], [0, 0, 1, 1], [], []>} : vector<8x8xf32>, vector<8x32xf32>, vector<8x32xf32> -> vector<8x32xf32>
    %326 = arith.addf %306, %325 : vector<8x32xf32>
    %327 = vector.extract_strided_slice %284 {offsets = [0, 16], sizes = [8, 8], strides = [1, 1]} : vector<8x96xf32> to vector<8x8xf32>
    %328 = vector.extract_strided_slice %284 {offsets = [0, 48], sizes = [8, 8], strides = [1, 1]} : vector<8x96xf32> to vector<8x8xf32>
    %329 = vector.extract_strided_slice %284 {offsets = [0, 80], sizes = [8, 8], strides = [1, 1]} : vector<8x96xf32> to vector<8x8xf32>
    "tpu.trace_start"() <{level = 10 : i32, message = "qd,kd->qk"}> : () -> ()
    %cst_117 = arith.constant dense<0.000000e+00> : vector<8x8xf32>
    %330 = tpu.matmul %327, %328, %cst_117 {dimension_numbers = #tpu.dot_dimension_numbers<[1], [1], [0], [0], [0, 0, 1, 0], [], []>} : vector<8x8xf32>, vector<8x8xf32>, vector<8x8xf32> -> vector<8x8xf32>
    "tpu.trace_stop"() : () -> ()
    %331 = vector.broadcast %285 : vector<1x8xf32> to vector<8x8xf32>
    %332 = arith.addf %330, %331 : vector<8x8xf32>
    %cst_118 = arith.constant dense<0xFF800000> : vector<8xf32>
    %333 = vector.multi_reduction <maximumf>, %332, %cst_118 [1] : vector<8x8xf32> to vector<8xf32>
    %334 = vector.shape_cast %333 : vector<8xf32> to vector<8x1xf32>
    %335 = vector.broadcast %334 : vector<8x1xf32> to vector<8x8xf32>
    %336 = arith.subf %332, %335 : vector<8x8xf32>
    %337 = math.exp %336 : vector<8x8xf32>
    %cst_119 = arith.constant dense<0.000000e+00> : vector<8xf32>
    %338 = vector.multi_reduction <add>, %337, %cst_119 [1] : vector<8x8xf32> to vector<8xf32>
    %339 = vector.shape_cast %338 : vector<8xf32> to vector<8x1xf32>
    %340 = tpu.reciprocal %339 {approx = true} : vector<8x1xf32> -> vector<8x1xf32>
    %341 = vector.broadcast %340 : vector<8x1xf32> to vector<8x8xf32>
    %342 = arith.mulf %337, %341 : vector<8x8xf32>
    %cst_120 = arith.constant dense<0.000000e+00> : vector<8x8xf32>
    %343 = tpu.matmul %342, %329, %cst_120 {dimension_numbers = #tpu.dot_dimension_numbers<[1], [0], [0], [1], [0, 0, 1, 1], [], []>} : vector<8x8xf32>, vector<8x8xf32>, vector<8x8xf32> -> vector<8x8xf32>
    %344 = vector.extract_strided_slice %283 {offsets = [16, 0], sizes = [8, 32], strides = [1, 1]} : vector<32x32xf32> to vector<8x32xf32>
    %cst_121 = arith.constant dense<0.000000e+00> : vector<8x32xf32>
    %345 = tpu.matmul %343, %344, %cst_121 {dimension_numbers = #tpu.dot_dimension_numbers<[1], [0], [0], [1], [0, 0, 1, 1], [], []>} : vector<8x8xf32>, vector<8x32xf32>, vector<8x32xf32> -> vector<8x32xf32>
    %346 = arith.addf %326, %345 : vector<8x32xf32>
    %347 = vector.extract_strided_slice %284 {offsets = [0, 24], sizes = [8, 8], strides = [1, 1]} : vector<8x96xf32> to vector<8x8xf32>
    %348 = vector.extract_strided_slice %284 {offsets = [0, 56], sizes = [8, 8], strides = [1, 1]} : vector<8x96xf32> to vector<8x8xf32>
    %349 = vector.extract_strided_slice %284 {offsets = [0, 88], sizes = [8, 8], strides = [1, 1]} : vector<8x96xf32> to vector<8x8xf32>
    "tpu.trace_start"() <{level = 10 : i32, message = "qd,kd->qk"}> : () -> ()
    %cst_122 = arith.constant dense<0.000000e+00> : vector<8x8xf32>
    %350 = tpu.matmul %347, %348, %cst_122 {dimension_numbers = #tpu.dot_dimension_numbers<[1], [1], [0], [0], [0, 0, 1, 0], [], []>} : vector<8x8xf32>, vector<8x8xf32>, vector<8x8xf32> -> vector<8x8xf32>
    "tpu.trace_stop"() : () -> ()
    %351 = vector.broadcast %285 : vector<1x8xf32> to vector<8x8xf32>
    %352 = arith.addf %350, %351 : vector<8x8xf32>
    %cst_123 = arith.constant dense<0xFF800000> : vector<8xf32>
    %353 = vector.multi_reduction <maximumf>, %352, %cst_123 [1] : vector<8x8xf32> to vector<8xf32>
    %354 = vector.shape_cast %353 : vector<8xf32> to vector<8x1xf32>
    %355 = vector.broadcast %354 : vector<8x1xf32> to vector<8x8xf32>
    %356 = arith.subf %352, %355 : vector<8x8xf32>
    %357 = math.exp %356 : vector<8x8xf32>
    %cst_124 = arith.constant dense<0.000000e+00> : vector<8xf32>
    %358 = vector.multi_reduction <add>, %357, %cst_124 [1] : vector<8x8xf32> to vector<8xf32>
    %359 = vector.shape_cast %358 : vector<8xf32> to vector<8x1xf32>
    %360 = tpu.reciprocal %359 {approx = true} : vector<8x1xf32> -> vector<8x1xf32>
    %361 = vector.broadcast %360 : vector<8x1xf32> to vector<8x8xf32>
    %362 = arith.mulf %357, %361 : vector<8x8xf32>
    %cst_125 = arith.constant dense<0.000000e+00> : vector<8x8xf32>
    %363 = tpu.matmul %362, %349, %cst_125 {dimension_numbers = #tpu.dot_dimension_numbers<[1], [0], [0], [1], [0, 0, 1, 1], [], []>} : vector<8x8xf32>, vector<8x8xf32>, vector<8x8xf32> -> vector<8x8xf32>
    %364 = vector.extract_strided_slice %283 {offsets = [24, 0], sizes = [8, 32], strides = [1, 1]} : vector<32x32xf32> to vector<8x32xf32>
    %cst_126 = arith.constant dense<0.000000e+00> : vector<8x32xf32>
    %365 = tpu.matmul %363, %364, %cst_126 {dimension_numbers = #tpu.dot_dimension_numbers<[1], [0], [0], [1], [0, 0, 1, 1], [], []>} : vector<8x8xf32>, vector<8x32xf32>, vector<8x32xf32> -> vector<8x32xf32>
    %366 = arith.addf %346, %365 : vector<8x32xf32>
    %367 = vector.extract_strided_slice %282 {offsets = [8, 0], sizes = [8, 96], strides = [1, 1]} : vector<16x96xf32> to vector<8x96xf32>
    %368 = vector.extract_strided_slice %32 {offsets = [1, 0], sizes = [1, 8], strides = [1, 1]} : vector<2x8xf32> to vector<1x8xf32>
    %cst_127 = arith.constant 0.000000e+00 : f32
    %369 = vector.broadcast %cst_127 : f32 to vector<8x32xf32>
    %370 = vector.extract_strided_slice %367 {offsets = [0, 0], sizes = [8, 8], strides = [1, 1]} : vector<8x96xf32> to vector<8x8xf32>
    %371 = vector.extract_strided_slice %367 {offsets = [0, 32], sizes = [8, 8], strides = [1, 1]} : vector<8x96xf32> to vector<8x8xf32>
    %372 = vector.extract_strided_slice %367 {offsets = [0, 64], sizes = [8, 8], strides = [1, 1]} : vector<8x96xf32> to vector<8x8xf32>
    "tpu.trace_start"() <{level = 10 : i32, message = "qd,kd->qk"}> : () -> ()
    %cst_128 = arith.constant dense<0.000000e+00> : vector<8x8xf32>
    %373 = tpu.matmul %370, %371, %cst_128 {dimension_numbers = #tpu.dot_dimension_numbers<[1], [1], [0], [0], [0, 0, 1, 0], [], []>} : vector<8x8xf32>, vector<8x8xf32>, vector<8x8xf32> -> vector<8x8xf32>
    "tpu.trace_stop"() : () -> ()
    %374 = vector.broadcast %368 : vector<1x8xf32> to vector<8x8xf32>
    %375 = arith.addf %373, %374 : vector<8x8xf32>
    %cst_129 = arith.constant dense<0xFF800000> : vector<8xf32>
    %376 = vector.multi_reduction <maximumf>, %375, %cst_129 [1] : vector<8x8xf32> to vector<8xf32>
    %377 = vector.shape_cast %376 : vector<8xf32> to vector<8x1xf32>
    %378 = vector.broadcast %377 : vector<8x1xf32> to vector<8x8xf32>
    %379 = arith.subf %375, %378 : vector<8x8xf32>
    %380 = math.exp %379 : vector<8x8xf32>
    %cst_130 = arith.constant dense<0.000000e+00> : vector<8xf32>
    %381 = vector.multi_reduction <add>, %380, %cst_130 [1] : vector<8x8xf32> to vector<8xf32>
    %382 = vector.shape_cast %381 : vector<8xf32> to vector<8x1xf32>
    %383 = tpu.reciprocal %382 {approx = true} : vector<8x1xf32> -> vector<8x1xf32>
    %384 = vector.broadcast %383 : vector<8x1xf32> to vector<8x8xf32>
    %385 = arith.mulf %380, %384 : vector<8x8xf32>
    %cst_131 = arith.constant dense<0.000000e+00> : vector<8x8xf32>
    %386 = tpu.matmul %385, %372, %cst_131 {dimension_numbers = #tpu.dot_dimension_numbers<[1], [0], [0], [1], [0, 0, 1, 1], [], []>} : vector<8x8xf32>, vector<8x8xf32>, vector<8x8xf32> -> vector<8x8xf32>
    %387 = vector.extract_strided_slice %283 {offsets = [0, 0], sizes = [8, 32], strides = [1, 1]} : vector<32x32xf32> to vector<8x32xf32>
    %cst_132 = arith.constant dense<0.000000e+00> : vector<8x32xf32>
    %388 = tpu.matmul %386, %387, %cst_132 {dimension_numbers = #tpu.dot_dimension_numbers<[1], [0], [0], [1], [0, 0, 1, 1], [], []>} : vector<8x8xf32>, vector<8x32xf32>, vector<8x32xf32> -> vector<8x32xf32>
    %389 = arith.addf %369, %388 : vector<8x32xf32>
    %390 = vector.extract_strided_slice %367 {offsets = [0, 8], sizes = [8, 8], strides = [1, 1]} : vector<8x96xf32> to vector<8x8xf32>
    %391 = vector.extract_strided_slice %367 {offsets = [0, 40], sizes = [8, 8], strides = [1, 1]} : vector<8x96xf32> to vector<8x8xf32>
    %392 = vector.extract_strided_slice %367 {offsets = [0, 72], sizes = [8, 8], strides = [1, 1]} : vector<8x96xf32> to vector<8x8xf32>
    "tpu.trace_start"() <{level = 10 : i32, message = "qd,kd->qk"}> : () -> ()
    %cst_133 = arith.constant dense<0.000000e+00> : vector<8x8xf32>
    %393 = tpu.matmul %390, %391, %cst_133 {dimension_numbers = #tpu.dot_dimension_numbers<[1], [1], [0], [0], [0, 0, 1, 0], [], []>} : vector<8x8xf32>, vector<8x8xf32>, vector<8x8xf32> -> vector<8x8xf32>
    "tpu.trace_stop"() : () -> ()
    %394 = vector.broadcast %368 : vector<1x8xf32> to vector<8x8xf32>
    %395 = arith.addf %393, %394 : vector<8x8xf32>
    %cst_134 = arith.constant dense<0xFF800000> : vector<8xf32>
    %396 = vector.multi_reduction <maximumf>, %395, %cst_134 [1] : vector<8x8xf32> to vector<8xf32>
    %397 = vector.shape_cast %396 : vector<8xf32> to vector<8x1xf32>
    %398 = vector.broadcast %397 : vector<8x1xf32> to vector<8x8xf32>
    %399 = arith.subf %395, %398 : vector<8x8xf32>
    %400 = math.exp %399 : vector<8x8xf32>
    %cst_135 = arith.constant dense<0.000000e+00> : vector<8xf32>
    %401 = vector.multi_reduction <add>, %400, %cst_135 [1] : vector<8x8xf32> to vector<8xf32>
    %402 = vector.shape_cast %401 : vector<8xf32> to vector<8x1xf32>
    %403 = tpu.reciprocal %402 {approx = true} : vector<8x1xf32> -> vector<8x1xf32>
    %404 = vector.broadcast %403 : vector<8x1xf32> to vector<8x8xf32>
    %405 = arith.mulf %400, %404 : vector<8x8xf32>
    %cst_136 = arith.constant dense<0.000000e+00> : vector<8x8xf32>
    %406 = tpu.matmul %405, %392, %cst_136 {dimension_numbers = #tpu.dot_dimension_numbers<[1], [0], [0], [1], [0, 0, 1, 1], [], []>} : vector<8x8xf32>, vector<8x8xf32>, vector<8x8xf32> -> vector<8x8xf32>
    %407 = vector.extract_strided_slice %283 {offsets = [8, 0], sizes = [8, 32], strides = [1, 1]} : vector<32x32xf32> to vector<8x32xf32>
    %cst_137 = arith.constant dense<0.000000e+00> : vector<8x32xf32>
    %408 = tpu.matmul %406, %407, %cst_137 {dimension_numbers = #tpu.dot_dimension_numbers<[1], [0], [0], [1], [0, 0, 1, 1], [], []>} : vector<8x8xf32>, vector<8x32xf32>, vector<8x32xf32> -> vector<8x32xf32>
    %409 = arith.addf %389, %408 : vector<8x32xf32>
    %410 = vector.extract_strided_slice %367 {offsets = [0, 16], sizes = [8, 8], strides = [1, 1]} : vector<8x96xf32> to vector<8x8xf32>
    %411 = vector.extract_strided_slice %367 {offsets = [0, 48], sizes = [8, 8], strides = [1, 1]} : vector<8x96xf32> to vector<8x8xf32>
    %412 = vector.extract_strided_slice %367 {offsets = [0, 80], sizes = [8, 8], strides = [1, 1]} : vector<8x96xf32> to vector<8x8xf32>
    "tpu.trace_start"() <{level = 10 : i32, message = "qd,kd->qk"}> : () -> ()
    %cst_138 = arith.constant dense<0.000000e+00> : vector<8x8xf32>
    %413 = tpu.matmul %410, %411, %cst_138 {dimension_numbers = #tpu.dot_dimension_numbers<[1], [1], [0], [0], [0, 0, 1, 0], [], []>} : vector<8x8xf32>, vector<8x8xf32>, vector<8x8xf32> -> vector<8x8xf32>
    "tpu.trace_stop"() : () -> ()
    %414 = vector.broadcast %368 : vector<1x8xf32> to vector<8x8xf32>
    %415 = arith.addf %413, %414 : vector<8x8xf32>
    %cst_139 = arith.constant dense<0xFF800000> : vector<8xf32>
    %416 = vector.multi_reduction <maximumf>, %415, %cst_139 [1] : vector<8x8xf32> to vector<8xf32>
    %417 = vector.shape_cast %416 : vector<8xf32> to vector<8x1xf32>
    %418 = vector.broadcast %417 : vector<8x1xf32> to vector<8x8xf32>
    %419 = arith.subf %415, %418 : vector<8x8xf32>
    %420 = math.exp %419 : vector<8x8xf32>
    %cst_140 = arith.constant dense<0.000000e+00> : vector<8xf32>
    %421 = vector.multi_reduction <add>, %420, %cst_140 [1] : vector<8x8xf32> to vector<8xf32>
    %422 = vector.shape_cast %421 : vector<8xf32> to vector<8x1xf32>
    %423 = tpu.reciprocal %422 {approx = true} : vector<8x1xf32> -> vector<8x1xf32>
    %424 = vector.broadcast %423 : vector<8x1xf32> to vector<8x8xf32>
    %425 = arith.mulf %420, %424 : vector<8x8xf32>
    %cst_141 = arith.constant dense<0.000000e+00> : vector<8x8xf32>
    %426 = tpu.matmul %425, %412, %cst_141 {dimension_numbers = #tpu.dot_dimension_numbers<[1], [0], [0], [1], [0, 0, 1, 1], [], []>} : vector<8x8xf32>, vector<8x8xf32>, vector<8x8xf32> -> vector<8x8xf32>
    %427 = vector.extract_strided_slice %283 {offsets = [16, 0], sizes = [8, 32], strides = [1, 1]} : vector<32x32xf32> to vector<8x32xf32>
    %cst_142 = arith.constant dense<0.000000e+00> : vector<8x32xf32>
    %428 = tpu.matmul %426, %427, %cst_142 {dimension_numbers = #tpu.dot_dimension_numbers<[1], [0], [0], [1], [0, 0, 1, 1], [], []>} : vector<8x8xf32>, vector<8x32xf32>, vector<8x32xf32> -> vector<8x32xf32>
    %429 = arith.addf %409, %428 : vector<8x32xf32>
    %430 = vector.extract_strided_slice %367 {offsets = [0, 24], sizes = [8, 8], strides = [1, 1]} : vector<8x96xf32> to vector<8x8xf32>
    %431 = vector.extract_strided_slice %367 {offsets = [0, 56], sizes = [8, 8], strides = [1, 1]} : vector<8x96xf32> to vector<8x8xf32>
    %432 = vector.extract_strided_slice %367 {offsets = [0, 88], sizes = [8, 8], strides = [1, 1]} : vector<8x96xf32> to vector<8x8xf32>
    "tpu.trace_start"() <{level = 10 : i32, message = "qd,kd->qk"}> : () -> ()
    %cst_143 = arith.constant dense<0.000000e+00> : vector<8x8xf32>
    %433 = tpu.matmul %430, %431, %cst_143 {dimension_numbers = #tpu.dot_dimension_numbers<[1], [1], [0], [0], [0, 0, 1, 0], [], []>} : vector<8x8xf32>, vector<8x8xf32>, vector<8x8xf32> -> vector<8x8xf32>
    "tpu.trace_stop"() : () -> ()
    %434 = vector.broadcast %368 : vector<1x8xf32> to vector<8x8xf32>
    %435 = arith.addf %433, %434 : vector<8x8xf32>
    %cst_144 = arith.constant dense<0xFF800000> : vector<8xf32>
    %436 = vector.multi_reduction <maximumf>, %435, %cst_144 [1] : vector<8x8xf32> to vector<8xf32>
    %437 = vector.shape_cast %436 : vector<8xf32> to vector<8x1xf32>
    %438 = vector.broadcast %437 : vector<8x1xf32> to vector<8x8xf32>
    %439 = arith.subf %435, %438 : vector<8x8xf32>
    %440 = math.exp %439 : vector<8x8xf32>
    %cst_145 = arith.constant dense<0.000000e+00> : vector<8xf32>
    %441 = vector.multi_reduction <add>, %440, %cst_145 [1] : vector<8x8xf32> to vector<8xf32>
    %442 = vector.shape_cast %441 : vector<8xf32> to vector<8x1xf32>
    %443 = tpu.reciprocal %442 {approx = true} : vector<8x1xf32> -> vector<8x1xf32>
    %444 = vector.broadcast %443 : vector<8x1xf32> to vector<8x8xf32>
    %445 = arith.mulf %440, %444 : vector<8x8xf32>
    %cst_146 = arith.constant dense<0.000000e+00> : vector<8x8xf32>
    %446 = tpu.matmul %445, %432, %cst_146 {dimension_numbers = #tpu.dot_dimension_numbers<[1], [0], [0], [1], [0, 0, 1, 1], [], []>} : vector<8x8xf32>, vector<8x8xf32>, vector<8x8xf32> -> vector<8x8xf32>
    %447 = vector.extract_strided_slice %283 {offsets = [24, 0], sizes = [8, 32], strides = [1, 1]} : vector<32x32xf32> to vector<8x32xf32>
    %cst_147 = arith.constant dense<0.000000e+00> : vector<8x32xf32>
    %448 = tpu.matmul %446, %447, %cst_147 {dimension_numbers = #tpu.dot_dimension_numbers<[1], [0], [0], [1], [0, 0, 1, 1], [], []>} : vector<8x8xf32>, vector<8x32xf32>, vector<8x32xf32> -> vector<8x32xf32>
    %449 = arith.addf %429, %448 : vector<8x32xf32>
    %450 = tpu.concatenate %366, %449 in 0 : vector<8x32xf32>, vector<8x32xf32> -> vector<16x32xf32>
    %c0_148 = arith.constant 0 : index
    %c0_149 = arith.constant 0 : index
    %451 = vector.load %arg27[%c0_148, %c0_149] : memref<1x32xf32, #tpu.memory_space<vmem>>, vector<1x32xf32>
    %452 = vector.broadcast %451 : vector<1x32xf32> to vector<16x32xf32>
    %453 = arith.addf %450, %452 : vector<16x32xf32>
    %454 = arith.addf %277, %453 : vector<16x32xf32>
    %c0_150 = arith.constant 0 : index
    %c0_151 = arith.constant 0 : index
    %455 = vector.load %arg28[%c0_150, %c0_151] : memref<1x32xf32, #tpu.memory_space<vmem>>, vector<1x32xf32>
    %c0_152 = arith.constant 0 : index
    %c0_153 = arith.constant 0 : index
    %456 = vector.load %arg29[%c0_152, %c0_153] : memref<1x32xf32, #tpu.memory_space<vmem>>, vector<1x32xf32>
    %cst_154 = arith.constant dense<0.000000e+00> : vector<16xf32>
    %457 = vector.multi_reduction <add>, %454, %cst_154 [1] : vector<16x32xf32> to vector<16xf32>
    %458 = vector.shape_cast %457 : vector<16xf32> to vector<16x1xf32>
    %cst_155 = arith.constant 3.200000e+01 : f32
    %459 = vector.broadcast %cst_155 : f32 to vector<16x1xf32>
    %460 = arith.divf %458, %459 : vector<16x1xf32>
    %461 = vector.broadcast %460 : vector<16x1xf32> to vector<16x32xf32>
    %462 = arith.subf %454, %461 : vector<16x32xf32>
    %463 = arith.mulf %462, %462 : vector<16x32xf32>
    %cst_156 = arith.constant dense<0.000000e+00> : vector<16xf32>
    %464 = vector.multi_reduction <add>, %463, %cst_156 [1] : vector<16x32xf32> to vector<16xf32>
    %465 = vector.shape_cast %464 : vector<16xf32> to vector<16x1xf32>
    %cst_157 = arith.constant 3.200000e+01 : f32
    %466 = vector.broadcast %cst_157 : f32 to vector<16x1xf32>
    %467 = arith.divf %465, %466 : vector<16x1xf32>
    %cst_158 = arith.constant 9.99999974E-6 : f32
    %468 = vector.broadcast %cst_158 : f32 to vector<16x1xf32>
    %469 = arith.addf %467, %468 : vector<16x1xf32>
    %470 = math.rsqrt %469 : vector<16x1xf32>
    %471 = vector.broadcast %470 : vector<16x1xf32> to vector<16x32xf32>
    %472 = arith.mulf %462, %471 : vector<16x32xf32>
    %473 = vector.broadcast %455 : vector<1x32xf32> to vector<16x32xf32>
    %474 = arith.mulf %472, %473 : vector<16x32xf32>
    %475 = vector.broadcast %456 : vector<1x32xf32> to vector<16x32xf32>
    %476 = arith.addf %474, %475 : vector<16x32xf32>
    %c0_159 = arith.constant 0 : index
    %c0_160 = arith.constant 0 : index
    %477 = vector.load %arg30[%c0_159, %c0_160] : memref<32x128xf32, #tpu.memory_space<vmem>>, vector<32x128xf32>
    %cst_161 = arith.constant dense<0.000000e+00> : vector<16x128xf32>
    %478 = tpu.matmul %476, %477, %cst_161 {dimension_numbers = #tpu.dot_dimension_numbers<[1], [0], [0], [1], [0, 0, 1, 1], [], []>} : vector<16x32xf32>, vector<32x128xf32>, vector<16x128xf32> -> vector<16x128xf32>
    %c0_162 = arith.constant 0 : index
    %c0_163 = arith.constant 0 : index
    %479 = vector.load %arg31[%c0_162, %c0_163] : memref<1x128xf32, #tpu.memory_space<vmem>>, vector<1x128xf32>
    %480 = vector.broadcast %479 : vector<1x128xf32> to vector<16x128xf32>
    %481 = arith.addf %478, %480 : vector<16x128xf32>
    %cst_164 = arith.constant 5.000000e-01 : f32
    %482 = vector.broadcast %cst_164 : f32 to vector<16x128xf32>
    %483 = arith.mulf %482, %481 : vector<16x128xf32>
    %cst_165 = arith.constant 4.471500e-02 : f32
    %484 = vector.broadcast %cst_165 : f32 to vector<16x128xf32>
    %485 = arith.mulf %484, %481 : vector<16x128xf32>
    %486 = arith.mulf %485, %481 : vector<16x128xf32>
    %487 = arith.mulf %486, %481 : vector<16x128xf32>
    %488 = arith.addf %481, %487 : vector<16x128xf32>
    %cst_166 = arith.constant 0.797884583 : f32
    %489 = vector.broadcast %cst_166 : f32 to vector<16x128xf32>
    %490 = arith.mulf %489, %488 : vector<16x128xf32>
    %491 = math.tanh %490 : vector<16x128xf32>
    %cst_167 = arith.constant 1.000000e+00 : f32
    %492 = vector.broadcast %cst_167 : f32 to vector<16x128xf32>
    %493 = arith.addf %492, %491 : vector<16x128xf32>
    %494 = arith.mulf %483, %493 : vector<16x128xf32>
    %c0_168 = arith.constant 0 : index
    %c0_169 = arith.constant 0 : index
    %495 = vector.load %arg32[%c0_168, %c0_169] : memref<128x32xf32, #tpu.memory_space<vmem>>, vector<128x32xf32>
    %cst_170 = arith.constant dense<0.000000e+00> : vector<16x32xf32>
    %496 = tpu.matmul %494, %495, %cst_170 {dimension_numbers = #tpu.dot_dimension_numbers<[1], [0], [0], [1], [0, 0, 1, 1], [], []>} : vector<16x128xf32>, vector<128x32xf32>, vector<16x32xf32> -> vector<16x32xf32>
    %c0_171 = arith.constant 0 : index
    %c0_172 = arith.constant 0 : index
    %497 = vector.load %arg33[%c0_171, %c0_172] : memref<1x32xf32, #tpu.memory_space<vmem>>, vector<1x32xf32>
    %498 = vector.broadcast %497 : vector<1x32xf32> to vector<16x32xf32>
    %499 = arith.addf %496, %498 : vector<16x32xf32>
    %500 = arith.addf %476, %499 : vector<16x32xf32>
    %c0_173 = arith.constant 0 : index
    %c0_174 = arith.constant 0 : index
    %501 = vector.load %arg34[%c0_173, %c0_174] : memref<1x32xf32, #tpu.memory_space<vmem>>, vector<1x32xf32>
    %c0_175 = arith.constant 0 : index
    %c0_176 = arith.constant 0 : index
    %502 = vector.load %arg35[%c0_175, %c0_176] : memref<1x32xf32, #tpu.memory_space<vmem>>, vector<1x32xf32>
    %cst_177 = arith.constant dense<0.000000e+00> : vector<16xf32>
    %503 = vector.multi_reduction <add>, %500, %cst_177 [1] : vector<16x32xf32> to vector<16xf32>
    %504 = vector.shape_cast %503 : vector<16xf32> to vector<16x1xf32>
    %cst_178 = arith.constant 3.200000e+01 : f32
    %505 = vector.broadcast %cst_178 : f32 to vector<16x1xf32>
    %506 = arith.divf %504, %505 : vector<16x1xf32>
    %507 = vector.broadcast %506 : vector<16x1xf32> to vector<16x32xf32>
    %508 = arith.subf %500, %507 : vector<16x32xf32>
    %509 = arith.mulf %508, %508 : vector<16x32xf32>
    %cst_179 = arith.constant dense<0.000000e+00> : vector<16xf32>
    %510 = vector.multi_reduction <add>, %509, %cst_179 [1] : vector<16x32xf32> to vector<16xf32>
    %511 = vector.shape_cast %510 : vector<16xf32> to vector<16x1xf32>
    %cst_180 = arith.constant 3.200000e+01 : f32
    %512 = vector.broadcast %cst_180 : f32 to vector<16x1xf32>
    %513 = arith.divf %511, %512 : vector<16x1xf32>
    %cst_181 = arith.constant 9.99999974E-6 : f32
    %514 = vector.broadcast %cst_181 : f32 to vector<16x1xf32>
    %515 = arith.addf %513, %514 : vector<16x1xf32>
    %516 = math.rsqrt %515 : vector<16x1xf32>
    %517 = vector.broadcast %516 : vector<16x1xf32> to vector<16x32xf32>
    %518 = arith.mulf %508, %517 : vector<16x32xf32>
    %519 = vector.broadcast %501 : vector<1x32xf32> to vector<16x32xf32>
    %520 = arith.mulf %518, %519 : vector<16x32xf32>
    %521 = vector.broadcast %502 : vector<1x32xf32> to vector<16x32xf32>
    %522 = arith.addf %520, %521 : vector<16x32xf32>
    %523 = vector.extract_strided_slice %522 {offsets = [0, 0], sizes = [1, 32], strides = [1, 1]} : vector<16x32xf32> to vector<1x32xf32>
    %524 = vector.extract_strided_slice %522 {offsets = [8, 0], sizes = [1, 32], strides = [1, 1]} : vector<16x32xf32> to vector<1x32xf32>
    %525 = tpu.concatenate %523, %524 in 0 : vector<1x32xf32>, vector<1x32xf32> -> vector<2x32xf32>
    %c0_182 = arith.constant 0 : index
    %c0_183 = arith.constant 0 : index
    %526 = vector.load %arg8[%c0_182, %c0_183] : memref<32x32xf32, #tpu.memory_space<vmem>>, vector<32x32xf32>
    %cst_184 = arith.constant dense<0.000000e+00> : vector<2x32xf32>
    %527 = tpu.matmul %525, %526, %cst_184 {dimension_numbers = #tpu.dot_dimension_numbers<[1], [0], [0], [1], [0, 0, 1, 1], [], []>} : vector<2x32xf32>, vector<32x32xf32>, vector<2x32xf32> -> vector<2x32xf32>
    %c0_185 = arith.constant 0 : index
    %c0_186 = arith.constant 0 : index
    %528 = vector.load %arg9[%c0_185, %c0_186] : memref<1x32xf32, #tpu.memory_space<vmem>>, vector<1x32xf32>
    %529 = vector.broadcast %528 : vector<1x32xf32> to vector<2x32xf32>
    %530 = arith.addf %527, %529 : vector<2x32xf32>
    %531 = math.tanh %530 : vector<2x32xf32>
    %c0_187 = arith.constant 0 : index
    %c0_188 = arith.constant 0 : index
    %532 = vector.load %arg10[%c0_187, %c0_188] : memref<32x3xf32, #tpu.memory_space<vmem>>, vector<32x3xf32>
    %cst_189 = arith.constant dense<0.000000e+00> : vector<2x3xf32>
    %533 = tpu.matmul %531, %532, %cst_189 {dimension_numbers = #tpu.dot_dimension_numbers<[1], [0], [0], [1], [0, 0, 1, 1], [], []>} : vector<2x32xf32>, vector<32x3xf32>, vector<2x3xf32> -> vector<2x3xf32>
    %c0_190 = arith.constant 0 : index
    %c0_191 = arith.constant 0 : index
    %534 = vector.load %arg11[%c0_190, %c0_191] : memref<1x3xf32, #tpu.memory_space<vmem>>, vector<1x3xf32>
    %535 = vector.broadcast %534 : vector<1x3xf32> to vector<2x3xf32>
    %536 = arith.addf %533, %535 : vector<2x3xf32>
    %c0_192 = arith.constant 0 : index
    %c0_193 = arith.constant 0 : index
    %537 = vector.load %arg37[%c0_192, %c0_193] : memref<2x3xf32, #tpu.memory_space<vmem>>, vector<2x3xf32>
    tpu.vector_store %arg37[%c0_192, %c0_193], %536 {strides = array<i32>} : memref<2x3xf32, #tpu.memory_space<vmem>>, vector<2x3xf32>,
    %c0_194 = arith.constant 0 : index
    %c0_195 = arith.constant 0 : index
    %538 = vector.load %arg6[%c0_194, %c0_195] : memref<2x1xi32, #tpu.memory_space<vmem>>, vector<2x1xi32>
    %539 = tpu.iota {dimensions = array<i32: 1>} : vector<2x3xi32>
    %540 = vector.broadcast %538 : vector<2x1xi32> to vector<2x3xi32>
    %541 = arith.cmpi eq, %539, %540 : vector<2x3xi32>
    %542 = arith.extui %541 : vector<2x3xi1> to vector<2x3xi32>
    %543 = arith.sitofp %542 : vector<2x3xi32> to vector<2x3xf32>
    %c0_196 = arith.constant 0 : index
    %c0_197 = arith.constant 0 : index
    %544 = vector.load %arg7[%c0_196, %c0_197] : memref<1x3xf32, #tpu.memory_space<vmem>>, vector<1x3xf32>
    %cst_198 = arith.constant dense<0xFF800000> : vector<2xf32>
    %545 = vector.multi_reduction <maximumf>, %536, %cst_198 [1] : vector<2x3xf32> to vector<2xf32>
    %546 = vector.shape_cast %545 : vector<2xf32> to vector<2x1xf32>
    %547 = vector.broadcast %546 : vector<2x1xf32> to vector<2x3xf32>
    %548 = arith.subf %536, %547 : vector<2x3xf32>
    %549 = math.exp %548 : vector<2x3xf32>
    %cst_199 = arith.constant dense<0.000000e+00> : vector<2xf32>
    %550 = vector.multi_reduction <add>, %549, %cst_199 [1] : vector<2x3xf32> to vector<2xf32>
    %551 = vector.shape_cast %550 : vector<2xf32> to vector<2x1xf32>
    %552 = math.log %551 : vector<2x1xf32>
    %553 = arith.addf %546, %552 : vector<2x1xf32>
    %554 = arith.mulf %536, %543 : vector<2x3xf32>
    %cst_200 = arith.constant dense<0.000000e+00> : vector<2xf32>
    %555 = vector.multi_reduction <add>, %554, %cst_200 [1] : vector<2x3xf32> to vector<2xf32>
    %556 = vector.shape_cast %555 : vector<2xf32> to vector<2x1xf32>
    %557 = vector.broadcast %544 : vector<1x3xf32> to vector<2x3xf32>
    %558 = arith.mulf %543, %557 : vector<2x3xf32>
    %cst_201 = arith.constant dense<0.000000e+00> : vector<2xf32>
    %559 = vector.multi_reduction <add>, %558, %cst_201 [1] : vector<2x3xf32> to vector<2xf32>
    %560 = vector.shape_cast %559 : vector<2xf32> to vector<2x1xf32>
    %561 = arith.subf %553, %556 : vector<2x1xf32>
    %562 = arith.mulf %561, %560 : vector<2x1xf32>
    %cst_202 = arith.constant dense<0.000000e+00> : vector<1xf32>
    %563 = vector.multi_reduction <add>, %562, %cst_202 [0] : vector<2x1xf32> to vector<1xf32>
    %564 = vector.shape_cast %563 : vector<1xf32> to vector<1x1xf32>
    %cst_203 = arith.constant dense<0.000000e+00> : vector<1xf32>
    %565 = vector.multi_reduction <add>, %560, %cst_203 [0] : vector<2x1xf32> to vector<1xf32>
    %566 = vector.shape_cast %565 : vector<1xf32> to vector<1x1xf32>
    %567 = arith.divf %564, %566 : vector<1x1xf32>
    %c0_204 = arith.constant 0 : index
    %c0_205 = arith.constant 0 : index
    %568 = vector.load %arg36[%c0_204, %c0_205] : memref<1x1xf32, #tpu.memory_space<vmem>>, vector<1x1xf32>
    tpu.vector_store %arg36[%c0_204, %c0_205], %567 {strides = array<i32>} : memref<1x1xf32, #tpu.memory_space<vmem>>, vector<1x1xf32>,
    return
  }
}

</mosaic_0001>

<llo_original>
// kernel: transformer_classifier_forward.1
$region0: #{transformer_classifier_forward.1}
  #allocation0 [shape = 'u32[]', space=smem, size = 0x4, offset = 0x4, fixed_abs, tag = 'smem constant byte address 0x4 - core index']
  #allocation1 [shape = 'u32[144,128]{1,0:T(1,128)}', space=vmem, size = 0x12000, scoped, tag = 'internal scratch']
  %s0 = inlined_call_operand.smem [shape: u32[38], index: -1, kind: input, shape index: {}]
  %s1 = sld [smem:[%s0]]
  %s2 = scalar_lea.smem %s0, 1
  %s3 = sld [smem:[%s2]]
  %s4 = scalar_lea.smem %s0, 2
  %s5 = sld [smem:[%s4]]
  %s6 = scalar_lea.smem %s0, 3
  %s7 = sld [smem:[%s6]]
  %s8 = scalar_lea.smem %s0, 4
  %s9 = sld [smem:[%s8]]
  %s10 = scalar_lea.smem %s0, 5
  %s11 = sld [smem:[%s10]]
  %s12 = scalar_lea.smem %s0, 6
  %s13 = sld [smem:[%s12]]
  %s14 = scalar_lea.smem %s0, 7
  %s15 = sld [smem:[%s14]]
  %s16 = scalar_lea.smem %s0, 8
  %s17 = sld [smem:[%s16]]
  %s18 = scalar_lea.smem %s0, 9
  %s19 = sld [smem:[%s18]]
  %s20 = scalar_lea.smem %s0, 10
  %s21 = sld [smem:[%s20]]
  %s22 = scalar_lea.smem %s0, 11
  %s23 = sld [smem:[%s22]]
  %s24 = scalar_lea.smem %s0, 12
  %s25 = sld [smem:[%s24]]
  %s26 = scalar_lea.smem %s0, 13
  %s27 = sld [smem:[%s26]]
  %s28 = scalar_lea.smem %s0, 14
  %s29 = sld [smem:[%s28]]
  %s30 = scalar_lea.smem %s0, 15
  %s31 = sld [smem:[%s30]]
  %s32 = scalar_lea.smem %s0, 16
  %s33 = sld [smem:[%s32]]
  %s34 = scalar_lea.smem %s0, 17
  %s35 = sld [smem:[%s34]]
  %s36 = scalar_lea.smem %s0, 18
  %s37 = sld [smem:[%s36]]
  %s38 = scalar_lea.smem %s0, 19
  %s39 = sld [smem:[%s38]]
  %s40 = scalar_lea.smem %s0, 20
  %s41 = sld [smem:[%s40]]
  %s42 = scalar_lea.smem %s0, 21
  %s43 = sld [smem:[%s42]]
  %s44 = scalar_lea.smem %s0, 22
  %s45 = sld [smem:[%s44]]
  %s46 = scalar_lea.smem %s0, 23
  %s47 = sld [smem:[%s46]]
  %s48 = scalar_lea.smem %s0, 24
  %s49 = sld [smem:[%s48]]
  %s50 = scalar_lea.smem %s0, 25
  %s51 = sld [smem:[%s50]]
  %s52 = scalar_lea.smem %s0, 26
  %s53 = sld [smem:[%s52]]
  %s54 = scalar_lea.smem %s0, 27
  %s55 = sld [smem:[%s54]]
  %s56 = scalar_lea.smem %s0, 28
  %s57 = sld [smem:[%s56]]
  %s58 = scalar_lea.smem %s0, 29
  %s59 = sld [smem:[%s58]]
  %s60 = scalar_lea.smem %s0, 30
  %s61 = sld [smem:[%s60]]
  %s62 = scalar_lea.smem %s0, 31
  %s63 = sld [smem:[%s62]]
  %s64 = scalar_lea.smem %s0, 32
  %s65 = sld [smem:[%s64]]
  %s66 = scalar_lea.smem %s0, 33
  %s67 = sld [smem:[%s66]]
  %s68 = scalar_lea.smem %s0, 34
  %s69 = sld [smem:[%s68]]
  %s70 = scalar_lea.smem %s0, 35
  %s71 = sld [smem:[%s70]]
  %s72 = scalar_lea.smem %s0, 36
  %s73 = sld [smem:[%s72]]
  %s74 = scalar_lea.smem %s0, 37
  %s75 = sld [smem:[%s74]]
  %76 = xla_tuple %s73, %s75
  %s77 = sld [smem:[#allocation0]]
  $region198: #{transformer_classifier_forward.1} parent=0
    _
  %s79 = ssub.s32 1, %s77
  %s80 = scalar_select 0, %s79, %s77
  $region1: #{transformer_classifier_forward.1} parent=0
    #allocation2 [shape = 'u8[65536]{0}', space=vmem, size = 0x10000, scoped, tag = 'input window, operand 2, single buffered']
    #allocation3 [shape = 's32[1]{0}', space=sflag, size = 0x4, scoped, tag = 'scoped memory for transformer_classifier_forward.1']
    #allocation4 [shape = 's32[1]{0}', space=sflag, size = 0x4, scoped, tag = 'scoped memory for transformer_classifier_forward.1']
    #allocation5 [shape = 'u8[16384]{0}', space=vmem, size = 0x4000, scoped, tag = 'input window, operand 8, single buffered']
    #allocation6 [shape = 's32[1]{0}', space=sflag, size = 0x4, scoped, tag = 'scoped memory for transformer_classifier_forward.1']
    #allocation7 [shape = 'u8[16384]{0}', space=vmem, size = 0x4000, scoped, tag = 'input window, operand 10, single buffered']
    #allocation8 [shape = 'u8[16384]{0}', space=vmem, size = 0x4000, scoped, tag = 'input window, operand 12, single buffered']
    #allocation9 [shape = 's32[1]{0}', space=sflag, size = 0x4, scoped, tag = 'scoped memory for transformer_classifier_forward.1']
    #allocation10 [shape = 'u8[16384]{0}', space=vmem, size = 0x4000, scoped, tag = 'input window, operand 14, single buffered']
    #allocation11 [shape = 'u8[16384]{0}', space=vmem, size = 0x4000, scoped, tag = 'input window, operand 18, single buffered']
    #allocation12 [shape = 's32[1]{0}', space=sflag, size = 0x4, scoped, tag = 'scoped memory for transformer_classifier_forward.1']
    #allocation13 [shape = 'u8[65536]{0}', space=vmem, size = 0x10000, scoped, tag = 'input window, operand 20, single buffered']
    #allocation14 [shape = 'u8[16384]{0}', space=vmem, size = 0x4000, scoped, tag = 'input window, operand 24, single buffered']
    #allocation15 [shape = 's32[1]{0}', space=sflag, size = 0x4, scoped, tag = 'scoped memory for transformer_classifier_forward.1']
    #allocation16 [shape = 'u8[65536]{0}', space=vmem, size = 0x10000, scoped, tag = 'input window, operand 32, single buffered']
    #allocation17 [shape = 'u8[512]{0}', space=vmem, size = 0x400, scoped, tag = 'output window, operand 0, single buffered']
    #allocation18 [shape = 'u8[1024]{0}', space=vmem, size = 0x400, scoped, tag = 'output window, operand 1, single buffered']
    #allocation19 [shape = 's32[1]{0}', space=sflag, size = 0x4, scoped, tag = 'scoped memory for transformer_classifier_forward.1']
    %81 = vsyncpa [#allocation3], 0
    %82 = vsyncpa [#allocation6], 0
    %83 = vsyncpa [#allocation9], 0
    %84 = vsyncpa [#allocation12], 0
    %85 = vsyncpa [#allocation15], 0
    %86 = vsyncpa [#allocation4], 0
    %87 = vsyncpa [#allocation19], 0
    // Predicated region
    $region2: #{transformer_classifier_forward.1} parent=1 // pred_check
      _
    $region3: #{transformer_classifier_forward.1} parent=1 // pred_check_branch
      %89 = sbr.rel (0) target = $region5
    $region4: #{transformer_classifier_forward.1} parent=1 // pred_region
      _
    $region5: #{transformer_classifier_forward.1} parent=1 // pred_fallthru
      _
    // Predicated region
    $region6: #{transformer_classifier_forward.1} parent=1 // pred_check
      _
    $region7: #{transformer_classifier_forward.1} parent=1 // pred_check_branch
      %91 = sbr.rel (0) target = $region9
    $region8: #{transformer_classifier_forward.1} parent=1 // pred_region
      _
    $region9: #{transformer_classifier_forward.1} parent=1 // pred_fallthru
      _
    // Predicated region
    $region10: #{transformer_classifier_forward.1} parent=1 // pred_check
      _
    $region11: #{transformer_classifier_forward.1} parent=1 // pred_check_branch
      %93 = sbr.rel (0) target = $region13
    $region12: #{transformer_classifier_forward.1} parent=1 // pred_region
      %s95 = ssub.s32 2048, 2048
      %96 = vsyncadd [#allocation3], %s95
      %s97 = sshll.u32 [#allocation2], 4
      %s98 = int_to_ptr.vmem [resolvable:$true] %s97
      %103 = dma.hbm_to_vmem [thread:$0]  %s5, 2048, %s98, [#allocation3], 128, 128, 8
    $region13: #{transformer_classifier_forward.1} parent=1 // pred_fallthru
      _
    // Predicated region
    $region14: #{transformer_classifier_forward.1} parent=1 // pred_check
      _
    $region15: #{transformer_classifier_forward.1} parent=1 // pred_check_branch
      %105 = sbr.rel (0) target = $region17
    $region16: #{transformer_classifier_forward.1} parent=1 // pred_region
      _
    $region17: #{transformer_classifier_forward.1} parent=1 // pred_fallthru
      _
    // Predicated region
    $region18: #{transformer_classifier_forward.1} parent=1 // pred_check
      _
    $region19: #{transformer_classifier_forward.1} parent=1 // pred_check_branch
      %107 = sbr.rel (0) target = $region21
    $region20: #{transformer_classifier_forward.1} parent=1 // pred_region
      _
    $region21: #{transformer_classifier_forward.1} parent=1 // pred_fallthru
      _
    // Predicated region
    $region22: #{transformer_classifier_forward.1} parent=1 // pred_check
      _
    $region23: #{transformer_classifier_forward.1} parent=1 // pred_check_branch
      %109 = sbr.rel (0) target = $region25
    $region24: #{transformer_classifier_forward.1} parent=1 // pred_region
      _
    $region25: #{transformer_classifier_forward.1} parent=1 // pred_fallthru
      _
    // Predicated region
    $region26: #{transformer_classifier_forward.1} parent=1 // pred_check
      _
    $region27: #{transformer_classifier_forward.1} parent=1 // pred_check_branch
      %111 = sbr.rel (0) target = $region29
    $region28: #{transformer_classifier_forward.1} parent=1 // pred_region
      _
    $region29: #{transformer_classifier_forward.1} parent=1 // pred_fallthru
      _
    // Predicated region
    $region30: #{transformer_classifier_forward.1} parent=1 // pred_check
      _
    $region31: #{transformer_classifier_forward.1} parent=1 // pred_check_branch
      %113 = sbr.rel (0) target = $region33
    $region32: #{transformer_classifier_forward.1} parent=1 // pred_region
      _
    $region33: #{transformer_classifier_forward.1} parent=1 // pred_fallthru
      _
    // Predicated region
    $region34: #{transformer_classifier_forward.1} parent=1 // pred_check
      _
    $region35: #{transformer_classifier_forward.1} parent=1 // pred_check_branch
      %115 = sbr.rel (0) target = $region37
    $region36: #{transformer_classifier_forward.1} parent=1 // pred_region
      %s117 = ssub.s32 512, 512
      %118 = vsyncadd [#allocation6], %s117
      %s119 = sshll.u32 [#allocation5], 4
      %s120 = int_to_ptr.vmem [resolvable:$true] %s119
      %125 = dma.hbm_to_vmem [thread:$0]  %s17, 512, %s120, [#allocation6], 128, 128, 8
    $region37: #{transformer_classifier_forward.1} parent=1 // pred_fallthru
      _
    // Predicated region
    $region38: #{transformer_classifier_forward.1} parent=1 // pred_check
      _
    $region39: #{transformer_classifier_forward.1} parent=1 // pred_check_branch
      %127 = sbr.rel (0) target = $region41
    $region40: #{transformer_classifier_forward.1} parent=1 // pred_region
      _
    $region41: #{transformer_classifier_forward.1} parent=1 // pred_fallthru
      _
    // Predicated region
    $region42: #{transformer_classifier_forward.1} parent=1 // pred_check
      _
    $region43: #{transformer_classifier_forward.1} parent=1 // pred_check_branch
      %129 = sbr.rel (0) target = $region45
    $region44: #{transformer_classifier_forward.1} parent=1 // pred_region
      %s131 = ssub.s32 512, 512
      %132 = vsyncadd [#allocation6], %s131
      %s133 = sshll.u32 [#allocation7], 4
      %s134 = int_to_ptr.vmem [resolvable:$true] %s133
      %139 = dma.hbm_to_vmem [thread:$0]  %s21, 512, %s134, [#allocation6], 128, 128, 8
    $region45: #{transformer_classifier_forward.1} parent=1 // pred_fallthru
      _
    // Predicated region
    $region46: #{transformer_classifier_forward.1} parent=1 // pred_check
      _
    $region47: #{transformer_classifier_forward.1} parent=1 // pred_check_branch
      %141 = sbr.rel (0) target = $region49
    $region48: #{transformer_classifier_forward.1} parent=1 // pred_region
      _
    $region49: #{transformer_classifier_forward.1} parent=1 // pred_fallthru
      _
    // Predicated region
    $region50: #{transformer_classifier_forward.1} parent=1 // pred_check
      _
    $region51: #{transformer_classifier_forward.1} parent=1 // pred_check_branch
      %143 = sbr.rel (0) target = $region53
    $region52: #{transformer_classifier_forward.1} parent=1 // pred_region
      %s145 = ssub.s32 512, 512
      %146 = vsyncadd [#allocation9], %s145
      %s147 = sshll.u32 [#allocation8], 4
      %s148 = int_to_ptr.vmem [resolvable:$true] %s147
      %153 = dma.hbm_to_vmem [thread:$0]  %s25, 512, %s148, [#allocation9], 128, 128, 8
    $region53: #{transformer_classifier_forward.1} parent=1 // pred_fallthru
      _
    // Predicated region
    $region54: #{transformer_classifier_forward.1} parent=1 // pred_check
      _
    $region55: #{transformer_classifier_forward.1} parent=1 // pred_check_branch
      %155 = sbr.rel (0) target = $region57
    $region56: #{transformer_classifier_forward.1} parent=1 // pred_region
      _
    $region57: #{transformer_classifier_forward.1} parent=1 // pred_fallthru
      _
    // Predicated region
    $region58: #{transformer_classifier_forward.1} parent=1 // pred_check
      _
    $region59: #{transformer_classifier_forward.1} parent=1 // pred_check_branch
      %157 = sbr.rel (0) target = $region61
    $region60: #{transformer_classifier_forward.1} parent=1 // pred_region
      %s159 = ssub.s32 512, 512
      %160 = vsyncadd [#allocation9], %s159
      %s161 = sshll.u32 [#allocation10], 4
      %s162 = int_to_ptr.vmem [resolvable:$true] %s161
      %167 = dma.hbm_to_vmem [thread:$0]  %s29, 512, %s162, [#allocation9], 128, 128, 8
    $region61: #{transformer_classifier_forward.1} parent=1 // pred_fallthru
      _
    // Predicated region
    $region62: #{transformer_classifier_forward.1} parent=1 // pred_check
      _
    $region63: #{transformer_classifier_forward.1} parent=1 // pred_check_branch
      %169 = sbr.rel (0) target = $region65
    $region64: #{transformer_classifier_forward.1} parent=1 // pred_region
      _
    $region65: #{transformer_classifier_forward.1} parent=1 // pred_fallthru
      _
    // Predicated region
    $region66: #{transformer_classifier_forward.1} parent=1 // pred_check
      _
    $region67: #{transformer_classifier_forward.1} parent=1 // pred_check_branch
      %171 = sbr.rel (0) target = $region69
    $region68: #{transformer_classifier_forward.1} parent=1 // pred_region
      _
    $region69: #{transformer_classifier_forward.1} parent=1 // pred_fallthru
      _
    // Predicated region
    $region70: #{transformer_classifier_forward.1} parent=1 // pred_check
      _
    $region71: #{transformer_classifier_forward.1} parent=1 // pred_check_branch
      %173 = sbr.rel (0) target = $region73
    $region72: #{transformer_classifier_forward.1} parent=1 // pred_region
      _
    $region73: #{transformer_classifier_forward.1} parent=1 // pred_fallthru
      _
    // Predicated region
    $region74: #{transformer_classifier_forward.1} parent=1 // pred_check
      _
    $region75: #{transformer_classifier_forward.1} parent=1 // pred_check_branch
      %175 = sbr.rel (0) target = $region77
    $region76: #{transformer_classifier_forward.1} parent=1 // pred_region
      %s177 = ssub.s32 512, 512
      %178 = vsyncadd [#allocation12], %s177
      %s179 = sshll.u32 [#allocation11], 4
      %s180 = int_to_ptr.vmem [resolvable:$true] %s179
      %185 = dma.hbm_to_vmem [thread:$0]  %s37, 512, %s180, [#allocation12], 128, 128, 8
    $region77: #{transformer_classifier_forward.1} parent=1 // pred_fallthru
      _
    // Predicated region
    $region78: #{transformer_classifier_forward.1} parent=1 // pred_check
      _
    $region79: #{transformer_classifier_forward.1} parent=1 // pred_check_branch
      %187 = sbr.rel (0) target = $region81
    $region80: #{transformer_classifier_forward.1} parent=1 // pred_region
      _
    $region81: #{transformer_classifier_forward.1} parent=1 // pred_fallthru
      _
    // Predicated region
    $region82: #{transformer_classifier_forward.1} parent=1 // pred_check
      _
    $region83: #{transformer_classifier_forward.1} parent=1 // pred_check_branch
      %189 = sbr.rel (0) target = $region85
    $region84: #{transformer_classifier_forward.1} parent=1 // pred_region
      %s191 = ssub.s32 2048, 2048
      %192 = vsyncadd [#allocation12], %s191
      %s193 = sshll.u32 [#allocation13], 4
      %s194 = int_to_ptr.vmem [resolvable:$true] %s193
      %199 = dma.hbm_to_vmem [thread:$0]  %s41, 2048, %s194, [#allocation12], 128, 128, 8
    $region85: #{transformer_classifier_forward.1} parent=1 // pred_fallthru
      _
    // Predicated region
    $region86: #{transformer_classifier_forward.1} parent=1 // pred_check
      _
    $region87: #{transformer_classifier_forward.1} parent=1 // pred_check_branch
      %201 = sbr.rel (0) target = $region89
    $region88: #{transformer_classifier_forward.1} parent=1 // pred_region
      _
    $region89: #{transformer_classifier_forward.1} parent=1 // pred_fallthru
      _
    // Predicated region
    $region90: #{transformer_classifier_forward.1} parent=1 // pred_check
      _
    $region91: #{transformer_classifier_forward.1} parent=1 // pred_check_branch
      %203 = sbr.rel (0) target = $region93
    $region92: #{transformer_classifier_forward.1} parent=1 // pred_region
      _
    $region93: #{transformer_classifier_forward.1} parent=1 // pred_fallthru
      _
    // Predicated region
    $region94: #{transformer_classifier_forward.1} parent=1 // pred_check
      _
    $region95: #{transformer_classifier_forward.1} parent=1 // pred_check_branch
      %205 = sbr.rel (0) target = $region97
    $region96: #{transformer_classifier_forward.1} parent=1 // pred_region
      _
    $region97: #{transformer_classifier_forward.1} parent=1 // pred_fallthru
      _
    // Predicated region
    $region98: #{transformer_classifier_forward.1} parent=1 // pred_check
      _
    $region99: #{transformer_classifier_forward.1} parent=1 // pred_check_branch
      %207 = sbr.rel (0) target = $region101
    $region100: #{transformer_classifier_forward.1} parent=1 // pred_region
      %s209 = ssub.s32 512, 512
      %210 = vsyncadd [#allocation15], %s209
      %s211 = sshll.u32 [#allocation14], 4
      %s212 = int_to_ptr.vmem [resolvable:$true] %s211
      %217 = dma.hbm_to_vmem [thread:$0]  %s49, 512, %s212, [#allocation15], 128, 128, 8
    $region101: #{transformer_classifier_forward.1} parent=1 // pred_fallthru
      _
    // Predicated region
    $region102: #{transformer_classifier_forward.1} parent=1 // pred_check
      _
    $region103: #{transformer_classifier_forward.1} parent=1 // pred_check_branch
      %219 = sbr.rel (0) target = $region105
    $region104: #{transformer_classifier_forward.1} parent=1 // pred_region
      _
    $region105: #{transformer_classifier_forward.1} parent=1 // pred_fallthru
      _
    // Predicated region
    $region106: #{transformer_classifier_forward.1} parent=1 // pred_check
      _
    $region107: #{transformer_classifier_forward.1} parent=1 // pred_check_branch
      %221 = sbr.rel (0) target = $region109
    $region108: #{transformer_classifier_forward.1} parent=1 // pred_region
      _
    $region109: #{transformer_classifier_forward.1} parent=1 // pred_fallthru
      _
    // Predicated region
    $region110: #{transformer_classifier_forward.1} parent=1 // pred_check
      _
    $region111: #{transformer_classifier_forward.1} parent=1 // pred_check_branch
      %223 = sbr.rel (0) target = $region113
    $region112: #{transformer_classifier_forward.1} parent=1 // pred_region
      _
    $region113: #{transformer_classifier_forward.1} parent=1 // pred_fallthru
      _
    // Predicated region
    $region114: #{transformer_classifier_forward.1} parent=1 // pred_check
      _
    $region115: #{transformer_classifier_forward.1} parent=1 // pred_check_branch
      %225 = sbr.rel (0) target = $region117
    $region116: #{transformer_classifier_forward.1} parent=1 // pred_region
      _
    $region117: #{transformer_classifier_forward.1} parent=1 // pred_fallthru
      _
    // Predicated region
    $region118: #{transformer_classifier_forward.1} parent=1 // pred_check
      _
    $region119: #{transformer_classifier_forward.1} parent=1 // pred_check_branch
      %227 = sbr.rel (0) target = $region121
    $region120: #{transformer_classifier_forward.1} parent=1 // pred_region
      _
    $region121: #{transformer_classifier_forward.1} parent=1 // pred_fallthru
      _
    // Predicated region
    $region122: #{transformer_classifier_forward.1} parent=1 // pred_check
      _
    $region123: #{transformer_classifier_forward.1} parent=1 // pred_check_branch
      %229 = sbr.rel (0) target = $region125
    $region124: #{transformer_classifier_forward.1} parent=1 // pred_region
      _
    $region125: #{transformer_classifier_forward.1} parent=1 // pred_fallthru
      _
    // Predicated region
    $region126: #{transformer_classifier_forward.1} parent=1 // pred_check
      _
    $region127: #{transformer_classifier_forward.1} parent=1 // pred_check_branch
      %231 = sbr.rel (0) target = $region129
    $region128: #{transformer_classifier_forward.1} parent=1 // pred_region
      _
    $region129: #{transformer_classifier_forward.1} parent=1 // pred_fallthru
      _
    // Predicated region
    $region130: #{transformer_classifier_forward.1} parent=1 // pred_check
      _
    $region131: #{transformer_classifier_forward.1} parent=1 // pred_check_branch
      %233 = sbr.rel (0) target = $region133
    $region132: #{transformer_classifier_forward.1} parent=1 // pred_region
      %s235 = ssub.s32 2048, 2048
      %236 = vsyncadd [#allocation15], %s235
      %s237 = sshll.u32 [#allocation16], 4
      %s238 = int_to_ptr.vmem [resolvable:$true] %s237
      %243 = dma.hbm_to_vmem [thread:$0]  %s65, 2048, %s238, [#allocation15], 128, 128, 8
    $region133: #{transformer_classifier_forward.1} parent=1 // pred_fallthru
      _
    // Predicated region
    $region134: #{transformer_classifier_forward.1} parent=1 // pred_check
      _
    $region135: #{transformer_classifier_forward.1} parent=1 // pred_check_branch
      %245 = sbr.rel (0) target = $region137
    $region136: #{transformer_classifier_forward.1} parent=1 // pred_region
      _
    $region137: #{transformer_classifier_forward.1} parent=1 // pred_fallthru
      _
    // Predicated region
    $region138: #{transformer_classifier_forward.1} parent=1 // pred_check
      _
    $region139: #{transformer_classifier_forward.1} parent=1 // pred_check_branch
      %247 = sbr.rel (0) target = $region141
    $region140: #{transformer_classifier_forward.1} parent=1 // pred_region
      _
    $region141: #{transformer_classifier_forward.1} parent=1 // pred_fallthru
      _
    // Predicated region
    $region142: #{transformer_classifier_forward.1} parent=1 // pred_check
      _
    $region143: #{transformer_classifier_forward.1} parent=1 // pred_check_branch
      %249 = sbr.rel (0) target = $region145
    $region144: #{transformer_classifier_forward.1} parent=1 // pred_region
      _
    $region145: #{transformer_classifier_forward.1} parent=1 // pred_fallthru
      _
    // Predicated region
    $region146: #{transformer_classifier_forward.1} parent=1 // pred_check
      _
    $region147: #{transformer_classifier_forward.1} parent=1 // pred_check_branch
      %251 = sbr.rel (0) target = $region149
    $region148: #{transformer_classifier_forward.1} parent=1 // pred_region
      %252 = dma.done [#allocation3], 2048
    $region149: #{transformer_classifier_forward.1} parent=1 // pred_fallthru
      _
    // Predicated region
    $region150: #{transformer_classifier_forward.1} parent=1 // pred_check
      _
    $region151: #{transformer_classifier_forward.1} parent=1 // pred_check_branch
      %254 = sbr.rel (0) target = $region153
    $region152: #{transformer_classifier_forward.1} parent=1 // pred_region
      %255 = dma.done [#allocation6], 512
    $region153: #{transformer_classifier_forward.1} parent=1 // pred_fallthru
      _
    // Predicated region
    $region154: #{transformer_classifier_forward.1} parent=1 // pred_check
      _
    $region155: #{transformer_classifier_forward.1} parent=1 // pred_check_branch
      %257 = sbr.rel (0) target = $region157
    $region156: #{transformer_classifier_forward.1} parent=1 // pred_region
      %258 = dma.done [#allocation6], 512
    $region157: #{transformer_classifier_forward.1} parent=1 // pred_fallthru
      _
    // Predicated region
    $region158: #{transformer_classifier_forward.1} parent=1 // pred_check
      _
    $region159: #{transformer_classifier_forward.1} parent=1 // pred_check_branch
      %260 = sbr.rel (0) target = $region161
    $region160: #{transformer_classifier_forward.1} parent=1 // pred_region
      %261 = dma.done [#allocation9], 512
    $region161: #{transformer_classifier_forward.1} parent=1 // pred_fallthru
      _
    // Predicated region
    $region162: #{transformer_classifier_forward.1} parent=1 // pred_check
      _
    $region163: #{transformer_classifier_forward.1} parent=1 // pred_check_branch
      %263 = sbr.rel (0) target = $region165
    $region164: #{transformer_classifier_forward.1} parent=1 // pred_region
      %264 = dma.done [#allocation9], 512
    $region165: #{transformer_classifier_forward.1} parent=1 // pred_fallthru
      _
    // Predicated region
    $region166: #{transformer_classifier_forward.1} parent=1 // pred_check
      _
    $region167: #{transformer_classifier_forward.1} parent=1 // pred_check_branch
      %266 = sbr.rel (0) target = $region169
    $region168: #{transformer_classifier_forward.1} parent=1 // pred_region
      %267 = dma.done [#allocation12], 512
    $region169: #{transformer_classifier_forward.1} parent=1 // pred_fallthru
      _
    // Predicated region
    $region170: #{transformer_classifier_forward.1} parent=1 // pred_check
      _
    $region171: #{transformer_classifier_forward.1} parent=1 // pred_check_branch
      %269 = sbr.rel (0) target = $region173
    $region172: #{transformer_classifier_forward.1} parent=1 // pred_region
      %270 = dma.done [#allocation12], 2048
    $region173: #{transformer_classifier_forward.1} parent=1 // pred_fallthru
      _
    // Predicated region
    $region174: #{transformer_classifier_forward.1} parent=1 // pred_check
      _
    $region175: #{transformer_classifier_forward.1} parent=1 // pred_check_branch
      %272 = sbr.rel (0) target = $region177
    $region176: #{transformer_classifier_forward.1} parent=1 // pred_region
      %273 = dma.done [#allocation15], 512
    $region177: #{transformer_classifier_forward.1} parent=1 // pred_fallthru
      _
    // Predicated region
    $region178: #{transformer_classifier_forward.1} parent=1 // pred_check
      _
    $region179: #{transformer_classifier_forward.1} parent=1 // pred_check_branch
      %275 = sbr.rel (0) target = $region181
    $region180: #{transformer_classifier_forward.1} parent=1 // pred_region
      %276 = dma.done [#allocation15], 2048
    $region181: #{transformer_classifier_forward.1} parent=1 // pred_fallthru
      _
    %v277 = vld [vmem:[%s1] sm:$0xff]
    %v278 = vld [vmem:[%s1 + $0x8] sm:$0xff]
    %v279 = vlaneseq
    %v280 = vand.u32 %v279, 127
    %281 = vset.pattern.permute.xlu0 0
    %282 = vperm.xlu0 %281, %v277
    %v283 = vpop.permute.xlu0 %282
    %284 = vset.pattern.permute.xlu0 0
    %285 = vperm.xlu0 %284, %v278
    %v286 = vpop.permute.xlu0 %285
    %vm287 = vcmp.eq.s32.totalorder %v280, %v283
    %vm288 = vcmp.eq.s32.totalorder %v280, %v286
    %v289 = vsel %vm287, 1, 0
    %v290 = vsel %vm288, 1, 0
    %v291 = vcvt.s32.f32 %v289
    %v292 = vcvt.s32.f32 %v290
    %v293 = vld [vmem:[#allocation2] sm:$0xff]
    %v294 = vld [vmem:[#allocation2 + $0x8] sm:$0xff]
    %v295 = vld [vmem:[#allocation2 + $0x10] sm:$0xff]
    %v296 = vld [vmem:[#allocation2 + $0x18] sm:$0xff]
    %v297 = vld [vmem:[#allocation2 + $0x20] sm:$0xff]
    %v298 = vld [vmem:[#allocation2 + $0x28] sm:$0xff]
    %v299 = vld [vmem:[#allocation2 + $0x30] sm:$0xff]
    %v300 = vld [vmem:[#allocation2 + $0x38] sm:$0xff]
    %v301 = vld [vmem:[#allocation2 + $0x40] sm:$0xff]
    %v302 = vld [vmem:[#allocation2 + $0x48] sm:$0xff]
    %v303 = vld [vmem:[#allocation2 + $0x50] sm:$0xff]
    %v304 = vld [vmem:[#allocation2 + $0x58] sm:$0xff]
    %v305 = vld [vmem:[#allocation2 + $0x60] sm:$0xff]
    %v306 = vld [vmem:[#allocation2 + $0x68] sm:$0xff]
    %v307 = vld [vmem:[#allocation2 + $0x70] sm:$0xff]
    %v308 = vld [vmem:[#allocation2 + $0x78] sm:$0xff]
    %v309 = vld [vmem:[%s3] sm:$0xff]
    %v310 = vld [vmem:[%s3 + $0x8] sm:$0xff]
    %311 = vmatprep.subr.mxu0 0.0
    %312 = vmatpush1.msra.mxu0 %v308
    %313 = vmatprep.subr.mxu0 0.0
    %314 = vmatpush1.msra.mxu0 %v307
    %315 = vmatprep.subr.mxu0 0.0
    %316 = vmatpush1.msra.mxu0 %v306
    %317 = vmatprep.subr.mxu0 0.0
    %318 = vmatpush1.msra.mxu0 %v305
    %319 = vmatprep.subr.mxu0 0.0
    %320 = vmatpush1.msra.mxu0 %v304
    %321 = vmatprep.subr.mxu0 0.0
    %322 = vmatpush1.msra.mxu0 %v303
    %323 = vmatprep.subr.mxu0 0.0
    %324 = vmatpush1.msra.mxu0 %v302
    %325 = vmatprep.subr.mxu0 0.0
    %326 = vmatpush1.msra.mxu0 %v301
    %327 = vmatprep.subr.mxu0 0.0
    %328 = vmatpush1.msra.mxu0 %v300
    %329 = vmatprep.subr.mxu0 0.0
    %330 = vmatpush1.msra.mxu0 %v299
    %331 = vmatprep.subr.mxu0 0.0
    %332 = vmatpush1.msra.mxu0 %v298
    %333 = vmatprep.subr.mxu0 0.0
    %334 = vmatpush1.msra.mxu0 %v297
    %335 = vmatprep.subr.mxu0 0.0
    %336 = vmatpush1.msra.mxu0 %v296
    %337 = vmatprep.subr.mxu0 0.0
    %338 = vmatpush1.msra.mxu0 %v295
    %339 = vmatprep.subr.mxu0 0.0
    %340 = vmatpush1.msra.mxu0 %v294
    %341 = vmatprep.subr.mxu0 0.0
    %342 = vmatpush1.msra.mxu0 %v293
    %343 = vmatprep.subr.mxu0 0.0
    %344 = vmatpush2.msra.mxu0 0.0
    %345 = vmatprep.subr.mxu0 0.0
    %346 = vmatpush2.msra.mxu0 0.0
    %347 = vmatprep.subr.mxu0 0.0
    %348 = vmatpush2.msra.mxu0 0.0
    %349 = vmatprep.subr.mxu0 0.0
    %350 = vmatpush2.msra.mxu0 0.0
    %351 = vmatprep.subr.mxu0 0.0
    %352 = vmatpush2.msra.mxu0 0.0
    %353 = vmatprep.subr.mxu0 0.0
    %354 = vmatpush2.msra.mxu0 0.0
    %355 = vmatprep.subr.mxu0 0.0
    %356 = vmatpush2.msra.mxu0 0.0
    %357 = vmatprep.subr.mxu0 0.0
    %358 = vmatpush2.msra.mxu0 0.0
    %359 = vmatprep.subr.mxu0 0.0
    %360 = vmatpush2.msra.mxu0 0.0
    %361 = vmatprep.subr.mxu0 0.0
    %362 = vmatpush2.msra.mxu0 0.0
    %363 = vmatprep.subr.mxu0 0.0
    %364 = vmatpush2.msra.mxu0 0.0
    %365 = vmatprep.subr.mxu0 0.0
    %366 = vmatpush2.msra.mxu0 0.0
    %367 = vmatprep.subr.mxu0 0.0
    %368 = vmatpush2.msra.mxu0 0.0
    %369 = vmatprep.subr.mxu0 0.0
    %370 = vmatpush2.msra.mxu0 0.0
    %371 = vmatprep.subr.mxu0 0.0
    %372 = vmatpush2.msra.mxu0 0.0
    %373 = vmatprep.subr.mxu0 0.0
    %374 = vmatpush2.msra.mxu0 0.0
    %375 = vmatprep.mubr.f32.mxu0 0.0
    %376 = vmatmul.mubr.f32.gmra.mxu0 %v291
    %v377 = vpop.f32.mrf.mxu0
    %v378 = vadd.f32 %v309, %v377
    %v379 = vpop.f32.mrf.mxu0
    %380 = vmatprep.mubr.f32.mxu0 0.0
    %381 = vmatmul.mubr.f32.gmra.mxu0 %v292
    %v382 = vpop.f32.mrf.mxu0
    %v383 = vadd.f32 %v310, %v382
    %v384 = vpop.f32.mrf.mxu0
    %385 = vdwg.mxu0
    %v386 = vld [vmem:[%s7] sm:$0x1]
    %v387 = vld [vmem:[%s9] sm:$0x1]
    %vm388 = vcmask 261120
    %v389 = vsel %vm388, %v378, 0.0
    %390 = vadd.xlane.f32.xlu0 %v389
    %v391 = vpop.xlane.xlu0 %390
    %v392 = vsel %vm388, %v383, 0.0
    %393 = vadd.xlane.f32.xlu0 %v392
    %v394 = vpop.xlane.xlu0 %393
    %v395 = vrcp.pop 32.0
    %v396 = vmul.f32 %v391, %v395
    %v397 = vmul.f32 %v394, %v395
    %v398 = vsub.f32 %v378, %v396
    %v399 = vsub.f32 %v383, %v397
    %v400 = vmul.f32 %v398, %v398
    %v401 = vmul.f32 %v399, %v399
    %v402 = vsel %vm388, %v400, 0.0
    %403 = vadd.xlane.f32.xlu0 %v402
    %v404 = vpop.xlane.xlu0 %403
    %v405 = vsel %vm388, %v401, 0.0
    %406 = vadd.xlane.f32.xlu0 %v405
    %v407 = vpop.xlane.xlu0 %406
    %v408 = vmul.f32 %v404, %v395
    %v409 = vmul.f32 %v407, %v395
    %v410 = vadd.f32 %v408, 1e-05
    %v411 = vadd.f32 %v409, 1e-05
    %v412 = vrsqrt.pop %v410
    %v413 = vrsqrt.pop %v411
    %v414 = vmul.f32 %v398, %v412
    %v415 = vmul.f32 %v399, %v413
    %v417 = vlaneseq
    %v418 = vshrl.u32 %v417, 7
    %v419 = vsub.s32 0, %v418
    %v420 = vrot.slane %v386, %v419
    %v422 = vmul.f32 %v414, %v420
    %v423 = vmul.f32 %v415, %v420
    %v425 = vlaneseq
    %v426 = vshrl.u32 %v425, 7
    %v427 = vsub.s32 0, %v426
    %v428 = vrot.slane %v387, %v427
    %v430 = vadd.f32 %v422, %v428
    %v431 = vadd.f32 %v423, %v428
    %v432 = vld [vmem:[%s11] sm:$0x3]
    %v433 = vld [vmem:[#allocation8] sm:$0xff]
    %v434 = vld [vmem:[#allocation8 + $0x8] sm:$0xff]
    %v435 = vld [vmem:[#allocation8 + $0x10] sm:$0xff]
    %v436 = vld [vmem:[#allocation8 + $0x18] sm:$0xff]
    %v437 = vld [vmem:[%s27] sm:$0x1]
    %v439 = vlaneseq
    %v440 = vshrl.u32 %v439, 7
    %v441 = vsub.s32 0, %v440
    %v442 = vrot.slane %v437, %v441
    %v445 = vsel %vm388, %v430, 0
    %v448 = vsel %vm388, %v431, 0
    %450 = vmatprep.subr.mxu0 0.0
    %451 = vmatpush1.msra.mxu0 0.0
    %452 = vmatprep.subr.mxu0 0.0
    %453 = vmatpush1.msra.mxu0 0.0
    %454 = vmatprep.subr.mxu0 0.0
    %455 = vmatpush1.msra.mxu0 0.0
    %456 = vmatprep.subr.mxu0 0.0
    %457 = vmatpush1.msra.mxu0 0.0
    %458 = vmatprep.subr.mxu0 0.0
    %459 = vmatpush1.msra.mxu0 0.0
    %460 = vmatprep.subr.mxu0 0.0
    %461 = vmatpush1.msra.mxu0 0.0
    %462 = vmatprep.subr.mxu0 0.0
    %463 = vmatpush1.msra.mxu0 0.0
    %464 = vmatprep.subr.mxu0 0.0
    %465 = vmatpush1.msra.mxu0 0.0
    %466 = vmatprep.subr.mxu0 0.0
    %467 = vmatpush1.msra.mxu0 0.0
    %468 = vmatprep.subr.mxu0 0.0
    %469 = vmatpush1.msra.mxu0 0.0
    %470 = vmatprep.subr.mxu0 0.0
    %471 = vmatpush1.msra.mxu0 0.0
    %472 = vmatprep.subr.mxu0 0.0
    %473 = vmatpush1.msra.mxu0 0.0
    %474 = vmatprep.subr.mxu0 0.0
    %475 = vmatpush1.msra.mxu0 %v436
    %476 = vmatprep.subr.mxu0 0.0
    %477 = vmatpush1.msra.mxu0 %v435
    %478 = vmatprep.subr.mxu0 0.0
    %479 = vmatpush1.msra.mxu0 %v434
    %480 = vmatprep.subr.mxu0 0.0
    %481 = vmatpush1.msra.mxu0 %v433
    %482 = vmatprep.subr.mxu0 0.0
    %483 = vmatpush2.msra.mxu0 0.0
    %484 = vmatprep.subr.mxu0 0.0
    %485 = vmatpush2.msra.mxu0 0.0
    %486 = vmatprep.subr.mxu0 0.0
    %487 = vmatpush2.msra.mxu0 0.0
    %488 = vmatprep.subr.mxu0 0.0
    %489 = vmatpush2.msra.mxu0 0.0
    %490 = vmatprep.subr.mxu0 0.0
    %491 = vmatpush2.msra.mxu0 0.0
    %492 = vmatprep.subr.mxu0 0.0
    %493 = vmatpush2.msra.mxu0 0.0
    %494 = vmatprep.subr.mxu0 0.0
    %495 = vmatpush2.msra.mxu0 0.0
    %496 = vmatprep.subr.mxu0 0.0
    %497 = vmatpush2.msra.mxu0 0.0
    %498 = vmatprep.subr.mxu0 0.0
    %499 = vmatpush2.msra.mxu0 0.0
    %500 = vmatprep.subr.mxu0 0.0
    %501 = vmatpush2.msra.mxu0 0.0
    %502 = vmatprep.subr.mxu0 0.0
    %503 = vmatpush2.msra.mxu0 0.0
    %504 = vmatprep.subr.mxu0 0.0
    %505 = vmatpush2.msra.mxu0 0.0
    %506 = vmatprep.subr.mxu0 0.0
    %507 = vmatpush2.msra.mxu0 0.0
    %508 = vmatprep.subr.mxu0 0.0
    %509 = vmatpush2.msra.mxu0 0.0
    %510 = vmatprep.subr.mxu0 0.0
    %511 = vmatpush2.msra.mxu0 0.0
    %512 = vmatprep.subr.mxu0 0.0
    %513 = vmatpush2.msra.mxu0 0.0
    %514 = vmatprep.mubr.f32.mxu0 0.0
    %515 = vmatmul.mubr.f32.gmra.mxu0 %v445
    %v516 = vpop.f32.mrf.mxu0
    %v517 = vadd.f32 %v442, %v516
    %v518 = vpop.f32.mrf.mxu0
    %519 = vmatprep.mubr.f32.mxu0 0.0
    %520 = vmatmul.mubr.f32.gmra.mxu0 %v448
    %v521 = vpop.f32.mrf.mxu0
    %v522 = vadd.f32 %v442, %v521
    %v523 = vpop.f32.mrf.mxu0
    %524 = vdwg.mxu0
    %v525 = vld [vmem:[#allocation10] sm:$0xff]
    %v526 = vld [vmem:[#allocation10 + $0x8] sm:$0xff]
    %v527 = vld [vmem:[#allocation10 + $0x10] sm:$0xff]
    %v528 = vld [vmem:[#allocation10 + $0x18] sm:$0xff]
    %v529 = vlaneseq
    %v530 = vshrl.u32 %v529, 7
    %v531 = vsub.s32 0, %v530
    %v532 = vrot.slane %v432, %v531
    %534 = vrot.lane.b32.xlu0 %v517, 96
    %v535 = vpop.permute.xlu0 %534
    %vm536 = vcmask 64512
    %v537 = vsel %vm536, %v517, 0
    %v539 = vsel %vm536, %v535, 0
    %541 = vmatprep.subr.mxu0 0.0
    %542 = vmatpush1.xpose.msra.mxu0 0.0
    %543 = vmatprep.subr.mxu0 0.0
    %544 = vmatpush1.xpose.msra.mxu0 0.0
    %545 = vmatprep.subr.mxu0 0.0
    %546 = vmatpush1.xpose.msra.mxu0 0.0
    %547 = vmatprep.subr.mxu0 0.0
    %548 = vmatpush1.xpose.msra.mxu0 0.0
    %549 = vmatprep.subr.mxu0 0.0
    %550 = vmatpush1.xpose.msra.mxu0 0.0
    %551 = vmatprep.subr.mxu0 0.0
    %552 = vmatpush1.xpose.msra.mxu0 0.0
    %553 = vmatprep.subr.mxu0 0.0
    %554 = vmatpush1.xpose.msra.mxu0 0.0
    %555 = vmatprep.subr.mxu0 0.0
    %556 = vmatpush1.xpose.msra.mxu0 0.0
    %557 = vmatprep.subr.mxu0 0.0
    %558 = vmatpush1.xpose.msra.mxu0 0.0
    %559 = vmatprep.subr.mxu0 0.0
    %560 = vmatpush1.xpose.msra.mxu0 0.0
    %561 = vmatprep.subr.mxu0 0.0
    %562 = vmatpush1.xpose.msra.mxu0 0.0
    %563 = vmatprep.subr.mxu0 0.0
    %564 = vmatpush1.xpose.msra.mxu0 0.0
    %565 = vmatprep.subr.mxu0 0.0
    %566 = vmatpush1.xpose.msra.mxu0 0.0
    %567 = vmatprep.subr.mxu0 0.0
    %568 = vmatpush1.xpose.msra.mxu0 0.0
    %569 = vmatprep.subr.mxu0 0.0
    %570 = vmatpush1.xpose.msra.mxu0 0.0
    %571 = vmatprep.subr.mxu0 0.0
    %572 = vmatpush1.xpose.msra.mxu0 %v539
    %573 = vmatprep.subr.mxu0 0.0
    %574 = vmatpush2.xpose.msra.mxu0 0.0
    %575 = vmatprep.subr.mxu0 0.0
    %576 = vmatpush2.xpose.msra.mxu0 0.0
    %577 = vmatprep.subr.mxu0 0.0
    %578 = vmatpush2.xpose.msra.mxu0 0.0
    %579 = vmatprep.subr.mxu0 0.0
    %580 = vmatpush2.xpose.msra.mxu0 0.0
    %581 = vmatprep.subr.mxu0 0.0
    %582 = vmatpush2.xpose.msra.mxu0 0.0
    %583 = vmatprep.subr.mxu0 0.0
    %584 = vmatpush2.xpose.msra.mxu0 0.0
    %585 = vmatprep.subr.mxu0 0.0
    %586 = vmatpush2.xpose.msra.mxu0 0.0
    %587 = vmatprep.subr.mxu0 0.0
    %588 = vmatpush2.xpose.msra.mxu0 0.0
    %589 = vmatprep.subr.mxu0 0.0
    %590 = vmatpush2.xpose.msra.mxu0 0.0
    %591 = vmatprep.subr.mxu0 0.0
    %592 = vmatpush2.xpose.msra.mxu0 0.0
    %593 = vmatprep.subr.mxu0 0.0
    %594 = vmatpush2.xpose.msra.mxu0 0.0
    %595 = vmatprep.subr.mxu0 0.0
    %596 = vmatpush2.xpose.msra.mxu0 0.0
    %597 = vmatprep.subr.mxu0 0.0
    %598 = vmatpush2.xpose.msra.mxu0 0.0
    %599 = vmatprep.subr.mxu0 0.0
    %600 = vmatpush2.xpose.msra.mxu0 0.0
    %601 = vmatprep.subr.mxu0 0.0
    %602 = vmatpush2.xpose.msra.mxu0 0.0
    %603 = vmatprep.subr.mxu0 0.0
    %604 = vmatpush2.xpose.msra.mxu0 0.0
    %605 = vmatprep.mubr.f32.mxu0 0.0
    %606 = vmatmul.mubr.f32.gmra.mxu0 %v537
    %v607 = vpop.f32.mrf.mxu0
    %v608 = vadd.f32 %v532, %v607
    %v609 = vpop.f32.mrf.mxu0
    %610 = vdwg.mxu0
    %v611 = vsel %vm536, %v608, -inf
    %612 = vmax.xlane.f32.xlu0 %v611
    %v613 = vpop.xlane.xlu0 %612
    %v614 = vsub.f32 %v608, %v613
    %v615 = vmul.f32 %v614, 1.442695
    %v616 = vpow.pop %v615
    %v617 = vsel %vm536, %v616, 0.0
    %618 = vadd.xlane.f32.xlu0 %v617
    %v619 = vpop.xlane.xlu0 %618
    %v620 = vrcp.pop %v619
    %v621 = vmul.f32 %v616, %v620
    %622 = vrot.lane.b32.xlu0 %v517, 64
    %v623 = vpop.permute.xlu0 %622
    %v626 = vsel %vm536, %v621, 0
    %628 = vmatprep.subr.mxu0 0.0
    %629 = vmatpush1.msra.mxu0 0.0
    %630 = vmatprep.subr.mxu0 0.0
    %631 = vmatpush1.msra.mxu0 0.0
    %632 = vmatprep.subr.mxu0 0.0
    %633 = vmatpush1.msra.mxu0 0.0
    %634 = vmatprep.subr.mxu0 0.0
    %635 = vmatpush1.msra.mxu0 0.0
    %636 = vmatprep.subr.mxu0 0.0
    %637 = vmatpush1.msra.mxu0 0.0
    %638 = vmatprep.subr.mxu0 0.0
    %639 = vmatpush1.msra.mxu0 0.0
    %640 = vmatprep.subr.mxu0 0.0
    %641 = vmatpush1.msra.mxu0 0.0
    %642 = vmatprep.subr.mxu0 0.0
    %643 = vmatpush1.msra.mxu0 0.0
    %644 = vmatprep.subr.mxu0 0.0
    %645 = vmatpush1.msra.mxu0 0.0
    %646 = vmatprep.subr.mxu0 0.0
    %647 = vmatpush1.msra.mxu0 0.0
    %648 = vmatprep.subr.mxu0 0.0
    %649 = vmatpush1.msra.mxu0 0.0
    %650 = vmatprep.subr.mxu0 0.0
    %651 = vmatpush1.msra.mxu0 0.0
    %652 = vmatprep.subr.mxu0 0.0
    %653 = vmatpush1.msra.mxu0 0.0
    %654 = vmatprep.subr.mxu0 0.0
    %655 = vmatpush1.msra.mxu0 0.0
    %656 = vmatprep.subr.mxu0 0.0
    %657 = vmatpush1.msra.mxu0 0.0
    %658 = vmatprep.subr.mxu0 0.0
    %659 = vmatpush1.msra.mxu0 %v623
    %660 = vmatprep.subr.mxu0 0.0
    %661 = vmatpush2.msra.mxu0 0.0
    %662 = vmatprep.subr.mxu0 0.0
    %663 = vmatpush2.msra.mxu0 0.0
    %664 = vmatprep.subr.mxu0 0.0
    %665 = vmatpush2.msra.mxu0 0.0
    %666 = vmatprep.subr.mxu0 0.0
    %667 = vmatpush2.msra.mxu0 0.0
    %668 = vmatprep.subr.mxu0 0.0
    %669 = vmatpush2.msra.mxu0 0.0
    %670 = vmatprep.subr.mxu0 0.0
    %671 = vmatpush2.msra.mxu0 0.0
    %672 = vmatprep.subr.mxu0 0.0
    %673 = vmatpush2.msra.mxu0 0.0
    %674 = vmatprep.subr.mxu0 0.0
    %675 = vmatpush2.msra.mxu0 0.0
    %676 = vmatprep.subr.mxu0 0.0
    %677 = vmatpush2.msra.mxu0 0.0
    %678 = vmatprep.subr.mxu0 0.0
    %679 = vmatpush2.msra.mxu0 0.0
    %680 = vmatprep.subr.mxu0 0.0
    %681 = vmatpush2.msra.mxu0 0.0
    %682 = vmatprep.subr.mxu0 0.0
    %683 = vmatpush2.msra.mxu0 0.0
    %684 = vmatprep.subr.mxu0 0.0
    %685 = vmatpush2.msra.mxu0 0.0
    %686 = vmatprep.subr.mxu0 0.0
    %687 = vmatpush2.msra.mxu0 0.0
    %688 = vmatprep.subr.mxu0 0.0
    %689 = vmatpush2.msra.mxu0 0.0
    %690 = vmatprep.subr.mxu0 0.0
    %691 = vmatpush2.msra.mxu0 0.0
    %692 = vmatprep.mubr.f32.mxu0 0.0
    %693 = vmatmul.mubr.f32.gmra.mxu0 %v626
    %v694 = vpop.f32.mrf.mxu0
    %v695 = vadd.f32 0.0, %v694
    %v696 = vpop.f32.mrf.mxu0
    %697 = vdwg.mxu0
    %698 = vrot.lane.b32.xlu0 %v517, 120
    %v699 = vpop.permute.xlu0 %698
    %700 = vrot.lane.b32.xlu0 %v517, 88
    %v701 = vpop.permute.xlu0 %700
    %v702 = vsel %vm536, %v699, 0
    %v704 = vsel %vm536, %v701, 0
    %706 = vmatprep.subr.mxu0 0.0
    %707 = vmatpush1.xpose.msra.mxu0 0.0
    %708 = vmatprep.subr.mxu0 0.0
    %709 = vmatpush1.xpose.msra.mxu0 0.0
    %710 = vmatprep.subr.mxu0 0.0
    %711 = vmatpush1.xpose.msra.mxu0 0.0
    %712 = vmatprep.subr.mxu0 0.0
    %713 = vmatpush1.xpose.msra.mxu0 0.0
    %714 = vmatprep.subr.mxu0 0.0
    %715 = vmatpush1.xpose.msra.mxu0 0.0
    %716 = vmatprep.subr.mxu0 0.0
    %717 = vmatpush1.xpose.msra.mxu0 0.0
    %718 = vmatprep.subr.mxu0 0.0
    %719 = vmatpush1.xpose.msra.mxu0 0.0
    %720 = vmatprep.subr.mxu0 0.0
    %721 = vmatpush1.xpose.msra.mxu0 0.0
    %722 = vmatprep.subr.mxu0 0.0
    %723 = vmatpush1.xpose.msra.mxu0 0.0
    %724 = vmatprep.subr.mxu0 0.0
    %725 = vmatpush1.xpose.msra.mxu0 0.0
    %726 = vmatprep.subr.mxu0 0.0
    %727 = vmatpush1.xpose.msra.mxu0 0.0
    %728 = vmatprep.subr.mxu0 0.0
    %729 = vmatpush1.xpose.msra.mxu0 0.0
    %730 = vmatprep.subr.mxu0 0.0
    %731 = vmatpush1.xpose.msra.mxu0 0.0
    %732 = vmatprep.subr.mxu0 0.0
    %733 = vmatpush1.xpose.msra.mxu0 0.0
    %734 = vmatprep.subr.mxu0 0.0
    %735 = vmatpush1.xpose.msra.mxu0 0.0
    %736 = vmatprep.subr.mxu0 0.0
    %737 = vmatpush1.xpose.msra.mxu0 %v704
    %738 = vmatprep.subr.mxu0 0.0
    %739 = vmatpush2.xpose.msra.mxu0 0.0
    %740 = vmatprep.subr.mxu0 0.0
    %741 = vmatpush2.xpose.msra.mxu0 0.0
    %742 = vmatprep.subr.mxu0 0.0
    %743 = vmatpush2.xpose.msra.mxu0 0.0
    %744 = vmatprep.subr.mxu0 0.0
    %745 = vmatpush2.xpose.msra.mxu0 0.0
    %746 = vmatprep.subr.mxu0 0.0
    %747 = vmatpush2.xpose.msra.mxu0 0.0
    %748 = vmatprep.subr.mxu0 0.0
    %749 = vmatpush2.xpose.msra.mxu0 0.0
    %750 = vmatprep.subr.mxu0 0.0
    %751 = vmatpush2.xpose.msra.mxu0 0.0
    %752 = vmatprep.subr.mxu0 0.0
    %753 = vmatpush2.xpose.msra.mxu0 0.0
    %754 = vmatprep.subr.mxu0 0.0
    %755 = vmatpush2.xpose.msra.mxu0 0.0
    %756 = vmatprep.subr.mxu0 0.0
    %757 = vmatpush2.xpose.msra.mxu0 0.0
    %758 = vmatprep.subr.mxu0 0.0
    %759 = vmatpush2.xpose.msra.mxu0 0.0
    %760 = vmatprep.subr.mxu0 0.0
    %761 = vmatpush2.xpose.msra.mxu0 0.0
    %762 = vmatprep.subr.mxu0 0.0
    %763 = vmatpush2.xpose.msra.mxu0 0.0
    %764 = vmatprep.subr.mxu0 0.0
    %765 = vmatpush2.xpose.msra.mxu0 0.0
    %766 = vmatprep.subr.mxu0 0.0
    %767 = vmatpush2.xpose.msra.mxu0 0.0
    %768 = vmatprep.subr.mxu0 0.0
    %769 = vmatpush2.xpose.msra.mxu0 0.0
    %770 = vmatprep.mubr.f32.mxu0 0.0
    %771 = vmatmul.mubr.f32.gmra.mxu0 %v702
    %v772 = vpop.f32.mrf.mxu0
    %v773 = vadd.f32 %v532, %v772
    %v774 = vpop.f32.mrf.mxu0
    %775 = vdwg.mxu0
    %v776 = vsel %vm536, %v773, -inf
    %777 = vmax.xlane.f32.xlu0 %v776
    %v778 = vpop.xlane.xlu0 %777
    %v779 = vsub.f32 %v773, %v778
    %v780 = vmul.f32 %v779, 1.442695
    %v781 = vpow.pop %v780
    %v782 = vsel %vm536, %v781, 0.0
    %783 = vadd.xlane.f32.xlu0 %v782
    %v784 = vpop.xlane.xlu0 %783
    %v785 = vrcp.pop %v784
    %v786 = vmul.f32 %v781, %v785
    %787 = vrot.lane.b32.xlu0 %v517, 56
    %v788 = vpop.permute.xlu0 %787
    %v791 = vsel %vm536, %v786, 0
    %793 = vmatprep.subr.mxu0 0.0
    %794 = vmatpush1.msra.mxu0 0.0
    %795 = vmatprep.subr.mxu0 0.0
    %796 = vmatpush1.msra.mxu0 0.0
    %797 = vmatprep.subr.mxu0 0.0
    %798 = vmatpush1.msra.mxu0 0.0
    %799 = vmatprep.subr.mxu0 0.0
    %800 = vmatpush1.msra.mxu0 0.0
    %801 = vmatprep.subr.mxu0 0.0
    %802 = vmatpush1.msra.mxu0 0.0
    %803 = vmatprep.subr.mxu0 0.0
    %804 = vmatpush1.msra.mxu0 0.0
    %805 = vmatprep.subr.mxu0 0.0
    %806 = vmatpush1.msra.mxu0 0.0
    %807 = vmatprep.subr.mxu0 0.0
    %808 = vmatpush1.msra.mxu0 0.0
    %809 = vmatprep.subr.mxu0 0.0
    %810 = vmatpush1.msra.mxu0 0.0
    %811 = vmatprep.subr.mxu0 0.0
    %812 = vmatpush1.msra.mxu0 0.0
    %813 = vmatprep.subr.mxu0 0.0
    %814 = vmatpush1.msra.mxu0 0.0
    %815 = vmatprep.subr.mxu0 0.0
    %816 = vmatpush1.msra.mxu0 0.0
    %817 = vmatprep.subr.mxu0 0.0
    %818 = vmatpush1.msra.mxu0 0.0
    %819 = vmatprep.subr.mxu0 0.0
    %820 = vmatpush1.msra.mxu0 0.0
    %821 = vmatprep.subr.mxu0 0.0
    %822 = vmatpush1.msra.mxu0 0.0
    %823 = vmatprep.subr.mxu0 0.0
    %824 = vmatpush1.msra.mxu0 %v788
    %825 = vmatprep.subr.mxu0 0.0
    %826 = vmatpush2.msra.mxu0 0.0
    %827 = vmatprep.subr.mxu0 0.0
    %828 = vmatpush2.msra.mxu0 0.0
    %829 = vmatprep.subr.mxu0 0.0
    %830 = vmatpush2.msra.mxu0 0.0
    %831 = vmatprep.subr.mxu0 0.0
    %832 = vmatpush2.msra.mxu0 0.0
    %833 = vmatprep.subr.mxu0 0.0
    %834 = vmatpush2.msra.mxu0 0.0
    %835 = vmatprep.subr.mxu0 0.0
    %836 = vmatpush2.msra.mxu0 0.0
    %837 = vmatprep.subr.mxu0 0.0
    %838 = vmatpush2.msra.mxu0 0.0
    %839 = vmatprep.subr.mxu0 0.0
    %840 = vmatpush2.msra.mxu0 0.0
    %841 = vmatprep.subr.mxu0 0.0
    %842 = vmatpush2.msra.mxu0 0.0
    %843 = vmatprep.subr.mxu0 0.0
    %844 = vmatpush2.msra.mxu0 0.0
    %845 = vmatprep.subr.mxu0 0.0
    %846 = vmatpush2.msra.mxu0 0.0
    %847 = vmatprep.subr.mxu0 0.0
    %848 = vmatpush2.msra.mxu0 0.0
    %849 = vmatprep.subr.mxu0 0.0
    %850 = vmatpush2.msra.mxu0 0.0
    %851 = vmatprep.subr.mxu0 0.0
    %852 = vmatpush2.msra.mxu0 0.0
    %853 = vmatprep.subr.mxu0 0.0
    %854 = vmatpush2.msra.mxu0 0.0
    %855 = vmatprep.subr.mxu0 0.0
    %856 = vmatpush2.msra.mxu0 0.0
    %857 = vmatprep.mubr.f32.mxu0 0.0
    %858 = vmatmul.mubr.f32.gmra.mxu0 %v791
    %v859 = vpop.f32.mrf.mxu0
    %v860 = vadd.f32 0.0, %v859
    %v861 = vpop.f32.mrf.mxu0
    %862 = vdwg.mxu0
    %v864 = vsel %vm536, %v860, 0
    %866 = vmatprep.subr.mxu0 0.0
    %867 = vmatpush1.msra.mxu0 0.0
    %868 = vmatprep.subr.mxu0 0.0
    %869 = vmatpush1.msra.mxu0 0.0
    %870 = vmatprep.subr.mxu0 0.0
    %871 = vmatpush1.msra.mxu0 0.0
    %872 = vmatprep.subr.mxu0 0.0
    %873 = vmatpush1.msra.mxu0 0.0
    %874 = vmatprep.subr.mxu0 0.0
    %875 = vmatpush1.msra.mxu0 0.0
    %876 = vmatprep.subr.mxu0 0.0
    %877 = vmatpush1.msra.mxu0 0.0
    %878 = vmatprep.subr.mxu0 0.0
    %879 = vmatpush1.msra.mxu0 0.0
    %880 = vmatprep.subr.mxu0 0.0
    %881 = vmatpush1.msra.mxu0 0.0
    %882 = vmatprep.subr.mxu0 0.0
    %883 = vmatpush1.msra.mxu0 0.0
    %884 = vmatprep.subr.mxu0 0.0
    %885 = vmatpush1.msra.mxu0 0.0
    %886 = vmatprep.subr.mxu0 0.0
    %887 = vmatpush1.msra.mxu0 0.0
    %888 = vmatprep.subr.mxu0 0.0
    %889 = vmatpush1.msra.mxu0 0.0
    %890 = vmatprep.subr.mxu0 0.0
    %891 = vmatpush1.msra.mxu0 0.0
    %892 = vmatprep.subr.mxu0 0.0
    %893 = vmatpush1.msra.mxu0 0.0
    %894 = vmatprep.subr.mxu0 0.0
    %895 = vmatpush1.msra.mxu0 0.0
    %896 = vmatprep.subr.mxu0 0.0
    %897 = vmatpush1.msra.mxu0 %v526
    %898 = vmatprep.subr.mxu0 0.0
    %899 = vmatpush2.msra.mxu0 0.0
    %900 = vmatprep.subr.mxu0 0.0
    %901 = vmatpush2.msra.mxu0 0.0
    %902 = vmatprep.subr.mxu0 0.0
    %903 = vmatpush2.msra.mxu0 0.0
    %904 = vmatprep.subr.mxu0 0.0
    %905 = vmatpush2.msra.mxu0 0.0
    %906 = vmatprep.subr.mxu0 0.0
    %907 = vmatpush2.msra.mxu0 0.0
    %908 = vmatprep.subr.mxu0 0.0
    %909 = vmatpush2.msra.mxu0 0.0
    %910 = vmatprep.subr.mxu0 0.0
    %911 = vmatpush2.msra.mxu0 0.0
    %912 = vmatprep.subr.mxu0 0.0
    %913 = vmatpush2.msra.mxu0 0.0
    %914 = vmatprep.subr.mxu0 0.0
    %915 = vmatpush2.msra.mxu0 0.0
    %916 = vmatprep.subr.mxu0 0.0
    %917 = vmatpush2.msra.mxu0 0.0
    %918 = vmatprep.subr.mxu0 0.0
    %919 = vmatpush2.msra.mxu0 0.0
    %920 = vmatprep.subr.mxu0 0.0
    %921 = vmatpush2.msra.mxu0 0.0
    %922 = vmatprep.subr.mxu0 0.0
    %923 = vmatpush2.msra.mxu0 0.0
    %924 = vmatprep.subr.mxu0 0.0
    %925 = vmatpush2.msra.mxu0 0.0
    %926 = vmatprep.subr.mxu0 0.0
    %927 = vmatpush2.msra.mxu0 0.0
    %928 = vmatprep.subr.mxu0 0.0
    %929 = vmatpush2.msra.mxu0 0.0
    %930 = vmatprep.mubr.f32.mxu0 0.0
    %931 = vmatmul.mubr.f32.gmra.mxu0 %v864
    %v932 = vpop.f32.mrf.mxu0
    %v933 = vadd.f32 0.0, %v932
    %v934 = vpop.f32.mrf.mxu0
    %935 = vdwg.mxu0
    %v937 = vsel %vm536, %v695, 0
    %939 = vmatprep.subr.mxu0 0.0
    %940 = vmatpush1.msra.mxu0 0.0
    %941 = vmatprep.subr.mxu0 0.0
    %942 = vmatpush1.msra.mxu0 0.0
    %943 = vmatprep.subr.mxu0 0.0
    %944 = vmatpush1.msra.mxu0 0.0
    %945 = vmatprep.subr.mxu0 0.0
    %946 = vmatpush1.msra.mxu0 0.0
    %947 = vmatprep.subr.mxu0 0.0
    %948 = vmatpush1.msra.mxu0 0.0
    %949 = vmatprep.subr.mxu0 0.0
    %950 = vmatpush1.msra.mxu0 0.0
    %951 = vmatprep.subr.mxu0 0.0
    %952 = vmatpush1.msra.mxu0 0.0
    %953 = vmatprep.subr.mxu0 0.0
    %954 = vmatpush1.msra.mxu0 0.0
    %955 = vmatprep.subr.mxu0 0.0
    %956 = vmatpush1.msra.mxu0 0.0
    %957 = vmatprep.subr.mxu0 0.0
    %958 = vmatpush1.msra.mxu0 0.0
    %959 = vmatprep.subr.mxu0 0.0
    %960 = vmatpush1.msra.mxu0 0.0
    %961 = vmatprep.subr.mxu0 0.0
    %962 = vmatpush1.msra.mxu0 0.0
    %963 = vmatprep.subr.mxu0 0.0
    %964 = vmatpush1.msra.mxu0 0.0
    %965 = vmatprep.subr.mxu0 0.0
    %966 = vmatpush1.msra.mxu0 0.0
    %967 = vmatprep.subr.mxu0 0.0
    %968 = vmatpush1.msra.mxu0 0.0
    %969 = vmatprep.subr.mxu0 0.0
    %970 = vmatpush1.msra.mxu0 %v525
    %971 = vmatprep.subr.mxu0 0.0
    %972 = vmatpush2.msra.mxu0 0.0
    %973 = vmatprep.subr.mxu0 0.0
    %974 = vmatpush2.msra.mxu0 0.0
    %975 = vmatprep.subr.mxu0 0.0
    %976 = vmatpush2.msra.mxu0 0.0
    %977 = vmatprep.subr.mxu0 0.0
    %978 = vmatpush2.msra.mxu0 0.0
    %979 = vmatprep.subr.mxu0 0.0
    %980 = vmatpush2.msra.mxu0 0.0
    %981 = vmatprep.subr.mxu0 0.0
    %982 = vmatpush2.msra.mxu0 0.0
    %983 = vmatprep.subr.mxu0 0.0
    %984 = vmatpush2.msra.mxu0 0.0
    %985 = vmatprep.subr.mxu0 0.0
    %986 = vmatpush2.msra.mxu0 0.0
    %987 = vmatprep.subr.mxu0 0.0
    %988 = vmatpush2.msra.mxu0 0.0
    %989 = vmatprep.subr.mxu0 0.0
    %990 = vmatpush2.msra.mxu0 0.0
    %991 = vmatprep.subr.mxu0 0.0
    %992 = vmatpush2.msra.mxu0 0.0
    %993 = vmatprep.subr.mxu0 0.0
    %994 = vmatpush2.msra.mxu0 0.0
    %995 = vmatprep.subr.mxu0 0.0
    %996 = vmatpush2.msra.mxu0 0.0
    %997 = vmatprep.subr.mxu0 0.0
    %998 = vmatpush2.msra.mxu0 0.0
    %999 = vmatprep.subr.mxu0 0.0
    %1000 = vmatpush2.msra.mxu0 0.0
    %1001 = vmatprep.subr.mxu0 0.0
    %1002 = vmatpush2.msra.mxu0 0.0
    %1003 = vmatprep.mubr.f32.mxu0 0.0
    %1004 = vmatmul.mubr.f32.gmra.mxu0 %v937
    %v1005 = vpop.f32.mrf.mxu0
    %v1006 = vadd.f32 %v933, %v1005
    %v1007 = vpop.f32.mrf.mxu0
    %1008 = vdwg.mxu0
    %1009 = vrot.lane.b32.xlu0 %v517, 112
    %v1010 = vpop.permute.xlu0 %1009
    %1011 = vrot.lane.b32.xlu0 %v517, 80
    %v1012 = vpop.permute.xlu0 %1011
    %v1013 = vsel %vm536, %v1010, 0
    %v1015 = vsel %vm536, %v1012, 0
    %1017 = vmatprep.subr.mxu0 0.0
    %1018 = vmatpush1.xpose.msra.mxu0 0.0
    %1019 = vmatprep.subr.mxu0 0.0
    %1020 = vmatpush1.xpose.msra.mxu0 0.0
    %1021 = vmatprep.subr.mxu0 0.0
    %1022 = vmatpush1.xpose.msra.mxu0 0.0
    %1023 = vmatprep.subr.mxu0 0.0
    %1024 = vmatpush1.xpose.msra.mxu0 0.0
    %1025 = vmatprep.subr.mxu0 0.0
    %1026 = vmatpush1.xpose.msra.mxu0 0.0
    %1027 = vmatprep.subr.mxu0 0.0
    %1028 = vmatpush1.xpose.msra.mxu0 0.0
    %1029 = vmatprep.subr.mxu0 0.0
    %1030 = vmatpush1.xpose.msra.mxu0 0.0
    %1031 = vmatprep.subr.mxu0 0.0
    %1032 = vmatpush1.xpose.msra.mxu0 0.0
    %1033 = vmatprep.subr.mxu0 0.0
    %1034 = vmatpush1.xpose.msra.mxu0 0.0
    %1035 = vmatprep.subr.mxu0 0.0
    %1036 = vmatpush1.xpose.msra.mxu0 0.0
    %1037 = vmatprep.subr.mxu0 0.0
    %1038 = vmatpush1.xpose.msra.mxu0 0.0
    %1039 = vmatprep.subr.mxu0 0.0
    %1040 = vmatpush1.xpose.msra.mxu0 0.0
    %1041 = vmatprep.subr.mxu0 0.0
    %1042 = vmatpush1.xpose.msra.mxu0 0.0
    %1043 = vmatprep.subr.mxu0 0.0
    %1044 = vmatpush1.xpose.msra.mxu0 0.0
    %1045 = vmatprep.subr.mxu0 0.0
    %1046 = vmatpush1.xpose.msra.mxu0 0.0
    %1047 = vmatprep.subr.mxu0 0.0
    %1048 = vmatpush1.xpose.msra.mxu0 %v1015
    %1049 = vmatprep.subr.mxu0 0.0
    %1050 = vmatpush2.xpose.msra.mxu0 0.0
    %1051 = vmatprep.subr.mxu0 0.0
    %1052 = vmatpush2.xpose.msra.mxu0 0.0
    %1053 = vmatprep.subr.mxu0 0.0
    %1054 = vmatpush2.xpose.msra.mxu0 0.0
    %1055 = vmatprep.subr.mxu0 0.0
    %1056 = vmatpush2.xpose.msra.mxu0 0.0
    %1057 = vmatprep.subr.mxu0 0.0
    %1058 = vmatpush2.xpose.msra.mxu0 0.0
    %1059 = vmatprep.subr.mxu0 0.0
    %1060 = vmatpush2.xpose.msra.mxu0 0.0
    %1061 = vmatprep.subr.mxu0 0.0
    %1062 = vmatpush2.xpose.msra.mxu0 0.0
    %1063 = vmatprep.subr.mxu0 0.0
    %1064 = vmatpush2.xpose.msra.mxu0 0.0
    %1065 = vmatprep.subr.mxu0 0.0
    %1066 = vmatpush2.xpose.msra.mxu0 0.0
    %1067 = vmatprep.subr.mxu0 0.0
    %1068 = vmatpush2.xpose.msra.mxu0 0.0
    %1069 = vmatprep.subr.mxu0 0.0
    %1070 = vmatpush2.xpose.msra.mxu0 0.0
    %1071 = vmatprep.subr.mxu0 0.0
    %1072 = vmatpush2.xpose.msra.mxu0 0.0
    %1073 = vmatprep.subr.mxu0 0.0
    %1074 = vmatpush2.xpose.msra.mxu0 0.0
    %1075 = vmatprep.subr.mxu0 0.0
    %1076 = vmatpush2.xpose.msra.mxu0 0.0
    %1077 = vmatprep.subr.mxu0 0.0
    %1078 = vmatpush2.xpose.msra.mxu0 0.0
    %1079 = vmatprep.subr.mxu0 0.0
    %1080 = vmatpush2.xpose.msra.mxu0 0.0
    %1081 = vmatprep.mubr.f32.mxu0 0.0
    %1082 = vmatmul.mubr.f32.gmra.mxu0 %v1013
    %v1083 = vpop.f32.mrf.mxu0
    %v1084 = vadd.f32 %v532, %v1083
    %v1085 = vpop.f32.mrf.mxu0
    %1086 = vdwg.mxu0
    %v1087 = vsel %vm536, %v1084, -inf
    %1088 = vmax.xlane.f32.xlu0 %v1087
    %v1089 = vpop.xlane.xlu0 %1088
    %v1090 = vsub.f32 %v1084, %v1089
    %v1091 = vmul.f32 %v1090, 1.442695
    %v1092 = vpow.pop %v1091
    %v1093 = vsel %vm536, %v1092, 0.0
    %1094 = vadd.xlane.f32.xlu0 %v1093
    %v1095 = vpop.xlane.xlu0 %1094
    %v1096 = vrcp.pop %v1095
    %v1097 = vmul.f32 %v1092, %v1096
    %1098 = vrot.lane.b32.xlu0 %v517, 48
    %v1099 = vpop.permute.xlu0 %1098
    %v1102 = vsel %vm536, %v1097, 0
    %1104 = vmatprep.subr.mxu0 0.0
    %1105 = vmatpush1.msra.mxu0 0.0
    %1106 = vmatprep.subr.mxu0 0.0
    %1107 = vmatpush1.msra.mxu0 0.0
    %1108 = vmatprep.subr.mxu0 0.0
    %1109 = vmatpush1.msra.mxu0 0.0
    %1110 = vmatprep.subr.mxu0 0.0
    %1111 = vmatpush1.msra.mxu0 0.0
    %1112 = vmatprep.subr.mxu0 0.0
    %1113 = vmatpush1.msra.mxu0 0.0
    %1114 = vmatprep.subr.mxu0 0.0
    %1115 = vmatpush1.msra.mxu0 0.0
    %1116 = vmatprep.subr.mxu0 0.0
    %1117 = vmatpush1.msra.mxu0 0.0
    %1118 = vmatprep.subr.mxu0 0.0
    %1119 = vmatpush1.msra.mxu0 0.0
    %1120 = vmatprep.subr.mxu0 0.0
    %1121 = vmatpush1.msra.mxu0 0.0
    %1122 = vmatprep.subr.mxu0 0.0
    %1123 = vmatpush1.msra.mxu0 0.0
    %1124 = vmatprep.subr.mxu0 0.0
    %1125 = vmatpush1.msra.mxu0 0.0
    %1126 = vmatprep.subr.mxu0 0.0
    %1127 = vmatpush1.msra.mxu0 0.0
    %1128 = vmatprep.subr.mxu0 0.0
    %1129 = vmatpush1.msra.mxu0 0.0
    %1130 = vmatprep.subr.mxu0 0.0
    %1131 = vmatpush1.msra.mxu0 0.0
    %1132 = vmatprep.subr.mxu0 0.0
    %1133 = vmatpush1.msra.mxu0 0.0
    %1134 = vmatprep.subr.mxu0 0.0
    %1135 = vmatpush1.msra.mxu0 %v1099
    %1136 = vmatprep.subr.mxu0 0.0
    %1137 = vmatpush2.msra.mxu0 0.0
    %1138 = vmatprep.subr.mxu0 0.0
    %1139 = vmatpush2.msra.mxu0 0.0
    %1140 = vmatprep.subr.mxu0 0.0
    %1141 = vmatpush2.msra.mxu0 0.0
    %1142 = vmatprep.subr.mxu0 0.0
    %1143 = vmatpush2.msra.mxu0 0.0
    %1144 = vmatprep.subr.mxu0 0.0
    %1145 = vmatpush2.msra.mxu0 0.0
    %1146 = vmatprep.subr.mxu0 0.0
    %1147 = vmatpush2.msra.mxu0 0.0
    %1148 = vmatprep.subr.mxu0 0.0
    %1149 = vmatpush2.msra.mxu0 0.0
    %1150 = vmatprep.subr.mxu0 0.0
    %1151 = vmatpush2.msra.mxu0 0.0
    %1152 = vmatprep.subr.mxu0 0.0
    %1153 = vmatpush2.msra.mxu0 0.0
    %1154 = vmatprep.subr.mxu0 0.0
    %1155 = vmatpush2.msra.mxu0 0.0
    %1156 = vmatprep.subr.mxu0 0.0
    %1157 = vmatpush2.msra.mxu0 0.0
    %1158 = vmatprep.subr.mxu0 0.0
    %1159 = vmatpush2.msra.mxu0 0.0
    %1160 = vmatprep.subr.mxu0 0.0
    %1161 = vmatpush2.msra.mxu0 0.0
    %1162 = vmatprep.subr.mxu0 0.0
    %1163 = vmatpush2.msra.mxu0 0.0
    %1164 = vmatprep.subr.mxu0 0.0
    %1165 = vmatpush2.msra.mxu0 0.0
    %1166 = vmatprep.subr.mxu0 0.0
    %1167 = vmatpush2.msra.mxu0 0.0
    %1168 = vmatprep.mubr.f32.mxu0 0.0
    %1169 = vmatmul.mubr.f32.gmra.mxu0 %v1102
    %v1170 = vpop.f32.mrf.mxu0
    %v1171 = vadd.f32 0.0, %v1170
    %v1172 = vpop.f32.mrf.mxu0
    %1173 = vdwg.mxu0
    %v1175 = vsel %vm536, %v1171, 0
    %1177 = vmatprep.subr.mxu0 0.0
    %1178 = vmatpush1.msra.mxu0 0.0
    %1179 = vmatprep.subr.mxu0 0.0
    %1180 = vmatpush1.msra.mxu0 0.0
    %1181 = vmatprep.subr.mxu0 0.0
    %1182 = vmatpush1.msra.mxu0 0.0
    %1183 = vmatprep.subr.mxu0 0.0
    %1184 = vmatpush1.msra.mxu0 0.0
    %1185 = vmatprep.subr.mxu0 0.0
    %1186 = vmatpush1.msra.mxu0 0.0
    %1187 = vmatprep.subr.mxu0 0.0
    %1188 = vmatpush1.msra.mxu0 0.0
    %1189 = vmatprep.subr.mxu0 0.0
    %1190 = vmatpush1.msra.mxu0 0.0
    %1191 = vmatprep.subr.mxu0 0.0
    %1192 = vmatpush1.msra.mxu0 0.0
    %1193 = vmatprep.subr.mxu0 0.0
    %1194 = vmatpush1.msra.mxu0 0.0
    %1195 = vmatprep.subr.mxu0 0.0
    %1196 = vmatpush1.msra.mxu0 0.0
    %1197 = vmatprep.subr.mxu0 0.0
    %1198 = vmatpush1.msra.mxu0 0.0
    %1199 = vmatprep.subr.mxu0 0.0
    %1200 = vmatpush1.msra.mxu0 0.0
    %1201 = vmatprep.subr.mxu0 0.0
    %1202 = vmatpush1.msra.mxu0 0.0
    %1203 = vmatprep.subr.mxu0 0.0
    %1204 = vmatpush1.msra.mxu0 0.0
    %1205 = vmatprep.subr.mxu0 0.0
    %1206 = vmatpush1.msra.mxu0 0.0
    %1207 = vmatprep.subr.mxu0 0.0
    %1208 = vmatpush1.msra.mxu0 %v527
    %1209 = vmatprep.subr.mxu0 0.0
    %1210 = vmatpush2.msra.mxu0 0.0
    %1211 = vmatprep.subr.mxu0 0.0
    %1212 = vmatpush2.msra.mxu0 0.0
    %1213 = vmatprep.subr.mxu0 0.0
    %1214 = vmatpush2.msra.mxu0 0.0
    %1215 = vmatprep.subr.mxu0 0.0
    %1216 = vmatpush2.msra.mxu0 0.0
    %1217 = vmatprep.subr.mxu0 0.0
    %1218 = vmatpush2.msra.mxu0 0.0
    %1219 = vmatprep.subr.mxu0 0.0
    %1220 = vmatpush2.msra.mxu0 0.0
    %1221 = vmatprep.subr.mxu0 0.0
    %1222 = vmatpush2.msra.mxu0 0.0
    %1223 = vmatprep.subr.mxu0 0.0
    %1224 = vmatpush2.msra.mxu0 0.0
    %1225 = vmatprep.subr.mxu0 0.0
    %1226 = vmatpush2.msra.mxu0 0.0
    %1227 = vmatprep.subr.mxu0 0.0
    %1228 = vmatpush2.msra.mxu0 0.0
    %1229 = vmatprep.subr.mxu0 0.0
    %1230 = vmatpush2.msra.mxu0 0.0
    %1231 = vmatprep.subr.mxu0 0.0
    %1232 = vmatpush2.msra.mxu0 0.0
    %1233 = vmatprep.subr.mxu0 0.0
    %1234 = vmatpush2.msra.mxu0 0.0
    %1235 = vmatprep.subr.mxu0 0.0
    %1236 = vmatpush2.msra.mxu0 0.0
    %1237 = vmatprep.subr.mxu0 0.0
    %1238 = vmatpush2.msra.mxu0 0.0
    %1239 = vmatprep.subr.mxu0 0.0
    %1240 = vmatpush2.msra.mxu0 0.0
    %1241 = vmatprep.mubr.f32.mxu0 0.0
    %1242 = vmatmul.mubr.f32.gmra.mxu0 %v1175
    %v1243 = vpop.f32.mrf.mxu0
    %v1244 = vadd.f32 0.0, %v1243
    %v1245 = vpop.f32.mrf.mxu0
    %1246 = vdwg.mxu0
    %v1247 = vadd.f32 %v1006, %v1244
    %1248 = vrot.lane.b32.xlu0 %v517, 104
    %v1249 = vpop.permute.xlu0 %1248
    %1250 = vrot.lane.b32.xlu0 %v517, 72
    %v1251 = vpop.permute.xlu0 %1250
    %v1252 = vsel %vm536, %v1249, 0
    %v1254 = vsel %vm536, %v1251, 0
    %1256 = vmatprep.subr.mxu0 0.0
    %1257 = vmatpush1.xpose.msra.mxu0 0.0
    %1258 = vmatprep.subr.mxu0 0.0
    %1259 = vmatpush1.xpose.msra.mxu0 0.0
    %1260 = vmatprep.subr.mxu0 0.0
    %1261 = vmatpush1.xpose.msra.mxu0 0.0
    %1262 = vmatprep.subr.mxu0 0.0
    %1263 = vmatpush1.xpose.msra.mxu0 0.0
    %1264 = vmatprep.subr.mxu0 0.0
    %1265 = vmatpush1.xpose.msra.mxu0 0.0
    %1266 = vmatprep.subr.mxu0 0.0
    %1267 = vmatpush1.xpose.msra.mxu0 0.0
    %1268 = vmatprep.subr.mxu0 0.0
    %1269 = vmatpush1.xpose.msra.mxu0 0.0
    %1270 = vmatprep.subr.mxu0 0.0
    %1271 = vmatpush1.xpose.msra.mxu0 0.0
    %1272 = vmatprep.subr.mxu0 0.0
    %1273 = vmatpush1.xpose.msra.mxu0 0.0
    %1274 = vmatprep.subr.mxu0 0.0
    %1275 = vmatpush1.xpose.msra.mxu0 0.0
    %1276 = vmatprep.subr.mxu0 0.0
    %1277 = vmatpush1.xpose.msra.mxu0 0.0
    %1278 = vmatprep.subr.mxu0 0.0
    %1279 = vmatpush1.xpose.msra.mxu0 0.0
    %1280 = vmatprep.subr.mxu0 0.0
    %1281 = vmatpush1.xpose.msra.mxu0 0.0
    %1282 = vmatprep.subr.mxu0 0.0
    %1283 = vmatpush1.xpose.msra.mxu0 0.0
    %1284 = vmatprep.subr.mxu0 0.0
    %1285 = vmatpush1.xpose.msra.mxu0 0.0
    %1286 = vmatprep.subr.mxu0 0.0
    %1287 = vmatpush1.xpose.msra.mxu0 %v1254
    %1288 = vmatprep.subr.mxu0 0.0
    %1289 = vmatpush2.xpose.msra.mxu0 0.0
    %1290 = vmatprep.subr.mxu0 0.0
    %1291 = vmatpush2.xpose.msra.mxu0 0.0
    %1292 = vmatprep.subr.mxu0 0.0
    %1293 = vmatpush2.xpose.msra.mxu0 0.0
    %1294 = vmatprep.subr.mxu0 0.0
    %1295 = vmatpush2.xpose.msra.mxu0 0.0
    %1296 = vmatprep.subr.mxu0 0.0
    %1297 = vmatpush2.xpose.msra.mxu0 0.0
    %1298 = vmatprep.subr.mxu0 0.0
    %1299 = vmatpush2.xpose.msra.mxu0 0.0
    %1300 = vmatprep.subr.mxu0 0.0
    %1301 = vmatpush2.xpose.msra.mxu0 0.0
    %1302 = vmatprep.subr.mxu0 0.0
    %1303 = vmatpush2.xpose.msra.mxu0 0.0
    %1304 = vmatprep.subr.mxu0 0.0
    %1305 = vmatpush2.xpose.msra.mxu0 0.0
    %1306 = vmatprep.subr.mxu0 0.0
    %1307 = vmatpush2.xpose.msra.mxu0 0.0
    %1308 = vmatprep.subr.mxu0 0.0
    %1309 = vmatpush2.xpose.msra.mxu0 0.0
    %1310 = vmatprep.subr.mxu0 0.0
    %1311 = vmatpush2.xpose.msra.mxu0 0.0
    %1312 = vmatprep.subr.mxu0 0.0
    %1313 = vmatpush2.xpose.msra.mxu0 0.0
    %1314 = vmatprep.subr.mxu0 0.0
    %1315 = vmatpush2.xpose.msra.mxu0 0.0
    %1316 = vmatprep.subr.mxu0 0.0
    %1317 = vmatpush2.xpose.msra.mxu0 0.0
    %1318 = vmatprep.subr.mxu0 0.0
    %1319 = vmatpush2.xpose.msra.mxu0 0.0
    %1320 = vmatprep.mubr.f32.mxu0 0.0
    %1321 = vmatmul.mubr.f32.gmra.mxu0 %v1252
    %v1322 = vpop.f32.mrf.mxu0
    %v1323 = vadd.f32 %v532, %v1322
    %v1324 = vpop.f32.mrf.mxu0
    %1325 = vdwg.mxu0
    %v1326 = vsel %vm536, %v1323, -inf
    %1327 = vmax.xlane.f32.xlu0 %v1326
    %v1328 = vpop.xlane.xlu0 %1327
    %v1329 = vsub.f32 %v1323, %v1328
    %v1330 = vmul.f32 %v1329, 1.442695
    %v1331 = vpow.pop %v1330
    %v1332 = vsel %vm536, %v1331, 0.0
    %1333 = vadd.xlane.f32.xlu0 %v1332
    %v1334 = vpop.xlane.xlu0 %1333
    %v1335 = vrcp.pop %v1334
    %v1336 = vmul.f32 %v1331, %v1335
    %1337 = vrot.lane.b32.xlu0 %v517, 40
    %v1338 = vpop.permute.xlu0 %1337
    %v1341 = vsel %vm536, %v1336, 0
    %1343 = vmatprep.subr.mxu0 0.0
    %1344 = vmatpush1.msra.mxu0 0.0
    %1345 = vmatprep.subr.mxu0 0.0
    %1346 = vmatpush1.msra.mxu0 0.0
    %1347 = vmatprep.subr.mxu0 0.0
    %1348 = vmatpush1.msra.mxu0 0.0
    %1349 = vmatprep.subr.mxu0 0.0
    %1350 = vmatpush1.msra.mxu0 0.0
    %1351 = vmatprep.subr.mxu0 0.0
    %1352 = vmatpush1.msra.mxu0 0.0
    %1353 = vmatprep.subr.mxu0 0.0
    %1354 = vmatpush1.msra.mxu0 0.0
    %1355 = vmatprep.subr.mxu0 0.0
    %1356 = vmatpush1.msra.mxu0 0.0
    %1357 = vmatprep.subr.mxu0 0.0
    %1358 = vmatpush1.msra.mxu0 0.0
    %1359 = vmatprep.subr.mxu0 0.0
    %1360 = vmatpush1.msra.mxu0 0.0
    %1361 = vmatprep.subr.mxu0 0.0
    %1362 = vmatpush1.msra.mxu0 0.0
    %1363 = vmatprep.subr.mxu0 0.0
    %1364 = vmatpush1.msra.mxu0 0.0
    %1365 = vmatprep.subr.mxu0 0.0
    %1366 = vmatpush1.msra.mxu0 0.0
    %1367 = vmatprep.subr.mxu0 0.0
    %1368 = vmatpush1.msra.mxu0 0.0
    %1369 = vmatprep.subr.mxu0 0.0
    %1370 = vmatpush1.msra.mxu0 0.0
    %1371 = vmatprep.subr.mxu0 0.0
    %1372 = vmatpush1.msra.mxu0 0.0
    %1373 = vmatprep.subr.mxu0 0.0
    %1374 = vmatpush1.msra.mxu0 %v1338
    %1375 = vmatprep.subr.mxu0 0.0
    %1376 = vmatpush2.msra.mxu0 0.0
    %1377 = vmatprep.subr.mxu0 0.0
    %1378 = vmatpush2.msra.mxu0 0.0
    %1379 = vmatprep.subr.mxu0 0.0
    %1380 = vmatpush2.msra.mxu0 0.0
    %1381 = vmatprep.subr.mxu0 0.0
    %1382 = vmatpush2.msra.mxu0 0.0
    %1383 = vmatprep.subr.mxu0 0.0
    %1384 = vmatpush2.msra.mxu0 0.0
    %1385 = vmatprep.subr.mxu0 0.0
    %1386 = vmatpush2.msra.mxu0 0.0
    %1387 = vmatprep.subr.mxu0 0.0
    %1388 = vmatpush2.msra.mxu0 0.0
    %1389 = vmatprep.subr.mxu0 0.0
    %1390 = vmatpush2.msra.mxu0 0.0
    %1391 = vmatprep.subr.mxu0 0.0
    %1392 = vmatpush2.msra.mxu0 0.0
    %1393 = vmatprep.subr.mxu0 0.0
    %1394 = vmatpush2.msra.mxu0 0.0
    %1395 = vmatprep.subr.mxu0 0.0
    %1396 = vmatpush2.msra.mxu0 0.0
    %1397 = vmatprep.subr.mxu0 0.0
    %1398 = vmatpush2.msra.mxu0 0.0
    %1399 = vmatprep.subr.mxu0 0.0
    %1400 = vmatpush2.msra.mxu0 0.0
    %1401 = vmatprep.subr.mxu0 0.0
    %1402 = vmatpush2.msra.mxu0 0.0
    %1403 = vmatprep.subr.mxu0 0.0
    %1404 = vmatpush2.msra.mxu0 0.0
    %1405 = vmatprep.subr.mxu0 0.0
    %1406 = vmatpush2.msra.mxu0 0.0
    %1407 = vmatprep.mubr.f32.mxu0 0.0
    %1408 = vmatmul.mubr.f32.gmra.mxu0 %v1341
    %v1409 = vpop.f32.mrf.mxu0
    %v1410 = vadd.f32 0.0, %v1409
    %v1411 = vpop.f32.mrf.mxu0
    %1412 = vdwg.mxu0
    %v1414 = vsel %vm536, %v1410, 0
    %1416 = vmatprep.subr.mxu0 0.0
    %1417 = vmatpush1.msra.mxu0 0.0
    %1418 = vmatprep.subr.mxu0 0.0
    %1419 = vmatpush1.msra.mxu0 0.0
    %1420 = vmatprep.subr.mxu0 0.0
    %1421 = vmatpush1.msra.mxu0 0.0
    %1422 = vmatprep.subr.mxu0 0.0
    %1423 = vmatpush1.msra.mxu0 0.0
    %1424 = vmatprep.subr.mxu0 0.0
    %1425 = vmatpush1.msra.mxu0 0.0
    %1426 = vmatprep.subr.mxu0 0.0
    %1427 = vmatpush1.msra.mxu0 0.0
    %1428 = vmatprep.subr.mxu0 0.0
    %1429 = vmatpush1.msra.mxu0 0.0
    %1430 = vmatprep.subr.mxu0 0.0
    %1431 = vmatpush1.msra.mxu0 0.0
    %1432 = vmatprep.subr.mxu0 0.0
    %1433 = vmatpush1.msra.mxu0 0.0
    %1434 = vmatprep.subr.mxu0 0.0
    %1435 = vmatpush1.msra.mxu0 0.0
    %1436 = vmatprep.subr.mxu0 0.0
    %1437 = vmatpush1.msra.mxu0 0.0
    %1438 = vmatprep.subr.mxu0 0.0
    %1439 = vmatpush1.msra.mxu0 0.0
    %1440 = vmatprep.subr.mxu0 0.0
    %1441 = vmatpush1.msra.mxu0 0.0
    %1442 = vmatprep.subr.mxu0 0.0
    %1443 = vmatpush1.msra.mxu0 0.0
    %1444 = vmatprep.subr.mxu0 0.0
    %1445 = vmatpush1.msra.mxu0 0.0
    %1446 = vmatprep.subr.mxu0 0.0
    %1447 = vmatpush1.msra.mxu0 %v528
    %1448 = vmatprep.subr.mxu0 0.0
    %1449 = vmatpush2.msra.mxu0 0.0
    %1450 = vmatprep.subr.mxu0 0.0
    %1451 = vmatpush2.msra.mxu0 0.0
    %1452 = vmatprep.subr.mxu0 0.0
    %1453 = vmatpush2.msra.mxu0 0.0
    %1454 = vmatprep.subr.mxu0 0.0
    %1455 = vmatpush2.msra.mxu0 0.0
    %1456 = vmatprep.subr.mxu0 0.0
    %1457 = vmatpush2.msra.mxu0 0.0
    %1458 = vmatprep.subr.mxu0 0.0
    %1459 = vmatpush2.msra.mxu0 0.0
    %1460 = vmatprep.subr.mxu0 0.0
    %1461 = vmatpush2.msra.mxu0 0.0
    %1462 = vmatprep.subr.mxu0 0.0
    %1463 = vmatpush2.msra.mxu0 0.0
    %1464 = vmatprep.subr.mxu0 0.0
    %1465 = vmatpush2.msra.mxu0 0.0
    %1466 = vmatprep.subr.mxu0 0.0
    %1467 = vmatpush2.msra.mxu0 0.0
    %1468 = vmatprep.subr.mxu0 0.0
    %1469 = vmatpush2.msra.mxu0 0.0
    %1470 = vmatprep.subr.mxu0 0.0
    %1471 = vmatpush2.msra.mxu0 0.0
    %1472 = vmatprep.subr.mxu0 0.0
    %1473 = vmatpush2.msra.mxu0 0.0
    %1474 = vmatprep.subr.mxu0 0.0
    %1475 = vmatpush2.msra.mxu0 0.0
    %1476 = vmatprep.subr.mxu0 0.0
    %1477 = vmatpush2.msra.mxu0 0.0
    %1478 = vmatprep.subr.mxu0 0.0
    %1479 = vmatpush2.msra.mxu0 0.0
    %1480 = vmatprep.mubr.f32.mxu0 0.0
    %1481 = vmatmul.mubr.f32.gmra.mxu0 %v1414
    %v1482 = vpop.f32.mrf.mxu0
    %v1483 = vadd.f32 0.0, %v1482
    %v1484 = vpop.f32.mrf.mxu0
    %1485 = vdwg.mxu0
    %v1486 = vadd.f32 %v1247, %v1483
    %v1487 = vlaneseq
    %v1488 = vshrl.u32 %v1487, 7
    %v1489 = vsub.s32 1, %v1488
    %v1490 = vrot.slane %v432, %v1489
    %1492 = vrot.lane.b32.xlu0 %v522, 96
    %v1493 = vpop.permute.xlu0 %1492
    %v1494 = vsel %vm536, %v522, 0
    %v1496 = vsel %vm536, %v1493, 0
    %1498 = vmatprep.subr.mxu0 0.0
    %1499 = vmatpush1.xpose.msra.mxu0 0.0
    %1500 = vmatprep.subr.mxu0 0.0
    %1501 = vmatpush1.xpose.msra.mxu0 0.0
    %1502 = vmatprep.subr.mxu0 0.0
    %1503 = vmatpush1.xpose.msra.mxu0 0.0
    %1504 = vmatprep.subr.mxu0 0.0
    %1505 = vmatpush1.xpose.msra.mxu0 0.0
    %1506 = vmatprep.subr.mxu0 0.0
    %1507 = vmatpush1.xpose.msra.mxu0 0.0
    %1508 = vmatprep.subr.mxu0 0.0
    %1509 = vmatpush1.xpose.msra.mxu0 0.0
    %1510 = vmatprep.subr.mxu0 0.0
    %1511 = vmatpush1.xpose.msra.mxu0 0.0
    %1512 = vmatprep.subr.mxu0 0.0
    %1513 = vmatpush1.xpose.msra.mxu0 0.0
    %1514 = vmatprep.subr.mxu0 0.0
    %1515 = vmatpush1.xpose.msra.mxu0 0.0
    %1516 = vmatprep.subr.mxu0 0.0
    %1517 = vmatpush1.xpose.msra.mxu0 0.0
    %1518 = vmatprep.subr.mxu0 0.0
    %1519 = vmatpush1.xpose.msra.mxu0 0.0
    %1520 = vmatprep.subr.mxu0 0.0
    %1521 = vmatpush1.xpose.msra.mxu0 0.0
    %1522 = vmatprep.subr.mxu0 0.0
    %1523 = vmatpush1.xpose.msra.mxu0 0.0
    %1524 = vmatprep.subr.mxu0 0.0
    %1525 = vmatpush1.xpose.msra.mxu0 0.0
    %1526 = vmatprep.subr.mxu0 0.0
    %1527 = vmatpush1.xpose.msra.mxu0 0.0
    %1528 = vmatprep.subr.mxu0 0.0
    %1529 = vmatpush1.xpose.msra.mxu0 %v1496
    %1530 = vmatprep.subr.mxu0 0.0
    %1531 = vmatpush2.xpose.msra.mxu0 0.0
    %1532 = vmatprep.subr.mxu0 0.0
    %1533 = vmatpush2.xpose.msra.mxu0 0.0
    %1534 = vmatprep.subr.mxu0 0.0
    %1535 = vmatpush2.xpose.msra.mxu0 0.0
    %1536 = vmatprep.subr.mxu0 0.0
    %1537 = vmatpush2.xpose.msra.mxu0 0.0
    %1538 = vmatprep.subr.mxu0 0.0
    %1539 = vmatpush2.xpose.msra.mxu0 0.0
    %1540 = vmatprep.subr.mxu0 0.0
    %1541 = vmatpush2.xpose.msra.mxu0 0.0
    %1542 = vmatprep.subr.mxu0 0.0
    %1543 = vmatpush2.xpose.msra.mxu0 0.0
    %1544 = vmatprep.subr.mxu0 0.0
    %1545 = vmatpush2.xpose.msra.mxu0 0.0
    %1546 = vmatprep.subr.mxu0 0.0
    %1547 = vmatpush2.xpose.msra.mxu0 0.0
    %1548 = vmatprep.subr.mxu0 0.0
    %1549 = vmatpush2.xpose.msra.mxu0 0.0
    %1550 = vmatprep.subr.mxu0 0.0
    %1551 = vmatpush2.xpose.msra.mxu0 0.0
    %1552 = vmatprep.subr.mxu0 0.0
    %1553 = vmatpush2.xpose.msra.mxu0 0.0
    %1554 = vmatprep.subr.mxu0 0.0
    %1555 = vmatpush2.xpose.msra.mxu0 0.0
    %1556 = vmatprep.subr.mxu0 0.0
    %1557 = vmatpush2.xpose.msra.mxu0 0.0
    %1558 = vmatprep.subr.mxu0 0.0
    %1559 = vmatpush2.xpose.msra.mxu0 0.0
    %1560 = vmatprep.subr.mxu0 0.0
    %1561 = vmatpush2.xpose.msra.mxu0 0.0
    %1562 = vmatprep.mubr.f32.mxu0 0.0
    %1563 = vmatmul.mubr.f32.gmra.mxu0 %v1494
    %v1564 = vpop.f32.mrf.mxu0
    %v1565 = vadd.f32 %v1490, %v1564
    %v1566 = vpop.f32.mrf.mxu0
    %1567 = vdwg.mxu0
    %v1568 = vsel %vm536, %v1565, -inf
    %1569 = vmax.xlane.f32.xlu0 %v1568
    %v1570 = vpop.xlane.xlu0 %1569
    %v1571 = vsub.f32 %v1565, %v1570
    %v1572 = vmul.f32 %v1571, 1.442695
    %v1573 = vpow.pop %v1572
    %v1574 = vsel %vm536, %v1573, 0.0
    %1575 = vadd.xlane.f32.xlu0 %v1574
    %v1576 = vpop.xlane.xlu0 %1575
    %v1577 = vrcp.pop %v1576
    %v1578 = vmul.f32 %v1573, %v1577
    %1579 = vrot.lane.b32.xlu0 %v522, 64
    %v1580 = vpop.permute.xlu0 %1579
    %v1583 = vsel %vm536, %v1578, 0
    %1585 = vmatprep.subr.mxu0 0.0
    %1586 = vmatpush1.msra.mxu0 0.0
    %1587 = vmatprep.subr.mxu0 0.0
    %1588 = vmatpush1.msra.mxu0 0.0
    %1589 = vmatprep.subr.mxu0 0.0
    %1590 = vmatpush1.msra.mxu0 0.0
    %1591 = vmatprep.subr.mxu0 0.0
    %1592 = vmatpush1.msra.mxu0 0.0
    %1593 = vmatprep.subr.mxu0 0.0
    %1594 = vmatpush1.msra.mxu0 0.0
    %1595 = vmatprep.subr.mxu0 0.0
    %1596 = vmatpush1.msra.mxu0 0.0
    %1597 = vmatprep.subr.mxu0 0.0
    %1598 = vmatpush1.msra.mxu0 0.0
    %1599 = vmatprep.subr.mxu0 0.0
    %1600 = vmatpush1.msra.mxu0 0.0
    %1601 = vmatprep.subr.mxu0 0.0
    %1602 = vmatpush1.msra.mxu0 0.0
    %1603 = vmatprep.subr.mxu0 0.0
    %1604 = vmatpush1.msra.mxu0 0.0
    %1605 = vmatprep.subr.mxu0 0.0
    %1606 = vmatpush1.msra.mxu0 0.0
    %1607 = vmatprep.subr.mxu0 0.0
    %1608 = vmatpush1.msra.mxu0 0.0
    %1609 = vmatprep.subr.mxu0 0.0
    %1610 = vmatpush1.msra.mxu0 0.0
    %1611 = vmatprep.subr.mxu0 0.0
    %1612 = vmatpush1.msra.mxu0 0.0
    %1613 = vmatprep.subr.mxu0 0.0
    %1614 = vmatpush1.msra.mxu0 0.0
    %1615 = vmatprep.subr.mxu0 0.0
    %1616 = vmatpush1.msra.mxu0 %v1580
    %1617 = vmatprep.subr.mxu0 0.0
    %1618 = vmatpush2.msra.mxu0 0.0
    %1619 = vmatprep.subr.mxu0 0.0
    %1620 = vmatpush2.msra.mxu0 0.0
    %1621 = vmatprep.subr.mxu0 0.0
    %1622 = vmatpush2.msra.mxu0 0.0
    %1623 = vmatprep.subr.mxu0 0.0
    %1624 = vmatpush2.msra.mxu0 0.0
    %1625 = vmatprep.subr.mxu0 0.0
    %1626 = vmatpush2.msra.mxu0 0.0
    %1627 = vmatprep.subr.mxu0 0.0
    %1628 = vmatpush2.msra.mxu0 0.0
    %1629 = vmatprep.subr.mxu0 0.0
    %1630 = vmatpush2.msra.mxu0 0.0
    %1631 = vmatprep.subr.mxu0 0.0
    %1632 = vmatpush2.msra.mxu0 0.0
    %1633 = vmatprep.subr.mxu0 0.0
    %1634 = vmatpush2.msra.mxu0 0.0
    %1635 = vmatprep.subr.mxu0 0.0
    %1636 = vmatpush2.msra.mxu0 0.0
    %1637 = vmatprep.subr.mxu0 0.0
    %1638 = vmatpush2.msra.mxu0 0.0
    %1639 = vmatprep.subr.mxu0 0.0
    %1640 = vmatpush2.msra.mxu0 0.0
    %1641 = vmatprep.subr.mxu0 0.0
    %1642 = vmatpush2.msra.mxu0 0.0
    %1643 = vmatprep.subr.mxu0 0.0
    %1644 = vmatpush2.msra.mxu0 0.0
    %1645 = vmatprep.subr.mxu0 0.0
    %1646 = vmatpush2.msra.mxu0 0.0
    %1647 = vmatprep.subr.mxu0 0.0
    %1648 = vmatpush2.msra.mxu0 0.0
    %1649 = vmatprep.mubr.f32.mxu0 0.0
    %1650 = vmatmul.mubr.f32.gmra.mxu0 %v1583
    %v1651 = vpop.f32.mrf.mxu0
    %v1652 = vadd.f32 0.0, %v1651
    %v1653 = vpop.f32.mrf.mxu0
    %1654 = vdwg.mxu0
    %1655 = vrot.lane.b32.xlu0 %v522, 120
    %v1656 = vpop.permute.xlu0 %1655
    %1657 = vrot.lane.b32.xlu0 %v522, 88
    %v1658 = vpop.permute.xlu0 %1657
    %v1659 = vsel %vm536, %v1656, 0
    %v1661 = vsel %vm536, %v1658, 0
    %1663 = vmatprep.subr.mxu0 0.0
    %1664 = vmatpush1.xpose.msra.mxu0 0.0
    %1665 = vmatprep.subr.mxu0 0.0
    %1666 = vmatpush1.xpose.msra.mxu0 0.0
    %1667 = vmatprep.subr.mxu0 0.0
    %1668 = vmatpush1.xpose.msra.mxu0 0.0
    %1669 = vmatprep.subr.mxu0 0.0
    %1670 = vmatpush1.xpose.msra.mxu0 0.0
    %1671 = vmatprep.subr.mxu0 0.0
    %1672 = vmatpush1.xpose.msra.mxu0 0.0
    %1673 = vmatprep.subr.mxu0 0.0
    %1674 = vmatpush1.xpose.msra.mxu0 0.0
    %1675 = vmatprep.subr.mxu0 0.0
    %1676 = vmatpush1.xpose.msra.mxu0 0.0
    %1677 = vmatprep.subr.mxu0 0.0
    %1678 = vmatpush1.xpose.msra.mxu0 0.0
    %1679 = vmatprep.subr.mxu0 0.0
    %1680 = vmatpush1.xpose.msra.mxu0 0.0
    %1681 = vmatprep.subr.mxu0 0.0
    %1682 = vmatpush1.xpose.msra.mxu0 0.0
    %1683 = vmatprep.subr.mxu0 0.0
    %1684 = vmatpush1.xpose.msra.mxu0 0.0
    %1685 = vmatprep.subr.mxu0 0.0
    %1686 = vmatpush1.xpose.msra.mxu0 0.0
    %1687 = vmatprep.subr.mxu0 0.0
    %1688 = vmatpush1.xpose.msra.mxu0 0.0
    %1689 = vmatprep.subr.mxu0 0.0
    %1690 = vmatpush1.xpose.msra.mxu0 0.0
    %1691 = vmatprep.subr.mxu0 0.0
    %1692 = vmatpush1.xpose.msra.mxu0 0.0
    %1693 = vmatprep.subr.mxu0 0.0
    %1694 = vmatpush1.xpose.msra.mxu0 %v1661
    %1695 = vmatprep.subr.mxu0 0.0
    %1696 = vmatpush2.xpose.msra.mxu0 0.0
    %1697 = vmatprep.subr.mxu0 0.0
    %1698 = vmatpush2.xpose.msra.mxu0 0.0
    %1699 = vmatprep.subr.mxu0 0.0
    %1700 = vmatpush2.xpose.msra.mxu0 0.0
    %1701 = vmatprep.subr.mxu0 0.0
    %1702 = vmatpush2.xpose.msra.mxu0 0.0
    %1703 = vmatprep.subr.mxu0 0.0
    %1704 = vmatpush2.xpose.msra.mxu0 0.0
    %1705 = vmatprep.subr.mxu0 0.0
    %1706 = vmatpush2.xpose.msra.mxu0 0.0
    %1707 = vmatprep.subr.mxu0 0.0
    %1708 = vmatpush2.xpose.msra.mxu0 0.0
    %1709 = vmatprep.subr.mxu0 0.0
    %1710 = vmatpush2.xpose.msra.mxu0 0.0
    %1711 = vmatprep.subr.mxu0 0.0
    %1712 = vmatpush2.xpose.msra.mxu0 0.0
    %1713 = vmatprep.subr.mxu0 0.0
    %1714 = vmatpush2.xpose.msra.mxu0 0.0
    %1715 = vmatprep.subr.mxu0 0.0
    %1716 = vmatpush2.xpose.msra.mxu0 0.0
    %1717 = vmatprep.subr.mxu0 0.0
    %1718 = vmatpush2.xpose.msra.mxu0 0.0
    %1719 = vmatprep.subr.mxu0 0.0
    %1720 = vmatpush2.xpose.msra.mxu0 0.0
    %1721 = vmatprep.subr.mxu0 0.0
    %1722 = vmatpush2.xpose.msra.mxu0 0.0
    %1723 = vmatprep.subr.mxu0 0.0
    %1724 = vmatpush2.xpose.msra.mxu0 0.0
    %1725 = vmatprep.subr.mxu0 0.0
    %1726 = vmatpush2.xpose.msra.mxu0 0.0
    %1727 = vmatprep.mubr.f32.mxu0 0.0
    %1728 = vmatmul.mubr.f32.gmra.mxu0 %v1659
    %v1729 = vpop.f32.mrf.mxu0
    %v1730 = vadd.f32 %v1490, %v1729
    %v1731 = vpop.f32.mrf.mxu0
    %1732 = vdwg.mxu0
    %v1733 = vsel %vm536, %v1730, -inf
    %1734 = vmax.xlane.f32.xlu0 %v1733
    %v1735 = vpop.xlane.xlu0 %1734
    %v1736 = vsub.f32 %v1730, %v1735
    %v1737 = vmul.f32 %v1736, 1.442695
    %v1738 = vpow.pop %v1737
    %v1739 = vsel %vm536, %v1738, 0.0
    %1740 = vadd.xlane.f32.xlu0 %v1739
    %v1741 = vpop.xlane.xlu0 %1740
    %v1742 = vrcp.pop %v1741
    %v1743 = vmul.f32 %v1738, %v1742
    %1744 = vrot.lane.b32.xlu0 %v522, 56
    %v1745 = vpop.permute.xlu0 %1744
    %v1748 = vsel %vm536, %v1743, 0
    %1750 = vmatprep.subr.mxu0 0.0
    %1751 = vmatpush1.msra.mxu0 0.0
    %1752 = vmatprep.subr.mxu0 0.0
    %1753 = vmatpush1.msra.mxu0 0.0
    %1754 = vmatprep.subr.mxu0 0.0
    %1755 = vmatpush1.msra.mxu0 0.0
    %1756 = vmatprep.subr.mxu0 0.0
    %1757 = vmatpush1.msra.mxu0 0.0
    %1758 = vmatprep.subr.mxu0 0.0
    %1759 = vmatpush1.msra.mxu0 0.0
    %1760 = vmatprep.subr.mxu0 0.0
    %1761 = vmatpush1.msra.mxu0 0.0
    %1762 = vmatprep.subr.mxu0 0.0
    %1763 = vmatpush1.msra.mxu0 0.0
    %1764 = vmatprep.subr.mxu0 0.0
    %1765 = vmatpush1.msra.mxu0 0.0
    %1766 = vmatprep.subr.mxu0 0.0
    %1767 = vmatpush1.msra.mxu0 0.0
    %1768 = vmatprep.subr.mxu0 0.0
    %1769 = vmatpush1.msra.mxu0 0.0
    %1770 = vmatprep.subr.mxu0 0.0
    %1771 = vmatpush1.msra.mxu0 0.0
    %1772 = vmatprep.subr.mxu0 0.0
    %1773 = vmatpush1.msra.mxu0 0.0
    %1774 = vmatprep.subr.mxu0 0.0
    %1775 = vmatpush1.msra.mxu0 0.0
    %1776 = vmatprep.subr.mxu0 0.0
    %1777 = vmatpush1.msra.mxu0 0.0
    %1778 = vmatprep.subr.mxu0 0.0
    %1779 = vmatpush1.msra.mxu0 0.0
    %1780 = vmatprep.subr.mxu0 0.0
    %1781 = vmatpush1.msra.mxu0 %v1745
    %1782 = vmatprep.subr.mxu0 0.0
    %1783 = vmatpush2.msra.mxu0 0.0
    %1784 = vmatprep.subr.mxu0 0.0
    %1785 = vmatpush2.msra.mxu0 0.0
    %1786 = vmatprep.subr.mxu0 0.0
    %1787 = vmatpush2.msra.mxu0 0.0
    %1788 = vmatprep.subr.mxu0 0.0
    %1789 = vmatpush2.msra.mxu0 0.0
    %1790 = vmatprep.subr.mxu0 0.0
    %1791 = vmatpush2.msra.mxu0 0.0
    %1792 = vmatprep.subr.mxu0 0.0
    %1793 = vmatpush2.msra.mxu0 0.0
    %1794 = vmatprep.subr.mxu0 0.0
    %1795 = vmatpush2.msra.mxu0 0.0
    %1796 = vmatprep.subr.mxu0 0.0
    %1797 = vmatpush2.msra.mxu0 0.0
    %1798 = vmatprep.subr.mxu0 0.0
    %1799 = vmatpush2.msra.mxu0 0.0
    %1800 = vmatprep.subr.mxu0 0.0
    %1801 = vmatpush2.msra.mxu0 0.0
    %1802 = vmatprep.subr.mxu0 0.0
    %1803 = vmatpush2.msra.mxu0 0.0
    %1804 = vmatprep.subr.mxu0 0.0
    %1805 = vmatpush2.msra.mxu0 0.0
    %1806 = vmatprep.subr.mxu0 0.0
    %1807 = vmatpush2.msra.mxu0 0.0
    %1808 = vmatprep.subr.mxu0 0.0
    %1809 = vmatpush2.msra.mxu0 0.0
    %1810 = vmatprep.subr.mxu0 0.0
    %1811 = vmatpush2.msra.mxu0 0.0
    %1812 = vmatprep.subr.mxu0 0.0
    %1813 = vmatpush2.msra.mxu0 0.0
    %1814 = vmatprep.mubr.f32.mxu0 0.0
    %1815 = vmatmul.mubr.f32.gmra.mxu0 %v1748
    %v1816 = vpop.f32.mrf.mxu0
    %v1817 = vadd.f32 0.0, %v1816
    %v1818 = vpop.f32.mrf.mxu0
    %1819 = vdwg.mxu0
    %v1821 = vsel %vm536, %v1817, 0
    %1823 = vmatprep.subr.mxu0 0.0
    %1824 = vmatpush1.msra.mxu0 0.0
    %1825 = vmatprep.subr.mxu0 0.0
    %1826 = vmatpush1.msra.mxu0 0.0
    %1827 = vmatprep.subr.mxu0 0.0
    %1828 = vmatpush1.msra.mxu0 0.0
    %1829 = vmatprep.subr.mxu0 0.0
    %1830 = vmatpush1.msra.mxu0 0.0
    %1831 = vmatprep.subr.mxu0 0.0
    %1832 = vmatpush1.msra.mxu0 0.0
    %1833 = vmatprep.subr.mxu0 0.0
    %1834 = vmatpush1.msra.mxu0 0.0
    %1835 = vmatprep.subr.mxu0 0.0
    %1836 = vmatpush1.msra.mxu0 0.0
    %1837 = vmatprep.subr.mxu0 0.0
    %1838 = vmatpush1.msra.mxu0 0.0
    %1839 = vmatprep.subr.mxu0 0.0
    %1840 = vmatpush1.msra.mxu0 0.0
    %1841 = vmatprep.subr.mxu0 0.0
    %1842 = vmatpush1.msra.mxu0 0.0
    %1843 = vmatprep.subr.mxu0 0.0
    %1844 = vmatpush1.msra.mxu0 0.0
    %1845 = vmatprep.subr.mxu0 0.0
    %1846 = vmatpush1.msra.mxu0 0.0
    %1847 = vmatprep.subr.mxu0 0.0
    %1848 = vmatpush1.msra.mxu0 0.0
    %1849 = vmatprep.subr.mxu0 0.0
    %1850 = vmatpush1.msra.mxu0 0.0
    %1851 = vmatprep.subr.mxu0 0.0
    %1852 = vmatpush1.msra.mxu0 0.0
    %1853 = vmatprep.subr.mxu0 0.0
    %1854 = vmatpush1.msra.mxu0 %v526
    %1855 = vmatprep.subr.mxu0 0.0
    %1856 = vmatpush2.msra.mxu0 0.0
    %1857 = vmatprep.subr.mxu0 0.0
    %1858 = vmatpush2.msra.mxu0 0.0
    %1859 = vmatprep.subr.mxu0 0.0
    %1860 = vmatpush2.msra.mxu0 0.0
    %1861 = vmatprep.subr.mxu0 0.0
    %1862 = vmatpush2.msra.mxu0 0.0
    %1863 = vmatprep.subr.mxu0 0.0
    %1864 = vmatpush2.msra.mxu0 0.0
    %1865 = vmatprep.subr.mxu0 0.0
    %1866 = vmatpush2.msra.mxu0 0.0
    %1867 = vmatprep.subr.mxu0 0.0
    %1868 = vmatpush2.msra.mxu0 0.0
    %1869 = vmatprep.subr.mxu0 0.0
    %1870 = vmatpush2.msra.mxu0 0.0
    %1871 = vmatprep.subr.mxu0 0.0
    %1872 = vmatpush2.msra.mxu0 0.0
    %1873 = vmatprep.subr.mxu0 0.0
    %1874 = vmatpush2.msra.mxu0 0.0
    %1875 = vmatprep.subr.mxu0 0.0
    %1876 = vmatpush2.msra.mxu0 0.0
    %1877 = vmatprep.subr.mxu0 0.0
    %1878 = vmatpush2.msra.mxu0 0.0
    %1879 = vmatprep.subr.mxu0 0.0
    %1880 = vmatpush2.msra.mxu0 0.0
    %1881 = vmatprep.subr.mxu0 0.0
    %1882 = vmatpush2.msra.mxu0 0.0
    %1883 = vmatprep.subr.mxu0 0.0
    %1884 = vmatpush2.msra.mxu0 0.0
    %1885 = vmatprep.subr.mxu0 0.0
    %1886 = vmatpush2.msra.mxu0 0.0
    %1887 = vmatprep.mubr.f32.mxu0 0.0
    %1888 = vmatmul.mubr.f32.gmra.mxu0 %v1821
    %v1889 = vpop.f32.mrf.mxu0
    %v1890 = vadd.f32 0.0, %v1889
    %v1891 = vpop.f32.mrf.mxu0
    %1892 = vdwg.mxu0
    %v1894 = vsel %vm536, %v1652, 0
    %1896 = vmatprep.subr.mxu0 0.0
    %1897 = vmatpush1.msra.mxu0 0.0
    %1898 = vmatprep.subr.mxu0 0.0
    %1899 = vmatpush1.msra.mxu0 0.0
    %1900 = vmatprep.subr.mxu0 0.0
    %1901 = vmatpush1.msra.mxu0 0.0
    %1902 = vmatprep.subr.mxu0 0.0
    %1903 = vmatpush1.msra.mxu0 0.0
    %1904 = vmatprep.subr.mxu0 0.0
    %1905 = vmatpush1.msra.mxu0 0.0
    %1906 = vmatprep.subr.mxu0 0.0
    %1907 = vmatpush1.msra.mxu0 0.0
    %1908 = vmatprep.subr.mxu0 0.0
    %1909 = vmatpush1.msra.mxu0 0.0
    %1910 = vmatprep.subr.mxu0 0.0
    %1911 = vmatpush1.msra.mxu0 0.0
    %1912 = vmatprep.subr.mxu0 0.0
    %1913 = vmatpush1.msra.mxu0 0.0
    %1914 = vmatprep.subr.mxu0 0.0
    %1915 = vmatpush1.msra.mxu0 0.0
    %1916 = vmatprep.subr.mxu0 0.0
    %1917 = vmatpush1.msra.mxu0 0.0
    %1918 = vmatprep.subr.mxu0 0.0
    %1919 = vmatpush1.msra.mxu0 0.0
    %1920 = vmatprep.subr.mxu0 0.0
    %1921 = vmatpush1.msra.mxu0 0.0
    %1922 = vmatprep.subr.mxu0 0.0
    %1923 = vmatpush1.msra.mxu0 0.0
    %1924 = vmatprep.subr.mxu0 0.0
    %1925 = vmatpush1.msra.mxu0 0.0
    %1926 = vmatprep.subr.mxu0 0.0
    %1927 = vmatpush1.msra.mxu0 %v525
    %1928 = vmatprep.subr.mxu0 0.0
    %1929 = vmatpush2.msra.mxu0 0.0
    %1930 = vmatprep.subr.mxu0 0.0
    %1931 = vmatpush2.msra.mxu0 0.0
    %1932 = vmatprep.subr.mxu0 0.0
    %1933 = vmatpush2.msra.mxu0 0.0
    %1934 = vmatprep.subr.mxu0 0.0
    %1935 = vmatpush2.msra.mxu0 0.0
    %1936 = vmatprep.subr.mxu0 0.0
    %1937 = vmatpush2.msra.mxu0 0.0
    %1938 = vmatprep.subr.mxu0 0.0
    %1939 = vmatpush2.msra.mxu0 0.0
    %1940 = vmatprep.subr.mxu0 0.0
    %1941 = vmatpush2.msra.mxu0 0.0
    %1942 = vmatprep.subr.mxu0 0.0
    %1943 = vmatpush2.msra.mxu0 0.0
    %1944 = vmatprep.subr.mxu0 0.0
    %1945 = vmatpush2.msra.mxu0 0.0
    %1946 = vmatprep.subr.mxu0 0.0
    %1947 = vmatpush2.msra.mxu0 0.0
    %1948 = vmatprep.subr.mxu0 0.0
    %1949 = vmatpush2.msra.mxu0 0.0
    %1950 = vmatprep.subr.mxu0 0.0
    %1951 = vmatpush2.msra.mxu0 0.0
    %1952 = vmatprep.subr.mxu0 0.0
    %1953 = vmatpush2.msra.mxu0 0.0
    %1954 = vmatprep.subr.mxu0 0.0
    %1955 = vmatpush2.msra.mxu0 0.0
    %1956 = vmatprep.subr.mxu0 0.0
    %1957 = vmatpush2.msra.mxu0 0.0
    %1958 = vmatprep.subr.mxu0 0.0
    %1959 = vmatpush2.msra.mxu0 0.0
    %1960 = vmatprep.mubr.f32.mxu0 0.0
    %1961 = vmatmul.mubr.f32.gmra.mxu0 %v1894
    %v1962 = vpop.f32.mrf.mxu0
    %v1963 = vadd.f32 %v1890, %v1962
    %v1964 = vpop.f32.mrf.mxu0
    %1965 = vdwg.mxu0
    %1966 = vrot.lane.b32.xlu0 %v522, 112
    %v1967 = vpop.permute.xlu0 %1966
    %1968 = vrot.lane.b32.xlu0 %v522, 80
    %v1969 = vpop.permute.xlu0 %1968
    %v1970 = vsel %vm536, %v1967, 0
    %v1972 = vsel %vm536, %v1969, 0
    %1974 = vmatprep.subr.mxu0 0.0
    %1975 = vmatpush1.xpose.msra.mxu0 0.0
    %1976 = vmatprep.subr.mxu0 0.0
    %1977 = vmatpush1.xpose.msra.mxu0 0.0
    %1978 = vmatprep.subr.mxu0 0.0
    %1979 = vmatpush1.xpose.msra.mxu0 0.0
    %1980 = vmatprep.subr.mxu0 0.0
    %1981 = vmatpush1.xpose.msra.mxu0 0.0
    %1982 = vmatprep.subr.mxu0 0.0
    %1983 = vmatpush1.xpose.msra.mxu0 0.0
    %1984 = vmatprep.subr.mxu0 0.0
    %1985 = vmatpush1.xpose.msra.mxu0 0.0
    %1986 = vmatprep.subr.mxu0 0.0
    %1987 = vmatpush1.xpose.msra.mxu0 0.0
    %1988 = vmatprep.subr.mxu0 0.0
    %1989 = vmatpush1.xpose.msra.mxu0 0.0
    %1990 = vmatprep.subr.mxu0 0.0
    %1991 = vmatpush1.xpose.msra.mxu0 0.0
    %1992 = vmatprep.subr.mxu0 0.0
    %1993 = vmatpush1.xpose.msra.mxu0 0.0
    %1994 = vmatprep.subr.mxu0 0.0
    %1995 = vmatpush1.xpose.msra.mxu0 0.0
    %1996 = vmatprep.subr.mxu0 0.0
    %1997 = vmatpush1.xpose.msra.mxu0 0.0
    %1998 = vmatprep.subr.mxu0 0.0
    %1999 = vmatpush1.xpose.msra.mxu0 0.0
    %2000 = vmatprep.subr.mxu0 0.0
    %2001 = vmatpush1.xpose.msra.mxu0 0.0
    %2002 = vmatprep.subr.mxu0 0.0
    %2003 = vmatpush1.xpose.msra.mxu0 0.0
    %2004 = vmatprep.subr.mxu0 0.0
    %2005 = vmatpush1.xpose.msra.mxu0 %v1972
    %2006 = vmatprep.subr.mxu0 0.0
    %2007 = vmatpush2.xpose.msra.mxu0 0.0
    %2008 = vmatprep.subr.mxu0 0.0
    %2009 = vmatpush2.xpose.msra.mxu0 0.0
    %2010 = vmatprep.subr.mxu0 0.0
    %2011 = vmatpush2.xpose.msra.mxu0 0.0
    %2012 = vmatprep.subr.mxu0 0.0
    %2013 = vmatpush2.xpose.msra.mxu0 0.0
    %2014 = vmatprep.subr.mxu0 0.0
    %2015 = vmatpush2.xpose.msra.mxu0 0.0
    %2016 = vmatprep.subr.mxu0 0.0
    %2017 = vmatpush2.xpose.msra.mxu0 0.0
    %2018 = vmatprep.subr.mxu0 0.0
    %2019 = vmatpush2.xpose.msra.mxu0 0.0
    %2020 = vmatprep.subr.mxu0 0.0
    %2021 = vmatpush2.xpose.msra.mxu0 0.0
    %2022 = vmatprep.subr.mxu0 0.0
    %2023 = vmatpush2.xpose.msra.mxu0 0.0
    %2024 = vmatprep.subr.mxu0 0.0
    %2025 = vmatpush2.xpose.msra.mxu0 0.0
    %2026 = vmatprep.subr.mxu0 0.0
    %2027 = vmatpush2.xpose.msra.mxu0 0.0
    %2028 = vmatprep.subr.mxu0 0.0
    %2029 = vmatpush2.xpose.msra.mxu0 0.0
    %2030 = vmatprep.subr.mxu0 0.0
    %2031 = vmatpush2.xpose.msra.mxu0 0.0
    %2032 = vmatprep.subr.mxu0 0.0
    %2033 = vmatpush2.xpose.msra.mxu0 0.0
    %2034 = vmatprep.subr.mxu0 0.0
    %2035 = vmatpush2.xpose.msra.mxu0 0.0
    %2036 = vmatprep.subr.mxu0 0.0
    %2037 = vmatpush2.xpose.msra.mxu0 0.0
    %2038 = vmatprep.mubr.f32.mxu0 0.0
    %2039 = vmatmul.mubr.f32.gmra.mxu0 %v1970
    %v2040 = vpop.f32.mrf.mxu0
    %v2041 = vadd.f32 %v1490, %v2040
    %v2042 = vpop.f32.mrf.mxu0
    %2043 = vdwg.mxu0
    %v2044 = vsel %vm536, %v2041, -inf
    %2045 = vmax.xlane.f32.xlu0 %v2044
    %v2046 = vpop.xlane.xlu0 %2045
    %v2047 = vsub.f32 %v2041, %v2046
    %v2048 = vmul.f32 %v2047, 1.442695
    %v2049 = vpow.pop %v2048
    %v2050 = vsel %vm536, %v2049, 0.0
    %2051 = vadd.xlane.f32.xlu0 %v2050
    %v2052 = vpop.xlane.xlu0 %2051
    %v2053 = vrcp.pop %v2052
    %v2054 = vmul.f32 %v2049, %v2053
    %2055 = vrot.lane.b32.xlu0 %v522, 48
    %v2056 = vpop.permute.xlu0 %2055
    %v2059 = vsel %vm536, %v2054, 0
    %2061 = vmatprep.subr.mxu0 0.0
    %2062 = vmatpush1.msra.mxu0 0.0
    %2063 = vmatprep.subr.mxu0 0.0
    %2064 = vmatpush1.msra.mxu0 0.0
    %2065 = vmatprep.subr.mxu0 0.0
    %2066 = vmatpush1.msra.mxu0 0.0
    %2067 = vmatprep.subr.mxu0 0.0
    %2068 = vmatpush1.msra.mxu0 0.0
    %2069 = vmatprep.subr.mxu0 0.0
    %2070 = vmatpush1.msra.mxu0 0.0
    %2071 = vmatprep.subr.mxu0 0.0
    %2072 = vmatpush1.msra.mxu0 0.0
    %2073 = vmatprep.subr.mxu0 0.0
    %2074 = vmatpush1.msra.mxu0 0.0
    %2075 = vmatprep.subr.mxu0 0.0
    %2076 = vmatpush1.msra.mxu0 0.0
    %2077 = vmatprep.subr.mxu0 0.0
    %2078 = vmatpush1.msra.mxu0 0.0
    %2079 = vmatprep.subr.mxu0 0.0
    %2080 = vmatpush1.msra.mxu0 0.0
    %2081 = vmatprep.subr.mxu0 0.0
    %2082 = vmatpush1.msra.mxu0 0.0
    %2083 = vmatprep.subr.mxu0 0.0
    %2084 = vmatpush1.msra.mxu0 0.0
    %2085 = vmatprep.subr.mxu0 0.0
    %2086 = vmatpush1.msra.mxu0 0.0
    %2087 = vmatprep.subr.mxu0 0.0
    %2088 = vmatpush1.msra.mxu0 0.0
    %2089 = vmatprep.subr.mxu0 0.0
    %2090 = vmatpush1.msra.mxu0 0.0
    %2091 = vmatprep.subr.mxu0 0.0
    %2092 = vmatpush1.msra.mxu0 %v2056
    %2093 = vmatprep.subr.mxu0 0.0
    %2094 = vmatpush2.msra.mxu0 0.0
    %2095 = vmatprep.subr.mxu0 0.0
    %2096 = vmatpush2.msra.mxu0 0.0
    %2097 = vmatprep.subr.mxu0 0.0
    %2098 = vmatpush2.msra.mxu0 0.0
    %2099 = vmatprep.subr.mxu0 0.0
    %2100 = vmatpush2.msra.mxu0 0.0
    %2101 = vmatprep.subr.mxu0 0.0
    %2102 = vmatpush2.msra.mxu0 0.0
    %2103 = vmatprep.subr.mxu0 0.0
    %2104 = vmatpush2.msra.mxu0 0.0
    %2105 = vmatprep.subr.mxu0 0.0
    %2106 = vmatpush2.msra.mxu0 0.0
    %2107 = vmatprep.subr.mxu0 0.0
    %2108 = vmatpush2.msra.mxu0 0.0
    %2109 = vmatprep.subr.mxu0 0.0
    %2110 = vmatpush2.msra.mxu0 0.0
    %2111 = vmatprep.subr.mxu0 0.0
    %2112 = vmatpush2.msra.mxu0 0.0
    %2113 = vmatprep.subr.mxu0 0.0
    %2114 = vmatpush2.msra.mxu0 0.0
    %2115 = vmatprep.subr.mxu0 0.0
    %2116 = vmatpush2.msra.mxu0 0.0
    %2117 = vmatprep.subr.mxu0 0.0
    %2118 = vmatpush2.msra.mxu0 0.0
    %2119 = vmatprep.subr.mxu0 0.0
    %2120 = vmatpush2.msra.mxu0 0.0
    %2121 = vmatprep.subr.mxu0 0.0
    %2122 = vmatpush2.msra.mxu0 0.0
    %2123 = vmatprep.subr.mxu0 0.0
    %2124 = vmatpush2.msra.mxu0 0.0
    %2125 = vmatprep.mubr.f32.mxu0 0.0
    %2126 = vmatmul.mubr.f32.gmra.mxu0 %v2059
    %v2127 = vpop.f32.mrf.mxu0
    %v2128 = vadd.f32 0.0, %v2127
    %v2129 = vpop.f32.mrf.mxu0
    %2130 = vdwg.mxu0
    %v2132 = vsel %vm536, %v2128, 0
    %2134 = vmatprep.subr.mxu0 0.0
    %2135 = vmatpush1.msra.mxu0 0.0
    %2136 = vmatprep.subr.mxu0 0.0
    %2137 = vmatpush1.msra.mxu0 0.0
    %2138 = vmatprep.subr.mxu0 0.0
    %2139 = vmatpush1.msra.mxu0 0.0
    %2140 = vmatprep.subr.mxu0 0.0
    %2141 = vmatpush1.msra.mxu0 0.0
    %2142 = vmatprep.subr.mxu0 0.0
    %2143 = vmatpush1.msra.mxu0 0.0
    %2144 = vmatprep.subr.mxu0 0.0
    %2145 = vmatpush1.msra.mxu0 0.0
    %2146 = vmatprep.subr.mxu0 0.0
    %2147 = vmatpush1.msra.mxu0 0.0
    %2148 = vmatprep.subr.mxu0 0.0
    %2149 = vmatpush1.msra.mxu0 0.0
    %2150 = vmatprep.subr.mxu0 0.0
    %2151 = vmatpush1.msra.mxu0 0.0
    %2152 = vmatprep.subr.mxu0 0.0
    %2153 = vmatpush1.msra.mxu0 0.0
    %2154 = vmatprep.subr.mxu0 0.0
    %2155 = vmatpush1.msra.mxu0 0.0
    %2156 = vmatprep.subr.mxu0 0.0
    %2157 = vmatpush1.msra.mxu0 0.0
    %2158 = vmatprep.subr.mxu0 0.0
    %2159 = vmatpush1.msra.mxu0 0.0
    %2160 = vmatprep.subr.mxu0 0.0
    %2161 = vmatpush1.msra.mxu0 0.0
    %2162 = vmatprep.subr.mxu0 0.0
    %2163 = vmatpush1.msra.mxu0 0.0
    %2164 = vmatprep.subr.mxu0 0.0
    %2165 = vmatpush1.msra.mxu0 %v527
    %2166 = vmatprep.subr.mxu0 0.0
    %2167 = vmatpush2.msra.mxu0 0.0
    %2168 = vmatprep.subr.mxu0 0.0
    %2169 = vmatpush2.msra.mxu0 0.0
    %2170 = vmatprep.subr.mxu0 0.0
    %2171 = vmatpush2.msra.mxu0 0.0
    %2172 = vmatprep.subr.mxu0 0.0
    %2173 = vmatpush2.msra.mxu0 0.0
    %2174 = vmatprep.subr.mxu0 0.0
    %2175 = vmatpush2.msra.mxu0 0.0
    %2176 = vmatprep.subr.mxu0 0.0
    %2177 = vmatpush2.msra.mxu0 0.0
    %2178 = vmatprep.subr.mxu0 0.0
    %2179 = vmatpush2.msra.mxu0 0.0
    %2180 = vmatprep.subr.mxu0 0.0
    %2181 = vmatpush2.msra.mxu0 0.0
    %2182 = vmatprep.subr.mxu0 0.0
    %2183 = vmatpush2.msra.mxu0 0.0
    %2184 = vmatprep.subr.mxu0 0.0
    %2185 = vmatpush2.msra.mxu0 0.0
    %2186 = vmatprep.subr.mxu0 0.0
    %2187 = vmatpush2.msra.mxu0 0.0
    %2188 = vmatprep.subr.mxu0 0.0
    %2189 = vmatpush2.msra.mxu0 0.0
    %2190 = vmatprep.subr.mxu0 0.0
    %2191 = vmatpush2.msra.mxu0 0.0
    %2192 = vmatprep.subr.mxu0 0.0
    %2193 = vmatpush2.msra.mxu0 0.0
    %2194 = vmatprep.subr.mxu0 0.0
    %2195 = vmatpush2.msra.mxu0 0.0
    %2196 = vmatprep.subr.mxu0 0.0
    %2197 = vmatpush2.msra.mxu0 0.0
    %2198 = vmatprep.mubr.f32.mxu0 0.0
    %2199 = vmatmul.mubr.f32.gmra.mxu0 %v2132
    %v2200 = vpop.f32.mrf.mxu0
    %v2201 = vadd.f32 0.0, %v2200
    %v2202 = vpop.f32.mrf.mxu0
    %2203 = vdwg.mxu0
    %v2204 = vadd.f32 %v1963, %v2201
    %2205 = vrot.lane.b32.xlu0 %v522, 104
    %v2206 = vpop.permute.xlu0 %2205
    %2207 = vrot.lane.b32.xlu0 %v522, 72
    %v2208 = vpop.permute.xlu0 %2207
    %v2209 = vsel %vm536, %v2206, 0
    %v2211 = vsel %vm536, %v2208, 0
    %2213 = vmatprep.subr.mxu0 0.0
    %2214 = vmatpush1.xpose.msra.mxu0 0.0
    %2215 = vmatprep.subr.mxu0 0.0
    %2216 = vmatpush1.xpose.msra.mxu0 0.0
    %2217 = vmatprep.subr.mxu0 0.0
    %2218 = vmatpush1.xpose.msra.mxu0 0.0
    %2219 = vmatprep.subr.mxu0 0.0
    %2220 = vmatpush1.xpose.msra.mxu0 0.0
    %2221 = vmatprep.subr.mxu0 0.0
    %2222 = vmatpush1.xpose.msra.mxu0 0.0
    %2223 = vmatprep.subr.mxu0 0.0
    %2224 = vmatpush1.xpose.msra.mxu0 0.0
    %2225 = vmatprep.subr.mxu0 0.0
    %2226 = vmatpush1.xpose.msra.mxu0 0.0
    %2227 = vmatprep.subr.mxu0 0.0
    %2228 = vmatpush1.xpose.msra.mxu0 0.0
    %2229 = vmatprep.subr.mxu0 0.0
    %2230 = vmatpush1.xpose.msra.mxu0 0.0
    %2231 = vmatprep.subr.mxu0 0.0
    %2232 = vmatpush1.xpose.msra.mxu0 0.0
    %2233 = vmatprep.subr.mxu0 0.0
    %2234 = vmatpush1.xpose.msra.mxu0 0.0
    %2235 = vmatprep.subr.mxu0 0.0
    %2236 = vmatpush1.xpose.msra.mxu0 0.0
    %2237 = vmatprep.subr.mxu0 0.0
    %2238 = vmatpush1.xpose.msra.mxu0 0.0
    %2239 = vmatprep.subr.mxu0 0.0
    %2240 = vmatpush1.xpose.msra.mxu0 0.0
    %2241 = vmatprep.subr.mxu0 0.0
    %2242 = vmatpush1.xpose.msra.mxu0 0.0
    %2243 = vmatprep.subr.mxu0 0.0
    %2244 = vmatpush1.xpose.msra.mxu0 %v2211
    %2245 = vmatprep.subr.mxu0 0.0
    %2246 = vmatpush2.xpose.msra.mxu0 0.0
    %2247 = vmatprep.subr.mxu0 0.0
    %2248 = vmatpush2.xpose.msra.mxu0 0.0
    %2249 = vmatprep.subr.mxu0 0.0
    %2250 = vmatpush2.xpose.msra.mxu0 0.0
    %2251 = vmatprep.subr.mxu0 0.0
    %2252 = vmatpush2.xpose.msra.mxu0 0.0
    %2253 = vmatprep.subr.mxu0 0.0
    %2254 = vmatpush2.xpose.msra.mxu0 0.0
    %2255 = vmatprep.subr.mxu0 0.0
    %2256 = vmatpush2.xpose.msra.mxu0 0.0
    %2257 = vmatprep.subr.mxu0 0.0
    %2258 = vmatpush2.xpose.msra.mxu0 0.0
    %2259 = vmatprep.subr.mxu0 0.0
    %2260 = vmatpush2.xpose.msra.mxu0 0.0
    %2261 = vmatprep.subr.mxu0 0.0
    %2262 = vmatpush2.xpose.msra.mxu0 0.0
    %2263 = vmatprep.subr.mxu0 0.0
    %2264 = vmatpush2.xpose.msra.mxu0 0.0
    %2265 = vmatprep.subr.mxu0 0.0
    %2266 = vmatpush2.xpose.msra.mxu0 0.0
    %2267 = vmatprep.subr.mxu0 0.0
    %2268 = vmatpush2.xpose.msra.mxu0 0.0
    %2269 = vmatprep.subr.mxu0 0.0
    %2270 = vmatpush2.xpose.msra.mxu0 0.0
    %2271 = vmatprep.subr.mxu0 0.0
    %2272 = vmatpush2.xpose.msra.mxu0 0.0
    %2273 = vmatprep.subr.mxu0 0.0
    %2274 = vmatpush2.xpose.msra.mxu0 0.0
    %2275 = vmatprep.subr.mxu0 0.0
    %2276 = vmatpush2.xpose.msra.mxu0 0.0
    %2277 = vmatprep.mubr.f32.mxu0 0.0
    %2278 = vmatmul.mubr.f32.gmra.mxu0 %v2209
    %v2279 = vpop.f32.mrf.mxu0
    %v2280 = vadd.f32 %v1490, %v2279
    %v2281 = vpop.f32.mrf.mxu0
    %2282 = vdwg.mxu0
    %v2283 = vsel %vm536, %v2280, -inf
    %2284 = vmax.xlane.f32.xlu0 %v2283
    %v2285 = vpop.xlane.xlu0 %2284
    %v2286 = vsub.f32 %v2280, %v2285
    %v2287 = vmul.f32 %v2286, 1.442695
    %v2288 = vpow.pop %v2287
    %v2289 = vsel %vm536, %v2288, 0.0
    %2290 = vadd.xlane.f32.xlu0 %v2289
    %v2291 = vpop.xlane.xlu0 %2290
    %v2292 = vrcp.pop %v2291
    %v2293 = vmul.f32 %v2288, %v2292
    %2294 = vrot.lane.b32.xlu0 %v522, 40
    %v2295 = vpop.permute.xlu0 %2294
    %v2298 = vsel %vm536, %v2293, 0
    %2300 = vmatprep.subr.mxu0 0.0
    %2301 = vmatpush1.msra.mxu0 0.0
    %2302 = vmatprep.subr.mxu0 0.0
    %2303 = vmatpush1.msra.mxu0 0.0
    %2304 = vmatprep.subr.mxu0 0.0
    %2305 = vmatpush1.msra.mxu0 0.0
    %2306 = vmatprep.subr.mxu0 0.0
    %2307 = vmatpush1.msra.mxu0 0.0
    %2308 = vmatprep.subr.mxu0 0.0
    %2309 = vmatpush1.msra.mxu0 0.0
    %2310 = vmatprep.subr.mxu0 0.0
    %2311 = vmatpush1.msra.mxu0 0.0
    %2312 = vmatprep.subr.mxu0 0.0
    %2313 = vmatpush1.msra.mxu0 0.0
    %2314 = vmatprep.subr.mxu0 0.0
    %2315 = vmatpush1.msra.mxu0 0.0
    %2316 = vmatprep.subr.mxu0 0.0
    %2317 = vmatpush1.msra.mxu0 0.0
    %2318 = vmatprep.subr.mxu0 0.0
    %2319 = vmatpush1.msra.mxu0 0.0
    %2320 = vmatprep.subr.mxu0 0.0
    %2321 = vmatpush1.msra.mxu0 0.0
    %2322 = vmatprep.subr.mxu0 0.0
    %2323 = vmatpush1.msra.mxu0 0.0
    %2324 = vmatprep.subr.mxu0 0.0
    %2325 = vmatpush1.msra.mxu0 0.0
    %2326 = vmatprep.subr.mxu0 0.0
    %2327 = vmatpush1.msra.mxu0 0.0
    %2328 = vmatprep.subr.mxu0 0.0
    %2329 = vmatpush1.msra.mxu0 0.0
    %2330 = vmatprep.subr.mxu0 0.0
    %2331 = vmatpush1.msra.mxu0 %v2295
    %2332 = vmatprep.subr.mxu0 0.0
    %2333 = vmatpush2.msra.mxu0 0.0
    %2334 = vmatprep.subr.mxu0 0.0
    %2335 = vmatpush2.msra.mxu0 0.0
    %2336 = vmatprep.subr.mxu0 0.0
    %2337 = vmatpush2.msra.mxu0 0.0
    %2338 = vmatprep.subr.mxu0 0.0
    %2339 = vmatpush2.msra.mxu0 0.0
    %2340 = vmatprep.subr.mxu0 0.0
    %2341 = vmatpush2.msra.mxu0 0.0
    %2342 = vmatprep.subr.mxu0 0.0
    %2343 = vmatpush2.msra.mxu0 0.0
    %2344 = vmatprep.subr.mxu0 0.0
    %2345 = vmatpush2.msra.mxu0 0.0
    %2346 = vmatprep.subr.mxu0 0.0
    %2347 = vmatpush2.msra.mxu0 0.0
    %2348 = vmatprep.subr.mxu0 0.0
    %2349 = vmatpush2.msra.mxu0 0.0
    %2350 = vmatprep.subr.mxu0 0.0
    %2351 = vmatpush2.msra.mxu0 0.0
    %2352 = vmatprep.subr.mxu0 0.0
    %2353 = vmatpush2.msra.mxu0 0.0
    %2354 = vmatprep.subr.mxu0 0.0
    %2355 = vmatpush2.msra.mxu0 0.0
    %2356 = vmatprep.subr.mxu0 0.0
    %2357 = vmatpush2.msra.mxu0 0.0
    %2358 = vmatprep.subr.mxu0 0.0
    %2359 = vmatpush2.msra.mxu0 0.0
    %2360 = vmatprep.subr.mxu0 0.0
    %2361 = vmatpush2.msra.mxu0 0.0
    %2362 = vmatprep.subr.mxu0 0.0
    %2363 = vmatpush2.msra.mxu0 0.0
    %2364 = vmatprep.mubr.f32.mxu0 0.0
    %2365 = vmatmul.mubr.f32.gmra.mxu0 %v2298
    %v2366 = vpop.f32.mrf.mxu0
    %v2367 = vadd.f32 0.0, %v2366
    %v2368 = vpop.f32.mrf.mxu0
    %2369 = vdwg.mxu0
    %v2371 = vsel %vm536, %v2367, 0
    %2373 = vmatprep.subr.mxu0 0.0
    %2374 = vmatpush1.msra.mxu0 0.0
    %2375 = vmatprep.subr.mxu0 0.0
    %2376 = vmatpush1.msra.mxu0 0.0
    %2377 = vmatprep.subr.mxu0 0.0
    %2378 = vmatpush1.msra.mxu0 0.0
    %2379 = vmatprep.subr.mxu0 0.0
    %2380 = vmatpush1.msra.mxu0 0.0
    %2381 = vmatprep.subr.mxu0 0.0
    %2382 = vmatpush1.msra.mxu0 0.0
    %2383 = vmatprep.subr.mxu0 0.0
    %2384 = vmatpush1.msra.mxu0 0.0
    %2385 = vmatprep.subr.mxu0 0.0
    %2386 = vmatpush1.msra.mxu0 0.0
    %2387 = vmatprep.subr.mxu0 0.0
    %2388 = vmatpush1.msra.mxu0 0.0
    %2389 = vmatprep.subr.mxu0 0.0
    %2390 = vmatpush1.msra.mxu0 0.0
    %2391 = vmatprep.subr.mxu0 0.0
    %2392 = vmatpush1.msra.mxu0 0.0
    %2393 = vmatprep.subr.mxu0 0.0
    %2394 = vmatpush1.msra.mxu0 0.0
    %2395 = vmatprep.subr.mxu0 0.0
    %2396 = vmatpush1.msra.mxu0 0.0
    %2397 = vmatprep.subr.mxu0 0.0
    %2398 = vmatpush1.msra.mxu0 0.0
    %2399 = vmatprep.subr.mxu0 0.0
    %2400 = vmatpush1.msra.mxu0 0.0
    %2401 = vmatprep.subr.mxu0 0.0
    %2402 = vmatpush1.msra.mxu0 0.0
    %2403 = vmatprep.subr.mxu0 0.0
    %2404 = vmatpush1.msra.mxu0 %v528
    %2405 = vmatprep.subr.mxu0 0.0
    %2406 = vmatpush2.msra.mxu0 0.0
    %2407 = vmatprep.subr.mxu0 0.0
    %2408 = vmatpush2.msra.mxu0 0.0
    %2409 = vmatprep.subr.mxu0 0.0
    %2410 = vmatpush2.msra.mxu0 0.0
    %2411 = vmatprep.subr.mxu0 0.0
    %2412 = vmatpush2.msra.mxu0 0.0
    %2413 = vmatprep.subr.mxu0 0.0
    %2414 = vmatpush2.msra.mxu0 0.0
    %2415 = vmatprep.subr.mxu0 0.0
    %2416 = vmatpush2.msra.mxu0 0.0
    %2417 = vmatprep.subr.mxu0 0.0
    %2418 = vmatpush2.msra.mxu0 0.0
    %2419 = vmatprep.subr.mxu0 0.0
    %2420 = vmatpush2.msra.mxu0 0.0
    %2421 = vmatprep.subr.mxu0 0.0
    %2422 = vmatpush2.msra.mxu0 0.0
    %2423 = vmatprep.subr.mxu0 0.0
    %2424 = vmatpush2.msra.mxu0 0.0
    %2425 = vmatprep.subr.mxu0 0.0
    %2426 = vmatpush2.msra.mxu0 0.0
    %2427 = vmatprep.subr.mxu0 0.0
    %2428 = vmatpush2.msra.mxu0 0.0
    %2429 = vmatprep.subr.mxu0 0.0
    %2430 = vmatpush2.msra.mxu0 0.0
    %2431 = vmatprep.subr.mxu0 0.0
    %2432 = vmatpush2.msra.mxu0 0.0
    %2433 = vmatprep.subr.mxu0 0.0
    %2434 = vmatpush2.msra.mxu0 0.0
    %2435 = vmatprep.subr.mxu0 0.0
    %2436 = vmatpush2.msra.mxu0 0.0
    %2437 = vmatprep.mubr.f32.mxu0 0.0
    %2438 = vmatmul.mubr.f32.gmra.mxu0 %v2371
    %v2439 = vpop.f32.mrf.mxu0
    %v2440 = vadd.f32 0.0, %v2439
    %v2441 = vpop.f32.mrf.mxu0
    %2442 = vdwg.mxu0
    %v2443 = vadd.f32 %v2204, %v2440
    %v2444 = vld [vmem:[%s31] sm:$0x1]
    %v2446 = vlaneseq
    %v2447 = vshrl.u32 %v2446, 7
    %v2448 = vsub.s32 0, %v2447
    %v2449 = vrot.slane %v2444, %v2448
    %v2451 = vadd.f32 %v1486, %v2449
    %v2452 = vadd.f32 %v2443, %v2449
    %v2453 = vadd.f32 %v430, %v2451
    %v2454 = vadd.f32 %v431, %v2452
    %v2455 = vld [vmem:[%s33] sm:$0x1]
    %v2456 = vld [vmem:[%s35] sm:$0x1]
    %v2457 = vsel %vm388, %v2453, 0.0
    %2458 = vadd.xlane.f32.xlu0 %v2457
    %v2459 = vpop.xlane.xlu0 %2458
    %v2460 = vsel %vm388, %v2454, 0.0
    %2461 = vadd.xlane.f32.xlu0 %v2460
    %v2462 = vpop.xlane.xlu0 %2461
    %v2463 = vmul.f32 %v2459, %v395
    %v2464 = vmul.f32 %v2462, %v395
    %v2465 = vsub.f32 %v2453, %v2463
    %v2466 = vsub.f32 %v2454, %v2464
    %v2467 = vmul.f32 %v2465, %v2465
    %v2468 = vmul.f32 %v2466, %v2466
    %v2469 = vsel %vm388, %v2467, 0.0
    %2470 = vadd.xlane.f32.xlu0 %v2469
    %v2471 = vpop.xlane.xlu0 %2470
    %v2472 = vsel %vm388, %v2468, 0.0
    %2473 = vadd.xlane.f32.xlu0 %v2472
    %v2474 = vpop.xlane.xlu0 %2473
    %v2475 = vmul.f32 %v2471, %v395
    %v2476 = vmul.f32 %v2474, %v395
    %v2477 = vadd.f32 %v2475, 1e-05
    %v2478 = vadd.f32 %v2476, 1e-05
    %v2479 = vrsqrt.pop %v2477
    %v2480 = vrsqrt.pop %v2478
    %v2481 = vmul.f32 %v2465, %v2479
    %v2482 = vmul.f32 %v2466, %v2480
    %v2484 = vlaneseq
    %v2485 = vshrl.u32 %v2484, 7
    %v2486 = vsub.s32 0, %v2485
    %v2487 = vrot.slane %v2455, %v2486
    %v2489 = vmul.f32 %v2481, %v2487
    %v2490 = vmul.f32 %v2482, %v2487
    %v2492 = vlaneseq
    %v2493 = vshrl.u32 %v2492, 7
    %v2494 = vsub.s32 0, %v2493
    %v2495 = vrot.slane %v2456, %v2494
    %v2497 = vadd.f32 %v2489, %v2495
    %v2498 = vadd.f32 %v2490, %v2495
    %v2499 = vld [vmem:[#allocation11] sm:$0xff]
    %v2500 = vld [vmem:[#allocation11 + $0x8] sm:$0xff]
    %v2501 = vld [vmem:[#allocation11 + $0x10] sm:$0xff]
    %v2502 = vld [vmem:[#allocation11 + $0x18] sm:$0xff]
    %v2503 = vld [vmem:[%s39] sm:$0x1]
    %v2505 = vlaneseq
    %v2506 = vshrl.u32 %v2505, 7
    %v2507 = vsub.s32 0, %v2506
    %v2508 = vrot.slane %v2503, %v2507
    %v2511 = vsel %vm388, %v2497, 0
    %v2514 = vsel %vm388, %v2498, 0
    %2516 = vmatprep.subr.mxu0 0.0
    %2517 = vmatpush1.msra.mxu0 0.0
    %2518 = vmatprep.subr.mxu0 0.0
    %2519 = vmatpush1.msra.mxu0 0.0
    %2520 = vmatprep.subr.mxu0 0.0
    %2521 = vmatpush1.msra.mxu0 0.0
    %2522 = vmatprep.subr.mxu0 0.0
    %2523 = vmatpush1.msra.mxu0 0.0
    %2524 = vmatprep.subr.mxu0 0.0
    %2525 = vmatpush1.msra.mxu0 0.0
    %2526 = vmatprep.subr.mxu0 0.0
    %2527 = vmatpush1.msra.mxu0 0.0
    %2528 = vmatprep.subr.mxu0 0.0
    %2529 = vmatpush1.msra.mxu0 0.0
    %2530 = vmatprep.subr.mxu0 0.0
    %2531 = vmatpush1.msra.mxu0 0.0
    %2532 = vmatprep.subr.mxu0 0.0
    %2533 = vmatpush1.msra.mxu0 0.0
    %2534 = vmatprep.subr.mxu0 0.0
    %2535 = vmatpush1.msra.mxu0 0.0
    %2536 = vmatprep.subr.mxu0 0.0
    %2537 = vmatpush1.msra.mxu0 0.0
    %2538 = vmatprep.subr.mxu0 0.0
    %2539 = vmatpush1.msra.mxu0 0.0
    %2540 = vmatprep.subr.mxu0 0.0
    %2541 = vmatpush1.msra.mxu0 %v2502
    %2542 = vmatprep.subr.mxu0 0.0
    %2543 = vmatpush1.msra.mxu0 %v2501
    %2544 = vmatprep.subr.mxu0 0.0
    %2545 = vmatpush1.msra.mxu0 %v2500
    %2546 = vmatprep.subr.mxu0 0.0
    %2547 = vmatpush1.msra.mxu0 %v2499
    %2548 = vmatprep.subr.mxu0 0.0
    %2549 = vmatpush2.msra.mxu0 0.0
    %2550 = vmatprep.subr.mxu0 0.0
    %2551 = vmatpush2.msra.mxu0 0.0
    %2552 = vmatprep.subr.mxu0 0.0
    %2553 = vmatpush2.msra.mxu0 0.0
    %2554 = vmatprep.subr.mxu0 0.0
    %2555 = vmatpush2.msra.mxu0 0.0
    %2556 = vmatprep.subr.mxu0 0.0
    %2557 = vmatpush2.msra.mxu0 0.0
    %2558 = vmatprep.subr.mxu0 0.0
    %2559 = vmatpush2.msra.mxu0 0.0
    %2560 = vmatprep.subr.mxu0 0.0
    %2561 = vmatpush2.msra.mxu0 0.0
    %2562 = vmatprep.subr.mxu0 0.0
    %2563 = vmatpush2.msra.mxu0 0.0
    %2564 = vmatprep.subr.mxu0 0.0
    %2565 = vmatpush2.msra.mxu0 0.0
    %2566 = vmatprep.subr.mxu0 0.0
    %2567 = vmatpush2.msra.mxu0 0.0
    %2568 = vmatprep.subr.mxu0 0.0
    %2569 = vmatpush2.msra.mxu0 0.0
    %2570 = vmatprep.subr.mxu0 0.0
    %2571 = vmatpush2.msra.mxu0 0.0
    %2572 = vmatprep.subr.mxu0 0.0
    %2573 = vmatpush2.msra.mxu0 0.0
    %2574 = vmatprep.subr.mxu0 0.0
    %2575 = vmatpush2.msra.mxu0 0.0
    %2576 = vmatprep.subr.mxu0 0.0
    %2577 = vmatpush2.msra.mxu0 0.0
    %2578 = vmatprep.subr.mxu0 0.0
    %2579 = vmatpush2.msra.mxu0 0.0
    %2580 = vmatprep.mubr.f32.mxu0 0.0
    %2581 = vmatmul.mubr.f32.gmra.mxu0 %v2511
    %v2582 = vpop.f32.mrf.mxu0
    %v2583 = vadd.f32 %v2508, %v2582
    %v2584 = vpop.f32.mrf.mxu0
    %2585 = vmatprep.mubr.f32.mxu0 0.0
    %2586 = vmatmul.mubr.f32.gmra.mxu0 %v2514
    %v2587 = vpop.f32.mrf.mxu0
    %v2588 = vadd.f32 %v2508, %v2587
    %v2589 = vpop.f32.mrf.mxu0
    %2590 = vdwg.mxu0
    %v2591 = vmul.f32 %v2583, 0.5
    %v2592 = vmul.f32 %v2588, 0.5
    %v2593 = vmul.f32 %v2583, 0.044715
    %v2594 = vmul.f32 %v2588, 0.044715
    %v2595 = vmul.f32 %v2593, %v2583
    %v2596 = vmul.f32 %v2594, %v2588
    %v2597 = vmul.f32 %v2595, %v2583
    %v2598 = vmul.f32 %v2596, %v2588
    %v2599 = vadd.f32 %v2583, %v2597
    %v2600 = vadd.f32 %v2588, %v2598
    %v2601 = vmul.f32 %v2599, 0.7978846
    %v2602 = vmul.f32 %v2600, 0.7978846
    %v2603 = vtanh.pop %v2601
    %v2604 = vtanh.pop %v2602
    %v2605 = vadd.f32 %v2603, 1.0
    %v2606 = vadd.f32 %v2604, 1.0
    %v2607 = vmul.f32 %v2591, %v2605
    %v2608 = vmul.f32 %v2592, %v2606
    %v2609 = vld [vmem:[#allocation13] sm:$0xff]
    %v2610 = vld [vmem:[#allocation13 + $0x8] sm:$0xff]
    %v2611 = vld [vmem:[#allocation13 + $0x10] sm:$0xff]
    %v2612 = vld [vmem:[#allocation13 + $0x18] sm:$0xff]
    %v2613 = vld [vmem:[#allocation13 + $0x20] sm:$0xff]
    %v2614 = vld [vmem:[#allocation13 + $0x28] sm:$0xff]
    %v2615 = vld [vmem:[#allocation13 + $0x30] sm:$0xff]
    %v2616 = vld [vmem:[#allocation13 + $0x38] sm:$0xff]
    %v2617 = vld [vmem:[#allocation13 + $0x40] sm:$0xff]
    %v2618 = vld [vmem:[#allocation13 + $0x48] sm:$0xff]
    %v2619 = vld [vmem:[#allocation13 + $0x50] sm:$0xff]
    %v2620 = vld [vmem:[#allocation13 + $0x58] sm:$0xff]
    %v2621 = vld [vmem:[#allocation13 + $0x60] sm:$0xff]
    %v2622 = vld [vmem:[#allocation13 + $0x68] sm:$0xff]
    %v2623 = vld [vmem:[#allocation13 + $0x70] sm:$0xff]
    %v2624 = vld [vmem:[#allocation13 + $0x78] sm:$0xff]
    %v2625 = vld [vmem:[%s43] sm:$0x1]
    %v2627 = vlaneseq
    %v2628 = vshrl.u32 %v2627, 7
    %v2629 = vsub.s32 0, %v2628
    %v2630 = vrot.slane %v2625, %v2629
    %2632 = vmatprep.subr.mxu0 0.0
    %2633 = vmatpush1.msra.mxu0 %v2624
    %2634 = vmatprep.subr.mxu0 0.0
    %2635 = vmatpush1.msra.mxu0 %v2623
    %2636 = vmatprep.subr.mxu0 0.0
    %2637 = vmatpush1.msra.mxu0 %v2622
    %2638 = vmatprep.subr.mxu0 0.0
    %2639 = vmatpush1.msra.mxu0 %v2621
    %2640 = vmatprep.subr.mxu0 0.0
    %2641 = vmatpush1.msra.mxu0 %v2620
    %2642 = vmatprep.subr.mxu0 0.0
    %2643 = vmatpush1.msra.mxu0 %v2619
    %2644 = vmatprep.subr.mxu0 0.0
    %2645 = vmatpush1.msra.mxu0 %v2618
    %2646 = vmatprep.subr.mxu0 0.0
    %2647 = vmatpush1.msra.mxu0 %v2617
    %2648 = vmatprep.subr.mxu0 0.0
    %2649 = vmatpush1.msra.mxu0 %v2616
    %2650 = vmatprep.subr.mxu0 0.0
    %2651 = vmatpush1.msra.mxu0 %v2615
    %2652 = vmatprep.subr.mxu0 0.0
    %2653 = vmatpush1.msra.mxu0 %v2614
    %2654 = vmatprep.subr.mxu0 0.0
    %2655 = vmatpush1.msra.mxu0 %v2613
    %2656 = vmatprep.subr.mxu0 0.0
    %2657 = vmatpush1.msra.mxu0 %v2612
    %2658 = vmatprep.subr.mxu0 0.0
    %2659 = vmatpush1.msra.mxu0 %v2611
    %2660 = vmatprep.subr.mxu0 0.0
    %2661 = vmatpush1.msra.mxu0 %v2610
    %2662 = vmatprep.subr.mxu0 0.0
    %2663 = vmatpush1.msra.mxu0 %v2609
    %2664 = vmatprep.subr.mxu0 0.0
    %2665 = vmatpush2.msra.mxu0 0.0
    %2666 = vmatprep.subr.mxu0 0.0
    %2667 = vmatpush2.msra.mxu0 0.0
    %2668 = vmatprep.subr.mxu0 0.0
    %2669 = vmatpush2.msra.mxu0 0.0
    %2670 = vmatprep.subr.mxu0 0.0
    %2671 = vmatpush2.msra.mxu0 0.0
    %2672 = vmatprep.subr.mxu0 0.0
    %2673 = vmatpush2.msra.mxu0 0.0
    %2674 = vmatprep.subr.mxu0 0.0
    %2675 = vmatpush2.msra.mxu0 0.0
    %2676 = vmatprep.subr.mxu0 0.0
    %2677 = vmatpush2.msra.mxu0 0.0
    %2678 = vmatprep.subr.mxu0 0.0
    %2679 = vmatpush2.msra.mxu0 0.0
    %2680 = vmatprep.subr.mxu0 0.0
    %2681 = vmatpush2.msra.mxu0 0.0
    %2682 = vmatprep.subr.mxu0 0.0
    %2683 = vmatpush2.msra.mxu0 0.0
    %2684 = vmatprep.subr.mxu0 0.0
    %2685 = vmatpush2.msra.mxu0 0.0
    %2686 = vmatprep.subr.mxu0 0.0
    %2687 = vmatpush2.msra.mxu0 0.0
    %2688 = vmatprep.subr.mxu0 0.0
    %2689 = vmatpush2.msra.mxu0 0.0
    %2690 = vmatprep.subr.mxu0 0.0
    %2691 = vmatpush2.msra.mxu0 0.0
    %2692 = vmatprep.subr.mxu0 0.0
    %2693 = vmatpush2.msra.mxu0 0.0
    %2694 = vmatprep.subr.mxu0 0.0
    %2695 = vmatpush2.msra.mxu0 0.0
    %2696 = vmatprep.mubr.f32.mxu0 0.0
    %2697 = vmatmul.mubr.f32.gmra.mxu0 %v2607
    %v2698 = vpop.f32.mrf.mxu0
    %v2699 = vadd.f32 %v2630, %v2698
    %v2700 = vpop.f32.mrf.mxu0
    %2701 = vmatprep.mubr.f32.mxu0 0.0
    %2702 = vmatmul.mubr.f32.gmra.mxu0 %v2608
    %v2703 = vpop.f32.mrf.mxu0
    %v2704 = vadd.f32 %v2630, %v2703
    %v2705 = vpop.f32.mrf.mxu0
    %2706 = vdwg.mxu0
    %v2707 = vadd.f32 %v2497, %v2699
    %v2708 = vadd.f32 %v2498, %v2704
    %v2709 = vld [vmem:[%s45] sm:$0x1]
    %v2710 = vld [vmem:[%s47] sm:$0x1]
    %v2711 = vsel %vm388, %v2707, 0.0
    %2712 = vadd.xlane.f32.xlu0 %v2711
    %v2713 = vpop.xlane.xlu0 %2712
    %v2714 = vsel %vm388, %v2708, 0.0
    %2715 = vadd.xlane.f32.xlu0 %v2714
    %v2716 = vpop.xlane.xlu0 %2715
    %v2717 = vmul.f32 %v2713, %v395
    %v2718 = vmul.f32 %v2716, %v395
    %v2719 = vsub.f32 %v2707, %v2717
    %v2720 = vsub.f32 %v2708, %v2718
    %v2721 = vmul.f32 %v2719, %v2719
    %v2722 = vmul.f32 %v2720, %v2720
    %v2723 = vsel %vm388, %v2721, 0.0
    %2724 = vadd.xlane.f32.xlu0 %v2723
    %v2725 = vpop.xlane.xlu0 %2724
    %v2726 = vsel %vm388, %v2722, 0.0
    %2727 = vadd.xlane.f32.xlu0 %v2726
    %v2728 = vpop.xlane.xlu0 %2727
    %v2729 = vmul.f32 %v2725, %v395
    %v2730 = vmul.f32 %v2728, %v395
    %v2731 = vadd.f32 %v2729, 1e-05
    %v2732 = vadd.f32 %v2730, 1e-05
    %v2733 = vrsqrt.pop %v2731
    %v2734 = vrsqrt.pop %v2732
    %v2735 = vmul.f32 %v2719, %v2733
    %v2736 = vmul.f32 %v2720, %v2734
    %v2738 = vlaneseq
    %v2739 = vshrl.u32 %v2738, 7
    %v2740 = vsub.s32 0, %v2739
    %v2741 = vrot.slane %v2709, %v2740
    %v2743 = vmul.f32 %v2735, %v2741
    %v2744 = vmul.f32 %v2736, %v2741
    %v2746 = vlaneseq
    %v2747 = vshrl.u32 %v2746, 7
    %v2748 = vsub.s32 0, %v2747
    %v2749 = vrot.slane %v2710, %v2748
    %v2751 = vadd.f32 %v2743, %v2749
    %v2752 = vadd.f32 %v2744, %v2749
    %v2753 = vld [vmem:[#allocation14] sm:$0xff]
    %v2754 = vld [vmem:[#allocation14 + $0x8] sm:$0xff]
    %v2755 = vld [vmem:[#allocation14 + $0x10] sm:$0xff]
    %v2756 = vld [vmem:[#allocation14 + $0x18] sm:$0xff]
    %v2757 = vld [vmem:[%s51] sm:$0x1]
    %v2759 = vlaneseq
    %v2760 = vshrl.u32 %v2759, 7
    %v2761 = vsub.s32 0, %v2760
    %v2762 = vrot.slane %v2757, %v2761
    %v2765 = vsel %vm388, %v2751, 0
    %v2768 = vsel %vm388, %v2752, 0
    %2770 = vmatprep.subr.mxu0 0.0
    %2771 = vmatpush1.msra.mxu0 0.0
    %2772 = vmatprep.subr.mxu0 0.0
    %2773 = vmatpush1.msra.mxu0 0.0
    %2774 = vmatprep.subr.mxu0 0.0
    %2775 = vmatpush1.msra.mxu0 0.0
    %2776 = vmatprep.subr.mxu0 0.0
    %2777 = vmatpush1.msra.mxu0 0.0
    %2778 = vmatprep.subr.mxu0 0.0
    %2779 = vmatpush1.msra.mxu0 0.0
    %2780 = vmatprep.subr.mxu0 0.0
    %2781 = vmatpush1.msra.mxu0 0.0
    %2782 = vmatprep.subr.mxu0 0.0
    %2783 = vmatpush1.msra.mxu0 0.0
    %2784 = vmatprep.subr.mxu0 0.0
    %2785 = vmatpush1.msra.mxu0 0.0
    %2786 = vmatprep.subr.mxu0 0.0
    %2787 = vmatpush1.msra.mxu0 0.0
    %2788 = vmatprep.subr.mxu0 0.0
    %2789 = vmatpush1.msra.mxu0 0.0
    %2790 = vmatprep.subr.mxu0 0.0
    %2791 = vmatpush1.msra.mxu0 0.0
    %2792 = vmatprep.subr.mxu0 0.0
    %2793 = vmatpush1.msra.mxu0 0.0
    %2794 = vmatprep.subr.mxu0 0.0
    %2795 = vmatpush1.msra.mxu0 %v2756
    %2796 = vmatprep.subr.mxu0 0.0
    %2797 = vmatpush1.msra.mxu0 %v2755
    %2798 = vmatprep.subr.mxu0 0.0
    %2799 = vmatpush1.msra.mxu0 %v2754
    %2800 = vmatprep.subr.mxu0 0.0
    %2801 = vmatpush1.msra.mxu0 %v2753
    %2802 = vmatprep.subr.mxu0 0.0
    %2803 = vmatpush2.msra.mxu0 0.0
    %2804 = vmatprep.subr.mxu0 0.0
    %2805 = vmatpush2.msra.mxu0 0.0
    %2806 = vmatprep.subr.mxu0 0.0
    %2807 = vmatpush2.msra.mxu0 0.0
    %2808 = vmatprep.subr.mxu0 0.0
    %2809 = vmatpush2.msra.mxu0 0.0
    %2810 = vmatprep.subr.mxu0 0.0
    %2811 = vmatpush2.msra.mxu0 0.0
    %2812 = vmatprep.subr.mxu0 0.0
    %2813 = vmatpush2.msra.mxu0 0.0
    %2814 = vmatprep.subr.mxu0 0.0
    %2815 = vmatpush2.msra.mxu0 0.0
    %2816 = vmatprep.subr.mxu0 0.0
    %2817 = vmatpush2.msra.mxu0 0.0
    %2818 = vmatprep.subr.mxu0 0.0
    %2819 = vmatpush2.msra.mxu0 0.0
    %2820 = vmatprep.subr.mxu0 0.0
    %2821 = vmatpush2.msra.mxu0 0.0
    %2822 = vmatprep.subr.mxu0 0.0
    %2823 = vmatpush2.msra.mxu0 0.0
    %2824 = vmatprep.subr.mxu0 0.0
    %2825 = vmatpush2.msra.mxu0 0.0
    %2826 = vmatprep.subr.mxu0 0.0
    %2827 = vmatpush2.msra.mxu0 0.0
    %2828 = vmatprep.subr.mxu0 0.0
    %2829 = vmatpush2.msra.mxu0 0.0
    %2830 = vmatprep.subr.mxu0 0.0
    %2831 = vmatpush2.msra.mxu0 0.0
    %2832 = vmatprep.subr.mxu0 0.0
    %2833 = vmatpush2.msra.mxu0 0.0
    %2834 = vmatprep.mubr.f32.mxu0 0.0
    %2835 = vmatmul.mubr.f32.gmra.mxu0 %v2765
    %v2836 = vpop.f32.mrf.mxu0
    %v2837 = vadd.f32 %v2762, %v2836
    %v2838 = vpop.f32.mrf.mxu0
    %2839 = vmatprep.mubr.f32.mxu0 0.0
    %2840 = vmatmul.mubr.f32.gmra.mxu0 %v2768
    %v2841 = vpop.f32.mrf.mxu0
    %v2842 = vadd.f32 %v2762, %v2841
    %v2843 = vpop.f32.mrf.mxu0
    %2844 = vdwg.mxu0
    %v2845 = vld [vmem:[%s53] sm:$0xff]
    %v2846 = vld [vmem:[%s53 + $0x8] sm:$0xff]
    %v2847 = vld [vmem:[%s53 + $0x10] sm:$0xff]
    %v2848 = vld [vmem:[%s53 + $0x18] sm:$0xff]
    %2850 = vrot.lane.b32.xlu0 %v2837, 96
    %v2851 = vpop.permute.xlu0 %2850
    %v2852 = vsel %vm536, %v2837, 0
    %v2854 = vsel %vm536, %v2851, 0
    %2856 = vmatprep.subr.mxu0 0.0
    %2857 = vmatpush1.xpose.msra.mxu0 0.0
    %2858 = vmatprep.subr.mxu0 0.0
    %2859 = vmatpush1.xpose.msra.mxu0 0.0
    %2860 = vmatprep.subr.mxu0 0.0
    %2861 = vmatpush1.xpose.msra.mxu0 0.0
    %2862 = vmatprep.subr.mxu0 0.0
    %2863 = vmatpush1.xpose.msra.mxu0 0.0
    %2864 = vmatprep.subr.mxu0 0.0
    %2865 = vmatpush1.xpose.msra.mxu0 0.0
    %2866 = vmatprep.subr.mxu0 0.0
    %2867 = vmatpush1.xpose.msra.mxu0 0.0
    %2868 = vmatprep.subr.mxu0 0.0
    %2869 = vmatpush1.xpose.msra.mxu0 0.0
    %2870 = vmatprep.subr.mxu0 0.0
    %2871 = vmatpush1.xpose.msra.mxu0 0.0
    %2872 = vmatprep.subr.mxu0 0.0
    %2873 = vmatpush1.xpose.msra.mxu0 0.0
    %2874 = vmatprep.subr.mxu0 0.0
    %2875 = vmatpush1.xpose.msra.mxu0 0.0
    %2876 = vmatprep.subr.mxu0 0.0
    %2877 = vmatpush1.xpose.msra.mxu0 0.0
    %2878 = vmatprep.subr.mxu0 0.0
    %2879 = vmatpush1.xpose.msra.mxu0 0.0
    %2880 = vmatprep.subr.mxu0 0.0
    %2881 = vmatpush1.xpose.msra.mxu0 0.0
    %2882 = vmatprep.subr.mxu0 0.0
    %2883 = vmatpush1.xpose.msra.mxu0 0.0
    %2884 = vmatprep.subr.mxu0 0.0
    %2885 = vmatpush1.xpose.msra.mxu0 0.0
    %2886 = vmatprep.subr.mxu0 0.0
    %2887 = vmatpush1.xpose.msra.mxu0 %v2854
    %2888 = vmatprep.subr.mxu0 0.0
    %2889 = vmatpush2.xpose.msra.mxu0 0.0
    %2890 = vmatprep.subr.mxu0 0.0
    %2891 = vmatpush2.xpose.msra.mxu0 0.0
    %2892 = vmatprep.subr.mxu0 0.0
    %2893 = vmatpush2.xpose.msra.mxu0 0.0
    %2894 = vmatprep.subr.mxu0 0.0
    %2895 = vmatpush2.xpose.msra.mxu0 0.0
    %2896 = vmatprep.subr.mxu0 0.0
    %2897 = vmatpush2.xpose.msra.mxu0 0.0
    %2898 = vmatprep.subr.mxu0 0.0
    %2899 = vmatpush2.xpose.msra.mxu0 0.0
    %2900 = vmatprep.subr.mxu0 0.0
    %2901 = vmatpush2.xpose.msra.mxu0 0.0
    %2902 = vmatprep.subr.mxu0 0.0
    %2903 = vmatpush2.xpose.msra.mxu0 0.0
    %2904 = vmatprep.subr.mxu0 0.0
    %2905 = vmatpush2.xpose.msra.mxu0 0.0
    %2906 = vmatprep.subr.mxu0 0.0
    %2907 = vmatpush2.xpose.msra.mxu0 0.0
    %2908 = vmatprep.subr.mxu0 0.0
    %2909 = vmatpush2.xpose.msra.mxu0 0.0
    %2910 = vmatprep.subr.mxu0 0.0
    %2911 = vmatpush2.xpose.msra.mxu0 0.0
    %2912 = vmatprep.subr.mxu0 0.0
    %2913 = vmatpush2.xpose.msra.mxu0 0.0
    %2914 = vmatprep.subr.mxu0 0.0
    %2915 = vmatpush2.xpose.msra.mxu0 0.0
    %2916 = vmatprep.subr.mxu0 0.0
    %2917 = vmatpush2.xpose.msra.mxu0 0.0
    %2918 = vmatprep.subr.mxu0 0.0
    %2919 = vmatpush2.xpose.msra.mxu0 0.0
    %2920 = vmatprep.mubr.f32.mxu0 0.0
    %2921 = vmatmul.mubr.f32.gmra.mxu0 %v2852
    %v2922 = vpop.f32.mrf.mxu0
    %v2923 = vadd.f32 %v532, %v2922
    %v2924 = vpop.f32.mrf.mxu0
    %2925 = vdwg.mxu0
    %v2926 = vsel %vm536, %v2923, -inf
    %2927 = vmax.xlane.f32.xlu0 %v2926
    %v2928 = vpop.xlane.xlu0 %2927
    %v2929 = vsub.f32 %v2923, %v2928
    %v2930 = vmul.f32 %v2929, 1.442695
    %v2931 = vpow.pop %v2930
    %v2932 = vsel %vm536, %v2931, 0.0
    %2933 = vadd.xlane.f32.xlu0 %v2932
    %v2934 = vpop.xlane.xlu0 %2933
    %v2935 = vrcp.pop %v2934
    %v2936 = vmul.f32 %v2931, %v2935
    %2937 = vrot.lane.b32.xlu0 %v2837, 64
    %v2938 = vpop.permute.xlu0 %2937
    %v2941 = vsel %vm536, %v2936, 0
    %2943 = vmatprep.subr.mxu0 0.0
    %2944 = vmatpush1.msra.mxu0 0.0
    %2945 = vmatprep.subr.mxu0 0.0
    %2946 = vmatpush1.msra.mxu0 0.0
    %2947 = vmatprep.subr.mxu0 0.0
    %2948 = vmatpush1.msra.mxu0 0.0
    %2949 = vmatprep.subr.mxu0 0.0
    %2950 = vmatpush1.msra.mxu0 0.0
    %2951 = vmatprep.subr.mxu0 0.0
    %2952 = vmatpush1.msra.mxu0 0.0
    %2953 = vmatprep.subr.mxu0 0.0
    %2954 = vmatpush1.msra.mxu0 0.0
    %2955 = vmatprep.subr.mxu0 0.0
    %2956 = vmatpush1.msra.mxu0 0.0
    %2957 = vmatprep.subr.mxu0 0.0
    %2958 = vmatpush1.msra.mxu0 0.0
    %2959 = vmatprep.subr.mxu0 0.0
    %2960 = vmatpush1.msra.mxu0 0.0
    %2961 = vmatprep.subr.mxu0 0.0
    %2962 = vmatpush1.msra.mxu0 0.0
    %2963 = vmatprep.subr.mxu0 0.0
    %2964 = vmatpush1.msra.mxu0 0.0
    %2965 = vmatprep.subr.mxu0 0.0
    %2966 = vmatpush1.msra.mxu0 0.0
    %2967 = vmatprep.subr.mxu0 0.0
    %2968 = vmatpush1.msra.mxu0 0.0
    %2969 = vmatprep.subr.mxu0 0.0
    %2970 = vmatpush1.msra.mxu0 0.0
    %2971 = vmatprep.subr.mxu0 0.0
    %2972 = vmatpush1.msra.mxu0 0.0
    %2973 = vmatprep.subr.mxu0 0.0
    %2974 = vmatpush1.msra.mxu0 %v2938
    %2975 = vmatprep.subr.mxu0 0.0
    %2976 = vmatpush2.msra.mxu0 0.0
    %2977 = vmatprep.subr.mxu0 0.0
    %2978 = vmatpush2.msra.mxu0 0.0
    %2979 = vmatprep.subr.mxu0 0.0
    %2980 = vmatpush2.msra.mxu0 0.0
    %2981 = vmatprep.subr.mxu0 0.0
    %2982 = vmatpush2.msra.mxu0 0.0
    %2983 = vmatprep.subr.mxu0 0.0
    %2984 = vmatpush2.msra.mxu0 0.0
    %2985 = vmatprep.subr.mxu0 0.0
    %2986 = vmatpush2.msra.mxu0 0.0
    %2987 = vmatprep.subr.mxu0 0.0
    %2988 = vmatpush2.msra.mxu0 0.0
    %2989 = vmatprep.subr.mxu0 0.0
    %2990 = vmatpush2.msra.mxu0 0.0
    %2991 = vmatprep.subr.mxu0 0.0
    %2992 = vmatpush2.msra.mxu0 0.0
    %2993 = vmatprep.subr.mxu0 0.0
    %2994 = vmatpush2.msra.mxu0 0.0
    %2995 = vmatprep.subr.mxu0 0.0
    %2996 = vmatpush2.msra.mxu0 0.0
    %2997 = vmatprep.subr.mxu0 0.0
    %2998 = vmatpush2.msra.mxu0 0.0
    %2999 = vmatprep.subr.mxu0 0.0
    %3000 = vmatpush2.msra.mxu0 0.0
    %3001 = vmatprep.subr.mxu0 0.0
    %3002 = vmatpush2.msra.mxu0 0.0
    %3003 = vmatprep.subr.mxu0 0.0
    %3004 = vmatpush2.msra.mxu0 0.0
    %3005 = vmatprep.subr.mxu0 0.0
    %3006 = vmatpush2.msra.mxu0 0.0
    %3007 = vmatprep.mubr.f32.mxu0 0.0
    %3008 = vmatmul.mubr.f32.gmra.mxu0 %v2941
    %v3009 = vpop.f32.mrf.mxu0
    %v3010 = vadd.f32 0.0, %v3009
    %v3011 = vpop.f32.mrf.mxu0
    %3012 = vdwg.mxu0
    %3013 = vrot.lane.b32.xlu0 %v2837, 120
    %v3014 = vpop.permute.xlu0 %3013
    %3015 = vrot.lane.b32.xlu0 %v2837, 88
    %v3016 = vpop.permute.xlu0 %3015
    %v3017 = vsel %vm536, %v3014, 0
    %v3019 = vsel %vm536, %v3016, 0
    %3021 = vmatprep.subr.mxu0 0.0
    %3022 = vmatpush1.xpose.msra.mxu0 0.0
    %3023 = vmatprep.subr.mxu0 0.0
    %3024 = vmatpush1.xpose.msra.mxu0 0.0
    %3025 = vmatprep.subr.mxu0 0.0
    %3026 = vmatpush1.xpose.msra.mxu0 0.0
    %3027 = vmatprep.subr.mxu0 0.0
    %3028 = vmatpush1.xpose.msra.mxu0 0.0
    %3029 = vmatprep.subr.mxu0 0.0
    %3030 = vmatpush1.xpose.msra.mxu0 0.0
    %3031 = vmatprep.subr.mxu0 0.0
    %3032 = vmatpush1.xpose.msra.mxu0 0.0
    %3033 = vmatprep.subr.mxu0 0.0
    %3034 = vmatpush1.xpose.msra.mxu0 0.0
    %3035 = vmatprep.subr.mxu0 0.0
    %3036 = vmatpush1.xpose.msra.mxu0 0.0
    %3037 = vmatprep.subr.mxu0 0.0
    %3038 = vmatpush1.xpose.msra.mxu0 0.0
    %3039 = vmatprep.subr.mxu0 0.0
    %3040 = vmatpush1.xpose.msra.mxu0 0.0
    %3041 = vmatprep.subr.mxu0 0.0
    %3042 = vmatpush1.xpose.msra.mxu0 0.0
    %3043 = vmatprep.subr.mxu0 0.0
    %3044 = vmatpush1.xpose.msra.mxu0 0.0
    %3045 = vmatprep.subr.mxu0 0.0
    %3046 = vmatpush1.xpose.msra.mxu0 0.0
    %3047 = vmatprep.subr.mxu0 0.0
    %3048 = vmatpush1.xpose.msra.mxu0 0.0
    %3049 = vmatprep.subr.mxu0 0.0
    %3050 = vmatpush1.xpose.msra.mxu0 0.0
    %3051 = vmatprep.subr.mxu0 0.0
    %3052 = vmatpush1.xpose.msra.mxu0 %v3019
    %3053 = vmatprep.subr.mxu0 0.0
    %3054 = vmatpush2.xpose.msra.mxu0 0.0
    %3055 = vmatprep.subr.mxu0 0.0
    %3056 = vmatpush2.xpose.msra.mxu0 0.0
    %3057 = vmatprep.subr.mxu0 0.0
    %3058 = vmatpush2.xpose.msra.mxu0 0.0
    %3059 = vmatprep.subr.mxu0 0.0
    %3060 = vmatpush2.xpose.msra.mxu0 0.0
    %3061 = vmatprep.subr.mxu0 0.0
    %3062 = vmatpush2.xpose.msra.mxu0 0.0
    %3063 = vmatprep.subr.mxu0 0.0
    %3064 = vmatpush2.xpose.msra.mxu0 0.0
    %3065 = vmatprep.subr.mxu0 0.0
    %3066 = vmatpush2.xpose.msra.mxu0 0.0
    %3067 = vmatprep.subr.mxu0 0.0
    %3068 = vmatpush2.xpose.msra.mxu0 0.0
    %3069 = vmatprep.subr.mxu0 0.0
    %3070 = vmatpush2.xpose.msra.mxu0 0.0
    %3071 = vmatprep.subr.mxu0 0.0
    %3072 = vmatpush2.xpose.msra.mxu0 0.0
    %3073 = vmatprep.subr.mxu0 0.0
    %3074 = vmatpush2.xpose.msra.mxu0 0.0
    %3075 = vmatprep.subr.mxu0 0.0
    %3076 = vmatpush2.xpose.msra.mxu0 0.0
    %3077 = vmatprep.subr.mxu0 0.0
    %3078 = vmatpush2.xpose.msra.mxu0 0.0
    %3079 = vmatprep.subr.mxu0 0.0
    %3080 = vmatpush2.xpose.msra.mxu0 0.0
    %3081 = vmatprep.subr.mxu0 0.0
    %3082 = vmatpush2.xpose.msra.mxu0 0.0
    %3083 = vmatprep.subr.mxu0 0.0
    %3084 = vmatpush2.xpose.msra.mxu0 0.0
    %3085 = vmatprep.mubr.f32.mxu0 0.0
    %3086 = vmatmul.mubr.f32.gmra.mxu0 %v3017
    %v3087 = vpop.f32.mrf.mxu0
    %v3088 = vadd.f32 %v532, %v3087
    %v3089 = vpop.f32.mrf.mxu0
    %3090 = vdwg.mxu0
    %v3091 = vsel %vm536, %v3088, -inf
    %3092 = vmax.xlane.f32.xlu0 %v3091
    %v3093 = vpop.xlane.xlu0 %3092
    %v3094 = vsub.f32 %v3088, %v3093
    %v3095 = vmul.f32 %v3094, 1.442695
    %v3096 = vpow.pop %v3095
    %v3097 = vsel %vm536, %v3096, 0.0
    %3098 = vadd.xlane.f32.xlu0 %v3097
    %v3099 = vpop.xlane.xlu0 %3098
    %v3100 = vrcp.pop %v3099
    %v3101 = vmul.f32 %v3096, %v3100
    %3102 = vrot.lane.b32.xlu0 %v2837, 56
    %v3103 = vpop.permute.xlu0 %3102
    %v3106 = vsel %vm536, %v3101, 0
    %3108 = vmatprep.subr.mxu0 0.0
    %3109 = vmatpush1.msra.mxu0 0.0
    %3110 = vmatprep.subr.mxu0 0.0
    %3111 = vmatpush1.msra.mxu0 0.0
    %3112 = vmatprep.subr.mxu0 0.0
    %3113 = vmatpush1.msra.mxu0 0.0
    %3114 = vmatprep.subr.mxu0 0.0
    %3115 = vmatpush1.msra.mxu0 0.0
    %3116 = vmatprep.subr.mxu0 0.0
    %3117 = vmatpush1.msra.mxu0 0.0
    %3118 = vmatprep.subr.mxu0 0.0
    %3119 = vmatpush1.msra.mxu0 0.0
    %3120 = vmatprep.subr.mxu0 0.0
    %3121 = vmatpush1.msra.mxu0 0.0
    %3122 = vmatprep.subr.mxu0 0.0
    %3123 = vmatpush1.msra.mxu0 0.0
    %3124 = vmatprep.subr.mxu0 0.0
    %3125 = vmatpush1.msra.mxu0 0.0
    %3126 = vmatprep.subr.mxu0 0.0
    %3127 = vmatpush1.msra.mxu0 0.0
    %3128 = vmatprep.subr.mxu0 0.0
    %3129 = vmatpush1.msra.mxu0 0.0
    %3130 = vmatprep.subr.mxu0 0.0
    %3131 = vmatpush1.msra.mxu0 0.0
    %3132 = vmatprep.subr.mxu0 0.0
    %3133 = vmatpush1.msra.mxu0 0.0
    %3134 = vmatprep.subr.mxu0 0.0
    %3135 = vmatpush1.msra.mxu0 0.0
    %3136 = vmatprep.subr.mxu0 0.0
    %3137 = vmatpush1.msra.mxu0 0.0
    %3138 = vmatprep.subr.mxu0 0.0
    %3139 = vmatpush1.msra.mxu0 %v3103
    %3140 = vmatprep.subr.mxu0 0.0
    %3141 = vmatpush2.msra.mxu0 0.0
    %3142 = vmatprep.subr.mxu0 0.0
    %3143 = vmatpush2.msra.mxu0 0.0
    %3144 = vmatprep.subr.mxu0 0.0
    %3145 = vmatpush2.msra.mxu0 0.0
    %3146 = vmatprep.subr.mxu0 0.0
    %3147 = vmatpush2.msra.mxu0 0.0
    %3148 = vmatprep.subr.mxu0 0.0
    %3149 = vmatpush2.msra.mxu0 0.0
    %3150 = vmatprep.subr.mxu0 0.0
    %3151 = vmatpush2.msra.mxu0 0.0
    %3152 = vmatprep.subr.mxu0 0.0
    %3153 = vmatpush2.msra.mxu0 0.0
    %3154 = vmatprep.subr.mxu0 0.0
    %3155 = vmatpush2.msra.mxu0 0.0
    %3156 = vmatprep.subr.mxu0 0.0
    %3157 = vmatpush2.msra.mxu0 0.0
    %3158 = vmatprep.subr.mxu0 0.0
    %3159 = vmatpush2.msra.mxu0 0.0
    %3160 = vmatprep.subr.mxu0 0.0
    %3161 = vmatpush2.msra.mxu0 0.0
    %3162 = vmatprep.subr.mxu0 0.0
    %3163 = vmatpush2.msra.mxu0 0.0
    %3164 = vmatprep.subr.mxu0 0.0
    %3165 = vmatpush2.msra.mxu0 0.0
    %3166 = vmatprep.subr.mxu0 0.0
    %3167 = vmatpush2.msra.mxu0 0.0
    %3168 = vmatprep.subr.mxu0 0.0
    %3169 = vmatpush2.msra.mxu0 0.0
    %3170 = vmatprep.subr.mxu0 0.0
    %3171 = vmatpush2.msra.mxu0 0.0
    %3172 = vmatprep.mubr.f32.mxu0 0.0
    %3173 = vmatmul.mubr.f32.gmra.mxu0 %v3106
    %v3174 = vpop.f32.mrf.mxu0
    %v3175 = vadd.f32 0.0, %v3174
    %v3176 = vpop.f32.mrf.mxu0
    %3177 = vdwg.mxu0
    %v3179 = vsel %vm536, %v3175, 0
    %3181 = vmatprep.subr.mxu0 0.0
    %3182 = vmatpush1.msra.mxu0 0.0
    %3183 = vmatprep.subr.mxu0 0.0
    %3184 = vmatpush1.msra.mxu0 0.0
    %3185 = vmatprep.subr.mxu0 0.0
    %3186 = vmatpush1.msra.mxu0 0.0
    %3187 = vmatprep.subr.mxu0 0.0
    %3188 = vmatpush1.msra.mxu0 0.0
    %3189 = vmatprep.subr.mxu0 0.0
    %3190 = vmatpush1.msra.mxu0 0.0
    %3191 = vmatprep.subr.mxu0 0.0
    %3192 = vmatpush1.msra.mxu0 0.0
    %3193 = vmatprep.subr.mxu0 0.0
    %3194 = vmatpush1.msra.mxu0 0.0
    %3195 = vmatprep.subr.mxu0 0.0
    %3196 = vmatpush1.msra.mxu0 0.0
    %3197 = vmatprep.subr.mxu0 0.0
    %3198 = vmatpush1.msra.mxu0 0.0
    %3199 = vmatprep.subr.mxu0 0.0
    %3200 = vmatpush1.msra.mxu0 0.0
    %3201 = vmatprep.subr.mxu0 0.0
    %3202 = vmatpush1.msra.mxu0 0.0
    %3203 = vmatprep.subr.mxu0 0.0
    %3204 = vmatpush1.msra.mxu0 0.0
    %3205 = vmatprep.subr.mxu0 0.0
    %3206 = vmatpush1.msra.mxu0 0.0
    %3207 = vmatprep.subr.mxu0 0.0
    %3208 = vmatpush1.msra.mxu0 0.0
    %3209 = vmatprep.subr.mxu0 0.0
    %3210 = vmatpush1.msra.mxu0 0.0
    %3211 = vmatprep.subr.mxu0 0.0
    %3212 = vmatpush1.msra.mxu0 %v2846
    %3213 = vmatprep.subr.mxu0 0.0
    %3214 = vmatpush2.msra.mxu0 0.0
    %3215 = vmatprep.subr.mxu0 0.0
    %3216 = vmatpush2.msra.mxu0 0.0
    %3217 = vmatprep.subr.mxu0 0.0
    %3218 = vmatpush2.msra.mxu0 0.0
    %3219 = vmatprep.subr.mxu0 0.0
    %3220 = vmatpush2.msra.mxu0 0.0
    %3221 = vmatprep.subr.mxu0 0.0
    %3222 = vmatpush2.msra.mxu0 0.0
    %3223 = vmatprep.subr.mxu0 0.0
    %3224 = vmatpush2.msra.mxu0 0.0
    %3225 = vmatprep.subr.mxu0 0.0
    %3226 = vmatpush2.msra.mxu0 0.0
    %3227 = vmatprep.subr.mxu0 0.0
    %3228 = vmatpush2.msra.mxu0 0.0
    %3229 = vmatprep.subr.mxu0 0.0
    %3230 = vmatpush2.msra.mxu0 0.0
    %3231 = vmatprep.subr.mxu0 0.0
    %3232 = vmatpush2.msra.mxu0 0.0
    %3233 = vmatprep.subr.mxu0 0.0
    %3234 = vmatpush2.msra.mxu0 0.0
    %3235 = vmatprep.subr.mxu0 0.0
    %3236 = vmatpush2.msra.mxu0 0.0
    %3237 = vmatprep.subr.mxu0 0.0
    %3238 = vmatpush2.msra.mxu0 0.0
    %3239 = vmatprep.subr.mxu0 0.0
    %3240 = vmatpush2.msra.mxu0 0.0
    %3241 = vmatprep.subr.mxu0 0.0
    %3242 = vmatpush2.msra.mxu0 0.0
    %3243 = vmatprep.subr.mxu0 0.0
    %3244 = vmatpush2.msra.mxu0 0.0
    %3245 = vmatprep.mubr.f32.mxu0 0.0
    %3246 = vmatmul.mubr.f32.gmra.mxu0 %v3179
    %v3247 = vpop.f32.mrf.mxu0
    %v3248 = vadd.f32 0.0, %v3247
    %v3249 = vpop.f32.mrf.mxu0
    %3250 = vdwg.mxu0
    %v3252 = vsel %vm536, %v3010, 0
    %3254 = vmatprep.subr.mxu0 0.0
    %3255 = vmatpush1.msra.mxu0 0.0
    %3256 = vmatprep.subr.mxu0 0.0
    %3257 = vmatpush1.msra.mxu0 0.0
    %3258 = vmatprep.subr.mxu0 0.0
    %3259 = vmatpush1.msra.mxu0 0.0
    %3260 = vmatprep.subr.mxu0 0.0
    %3261 = vmatpush1.msra.mxu0 0.0
    %3262 = vmatprep.subr.mxu0 0.0
    %3263 = vmatpush1.msra.mxu0 0.0
    %3264 = vmatprep.subr.mxu0 0.0
    %3265 = vmatpush1.msra.mxu0 0.0
    %3266 = vmatprep.subr.mxu0 0.0
    %3267 = vmatpush1.msra.mxu0 0.0
    %3268 = vmatprep.subr.mxu0 0.0
    %3269 = vmatpush1.msra.mxu0 0.0
    %3270 = vmatprep.subr.mxu0 0.0
    %3271 = vmatpush1.msra.mxu0 0.0
    %3272 = vmatprep.subr.mxu0 0.0
    %3273 = vmatpush1.msra.mxu0 0.0
    %3274 = vmatprep.subr.mxu0 0.0
    %3275 = vmatpush1.msra.mxu0 0.0
    %3276 = vmatprep.subr.mxu0 0.0
    %3277 = vmatpush1.msra.mxu0 0.0
    %3278 = vmatprep.subr.mxu0 0.0
    %3279 = vmatpush1.msra.mxu0 0.0
    %3280 = vmatprep.subr.mxu0 0.0
    %3281 = vmatpush1.msra.mxu0 0.0
    %3282 = vmatprep.subr.mxu0 0.0
    %3283 = vmatpush1.msra.mxu0 0.0
    %3284 = vmatprep.subr.mxu0 0.0
    %3285 = vmatpush1.msra.mxu0 %v2845
    %3286 = vmatprep.subr.mxu0 0.0
    %3287 = vmatpush2.msra.mxu0 0.0
    %3288 = vmatprep.subr.mxu0 0.0
    %3289 = vmatpush2.msra.mxu0 0.0
    %3290 = vmatprep.subr.mxu0 0.0
    %3291 = vmatpush2.msra.mxu0 0.0
    %3292 = vmatprep.subr.mxu0 0.0
    %3293 = vmatpush2.msra.mxu0 0.0
    %3294 = vmatprep.subr.mxu0 0.0
    %3295 = vmatpush2.msra.mxu0 0.0
    %3296 = vmatprep.subr.mxu0 0.0
    %3297 = vmatpush2.msra.mxu0 0.0
    %3298 = vmatprep.subr.mxu0 0.0
    %3299 = vmatpush2.msra.mxu0 0.0
    %3300 = vmatprep.subr.mxu0 0.0
    %3301 = vmatpush2.msra.mxu0 0.0
    %3302 = vmatprep.subr.mxu0 0.0
    %3303 = vmatpush2.msra.mxu0 0.0
    %3304 = vmatprep.subr.mxu0 0.0
    %3305 = vmatpush2.msra.mxu0 0.0
    %3306 = vmatprep.subr.mxu0 0.0
    %3307 = vmatpush2.msra.mxu0 0.0
    %3308 = vmatprep.subr.mxu0 0.0
    %3309 = vmatpush2.msra.mxu0 0.0
    %3310 = vmatprep.subr.mxu0 0.0
    %3311 = vmatpush2.msra.mxu0 0.0
    %3312 = vmatprep.subr.mxu0 0.0
    %3313 = vmatpush2.msra.mxu0 0.0
    %3314 = vmatprep.subr.mxu0 0.0
    %3315 = vmatpush2.msra.mxu0 0.0
    %3316 = vmatprep.subr.mxu0 0.0
    %3317 = vmatpush2.msra.mxu0 0.0
    %3318 = vmatprep.mubr.f32.mxu0 0.0
    %3319 = vmatmul.mubr.f32.gmra.mxu0 %v3252
    %v3320 = vpop.f32.mrf.mxu0
    %v3321 = vadd.f32 %v3248, %v3320
    %v3322 = vpop.f32.mrf.mxu0
    %3323 = vdwg.mxu0
    %3324 = vrot.lane.b32.xlu0 %v2837, 112
    %v3325 = vpop.permute.xlu0 %3324
    %3326 = vrot.lane.b32.xlu0 %v2837, 80
    %v3327 = vpop.permute.xlu0 %3326
    %v3328 = vsel %vm536, %v3325, 0
    %v3330 = vsel %vm536, %v3327, 0
    %3332 = vmatprep.subr.mxu0 0.0
    %3333 = vmatpush1.xpose.msra.mxu0 0.0
    %3334 = vmatprep.subr.mxu0 0.0
    %3335 = vmatpush1.xpose.msra.mxu0 0.0
    %3336 = vmatprep.subr.mxu0 0.0
    %3337 = vmatpush1.xpose.msra.mxu0 0.0
    %3338 = vmatprep.subr.mxu0 0.0
    %3339 = vmatpush1.xpose.msra.mxu0 0.0
    %3340 = vmatprep.subr.mxu0 0.0
    %3341 = vmatpush1.xpose.msra.mxu0 0.0
    %3342 = vmatprep.subr.mxu0 0.0
    %3343 = vmatpush1.xpose.msra.mxu0 0.0
    %3344 = vmatprep.subr.mxu0 0.0
    %3345 = vmatpush1.xpose.msra.mxu0 0.0
    %3346 = vmatprep.subr.mxu0 0.0
    %3347 = vmatpush1.xpose.msra.mxu0 0.0
    %3348 = vmatprep.subr.mxu0 0.0
    %3349 = vmatpush1.xpose.msra.mxu0 0.0
    %3350 = vmatprep.subr.mxu0 0.0
    %3351 = vmatpush1.xpose.msra.mxu0 0.0
    %3352 = vmatprep.subr.mxu0 0.0
    %3353 = vmatpush1.xpose.msra.mxu0 0.0
    %3354 = vmatprep.subr.mxu0 0.0
    %3355 = vmatpush1.xpose.msra.mxu0 0.0
    %3356 = vmatprep.subr.mxu0 0.0
    %3357 = vmatpush1.xpose.msra.mxu0 0.0
    %3358 = vmatprep.subr.mxu0 0.0
    %3359 = vmatpush1.xpose.msra.mxu0 0.0
    %3360 = vmatprep.subr.mxu0 0.0
    %3361 = vmatpush1.xpose.msra.mxu0 0.0
    %3362 = vmatprep.subr.mxu0 0.0
    %3363 = vmatpush1.xpose.msra.mxu0 %v3330
    %3364 = vmatprep.subr.mxu0 0.0
    %3365 = vmatpush2.xpose.msra.mxu0 0.0
    %3366 = vmatprep.subr.mxu0 0.0
    %3367 = vmatpush2.xpose.msra.mxu0 0.0
    %3368 = vmatprep.subr.mxu0 0.0
    %3369 = vmatpush2.xpose.msra.mxu0 0.0
    %3370 = vmatprep.subr.mxu0 0.0
    %3371 = vmatpush2.xpose.msra.mxu0 0.0
    %3372 = vmatprep.subr.mxu0 0.0
    %3373 = vmatpush2.xpose.msra.mxu0 0.0
    %3374 = vmatprep.subr.mxu0 0.0
    %3375 = vmatpush2.xpose.msra.mxu0 0.0
    %3376 = vmatprep.subr.mxu0 0.0
    %3377 = vmatpush2.xpose.msra.mxu0 0.0
    %3378 = vmatprep.subr.mxu0 0.0
    %3379 = vmatpush2.xpose.msra.mxu0 0.0
    %3380 = vmatprep.subr.mxu0 0.0
    %3381 = vmatpush2.xpose.msra.mxu0 0.0
    %3382 = vmatprep.subr.mxu0 0.0
    %3383 = vmatpush2.xpose.msra.mxu0 0.0
    %3384 = vmatprep.subr.mxu0 0.0
    %3385 = vmatpush2.xpose.msra.mxu0 0.0
    %3386 = vmatprep.subr.mxu0 0.0
    %3387 = vmatpush2.xpose.msra.mxu0 0.0
    %3388 = vmatprep.subr.mxu0 0.0
    %3389 = vmatpush2.xpose.msra.mxu0 0.0
    %3390 = vmatprep.subr.mxu0 0.0
    %3391 = vmatpush2.xpose.msra.mxu0 0.0
    %3392 = vmatprep.subr.mxu0 0.0
    %3393 = vmatpush2.xpose.msra.mxu0 0.0
    %3394 = vmatprep.subr.mxu0 0.0
    %3395 = vmatpush2.xpose.msra.mxu0 0.0
    %3396 = vmatprep.mubr.f32.mxu0 0.0
    %3397 = vmatmul.mubr.f32.gmra.mxu0 %v3328
    %v3398 = vpop.f32.mrf.mxu0
    %v3399 = vadd.f32 %v532, %v3398
    %v3400 = vpop.f32.mrf.mxu0
    %3401 = vdwg.mxu0
    %v3402 = vsel %vm536, %v3399, -inf
    %3403 = vmax.xlane.f32.xlu0 %v3402
    %v3404 = vpop.xlane.xlu0 %3403
    %v3405 = vsub.f32 %v3399, %v3404
    %v3406 = vmul.f32 %v3405, 1.442695
    %v3407 = vpow.pop %v3406
    %v3408 = vsel %vm536, %v3407, 0.0
    %3409 = vadd.xlane.f32.xlu0 %v3408
    %v3410 = vpop.xlane.xlu0 %3409
    %v3411 = vrcp.pop %v3410
    %v3412 = vmul.f32 %v3407, %v3411
    %3413 = vrot.lane.b32.xlu0 %v2837, 48
    %v3414 = vpop.permute.xlu0 %3413
    %v3417 = vsel %vm536, %v3412, 0
    %3419 = vmatprep.subr.mxu0 0.0
    %3420 = vmatpush1.msra.mxu0 0.0
    %3421 = vmatprep.subr.mxu0 0.0
    %3422 = vmatpush1.msra.mxu0 0.0
    %3423 = vmatprep.subr.mxu0 0.0
    %3424 = vmatpush1.msra.mxu0 0.0
    %3425 = vmatprep.subr.mxu0 0.0
    %3426 = vmatpush1.msra.mxu0 0.0
    %3427 = vmatprep.subr.mxu0 0.0
    %3428 = vmatpush1.msra.mxu0 0.0
    %3429 = vmatprep.subr.mxu0 0.0
    %3430 = vmatpush1.msra.mxu0 0.0
    %3431 = vmatprep.subr.mxu0 0.0
    %3432 = vmatpush1.msra.mxu0 0.0
    %3433 = vmatprep.subr.mxu0 0.0
    %3434 = vmatpush1.msra.mxu0 0.0
    %3435 = vmatprep.subr.mxu0 0.0
    %3436 = vmatpush1.msra.mxu0 0.0
    %3437 = vmatprep.subr.mxu0 0.0
    %3438 = vmatpush1.msra.mxu0 0.0
    %3439 = vmatprep.subr.mxu0 0.0
    %3440 = vmatpush1.msra.mxu0 0.0
    %3441 = vmatprep.subr.mxu0 0.0
    %3442 = vmatpush1.msra.mxu0 0.0
    %3443 = vmatprep.subr.mxu0 0.0
    %3444 = vmatpush1.msra.mxu0 0.0
    %3445 = vmatprep.subr.mxu0 0.0
    %3446 = vmatpush1.msra.mxu0 0.0
    %3447 = vmatprep.subr.mxu0 0.0
    %3448 = vmatpush1.msra.mxu0 0.0
    %3449 = vmatprep.subr.mxu0 0.0
    %3450 = vmatpush1.msra.mxu0 %v3414
    %3451 = vmatprep.subr.mxu0 0.0
    %3452 = vmatpush2.msra.mxu0 0.0
    %3453 = vmatprep.subr.mxu0 0.0
    %3454 = vmatpush2.msra.mxu0 0.0
    %3455 = vmatprep.subr.mxu0 0.0
    %3456 = vmatpush2.msra.mxu0 0.0
    %3457 = vmatprep.subr.mxu0 0.0
    %3458 = vmatpush2.msra.mxu0 0.0
    %3459 = vmatprep.subr.mxu0 0.0
    %3460 = vmatpush2.msra.mxu0 0.0
    %3461 = vmatprep.subr.mxu0 0.0
    %3462 = vmatpush2.msra.mxu0 0.0
    %3463 = vmatprep.subr.mxu0 0.0
    %3464 = vmatpush2.msra.mxu0 0.0
    %3465 = vmatprep.subr.mxu0 0.0
    %3466 = vmatpush2.msra.mxu0 0.0
    %3467 = vmatprep.subr.mxu0 0.0
    %3468 = vmatpush2.msra.mxu0 0.0
    %3469 = vmatprep.subr.mxu0 0.0
    %3470 = vmatpush2.msra.mxu0 0.0
    %3471 = vmatprep.subr.mxu0 0.0
    %3472 = vmatpush2.msra.mxu0 0.0
    %3473 = vmatprep.subr.mxu0 0.0
    %3474 = vmatpush2.msra.mxu0 0.0
    %3475 = vmatprep.subr.mxu0 0.0
    %3476 = vmatpush2.msra.mxu0 0.0
    %3477 = vmatprep.subr.mxu0 0.0
    %3478 = vmatpush2.msra.mxu0 0.0
    %3479 = vmatprep.subr.mxu0 0.0
    %3480 = vmatpush2.msra.mxu0 0.0
    %3481 = vmatprep.subr.mxu0 0.0
    %3482 = vmatpush2.msra.mxu0 0.0
    %3483 = vmatprep.mubr.f32.mxu0 0.0
    %3484 = vmatmul.mubr.f32.gmra.mxu0 %v3417
    %v3485 = vpop.f32.mrf.mxu0
    %v3486 = vadd.f32 0.0, %v3485
    %v3487 = vpop.f32.mrf.mxu0
    %3488 = vdwg.mxu0
    %v3490 = vsel %vm536, %v3486, 0
    %3492 = vmatprep.subr.mxu0 0.0
    %3493 = vmatpush1.msra.mxu0 0.0
    %3494 = vmatprep.subr.mxu0 0.0
    %3495 = vmatpush1.msra.mxu0 0.0
    %3496 = vmatprep.subr.mxu0 0.0
    %3497 = vmatpush1.msra.mxu0 0.0
    %3498 = vmatprep.subr.mxu0 0.0
    %3499 = vmatpush1.msra.mxu0 0.0
    %3500 = vmatprep.subr.mxu0 0.0
    %3501 = vmatpush1.msra.mxu0 0.0
    %3502 = vmatprep.subr.mxu0 0.0
    %3503 = vmatpush1.msra.mxu0 0.0
    %3504 = vmatprep.subr.mxu0 0.0
    %3505 = vmatpush1.msra.mxu0 0.0
    %3506 = vmatprep.subr.mxu0 0.0
    %3507 = vmatpush1.msra.mxu0 0.0
    %3508 = vmatprep.subr.mxu0 0.0
    %3509 = vmatpush1.msra.mxu0 0.0
    %3510 = vmatprep.subr.mxu0 0.0
    %3511 = vmatpush1.msra.mxu0 0.0
    %3512 = vmatprep.subr.mxu0 0.0
    %3513 = vmatpush1.msra.mxu0 0.0
    %3514 = vmatprep.subr.mxu0 0.0
    %3515 = vmatpush1.msra.mxu0 0.0
    %3516 = vmatprep.subr.mxu0 0.0
    %3517 = vmatpush1.msra.mxu0 0.0
    %3518 = vmatprep.subr.mxu0 0.0
    %3519 = vmatpush1.msra.mxu0 0.0
    %3520 = vmatprep.subr.mxu0 0.0
    %3521 = vmatpush1.msra.mxu0 0.0
    %3522 = vmatprep.subr.mxu0 0.0
    %3523 = vmatpush1.msra.mxu0 %v2847
    %3524 = vmatprep.subr.mxu0 0.0
    %3525 = vmatpush2.msra.mxu0 0.0
    %3526 = vmatprep.subr.mxu0 0.0
    %3527 = vmatpush2.msra.mxu0 0.0
    %3528 = vmatprep.subr.mxu0 0.0
    %3529 = vmatpush2.msra.mxu0 0.0
    %3530 = vmatprep.subr.mxu0 0.0
    %3531 = vmatpush2.msra.mxu0 0.0
    %3532 = vmatprep.subr.mxu0 0.0
    %3533 = vmatpush2.msra.mxu0 0.0
    %3534 = vmatprep.subr.mxu0 0.0
    %3535 = vmatpush2.msra.mxu0 0.0
    %3536 = vmatprep.subr.mxu0 0.0
    %3537 = vmatpush2.msra.mxu0 0.0
    %3538 = vmatprep.subr.mxu0 0.0
    %3539 = vmatpush2.msra.mxu0 0.0
    %3540 = vmatprep.subr.mxu0 0.0
    %3541 = vmatpush2.msra.mxu0 0.0
    %3542 = vmatprep.subr.mxu0 0.0
    %3543 = vmatpush2.msra.mxu0 0.0
    %3544 = vmatprep.subr.mxu0 0.0
    %3545 = vmatpush2.msra.mxu0 0.0
    %3546 = vmatprep.subr.mxu0 0.0
    %3547 = vmatpush2.msra.mxu0 0.0
    %3548 = vmatprep.subr.mxu0 0.0
    %3549 = vmatpush2.msra.mxu0 0.0
    %3550 = vmatprep.subr.mxu0 0.0
    %3551 = vmatpush2.msra.mxu0 0.0
    %3552 = vmatprep.subr.mxu0 0.0
    %3553 = vmatpush2.msra.mxu0 0.0
    %3554 = vmatprep.subr.mxu0 0.0
    %3555 = vmatpush2.msra.mxu0 0.0
    %3556 = vmatprep.mubr.f32.mxu0 0.0
    %3557 = vmatmul.mubr.f32.gmra.mxu0 %v3490
    %v3558 = vpop.f32.mrf.mxu0
    %v3559 = vadd.f32 0.0, %v3558
    %v3560 = vpop.f32.mrf.mxu0
    %3561 = vdwg.mxu0
    %v3562 = vadd.f32 %v3321, %v3559
    %3563 = vrot.lane.b32.xlu0 %v2837, 104
    %v3564 = vpop.permute.xlu0 %3563
    %3565 = vrot.lane.b32.xlu0 %v2837, 72
    %v3566 = vpop.permute.xlu0 %3565
    %v3567 = vsel %vm536, %v3564, 0
    %v3569 = vsel %vm536, %v3566, 0
    %3571 = vmatprep.subr.mxu0 0.0
    %3572 = vmatpush1.xpose.msra.mxu0 0.0
    %3573 = vmatprep.subr.mxu0 0.0
    %3574 = vmatpush1.xpose.msra.mxu0 0.0
    %3575 = vmatprep.subr.mxu0 0.0
    %3576 = vmatpush1.xpose.msra.mxu0 0.0
    %3577 = vmatprep.subr.mxu0 0.0
    %3578 = vmatpush1.xpose.msra.mxu0 0.0
    %3579 = vmatprep.subr.mxu0 0.0
    %3580 = vmatpush1.xpose.msra.mxu0 0.0
    %3581 = vmatprep.subr.mxu0 0.0
    %3582 = vmatpush1.xpose.msra.mxu0 0.0
    %3583 = vmatprep.subr.mxu0 0.0
    %3584 = vmatpush1.xpose.msra.mxu0 0.0
    %3585 = vmatprep.subr.mxu0 0.0
    %3586 = vmatpush1.xpose.msra.mxu0 0.0
    %3587 = vmatprep.subr.mxu0 0.0
    %3588 = vmatpush1.xpose.msra.mxu0 0.0
    %3589 = vmatprep.subr.mxu0 0.0
    %3590 = vmatpush1.xpose.msra.mxu0 0.0
    %3591 = vmatprep.subr.mxu0 0.0
    %3592 = vmatpush1.xpose.msra.mxu0 0.0
    %3593 = vmatprep.subr.mxu0 0.0
    %3594 = vmatpush1.xpose.msra.mxu0 0.0
    %3595 = vmatprep.subr.mxu0 0.0
    %3596 = vmatpush1.xpose.msra.mxu0 0.0
    %3597 = vmatprep.subr.mxu0 0.0
    %3598 = vmatpush1.xpose.msra.mxu0 0.0
    %3599 = vmatprep.subr.mxu0 0.0
    %3600 = vmatpush1.xpose.msra.mxu0 0.0
    %3601 = vmatprep.subr.mxu0 0.0
    %3602 = vmatpush1.xpose.msra.mxu0 %v3569
    %3603 = vmatprep.subr.mxu0 0.0
    %3604 = vmatpush2.xpose.msra.mxu0 0.0
    %3605 = vmatprep.subr.mxu0 0.0
    %3606 = vmatpush2.xpose.msra.mxu0 0.0
    %3607 = vmatprep.subr.mxu0 0.0
    %3608 = vmatpush2.xpose.msra.mxu0 0.0
    %3609 = vmatprep.subr.mxu0 0.0
    %3610 = vmatpush2.xpose.msra.mxu0 0.0
    %3611 = vmatprep.subr.mxu0 0.0
    %3612 = vmatpush2.xpose.msra.mxu0 0.0
    %3613 = vmatprep.subr.mxu0 0.0
    %3614 = vmatpush2.xpose.msra.mxu0 0.0
    %3615 = vmatprep.subr.mxu0 0.0
    %3616 = vmatpush2.xpose.msra.mxu0 0.0
    %3617 = vmatprep.subr.mxu0 0.0
    %3618 = vmatpush2.xpose.msra.mxu0 0.0
    %3619 = vmatprep.subr.mxu0 0.0
    %3620 = vmatpush2.xpose.msra.mxu0 0.0
    %3621 = vmatprep.subr.mxu0 0.0
    %3622 = vmatpush2.xpose.msra.mxu0 0.0
    %3623 = vmatprep.subr.mxu0 0.0
    %3624 = vmatpush2.xpose.msra.mxu0 0.0
    %3625 = vmatprep.subr.mxu0 0.0
    %3626 = vmatpush2.xpose.msra.mxu0 0.0
    %3627 = vmatprep.subr.mxu0 0.0
    %3628 = vmatpush2.xpose.msra.mxu0 0.0
    %3629 = vmatprep.subr.mxu0 0.0
    %3630 = vmatpush2.xpose.msra.mxu0 0.0
    %3631 = vmatprep.subr.mxu0 0.0
    %3632 = vmatpush2.xpose.msra.mxu0 0.0
    %3633 = vmatprep.subr.mxu0 0.0
    %3634 = vmatpush2.xpose.msra.mxu0 0.0
    %3635 = vmatprep.mubr.f32.mxu0 0.0
    %3636 = vmatmul.mubr.f32.gmra.mxu0 %v3567
    %v3637 = vpop.f32.mrf.mxu0
    %v3638 = vadd.f32 %v532, %v3637
    %v3639 = vpop.f32.mrf.mxu0
    %3640 = vdwg.mxu0
    %v3641 = vsel %vm536, %v3638, -inf
    %3642 = vmax.xlane.f32.xlu0 %v3641
    %v3643 = vpop.xlane.xlu0 %3642
    %v3644 = vsub.f32 %v3638, %v3643
    %v3645 = vmul.f32 %v3644, 1.442695
    %v3646 = vpow.pop %v3645
    %v3647 = vsel %vm536, %v3646, 0.0
    %3648 = vadd.xlane.f32.xlu0 %v3647
    %v3649 = vpop.xlane.xlu0 %3648
    %v3650 = vrcp.pop %v3649
    %v3651 = vmul.f32 %v3646, %v3650
    %3652 = vrot.lane.b32.xlu0 %v2837, 40
    %v3653 = vpop.permute.xlu0 %3652
    %v3656 = vsel %vm536, %v3651, 0
    %3658 = vmatprep.subr.mxu0 0.0
    %3659 = vmatpush1.msra.mxu0 0.0
    %3660 = vmatprep.subr.mxu0 0.0
    %3661 = vmatpush1.msra.mxu0 0.0
    %3662 = vmatprep.subr.mxu0 0.0
    %3663 = vmatpush1.msra.mxu0 0.0
    %3664 = vmatprep.subr.mxu0 0.0
    %3665 = vmatpush1.msra.mxu0 0.0
    %3666 = vmatprep.subr.mxu0 0.0
    %3667 = vmatpush1.msra.mxu0 0.0
    %3668 = vmatprep.subr.mxu0 0.0
    %3669 = vmatpush1.msra.mxu0 0.0
    %3670 = vmatprep.subr.mxu0 0.0
    %3671 = vmatpush1.msra.mxu0 0.0
    %3672 = vmatprep.subr.mxu0 0.0
    %3673 = vmatpush1.msra.mxu0 0.0
    %3674 = vmatprep.subr.mxu0 0.0
    %3675 = vmatpush1.msra.mxu0 0.0
    %3676 = vmatprep.subr.mxu0 0.0
    %3677 = vmatpush1.msra.mxu0 0.0
    %3678 = vmatprep.subr.mxu0 0.0
    %3679 = vmatpush1.msra.mxu0 0.0
    %3680 = vmatprep.subr.mxu0 0.0
    %3681 = vmatpush1.msra.mxu0 0.0
    %3682 = vmatprep.subr.mxu0 0.0
    %3683 = vmatpush1.msra.mxu0 0.0
    %3684 = vmatprep.subr.mxu0 0.0
    %3685 = vmatpush1.msra.mxu0 0.0
    %3686 = vmatprep.subr.mxu0 0.0
    %3687 = vmatpush1.msra.mxu0 0.0
    %3688 = vmatprep.subr.mxu0 0.0
    %3689 = vmatpush1.msra.mxu0 %v3653
    %3690 = vmatprep.subr.mxu0 0.0
    %3691 = vmatpush2.msra.mxu0 0.0
    %3692 = vmatprep.subr.mxu0 0.0
    %3693 = vmatpush2.msra.mxu0 0.0
    %3694 = vmatprep.subr.mxu0 0.0
    %3695 = vmatpush2.msra.mxu0 0.0
    %3696 = vmatprep.subr.mxu0 0.0
    %3697 = vmatpush2.msra.mxu0 0.0
    %3698 = vmatprep.subr.mxu0 0.0
    %3699 = vmatpush2.msra.mxu0 0.0
    %3700 = vmatprep.subr.mxu0 0.0
    %3701 = vmatpush2.msra.mxu0 0.0
    %3702 = vmatprep.subr.mxu0 0.0
    %3703 = vmatpush2.msra.mxu0 0.0
    %3704 = vmatprep.subr.mxu0 0.0
    %3705 = vmatpush2.msra.mxu0 0.0
    %3706 = vmatprep.subr.mxu0 0.0
    %3707 = vmatpush2.msra.mxu0 0.0
    %3708 = vmatprep.subr.mxu0 0.0
    %3709 = vmatpush2.msra.mxu0 0.0
    %3710 = vmatprep.subr.mxu0 0.0
    %3711 = vmatpush2.msra.mxu0 0.0
    %3712 = vmatprep.subr.mxu0 0.0
    %3713 = vmatpush2.msra.mxu0 0.0
    %3714 = vmatprep.subr.mxu0 0.0
    %3715 = vmatpush2.msra.mxu0 0.0
    %3716 = vmatprep.subr.mxu0 0.0
    %3717 = vmatpush2.msra.mxu0 0.0
    %3718 = vmatprep.subr.mxu0 0.0
    %3719 = vmatpush2.msra.mxu0 0.0
    %3720 = vmatprep.subr.mxu0 0.0
    %3721 = vmatpush2.msra.mxu0 0.0
    %3722 = vmatprep.mubr.f32.mxu0 0.0
    %3723 = vmatmul.mubr.f32.gmra.mxu0 %v3656
    %v3724 = vpop.f32.mrf.mxu0
    %v3725 = vadd.f32 0.0, %v3724
    %v3726 = vpop.f32.mrf.mxu0
    %3727 = vdwg.mxu0
    %v3729 = vsel %vm536, %v3725, 0
    %3731 = vmatprep.subr.mxu0 0.0
    %3732 = vmatpush1.msra.mxu0 0.0
    %3733 = vmatprep.subr.mxu0 0.0
    %3734 = vmatpush1.msra.mxu0 0.0
    %3735 = vmatprep.subr.mxu0 0.0
    %3736 = vmatpush1.msra.mxu0 0.0
    %3737 = vmatprep.subr.mxu0 0.0
    %3738 = vmatpush1.msra.mxu0 0.0
    %3739 = vmatprep.subr.mxu0 0.0
    %3740 = vmatpush1.msra.mxu0 0.0
    %3741 = vmatprep.subr.mxu0 0.0
    %3742 = vmatpush1.msra.mxu0 0.0
    %3743 = vmatprep.subr.mxu0 0.0
    %3744 = vmatpush1.msra.mxu0 0.0
    %3745 = vmatprep.subr.mxu0 0.0
    %3746 = vmatpush1.msra.mxu0 0.0
    %3747 = vmatprep.subr.mxu0 0.0
    %3748 = vmatpush1.msra.mxu0 0.0
    %3749 = vmatprep.subr.mxu0 0.0
    %3750 = vmatpush1.msra.mxu0 0.0
    %3751 = vmatprep.subr.mxu0 0.0
    %3752 = vmatpush1.msra.mxu0 0.0
    %3753 = vmatprep.subr.mxu0 0.0
    %3754 = vmatpush1.msra.mxu0 0.0
    %3755 = vmatprep.subr.mxu0 0.0
    %3756 = vmatpush1.msra.mxu0 0.0
    %3757 = vmatprep.subr.mxu0 0.0
    %3758 = vmatpush1.msra.mxu0 0.0
    %3759 = vmatprep.subr.mxu0 0.0
    %3760 = vmatpush1.msra.mxu0 0.0
    %3761 = vmatprep.subr.mxu0 0.0
    %3762 = vmatpush1.msra.mxu0 %v2848
    %3763 = vmatprep.subr.mxu0 0.0
    %3764 = vmatpush2.msra.mxu0 0.0
    %3765 = vmatprep.subr.mxu0 0.0
    %3766 = vmatpush2.msra.mxu0 0.0
    %3767 = vmatprep.subr.mxu0 0.0
    %3768 = vmatpush2.msra.mxu0 0.0
    %3769 = vmatprep.subr.mxu0 0.0
    %3770 = vmatpush2.msra.mxu0 0.0
    %3771 = vmatprep.subr.mxu0 0.0
    %3772 = vmatpush2.msra.mxu0 0.0
    %3773 = vmatprep.subr.mxu0 0.0
    %3774 = vmatpush2.msra.mxu0 0.0
    %3775 = vmatprep.subr.mxu0 0.0
    %3776 = vmatpush2.msra.mxu0 0.0
    %3777 = vmatprep.subr.mxu0 0.0
    %3778 = vmatpush2.msra.mxu0 0.0
    %3779 = vmatprep.subr.mxu0 0.0
    %3780 = vmatpush2.msra.mxu0 0.0
    %3781 = vmatprep.subr.mxu0 0.0
    %3782 = vmatpush2.msra.mxu0 0.0
    %3783 = vmatprep.subr.mxu0 0.0
    %3784 = vmatpush2.msra.mxu0 0.0
    %3785 = vmatprep.subr.mxu0 0.0
    %3786 = vmatpush2.msra.mxu0 0.0
    %3787 = vmatprep.subr.mxu0 0.0
    %3788 = vmatpush2.msra.mxu0 0.0
    %3789 = vmatprep.subr.mxu0 0.0
    %3790 = vmatpush2.msra.mxu0 0.0
    %3791 = vmatprep.subr.mxu0 0.0
    %3792 = vmatpush2.msra.mxu0 0.0
    %3793 = vmatprep.subr.mxu0 0.0
    %3794 = vmatpush2.msra.mxu0 0.0
    %3795 = vmatprep.mubr.f32.mxu0 0.0
    %3796 = vmatmul.mubr.f32.gmra.mxu0 %v3729
    %v3797 = vpop.f32.mrf.mxu0
    %v3798 = vadd.f32 0.0, %v3797
    %v3799 = vpop.f32.mrf.mxu0
    %3800 = vdwg.mxu0
    %v3801 = vadd.f32 %v3562, %v3798
    %3803 = vrot.lane.b32.xlu0 %v2842, 96
    %v3804 = vpop.permute.xlu0 %3803
    %v3805 = vsel %vm536, %v2842, 0
    %v3807 = vsel %vm536, %v3804, 0
    %3809 = vmatprep.subr.mxu0 0.0
    %3810 = vmatpush1.xpose.msra.mxu0 0.0
    %3811 = vmatprep.subr.mxu0 0.0
    %3812 = vmatpush1.xpose.msra.mxu0 0.0
    %3813 = vmatprep.subr.mxu0 0.0
    %3814 = vmatpush1.xpose.msra.mxu0 0.0
    %3815 = vmatprep.subr.mxu0 0.0
    %3816 = vmatpush1.xpose.msra.mxu0 0.0
    %3817 = vmatprep.subr.mxu0 0.0
    %3818 = vmatpush1.xpose.msra.mxu0 0.0
    %3819 = vmatprep.subr.mxu0 0.0
    %3820 = vmatpush1.xpose.msra.mxu0 0.0
    %3821 = vmatprep.subr.mxu0 0.0
    %3822 = vmatpush1.xpose.msra.mxu0 0.0
    %3823 = vmatprep.subr.mxu0 0.0
    %3824 = vmatpush1.xpose.msra.mxu0 0.0
    %3825 = vmatprep.subr.mxu0 0.0
    %3826 = vmatpush1.xpose.msra.mxu0 0.0
    %3827 = vmatprep.subr.mxu0 0.0
    %3828 = vmatpush1.xpose.msra.mxu0 0.0
    %3829 = vmatprep.subr.mxu0 0.0
    %3830 = vmatpush1.xpose.msra.mxu0 0.0
    %3831 = vmatprep.subr.mxu0 0.0
    %3832 = vmatpush1.xpose.msra.mxu0 0.0
    %3833 = vmatprep.subr.mxu0 0.0
    %3834 = vmatpush1.xpose.msra.mxu0 0.0
    %3835 = vmatprep.subr.mxu0 0.0
    %3836 = vmatpush1.xpose.msra.mxu0 0.0
    %3837 = vmatprep.subr.mxu0 0.0
    %3838 = vmatpush1.xpose.msra.mxu0 0.0
    %3839 = vmatprep.subr.mxu0 0.0
    %3840 = vmatpush1.xpose.msra.mxu0 %v3807
    %3841 = vmatprep.subr.mxu0 0.0
    %3842 = vmatpush2.xpose.msra.mxu0 0.0
    %3843 = vmatprep.subr.mxu0 0.0
    %3844 = vmatpush2.xpose.msra.mxu0 0.0
    %3845 = vmatprep.subr.mxu0 0.0
    %3846 = vmatpush2.xpose.msra.mxu0 0.0
    %3847 = vmatprep.subr.mxu0 0.0
    %3848 = vmatpush2.xpose.msra.mxu0 0.0
    %3849 = vmatprep.subr.mxu0 0.0
    %3850 = vmatpush2.xpose.msra.mxu0 0.0
    %3851 = vmatprep.subr.mxu0 0.0
    %3852 = vmatpush2.xpose.msra.mxu0 0.0
    %3853 = vmatprep.subr.mxu0 0.0
    %3854 = vmatpush2.xpose.msra.mxu0 0.0
    %3855 = vmatprep.subr.mxu0 0.0
    %3856 = vmatpush2.xpose.msra.mxu0 0.0
    %3857 = vmatprep.subr.mxu0 0.0
    %3858 = vmatpush2.xpose.msra.mxu0 0.0
    %3859 = vmatprep.subr.mxu0 0.0
    %3860 = vmatpush2.xpose.msra.mxu0 0.0
    %3861 = vmatprep.subr.mxu0 0.0
    %3862 = vmatpush2.xpose.msra.mxu0 0.0
    %3863 = vmatprep.subr.mxu0 0.0
    %3864 = vmatpush2.xpose.msra.mxu0 0.0
    %3865 = vmatprep.subr.mxu0 0.0
    %3866 = vmatpush2.xpose.msra.mxu0 0.0
    %3867 = vmatprep.subr.mxu0 0.0
    %3868 = vmatpush2.xpose.msra.mxu0 0.0
    %3869 = vmatprep.subr.mxu0 0.0
    %3870 = vmatpush2.xpose.msra.mxu0 0.0
    %3871 = vmatprep.subr.mxu0 0.0
    %3872 = vmatpush2.xpose.msra.mxu0 0.0
    %3873 = vmatprep.mubr.f32.mxu0 0.0
    %3874 = vmatmul.mubr.f32.gmra.mxu0 %v3805
    %v3875 = vpop.f32.mrf.mxu0
    %v3876 = vadd.f32 %v1490, %v3875
    %v3877 = vpop.f32.mrf.mxu0
    %3878 = vdwg.mxu0
    %v3879 = vsel %vm536, %v3876, -inf
    %3880 = vmax.xlane.f32.xlu0 %v3879
    %v3881 = vpop.xlane.xlu0 %3880
    %v3882 = vsub.f32 %v3876, %v3881
    %v3883 = vmul.f32 %v3882, 1.442695
    %v3884 = vpow.pop %v3883
    %v3885 = vsel %vm536, %v3884, 0.0
    %3886 = vadd.xlane.f32.xlu0 %v3885
    %v3887 = vpop.xlane.xlu0 %3886
    %v3888 = vrcp.pop %v3887
    %v3889 = vmul.f32 %v3884, %v3888
    %3890 = vrot.lane.b32.xlu0 %v2842, 64
    %v3891 = vpop.permute.xlu0 %3890
    %v3894 = vsel %vm536, %v3889, 0
    %3896 = vmatprep.subr.mxu0 0.0
    %3897 = vmatpush1.msra.mxu0 0.0
    %3898 = vmatprep.subr.mxu0 0.0
    %3899 = vmatpush1.msra.mxu0 0.0
    %3900 = vmatprep.subr.mxu0 0.0
    %3901 = vmatpush1.msra.mxu0 0.0
    %3902 = vmatprep.subr.mxu0 0.0
    %3903 = vmatpush1.msra.mxu0 0.0
    %3904 = vmatprep.subr.mxu0 0.0
    %3905 = vmatpush1.msra.mxu0 0.0
    %3906 = vmatprep.subr.mxu0 0.0
    %3907 = vmatpush1.msra.mxu0 0.0
    %3908 = vmatprep.subr.mxu0 0.0
    %3909 = vmatpush1.msra.mxu0 0.0
    %3910 = vmatprep.subr.mxu0 0.0
    %3911 = vmatpush1.msra.mxu0 0.0
    %3912 = vmatprep.subr.mxu0 0.0
    %3913 = vmatpush1.msra.mxu0 0.0
    %3914 = vmatprep.subr.mxu0 0.0
    %3915 = vmatpush1.msra.mxu0 0.0
    %3916 = vmatprep.subr.mxu0 0.0
    %3917 = vmatpush1.msra.mxu0 0.0
    %3918 = vmatprep.subr.mxu0 0.0
    %3919 = vmatpush1.msra.mxu0 0.0
    %3920 = vmatprep.subr.mxu0 0.0
    %3921 = vmatpush1.msra.mxu0 0.0
    %3922 = vmatprep.subr.mxu0 0.0
    %3923 = vmatpush1.msra.mxu0 0.0
    %3924 = vmatprep.subr.mxu0 0.0
    %3925 = vmatpush1.msra.mxu0 0.0
    %3926 = vmatprep.subr.mxu0 0.0
    %3927 = vmatpush1.msra.mxu0 %v3891
    %3928 = vmatprep.subr.mxu0 0.0
    %3929 = vmatpush2.msra.mxu0 0.0
    %3930 = vmatprep.subr.mxu0 0.0
    %3931 = vmatpush2.msra.mxu0 0.0
    %3932 = vmatprep.subr.mxu0 0.0
    %3933 = vmatpush2.msra.mxu0 0.0
    %3934 = vmatprep.subr.mxu0 0.0
    %3935 = vmatpush2.msra.mxu0 0.0
    %3936 = vmatprep.subr.mxu0 0.0
    %3937 = vmatpush2.msra.mxu0 0.0
    %3938 = vmatprep.subr.mxu0 0.0
    %3939 = vmatpush2.msra.mxu0 0.0
    %3940 = vmatprep.subr.mxu0 0.0
    %3941 = vmatpush2.msra.mxu0 0.0
    %3942 = vmatprep.subr.mxu0 0.0
    %3943 = vmatpush2.msra.mxu0 0.0
    %3944 = vmatprep.subr.mxu0 0.0
    %3945 = vmatpush2.msra.mxu0 0.0
    %3946 = vmatprep.subr.mxu0 0.0
    %3947 = vmatpush2.msra.mxu0 0.0
    %3948 = vmatprep.subr.mxu0 0.0
    %3949 = vmatpush2.msra.mxu0 0.0
    %3950 = vmatprep.subr.mxu0 0.0
    %3951 = vmatpush2.msra.mxu0 0.0
    %3952 = vmatprep.subr.mxu0 0.0
    %3953 = vmatpush2.msra.mxu0 0.0
    %3954 = vmatprep.subr.mxu0 0.0
    %3955 = vmatpush2.msra.mxu0 0.0
    %3956 = vmatprep.subr.mxu0 0.0
    %3957 = vmatpush2.msra.mxu0 0.0
    %3958 = vmatprep.subr.mxu0 0.0
    %3959 = vmatpush2.msra.mxu0 0.0
    %3960 = vmatprep.mubr.f32.mxu0 0.0
    %3961 = vmatmul.mubr.f32.gmra.mxu0 %v3894
    %v3962 = vpop.f32.mrf.mxu0
    %v3963 = vadd.f32 0.0, %v3962
    %v3964 = vpop.f32.mrf.mxu0
    %3965 = vdwg.mxu0
    %3966 = vrot.lane.b32.xlu0 %v2842, 120
    %v3967 = vpop.permute.xlu0 %3966
    %3968 = vrot.lane.b32.xlu0 %v2842, 88
    %v3969 = vpop.permute.xlu0 %3968
    %v3970 = vsel %vm536, %v3967, 0
    %v3972 = vsel %vm536, %v3969, 0
    %3974 = vmatprep.subr.mxu0 0.0
    %3975 = vmatpush1.xpose.msra.mxu0 0.0
    %3976 = vmatprep.subr.mxu0 0.0
    %3977 = vmatpush1.xpose.msra.mxu0 0.0
    %3978 = vmatprep.subr.mxu0 0.0
    %3979 = vmatpush1.xpose.msra.mxu0 0.0
    %3980 = vmatprep.subr.mxu0 0.0
    %3981 = vmatpush1.xpose.msra.mxu0 0.0
    %3982 = vmatprep.subr.mxu0 0.0
    %3983 = vmatpush1.xpose.msra.mxu0 0.0
    %3984 = vmatprep.subr.mxu0 0.0
    %3985 = vmatpush1.xpose.msra.mxu0 0.0
    %3986 = vmatprep.subr.mxu0 0.0
    %3987 = vmatpush1.xpose.msra.mxu0 0.0
    %3988 = vmatprep.subr.mxu0 0.0
    %3989 = vmatpush1.xpose.msra.mxu0 0.0
    %3990 = vmatprep.subr.mxu0 0.0
    %3991 = vmatpush1.xpose.msra.mxu0 0.0
    %3992 = vmatprep.subr.mxu0 0.0
    %3993 = vmatpush1.xpose.msra.mxu0 0.0
    %3994 = vmatprep.subr.mxu0 0.0
    %3995 = vmatpush1.xpose.msra.mxu0 0.0
    %3996 = vmatprep.subr.mxu0 0.0
    %3997 = vmatpush1.xpose.msra.mxu0 0.0
    %3998 = vmatprep.subr.mxu0 0.0
    %3999 = vmatpush1.xpose.msra.mxu0 0.0
    %4000 = vmatprep.subr.mxu0 0.0
    %4001 = vmatpush1.xpose.msra.mxu0 0.0
    %4002 = vmatprep.subr.mxu0 0.0
    %4003 = vmatpush1.xpose.msra.mxu0 0.0
    %4004 = vmatprep.subr.mxu0 0.0
    %4005 = vmatpush1.xpose.msra.mxu0 %v3972
    %4006 = vmatprep.subr.mxu0 0.0
    %4007 = vmatpush2.xpose.msra.mxu0 0.0
    %4008 = vmatprep.subr.mxu0 0.0
    %4009 = vmatpush2.xpose.msra.mxu0 0.0
    %4010 = vmatprep.subr.mxu0 0.0
    %4011 = vmatpush2.xpose.msra.mxu0 0.0
    %4012 = vmatprep.subr.mxu0 0.0
    %4013 = vmatpush2.xpose.msra.mxu0 0.0
    %4014 = vmatprep.subr.mxu0 0.0
    %4015 = vmatpush2.xpose.msra.mxu0 0.0
    %4016 = vmatprep.subr.mxu0 0.0
    %4017 = vmatpush2.xpose.msra.mxu0 0.0
    %4018 = vmatprep.subr.mxu0 0.0
    %4019 = vmatpush2.xpose.msra.mxu0 0.0
    %4020 = vmatprep.subr.mxu0 0.0
    %4021 = vmatpush2.xpose.msra.mxu0 0.0
    %4022 = vmatprep.subr.mxu0 0.0
    %4023 = vmatpush2.xpose.msra.mxu0 0.0
    %4024 = vmatprep.subr.mxu0 0.0
    %4025 = vmatpush2.xpose.msra.mxu0 0.0
    %4026 = vmatprep.subr.mxu0 0.0
    %4027 = vmatpush2.xpose.msra.mxu0 0.0
    %4028 = vmatprep.subr.mxu0 0.0
    %4029 = vmatpush2.xpose.msra.mxu0 0.0
    %4030 = vmatprep.subr.mxu0 0.0
    %4031 = vmatpush2.xpose.msra.mxu0 0.0
    %4032 = vmatprep.subr.mxu0 0.0
    %4033 = vmatpush2.xpose.msra.mxu0 0.0
    %4034 = vmatprep.subr.mxu0 0.0
    %4035 = vmatpush2.xpose.msra.mxu0 0.0
    %4036 = vmatprep.subr.mxu0 0.0
    %4037 = vmatpush2.xpose.msra.mxu0 0.0
    %4038 = vmatprep.mubr.f32.mxu0 0.0
    %4039 = vmatmul.mubr.f32.gmra.mxu0 %v3970
    %v4040 = vpop.f32.mrf.mxu0
    %v4041 = vadd.f32 %v1490, %v4040
    %v4042 = vpop.f32.mrf.mxu0
    %4043 = vdwg.mxu0
    %v4044 = vsel %vm536, %v4041, -inf
    %4045 = vmax.xlane.f32.xlu0 %v4044
    %v4046 = vpop.xlane.xlu0 %4045
    %v4047 = vsub.f32 %v4041, %v4046
    %v4048 = vmul.f32 %v4047, 1.442695
    %v4049 = vpow.pop %v4048
    %v4050 = vsel %vm536, %v4049, 0.0
    %4051 = vadd.xlane.f32.xlu0 %v4050
    %v4052 = vpop.xlane.xlu0 %4051
    %v4053 = vrcp.pop %v4052
    %v4054 = vmul.f32 %v4049, %v4053
    %4055 = vrot.lane.b32.xlu0 %v2842, 56
    %v4056 = vpop.permute.xlu0 %4055
    %v4059 = vsel %vm536, %v4054, 0
    %4061 = vmatprep.subr.mxu0 0.0
    %4062 = vmatpush1.msra.mxu0 0.0
    %4063 = vmatprep.subr.mxu0 0.0
    %4064 = vmatpush1.msra.mxu0 0.0
    %4065 = vmatprep.subr.mxu0 0.0
    %4066 = vmatpush1.msra.mxu0 0.0
    %4067 = vmatprep.subr.mxu0 0.0
    %4068 = vmatpush1.msra.mxu0 0.0
    %4069 = vmatprep.subr.mxu0 0.0
    %4070 = vmatpush1.msra.mxu0 0.0
    %4071 = vmatprep.subr.mxu0 0.0
    %4072 = vmatpush1.msra.mxu0 0.0
    %4073 = vmatprep.subr.mxu0 0.0
    %4074 = vmatpush1.msra.mxu0 0.0
    %4075 = vmatprep.subr.mxu0 0.0
    %4076 = vmatpush1.msra.mxu0 0.0
    %4077 = vmatprep.subr.mxu0 0.0
    %4078 = vmatpush1.msra.mxu0 0.0
    %4079 = vmatprep.subr.mxu0 0.0
    %4080 = vmatpush1.msra.mxu0 0.0
    %4081 = vmatprep.subr.mxu0 0.0
    %4082 = vmatpush1.msra.mxu0 0.0
    %4083 = vmatprep.subr.mxu0 0.0
    %4084 = vmatpush1.msra.mxu0 0.0
    %4085 = vmatprep.subr.mxu0 0.0
    %4086 = vmatpush1.msra.mxu0 0.0
    %4087 = vmatprep.subr.mxu0 0.0
    %4088 = vmatpush1.msra.mxu0 0.0
    %4089 = vmatprep.subr.mxu0 0.0
    %4090 = vmatpush1.msra.mxu0 0.0
    %4091 = vmatprep.subr.mxu0 0.0
    %4092 = vmatpush1.msra.mxu0 %v4056
    %4093 = vmatprep.subr.mxu0 0.0
    %4094 = vmatpush2.msra.mxu0 0.0
    %4095 = vmatprep.subr.mxu0 0.0
    %4096 = vmatpush2.msra.mxu0 0.0
    %4097 = vmatprep.subr.mxu0 0.0
    %4098 = vmatpush2.msra.mxu0 0.0
    %4099 = vmatprep.subr.mxu0 0.0
    %4100 = vmatpush2.msra.mxu0 0.0
    %4101 = vmatprep.subr.mxu0 0.0
    %4102 = vmatpush2.msra.mxu0 0.0
    %4103 = vmatprep.subr.mxu0 0.0
    %4104 = vmatpush2.msra.mxu0 0.0
    %4105 = vmatprep.subr.mxu0 0.0
    %4106 = vmatpush2.msra.mxu0 0.0
    %4107 = vmatprep.subr.mxu0 0.0
    %4108 = vmatpush2.msra.mxu0 0.0
    %4109 = vmatprep.subr.mxu0 0.0
    %4110 = vmatpush2.msra.mxu0 0.0
    %4111 = vmatprep.subr.mxu0 0.0
    %4112 = vmatpush2.msra.mxu0 0.0
    %4113 = vmatprep.subr.mxu0 0.0
    %4114 = vmatpush2.msra.mxu0 0.0
    %4115 = vmatprep.subr.mxu0 0.0
    %4116 = vmatpush2.msra.mxu0 0.0
    %4117 = vmatprep.subr.mxu0 0.0
    %4118 = vmatpush2.msra.mxu0 0.0
    %4119 = vmatprep.subr.mxu0 0.0
    %4120 = vmatpush2.msra.mxu0 0.0
    %4121 = vmatprep.subr.mxu0 0.0
    %4122 = vmatpush2.msra.mxu0 0.0
    %4123 = vmatprep.subr.mxu0 0.0
    %4124 = vmatpush2.msra.mxu0 0.0
    %4125 = vmatprep.mubr.f32.mxu0 0.0
    %4126 = vmatmul.mubr.f32.gmra.mxu0 %v4059
    %v4127 = vpop.f32.mrf.mxu0
    %v4128 = vadd.f32 0.0, %v4127
    %v4129 = vpop.f32.mrf.mxu0
    %4130 = vdwg.mxu0
    %v4132 = vsel %vm536, %v4128, 0
    %4134 = vmatprep.subr.mxu0 0.0
    %4135 = vmatpush1.msra.mxu0 0.0
    %4136 = vmatprep.subr.mxu0 0.0
    %4137 = vmatpush1.msra.mxu0 0.0
    %4138 = vmatprep.subr.mxu0 0.0
    %4139 = vmatpush1.msra.mxu0 0.0
    %4140 = vmatprep.subr.mxu0 0.0
    %4141 = vmatpush1.msra.mxu0 0.0
    %4142 = vmatprep.subr.mxu0 0.0
    %4143 = vmatpush1.msra.mxu0 0.0
    %4144 = vmatprep.subr.mxu0 0.0
    %4145 = vmatpush1.msra.mxu0 0.0
    %4146 = vmatprep.subr.mxu0 0.0
    %4147 = vmatpush1.msra.mxu0 0.0
    %4148 = vmatprep.subr.mxu0 0.0
    %4149 = vmatpush1.msra.mxu0 0.0
    %4150 = vmatprep.subr.mxu0 0.0
    %4151 = vmatpush1.msra.mxu0 0.0
    %4152 = vmatprep.subr.mxu0 0.0
    %4153 = vmatpush1.msra.mxu0 0.0
    %4154 = vmatprep.subr.mxu0 0.0
    %4155 = vmatpush1.msra.mxu0 0.0
    %4156 = vmatprep.subr.mxu0 0.0
    %4157 = vmatpush1.msra.mxu0 0.0
    %4158 = vmatprep.subr.mxu0 0.0
    %4159 = vmatpush1.msra.mxu0 0.0
    %4160 = vmatprep.subr.mxu0 0.0
    %4161 = vmatpush1.msra.mxu0 0.0
    %4162 = vmatprep.subr.mxu0 0.0
    %4163 = vmatpush1.msra.mxu0 0.0
    %4164 = vmatprep.subr.mxu0 0.0
    %4165 = vmatpush1.msra.mxu0 %v2846
    %4166 = vmatprep.subr.mxu0 0.0
    %4167 = vmatpush2.msra.mxu0 0.0
    %4168 = vmatprep.subr.mxu0 0.0
    %4169 = vmatpush2.msra.mxu0 0.0
    %4170 = vmatprep.subr.mxu0 0.0
    %4171 = vmatpush2.msra.mxu0 0.0
    %4172 = vmatprep.subr.mxu0 0.0
    %4173 = vmatpush2.msra.mxu0 0.0
    %4174 = vmatprep.subr.mxu0 0.0
    %4175 = vmatpush2.msra.mxu0 0.0
    %4176 = vmatprep.subr.mxu0 0.0
    %4177 = vmatpush2.msra.mxu0 0.0
    %4178 = vmatprep.subr.mxu0 0.0
    %4179 = vmatpush2.msra.mxu0 0.0
    %4180 = vmatprep.subr.mxu0 0.0
    %4181 = vmatpush2.msra.mxu0 0.0
    %4182 = vmatprep.subr.mxu0 0.0
    %4183 = vmatpush2.msra.mxu0 0.0
    %4184 = vmatprep.subr.mxu0 0.0
    %4185 = vmatpush2.msra.mxu0 0.0
    %4186 = vmatprep.subr.mxu0 0.0
    %4187 = vmatpush2.msra.mxu0 0.0
    %4188 = vmatprep.subr.mxu0 0.0
    %4189 = vmatpush2.msra.mxu0 0.0
    %4190 = vmatprep.subr.mxu0 0.0
    %4191 = vmatpush2.msra.mxu0 0.0
    %4192 = vmatprep.subr.mxu0 0.0
    %4193 = vmatpush2.msra.mxu0 0.0
    %4194 = vmatprep.subr.mxu0 0.0
    %4195 = vmatpush2.msra.mxu0 0.0
    %4196 = vmatprep.subr.mxu0 0.0
    %4197 = vmatpush2.msra.mxu0 0.0
    %4198 = vmatprep.mubr.f32.mxu0 0.0
    %4199 = vmatmul.mubr.f32.gmra.mxu0 %v4132
    %v4200 = vpop.f32.mrf.mxu0
    %v4201 = vadd.f32 0.0, %v4200
    %v4202 = vpop.f32.mrf.mxu0
    %4203 = vdwg.mxu0
    %v4205 = vsel %vm536, %v3963, 0
    %4207 = vmatprep.subr.mxu0 0.0
    %4208 = vmatpush1.msra.mxu0 0.0
    %4209 = vmatprep.subr.mxu0 0.0
    %4210 = vmatpush1.msra.mxu0 0.0
    %4211 = vmatprep.subr.mxu0 0.0
    %4212 = vmatpush1.msra.mxu0 0.0
    %4213 = vmatprep.subr.mxu0 0.0
    %4214 = vmatpush1.msra.mxu0 0.0
    %4215 = vmatprep.subr.mxu0 0.0
    %4216 = vmatpush1.msra.mxu0 0.0
    %4217 = vmatprep.subr.mxu0 0.0
    %4218 = vmatpush1.msra.mxu0 0.0
    %4219 = vmatprep.subr.mxu0 0.0
    %4220 = vmatpush1.msra.mxu0 0.0
    %4221 = vmatprep.subr.mxu0 0.0
    %4222 = vmatpush1.msra.mxu0 0.0
    %4223 = vmatprep.subr.mxu0 0.0
    %4224 = vmatpush1.msra.mxu0 0.0
    %4225 = vmatprep.subr.mxu0 0.0
    %4226 = vmatpush1.msra.mxu0 0.0
    %4227 = vmatprep.subr.mxu0 0.0
    %4228 = vmatpush1.msra.mxu0 0.0
    %4229 = vmatprep.subr.mxu0 0.0
    %4230 = vmatpush1.msra.mxu0 0.0
    %4231 = vmatprep.subr.mxu0 0.0
    %4232 = vmatpush1.msra.mxu0 0.0
    %4233 = vmatprep.subr.mxu0 0.0
    %4234 = vmatpush1.msra.mxu0 0.0
    %4235 = vmatprep.subr.mxu0 0.0
    %4236 = vmatpush1.msra.mxu0 0.0
    %4237 = vmatprep.subr.mxu0 0.0
    %4238 = vmatpush1.msra.mxu0 %v2845
    %4239 = vmatprep.subr.mxu0 0.0
    %4240 = vmatpush2.msra.mxu0 0.0
    %4241 = vmatprep.subr.mxu0 0.0
    %4242 = vmatpush2.msra.mxu0 0.0
    %4243 = vmatprep.subr.mxu0 0.0
    %4244 = vmatpush2.msra.mxu0 0.0
    %4245 = vmatprep.subr.mxu0 0.0
    %4246 = vmatpush2.msra.mxu0 0.0
    %4247 = vmatprep.subr.mxu0 0.0
    %4248 = vmatpush2.msra.mxu0 0.0
    %4249 = vmatprep.subr.mxu0 0.0
    %4250 = vmatpush2.msra.mxu0 0.0
    %4251 = vmatprep.subr.mxu0 0.0
    %4252 = vmatpush2.msra.mxu0 0.0
    %4253 = vmatprep.subr.mxu0 0.0
    %4254 = vmatpush2.msra.mxu0 0.0
    %4255 = vmatprep.subr.mxu0 0.0
    %4256 = vmatpush2.msra.mxu0 0.0
    %4257 = vmatprep.subr.mxu0 0.0
    %4258 = vmatpush2.msra.mxu0 0.0
    %4259 = vmatprep.subr.mxu0 0.0
    %4260 = vmatpush2.msra.mxu0 0.0
    %4261 = vmatprep.subr.mxu0 0.0
    %4262 = vmatpush2.msra.mxu0 0.0
    %4263 = vmatprep.subr.mxu0 0.0
    %4264 = vmatpush2.msra.mxu0 0.0
    %4265 = vmatprep.subr.mxu0 0.0
    %4266 = vmatpush2.msra.mxu0 0.0
    %4267 = vmatprep.subr.mxu0 0.0
    %4268 = vmatpush2.msra.mxu0 0.0
    %4269 = vmatprep.subr.mxu0 0.0
    %4270 = vmatpush2.msra.mxu0 0.0
    %4271 = vmatprep.mubr.f32.mxu0 0.0
    %4272 = vmatmul.mubr.f32.gmra.mxu0 %v4205
    %v4273 = vpop.f32.mrf.mxu0
    %v4274 = vadd.f32 %v4201, %v4273
    %v4275 = vpop.f32.mrf.mxu0
    %4276 = vdwg.mxu0
    %4277 = vrot.lane.b32.xlu0 %v2842, 112
    %v4278 = vpop.permute.xlu0 %4277
    %4279 = vrot.lane.b32.xlu0 %v2842, 80
    %v4280 = vpop.permute.xlu0 %4279
    %v4281 = vsel %vm536, %v4278, 0
    %v4283 = vsel %vm536, %v4280, 0
    %4285 = vmatprep.subr.mxu0 0.0
    %4286 = vmatpush1.xpose.msra.mxu0 0.0
    %4287 = vmatprep.subr.mxu0 0.0
    %4288 = vmatpush1.xpose.msra.mxu0 0.0
    %4289 = vmatprep.subr.mxu0 0.0
    %4290 = vmatpush1.xpose.msra.mxu0 0.0
    %4291 = vmatprep.subr.mxu0 0.0
    %4292 = vmatpush1.xpose.msra.mxu0 0.0
    %4293 = vmatprep.subr.mxu0 0.0
    %4294 = vmatpush1.xpose.msra.mxu0 0.0
    %4295 = vmatprep.subr.mxu0 0.0
    %4296 = vmatpush1.xpose.msra.mxu0 0.0
    %4297 = vmatprep.subr.mxu0 0.0
    %4298 = vmatpush1.xpose.msra.mxu0 0.0
    %4299 = vmatprep.subr.mxu0 0.0
    %4300 = vmatpush1.xpose.msra.mxu0 0.0
    %4301 = vmatprep.subr.mxu0 0.0
    %4302 = vmatpush1.xpose.msra.mxu0 0.0
    %4303 = vmatprep.subr.mxu0 0.0
    %4304 = vmatpush1.xpose.msra.mxu0 0.0
    %4305 = vmatprep.subr.mxu0 0.0
    %4306 = vmatpush1.xpose.msra.mxu0 0.0
    %4307 = vmatprep.subr.mxu0 0.0
    %4308 = vmatpush1.xpose.msra.mxu0 0.0
    %4309 = vmatprep.subr.mxu0 0.0
    %4310 = vmatpush1.xpose.msra.mxu0 0.0
    %4311 = vmatprep.subr.mxu0 0.0
    %4312 = vmatpush1.xpose.msra.mxu0 0.0
    %4313 = vmatprep.subr.mxu0 0.0
    %4314 = vmatpush1.xpose.msra.mxu0 0.0
    %4315 = vmatprep.subr.mxu0 0.0
    %4316 = vmatpush1.xpose.msra.mxu0 %v4283
    %4317 = vmatprep.subr.mxu0 0.0
    %4318 = vmatpush2.xpose.msra.mxu0 0.0
    %4319 = vmatprep.subr.mxu0 0.0
    %4320 = vmatpush2.xpose.msra.mxu0 0.0
    %4321 = vmatprep.subr.mxu0 0.0
    %4322 = vmatpush2.xpose.msra.mxu0 0.0
    %4323 = vmatprep.subr.mxu0 0.0
    %4324 = vmatpush2.xpose.msra.mxu0 0.0
    %4325 = vmatprep.subr.mxu0 0.0
    %4326 = vmatpush2.xpose.msra.mxu0 0.0
    %4327 = vmatprep.subr.mxu0 0.0
    %4328 = vmatpush2.xpose.msra.mxu0 0.0
    %4329 = vmatprep.subr.mxu0 0.0
    %4330 = vmatpush2.xpose.msra.mxu0 0.0
    %4331 = vmatprep.subr.mxu0 0.0
    %4332 = vmatpush2.xpose.msra.mxu0 0.0
    %4333 = vmatprep.subr.mxu0 0.0
    %4334 = vmatpush2.xpose.msra.mxu0 0.0
    %4335 = vmatprep.subr.mxu0 0.0
    %4336 = vmatpush2.xpose.msra.mxu0 0.0
    %4337 = vmatprep.subr.mxu0 0.0
    %4338 = vmatpush2.xpose.msra.mxu0 0.0
    %4339 = vmatprep.subr.mxu0 0.0
    %4340 = vmatpush2.xpose.msra.mxu0 0.0
    %4341 = vmatprep.subr.mxu0 0.0
    %4342 = vmatpush2.xpose.msra.mxu0 0.0
    %4343 = vmatprep.subr.mxu0 0.0
    %4344 = vmatpush2.xpose.msra.mxu0 0.0
    %4345 = vmatprep.subr.mxu0 0.0
    %4346 = vmatpush2.xpose.msra.mxu0 0.0
    %4347 = vmatprep.subr.mxu0 0.0
    %4348 = vmatpush2.xpose.msra.mxu0 0.0
    %4349 = vmatprep.mubr.f32.mxu0 0.0
    %4350 = vmatmul.mubr.f32.gmra.mxu0 %v4281
    %v4351 = vpop.f32.mrf.mxu0
    %v4352 = vadd.f32 %v1490, %v4351
    %v4353 = vpop.f32.mrf.mxu0
    %4354 = vdwg.mxu0
    %v4355 = vsel %vm536, %v4352, -inf
    %4356 = vmax.xlane.f32.xlu0 %v4355
    %v4357 = vpop.xlane.xlu0 %4356
    %v4358 = vsub.f32 %v4352, %v4357
    %v4359 = vmul.f32 %v4358, 1.442695
    %v4360 = vpow.pop %v4359
    %v4361 = vsel %vm536, %v4360, 0.0
    %4362 = vadd.xlane.f32.xlu0 %v4361
    %v4363 = vpop.xlane.xlu0 %4362
    %v4364 = vrcp.pop %v4363
    %v4365 = vmul.f32 %v4360, %v4364
    %4366 = vrot.lane.b32.xlu0 %v2842, 48
    %v4367 = vpop.permute.xlu0 %4366
    %v4370 = vsel %vm536, %v4365, 0
    %4372 = vmatprep.subr.mxu0 0.0
    %4373 = vmatpush1.msra.mxu0 0.0
    %4374 = vmatprep.subr.mxu0 0.0
    %4375 = vmatpush1.msra.mxu0 0.0
    %4376 = vmatprep.subr.mxu0 0.0
    %4377 = vmatpush1.msra.mxu0 0.0
    %4378 = vmatprep.subr.mxu0 0.0
    %4379 = vmatpush1.msra.mxu0 0.0
    %4380 = vmatprep.subr.mxu0 0.0
    %4381 = vmatpush1.msra.mxu0 0.0
    %4382 = vmatprep.subr.mxu0 0.0
    %4383 = vmatpush1.msra.mxu0 0.0
    %4384 = vmatprep.subr.mxu0 0.0
    %4385 = vmatpush1.msra.mxu0 0.0
    %4386 = vmatprep.subr.mxu0 0.0
    %4387 = vmatpush1.msra.mxu0 0.0
    %4388 = vmatprep.subr.mxu0 0.0
    %4389 = vmatpush1.msra.mxu0 0.0
    %4390 = vmatprep.subr.mxu0 0.0
    %4391 = vmatpush1.msra.mxu0 0.0
    %4392 = vmatprep.subr.mxu0 0.0
    %4393 = vmatpush1.msra.mxu0 0.0
    %4394 = vmatprep.subr.mxu0 0.0
    %4395 = vmatpush1.msra.mxu0 0.0
    %4396 = vmatprep.subr.mxu0 0.0
    %4397 = vmatpush1.msra.mxu0 0.0
    %4398 = vmatprep.subr.mxu0 0.0
    %4399 = vmatpush1.msra.mxu0 0.0
    %4400 = vmatprep.subr.mxu0 0.0
    %4401 = vmatpush1.msra.mxu0 0.0
    %4402 = vmatprep.subr.mxu0 0.0
    %4403 = vmatpush1.msra.mxu0 %v4367
    %4404 = vmatprep.subr.mxu0 0.0
    %4405 = vmatpush2.msra.mxu0 0.0
    %4406 = vmatprep.subr.mxu0 0.0
    %4407 = vmatpush2.msra.mxu0 0.0
    %4408 = vmatprep.subr.mxu0 0.0
    %4409 = vmatpush2.msra.mxu0 0.0
    %4410 = vmatprep.subr.mxu0 0.0
    %4411 = vmatpush2.msra.mxu0 0.0
    %4412 = vmatprep.subr.mxu0 0.0
    %4413 = vmatpush2.msra.mxu0 0.0
    %4414 = vmatprep.subr.mxu0 0.0
    %4415 = vmatpush2.msra.mxu0 0.0
    %4416 = vmatprep.subr.mxu0 0.0
    %4417 = vmatpush2.msra.mxu0 0.0
    %4418 = vmatprep.subr.mxu0 0.0
    %4419 = vmatpush2.msra.mxu0 0.0
    %4420 = vmatprep.subr.mxu0 0.0
    %4421 = vmatpush2.msra.mxu0 0.0
    %4422 = vmatprep.subr.mxu0 0.0
    %4423 = vmatpush2.msra.mxu0 0.0
    %4424 = vmatprep.subr.mxu0 0.0
    %4425 = vmatpush2.msra.mxu0 0.0
    %4426 = vmatprep.subr.mxu0 0.0
    %4427 = vmatpush2.msra.mxu0 0.0
    %4428 = vmatprep.subr.mxu0 0.0
    %4429 = vmatpush2.msra.mxu0 0.0
    %4430 = vmatprep.subr.mxu0 0.0
    %4431 = vmatpush2.msra.mxu0 0.0
    %4432 = vmatprep.subr.mxu0 0.0
    %4433 = vmatpush2.msra.mxu0 0.0
    %4434 = vmatprep.subr.mxu0 0.0
    %4435 = vmatpush2.msra.mxu0 0.0
    %4436 = vmatprep.mubr.f32.mxu0 0.0
    %4437 = vmatmul.mubr.f32.gmra.mxu0 %v4370
    %v4438 = vpop.f32.mrf.mxu0
    %v4439 = vadd.f32 0.0, %v4438
    %v4440 = vpop.f32.mrf.mxu0
    %4441 = vdwg.mxu0
    %v4443 = vsel %vm536, %v4439, 0
    %4445 = vmatprep.subr.mxu0 0.0
    %4446 = vmatpush1.msra.mxu0 0.0
    %4447 = vmatprep.subr.mxu0 0.0
    %4448 = vmatpush1.msra.mxu0 0.0
    %4449 = vmatprep.subr.mxu0 0.0
    %4450 = vmatpush1.msra.mxu0 0.0
    %4451 = vmatprep.subr.mxu0 0.0
    %4452 = vmatpush1.msra.mxu0 0.0
    %4453 = vmatprep.subr.mxu0 0.0
    %4454 = vmatpush1.msra.mxu0 0.0
    %4455 = vmatprep.subr.mxu0 0.0
    %4456 = vmatpush1.msra.mxu0 0.0
    %4457 = vmatprep.subr.mxu0 0.0
    %4458 = vmatpush1.msra.mxu0 0.0
    %4459 = vmatprep.subr.mxu0 0.0
    %4460 = vmatpush1.msra.mxu0 0.0
    %4461 = vmatprep.subr.mxu0 0.0
    %4462 = vmatpush1.msra.mxu0 0.0
    %4463 = vmatprep.subr.mxu0 0.0
    %4464 = vmatpush1.msra.mxu0 0.0
    %4465 = vmatprep.subr.mxu0 0.0
    %4466 = vmatpush1.msra.mxu0 0.0
    %4467 = vmatprep.subr.mxu0 0.0
    %4468 = vmatpush1.msra.mxu0 0.0
    %4469 = vmatprep.subr.mxu0 0.0
    %4470 = vmatpush1.msra.mxu0 0.0
    %4471 = vmatprep.subr.mxu0 0.0
    %4472 = vmatpush1.msra.mxu0 0.0
    %4473 = vmatprep.subr.mxu0 0.0
    %4474 = vmatpush1.msra.mxu0 0.0
    %4475 = vmatprep.subr.mxu0 0.0
    %4476 = vmatpush1.msra.mxu0 %v2847
    %4477 = vmatprep.subr.mxu0 0.0
    %4478 = vmatpush2.msra.mxu0 0.0
    %4479 = vmatprep.subr.mxu0 0.0
    %4480 = vmatpush2.msra.mxu0 0.0
    %4481 = vmatprep.subr.mxu0 0.0
    %4482 = vmatpush2.msra.mxu0 0.0
    %4483 = vmatprep.subr.mxu0 0.0
    %4484 = vmatpush2.msra.mxu0 0.0
    %4485 = vmatprep.subr.mxu0 0.0
    %4486 = vmatpush2.msra.mxu0 0.0
    %4487 = vmatprep.subr.mxu0 0.0
    %4488 = vmatpush2.msra.mxu0 0.0
    %4489 = vmatprep.subr.mxu0 0.0
    %4490 = vmatpush2.msra.mxu0 0.0
    %4491 = vmatprep.subr.mxu0 0.0
    %4492 = vmatpush2.msra.mxu0 0.0
    %4493 = vmatprep.subr.mxu0 0.0
    %4494 = vmatpush2.msra.mxu0 0.0
    %4495 = vmatprep.subr.mxu0 0.0
    %4496 = vmatpush2.msra.mxu0 0.0
    %4497 = vmatprep.subr.mxu0 0.0
    %4498 = vmatpush2.msra.mxu0 0.0
    %4499 = vmatprep.subr.mxu0 0.0
    %4500 = vmatpush2.msra.mxu0 0.0
    %4501 = vmatprep.subr.mxu0 0.0
    %4502 = vmatpush2.msra.mxu0 0.0
    %4503 = vmatprep.subr.mxu0 0.0
    %4504 = vmatpush2.msra.mxu0 0.0
    %4505 = vmatprep.subr.mxu0 0.0
    %4506 = vmatpush2.msra.mxu0 0.0
    %4507 = vmatprep.subr.mxu0 0.0
    %4508 = vmatpush2.msra.mxu0 0.0
    %4509 = vmatprep.mubr.f32.mxu0 0.0
    %4510 = vmatmul.mubr.f32.gmra.mxu0 %v4443
    %v4511 = vpop.f32.mrf.mxu0
    %v4512 = vadd.f32 0.0, %v4511
    %v4513 = vpop.f32.mrf.mxu0
    %4514 = vdwg.mxu0
    %v4515 = vadd.f32 %v4274, %v4512
    %4516 = vrot.lane.b32.xlu0 %v2842, 104
    %v4517 = vpop.permute.xlu0 %4516
    %4518 = vrot.lane.b32.xlu0 %v2842, 72
    %v4519 = vpop.permute.xlu0 %4518
    %v4520 = vsel %vm536, %v4517, 0
    %v4522 = vsel %vm536, %v4519, 0
    %4524 = vmatprep.subr.mxu0 0.0
    %4525 = vmatpush1.xpose.msra.mxu0 0.0
    %4526 = vmatprep.subr.mxu0 0.0
    %4527 = vmatpush1.xpose.msra.mxu0 0.0
    %4528 = vmatprep.subr.mxu0 0.0
    %4529 = vmatpush1.xpose.msra.mxu0 0.0
    %4530 = vmatprep.subr.mxu0 0.0
    %4531 = vmatpush1.xpose.msra.mxu0 0.0
    %4532 = vmatprep.subr.mxu0 0.0
    %4533 = vmatpush1.xpose.msra.mxu0 0.0
    %4534 = vmatprep.subr.mxu0 0.0
    %4535 = vmatpush1.xpose.msra.mxu0 0.0
    %4536 = vmatprep.subr.mxu0 0.0
    %4537 = vmatpush1.xpose.msra.mxu0 0.0
    %4538 = vmatprep.subr.mxu0 0.0
    %4539 = vmatpush1.xpose.msra.mxu0 0.0
    %4540 = vmatprep.subr.mxu0 0.0
    %4541 = vmatpush1.xpose.msra.mxu0 0.0
    %4542 = vmatprep.subr.mxu0 0.0
    %4543 = vmatpush1.xpose.msra.mxu0 0.0
    %4544 = vmatprep.subr.mxu0 0.0
    %4545 = vmatpush1.xpose.msra.mxu0 0.0
    %4546 = vmatprep.subr.mxu0 0.0
    %4547 = vmatpush1.xpose.msra.mxu0 0.0
    %4548 = vmatprep.subr.mxu0 0.0
    %4549 = vmatpush1.xpose.msra.mxu0 0.0
    %4550 = vmatprep.subr.mxu0 0.0
    %4551 = vmatpush1.xpose.msra.mxu0 0.0
    %4552 = vmatprep.subr.mxu0 0.0
    %4553 = vmatpush1.xpose.msra.mxu0 0.0
    %4554 = vmatprep.subr.mxu0 0.0
    %4555 = vmatpush1.xpose.msra.mxu0 %v4522
    %4556 = vmatprep.subr.mxu0 0.0
    %4557 = vmatpush2.xpose.msra.mxu0 0.0
    %4558 = vmatprep.subr.mxu0 0.0
    %4559 = vmatpush2.xpose.msra.mxu0 0.0
    %4560 = vmatprep.subr.mxu0 0.0
    %4561 = vmatpush2.xpose.msra.mxu0 0.0
    %4562 = vmatprep.subr.mxu0 0.0
    %4563 = vmatpush2.xpose.msra.mxu0 0.0
    %4564 = vmatprep.subr.mxu0 0.0
    %4565 = vmatpush2.xpose.msra.mxu0 0.0
    %4566 = vmatprep.subr.mxu0 0.0
    %4567 = vmatpush2.xpose.msra.mxu0 0.0
    %4568 = vmatprep.subr.mxu0 0.0
    %4569 = vmatpush2.xpose.msra.mxu0 0.0
    %4570 = vmatprep.subr.mxu0 0.0
    %4571 = vmatpush2.xpose.msra.mxu0 0.0
    %4572 = vmatprep.subr.mxu0 0.0
    %4573 = vmatpush2.xpose.msra.mxu0 0.0
    %4574 = vmatprep.subr.mxu0 0.0
    %4575 = vmatpush2.xpose.msra.mxu0 0.0
    %4576 = vmatprep.subr.mxu0 0.0
    %4577 = vmatpush2.xpose.msra.mxu0 0.0
    %4578 = vmatprep.subr.mxu0 0.0
    %4579 = vmatpush2.xpose.msra.mxu0 0.0
    %4580 = vmatprep.subr.mxu0 0.0
    %4581 = vmatpush2.xpose.msra.mxu0 0.0
    %4582 = vmatprep.subr.mxu0 0.0
    %4583 = vmatpush2.xpose.msra.mxu0 0.0
    %4584 = vmatprep.subr.mxu0 0.0
    %4585 = vmatpush2.xpose.msra.mxu0 0.0
    %4586 = vmatprep.subr.mxu0 0.0
    %4587 = vmatpush2.xpose.msra.mxu0 0.0
    %4588 = vmatprep.mubr.f32.mxu0 0.0
    %4589 = vmatmul.mubr.f32.gmra.mxu0 %v4520
    %v4590 = vpop.f32.mrf.mxu0
    %v4591 = vadd.f32 %v1490, %v4590
    %v4592 = vpop.f32.mrf.mxu0
    %4593 = vdwg.mxu0
    %v4594 = vsel %vm536, %v4591, -inf
    %4595 = vmax.xlane.f32.xlu0 %v4594
    %v4596 = vpop.xlane.xlu0 %4595
    %v4597 = vsub.f32 %v4591, %v4596
    %v4598 = vmul.f32 %v4597, 1.442695
    %v4599 = vpow.pop %v4598
    %v4600 = vsel %vm536, %v4599, 0.0
    %4601 = vadd.xlane.f32.xlu0 %v4600
    %v4602 = vpop.xlane.xlu0 %4601
    %v4603 = vrcp.pop %v4602
    %v4604 = vmul.f32 %v4599, %v4603
    %4605 = vrot.lane.b32.xlu0 %v2842, 40
    %v4606 = vpop.permute.xlu0 %4605
    %v4609 = vsel %vm536, %v4604, 0
    %4611 = vmatprep.subr.mxu0 0.0
    %4612 = vmatpush1.msra.mxu0 0.0
    %4613 = vmatprep.subr.mxu0 0.0
    %4614 = vmatpush1.msra.mxu0 0.0
    %4615 = vmatprep.subr.mxu0 0.0
    %4616 = vmatpush1.msra.mxu0 0.0
    %4617 = vmatprep.subr.mxu0 0.0
    %4618 = vmatpush1.msra.mxu0 0.0
    %4619 = vmatprep.subr.mxu0 0.0
    %4620 = vmatpush1.msra.mxu0 0.0
    %4621 = vmatprep.subr.mxu0 0.0
    %4622 = vmatpush1.msra.mxu0 0.0
    %4623 = vmatprep.subr.mxu0 0.0
    %4624 = vmatpush1.msra.mxu0 0.0
    %4625 = vmatprep.subr.mxu0 0.0
    %4626 = vmatpush1.msra.mxu0 0.0
    %4627 = vmatprep.subr.mxu0 0.0
    %4628 = vmatpush1.msra.mxu0 0.0
    %4629 = vmatprep.subr.mxu0 0.0
    %4630 = vmatpush1.msra.mxu0 0.0
    %4631 = vmatprep.subr.mxu0 0.0
    %4632 = vmatpush1.msra.mxu0 0.0
    %4633 = vmatprep.subr.mxu0 0.0
    %4634 = vmatpush1.msra.mxu0 0.0
    %4635 = vmatprep.subr.mxu0 0.0
    %4636 = vmatpush1.msra.mxu0 0.0
    %4637 = vmatprep.subr.mxu0 0.0
    %4638 = vmatpush1.msra.mxu0 0.0
    %4639 = vmatprep.subr.mxu0 0.0
    %4640 = vmatpush1.msra.mxu0 0.0
    %4641 = vmatprep.subr.mxu0 0.0
    %4642 = vmatpush1.msra.mxu0 %v4606
    %4643 = vmatprep.subr.mxu0 0.0
    %4644 = vmatpush2.msra.mxu0 0.0
    %4645 = vmatprep.subr.mxu0 0.0
    %4646 = vmatpush2.msra.mxu0 0.0
    %4647 = vmatprep.subr.mxu0 0.0
    %4648 = vmatpush2.msra.mxu0 0.0
    %4649 = vmatprep.subr.mxu0 0.0
    %4650 = vmatpush2.msra.mxu0 0.0
    %4651 = vmatprep.subr.mxu0 0.0
    %4652 = vmatpush2.msra.mxu0 0.0
    %4653 = vmatprep.subr.mxu0 0.0
    %4654 = vmatpush2.msra.mxu0 0.0
    %4655 = vmatprep.subr.mxu0 0.0
    %4656 = vmatpush2.msra.mxu0 0.0
    %4657 = vmatprep.subr.mxu0 0.0
    %4658 = vmatpush2.msra.mxu0 0.0
    %4659 = vmatprep.subr.mxu0 0.0
    %4660 = vmatpush2.msra.mxu0 0.0
    %4661 = vmatprep.subr.mxu0 0.0
    %4662 = vmatpush2.msra.mxu0 0.0
    %4663 = vmatprep.subr.mxu0 0.0
    %4664 = vmatpush2.msra.mxu0 0.0
    %4665 = vmatprep.subr.mxu0 0.0
    %4666 = vmatpush2.msra.mxu0 0.0
    %4667 = vmatprep.subr.mxu0 0.0
    %4668 = vmatpush2.msra.mxu0 0.0
    %4669 = vmatprep.subr.mxu0 0.0
    %4670 = vmatpush2.msra.mxu0 0.0
    %4671 = vmatprep.subr.mxu0 0.0
    %4672 = vmatpush2.msra.mxu0 0.0
    %4673 = vmatprep.subr.mxu0 0.0
    %4674 = vmatpush2.msra.mxu0 0.0
    %4675 = vmatprep.mubr.f32.mxu0 0.0
    %4676 = vmatmul.mubr.f32.gmra.mxu0 %v4609
    %v4677 = vpop.f32.mrf.mxu0
    %v4678 = vadd.f32 0.0, %v4677
    %v4679 = vpop.f32.mrf.mxu0
    %4680 = vdwg.mxu0
    %v4682 = vsel %vm536, %v4678, 0
    %4684 = vmatprep.subr.mxu0 0.0
    %4685 = vmatpush1.msra.mxu0 0.0
    %4686 = vmatprep.subr.mxu0 0.0
    %4687 = vmatpush1.msra.mxu0 0.0
    %4688 = vmatprep.subr.mxu0 0.0
    %4689 = vmatpush1.msra.mxu0 0.0
    %4690 = vmatprep.subr.mxu0 0.0
    %4691 = vmatpush1.msra.mxu0 0.0
    %4692 = vmatprep.subr.mxu0 0.0
    %4693 = vmatpush1.msra.mxu0 0.0
    %4694 = vmatprep.subr.mxu0 0.0
    %4695 = vmatpush1.msra.mxu0 0.0
    %4696 = vmatprep.subr.mxu0 0.0
    %4697 = vmatpush1.msra.mxu0 0.0
    %4698 = vmatprep.subr.mxu0 0.0
    %4699 = vmatpush1.msra.mxu0 0.0
    %4700 = vmatprep.subr.mxu0 0.0
    %4701 = vmatpush1.msra.mxu0 0.0
    %4702 = vmatprep.subr.mxu0 0.0
    %4703 = vmatpush1.msra.mxu0 0.0
    %4704 = vmatprep.subr.mxu0 0.0
    %4705 = vmatpush1.msra.mxu0 0.0
    %4706 = vmatprep.subr.mxu0 0.0
    %4707 = vmatpush1.msra.mxu0 0.0
    %4708 = vmatprep.subr.mxu0 0.0
    %4709 = vmatpush1.msra.mxu0 0.0
    %4710 = vmatprep.subr.mxu0 0.0
    %4711 = vmatpush1.msra.mxu0 0.0
    %4712 = vmatprep.subr.mxu0 0.0
    %4713 = vmatpush1.msra.mxu0 0.0
    %4714 = vmatprep.subr.mxu0 0.0
    %4715 = vmatpush1.msra.mxu0 %v2848
    %4716 = vmatprep.subr.mxu0 0.0
    %4717 = vmatpush2.msra.mxu0 0.0
    %4718 = vmatprep.subr.mxu0 0.0
    %4719 = vmatpush2.msra.mxu0 0.0
    %4720 = vmatprep.subr.mxu0 0.0
    %4721 = vmatpush2.msra.mxu0 0.0
    %4722 = vmatprep.subr.mxu0 0.0
    %4723 = vmatpush2.msra.mxu0 0.0
    %4724 = vmatprep.subr.mxu0 0.0
    %4725 = vmatpush2.msra.mxu0 0.0
    %4726 = vmatprep.subr.mxu0 0.0
    %4727 = vmatpush2.msra.mxu0 0.0
    %4728 = vmatprep.subr.mxu0 0.0
    %4729 = vmatpush2.msra.mxu0 0.0
    %4730 = vmatprep.subr.mxu0 0.0
    %4731 = vmatpush2.msra.mxu0 0.0
    %4732 = vmatprep.subr.mxu0 0.0
    %4733 = vmatpush2.msra.mxu0 0.0
    %4734 = vmatprep.subr.mxu0 0.0
    %4735 = vmatpush2.msra.mxu0 0.0
    %4736 = vmatprep.subr.mxu0 0.0
    %4737 = vmatpush2.msra.mxu0 0.0
    %4738 = vmatprep.subr.mxu0 0.0
    %4739 = vmatpush2.msra.mxu0 0.0
    %4740 = vmatprep.subr.mxu0 0.0
    %4741 = vmatpush2.msra.mxu0 0.0
    %4742 = vmatprep.subr.mxu0 0.0
    %4743 = vmatpush2.msra.mxu0 0.0
    %4744 = vmatprep.subr.mxu0 0.0
    %4745 = vmatpush2.msra.mxu0 0.0
    %4746 = vmatprep.subr.mxu0 0.0
    %4747 = vmatpush2.msra.mxu0 0.0
    %4748 = vmatprep.mubr.f32.mxu0 0.0
    %4749 = vmatmul.mubr.f32.gmra.mxu0 %v4682
    %v4750 = vpop.f32.mrf.mxu0
    %v4751 = vadd.f32 0.0, %v4750
    %v4752 = vpop.f32.mrf.mxu0
    %4753 = vdwg.mxu0
    %v4754 = vadd.f32 %v4515, %v4751
    %v4755 = vld [vmem:[%s55] sm:$0x1]
    %v4757 = vlaneseq
    %v4758 = vshrl.u32 %v4757, 7
    %v4759 = vsub.s32 0, %v4758
    %v4760 = vrot.slane %v4755, %v4759
    %v4762 = vadd.f32 %v3801, %v4760
    %v4763 = vadd.f32 %v4754, %v4760
    %v4764 = vadd.f32 %v2751, %v4762
    %v4765 = vadd.f32 %v2752, %v4763
    %v4766 = vld [vmem:[%s57] sm:$0x1]
    %v4767 = vld [vmem:[%s59] sm:$0x1]
    %v4768 = vsel %vm388, %v4764, 0.0
    %4769 = vadd.xlane.f32.xlu0 %v4768
    %v4770 = vpop.xlane.xlu0 %4769
    %v4771 = vsel %vm388, %v4765, 0.0
    %4772 = vadd.xlane.f32.xlu0 %v4771
    %v4773 = vpop.xlane.xlu0 %4772
    %v4774 = vmul.f32 %v4770, %v395
    %v4775 = vmul.f32 %v4773, %v395
    %v4776 = vsub.f32 %v4764, %v4774
    %v4777 = vsub.f32 %v4765, %v4775
    %v4778 = vmul.f32 %v4776, %v4776
    %v4779 = vmul.f32 %v4777, %v4777
    %v4780 = vsel %vm388, %v4778, 0.0
    %4781 = vadd.xlane.f32.xlu0 %v4780
    %v4782 = vpop.xlane.xlu0 %4781
    %v4783 = vsel %vm388, %v4779, 0.0
    %4784 = vadd.xlane.f32.xlu0 %v4783
    %v4785 = vpop.xlane.xlu0 %4784
    %v4786 = vmul.f32 %v4782, %v395
    %v4787 = vmul.f32 %v4785, %v395
    %v4788 = vadd.f32 %v4786, 1e-05
    %v4789 = vadd.f32 %v4787, 1e-05
    %v4790 = vrsqrt.pop %v4788
    %v4791 = vrsqrt.pop %v4789
    %v4792 = vmul.f32 %v4776, %v4790
    %v4793 = vmul.f32 %v4777, %v4791
    %v4795 = vlaneseq
    %v4796 = vshrl.u32 %v4795, 7
    %v4797 = vsub.s32 0, %v4796
    %v4798 = vrot.slane %v4766, %v4797
    %v4800 = vmul.f32 %v4792, %v4798
    %v4801 = vmul.f32 %v4793, %v4798
    %v4803 = vlaneseq
    %v4804 = vshrl.u32 %v4803, 7
    %v4805 = vsub.s32 0, %v4804
    %v4806 = vrot.slane %v4767, %v4805
    %v4808 = vadd.f32 %v4800, %v4806
    %v4809 = vadd.f32 %v4801, %v4806
    %v4810 = vld [vmem:[%s61] sm:$0xff]
    %v4811 = vld [vmem:[%s61 + $0x8] sm:$0xff]
    %v4812 = vld [vmem:[%s61 + $0x10] sm:$0xff]
    %v4813 = vld [vmem:[%s61 + $0x18] sm:$0xff]
    %v4814 = vld [vmem:[%s63] sm:$0x1]
    %v4816 = vlaneseq
    %v4817 = vshrl.u32 %v4816, 7
    %v4818 = vsub.s32 0, %v4817
    %v4819 = vrot.slane %v4814, %v4818
    %v4822 = vsel %vm388, %v4808, 0
    %v4825 = vsel %vm388, %v4809, 0
    %4827 = vmatprep.subr.mxu0 0.0
    %4828 = vmatpush1.msra.mxu0 0.0
    %4829 = vmatprep.subr.mxu0 0.0
    %4830 = vmatpush1.msra.mxu0 0.0
    %4831 = vmatprep.subr.mxu0 0.0
    %4832 = vmatpush1.msra.mxu0 0.0
    %4833 = vmatprep.subr.mxu0 0.0
    %4834 = vmatpush1.msra.mxu0 0.0
    %4835 = vmatprep.subr.mxu0 0.0
    %4836 = vmatpush1.msra.mxu0 0.0
    %4837 = vmatprep.subr.mxu0 0.0
    %4838 = vmatpush1.msra.mxu0 0.0
    %4839 = vmatprep.subr.mxu0 0.0
    %4840 = vmatpush1.msra.mxu0 0.0
    %4841 = vmatprep.subr.mxu0 0.0
    %4842 = vmatpush1.msra.mxu0 0.0
    %4843 = vmatprep.subr.mxu0 0.0
    %4844 = vmatpush1.msra.mxu0 0.0
    %4845 = vmatprep.subr.mxu0 0.0
    %4846 = vmatpush1.msra.mxu0 0.0
    %4847 = vmatprep.subr.mxu0 0.0
    %4848 = vmatpush1.msra.mxu0 0.0
    %4849 = vmatprep.subr.mxu0 0.0
    %4850 = vmatpush1.msra.mxu0 0.0
    %4851 = vmatprep.subr.mxu0 0.0
    %4852 = vmatpush1.msra.mxu0 %v4813
    %4853 = vmatprep.subr.mxu0 0.0
    %4854 = vmatpush1.msra.mxu0 %v4812
    %4855 = vmatprep.subr.mxu0 0.0
    %4856 = vmatpush1.msra.mxu0 %v4811
    %4857 = vmatprep.subr.mxu0 0.0
    %4858 = vmatpush1.msra.mxu0 %v4810
    %4859 = vmatprep.subr.mxu0 0.0
    %4860 = vmatpush2.msra.mxu0 0.0
    %4861 = vmatprep.subr.mxu0 0.0
    %4862 = vmatpush2.msra.mxu0 0.0
    %4863 = vmatprep.subr.mxu0 0.0
    %4864 = vmatpush2.msra.mxu0 0.0
    %4865 = vmatprep.subr.mxu0 0.0
    %4866 = vmatpush2.msra.mxu0 0.0
    %4867 = vmatprep.subr.mxu0 0.0
    %4868 = vmatpush2.msra.mxu0 0.0
    %4869 = vmatprep.subr.mxu0 0.0
    %4870 = vmatpush2.msra.mxu0 0.0
    %4871 = vmatprep.subr.mxu0 0.0
    %4872 = vmatpush2.msra.mxu0 0.0
    %4873 = vmatprep.subr.mxu0 0.0
    %4874 = vmatpush2.msra.mxu0 0.0
    %4875 = vmatprep.subr.mxu0 0.0
    %4876 = vmatpush2.msra.mxu0 0.0
    %4877 = vmatprep.subr.mxu0 0.0
    %4878 = vmatpush2.msra.mxu0 0.0
    %4879 = vmatprep.subr.mxu0 0.0
    %4880 = vmatpush2.msra.mxu0 0.0
    %4881 = vmatprep.subr.mxu0 0.0
    %4882 = vmatpush2.msra.mxu0 0.0
    %4883 = vmatprep.subr.mxu0 0.0
    %4884 = vmatpush2.msra.mxu0 0.0
    %4885 = vmatprep.subr.mxu0 0.0
    %4886 = vmatpush2.msra.mxu0 0.0
    %4887 = vmatprep.subr.mxu0 0.0
    %4888 = vmatpush2.msra.mxu0 0.0
    %4889 = vmatprep.subr.mxu0 0.0
    %4890 = vmatpush2.msra.mxu0 0.0
    %4891 = vmatprep.mubr.f32.mxu0 0.0
    %4892 = vmatmul.mubr.f32.gmra.mxu0 %v4822
    %v4893 = vpop.f32.mrf.mxu0
    %v4894 = vadd.f32 %v4819, %v4893
    %v4895 = vpop.f32.mrf.mxu0
    %4896 = vmatprep.mubr.f32.mxu0 0.0
    %4897 = vmatmul.mubr.f32.gmra.mxu0 %v4825
    %v4898 = vpop.f32.mrf.mxu0
    %v4899 = vadd.f32 %v4819, %v4898
    %v4900 = vpop.f32.mrf.mxu0
    %4901 = vdwg.mxu0
    %v4902 = vmul.f32 %v4894, 0.5
    %v4903 = vmul.f32 %v4899, 0.5
    %v4904 = vmul.f32 %v4894, 0.044715
    %v4905 = vmul.f32 %v4899, 0.044715
    %v4906 = vmul.f32 %v4904, %v4894
    %v4907 = vmul.f32 %v4905, %v4899
    %v4908 = vmul.f32 %v4906, %v4894
    %v4909 = vmul.f32 %v4907, %v4899
    %v4910 = vadd.f32 %v4894, %v4908
    %v4911 = vadd.f32 %v4899, %v4909
    %v4912 = vmul.f32 %v4910, 0.7978846
    %v4913 = vmul.f32 %v4911, 0.7978846
    %v4914 = vtanh.pop %v4912
    %v4915 = vtanh.pop %v4913
    %v4916 = vadd.f32 %v4914, 1.0
    %v4917 = vadd.f32 %v4915, 1.0
    %v4918 = vmul.f32 %v4902, %v4916
    %v4919 = vmul.f32 %v4903, %v4917
    %v4920 = vld [vmem:[#allocation16] sm:$0xff]
    %v4921 = vld [vmem:[#allocation16 + $0x8] sm:$0xff]
    %v4922 = vld [vmem:[#allocation16 + $0x10] sm:$0xff]
    %v4923 = vld [vmem:[#allocation16 + $0x18] sm:$0xff]
    %v4924 = vld [vmem:[#allocation16 + $0x20] sm:$0xff]
    %v4925 = vld [vmem:[#allocation16 + $0x28] sm:$0xff]
    %v4926 = vld [vmem:[#allocation16 + $0x30] sm:$0xff]
    %v4927 = vld [vmem:[#allocation16 + $0x38] sm:$0xff]
    %v4928 = vld [vmem:[#allocation16 + $0x40] sm:$0xff]
    %v4929 = vld [vmem:[#allocation16 + $0x48] sm:$0xff]
    %v4930 = vld [vmem:[#allocation16 + $0x50] sm:$0xff]
    %v4931 = vld [vmem:[#allocation16 + $0x58] sm:$0xff]
    %v4932 = vld [vmem:[#allocation16 + $0x60] sm:$0xff]
    %v4933 = vld [vmem:[#allocation16 + $0x68] sm:$0xff]
    %v4934 = vld [vmem:[#allocation16 + $0x70] sm:$0xff]
    %v4935 = vld [vmem:[#allocation16 + $0x78] sm:$0xff]
    %v4936 = vld [vmem:[%s67] sm:$0x1]
    %v4938 = vlaneseq
    %v4939 = vshrl.u32 %v4938, 7
    %v4940 = vsub.s32 0, %v4939
    %v4941 = vrot.slane %v4936, %v4940
    %4943 = vmatprep.subr.mxu0 0.0
    %4944 = vmatpush1.msra.mxu0 %v4935
    %4945 = vmatprep.subr.mxu0 0.0
    %4946 = vmatpush1.msra.mxu0 %v4934
    %4947 = vmatprep.subr.mxu0 0.0
    %4948 = vmatpush1.msra.mxu0 %v4933
    %4949 = vmatprep.subr.mxu0 0.0
    %4950 = vmatpush1.msra.mxu0 %v4932
    %4951 = vmatprep.subr.mxu0 0.0
    %4952 = vmatpush1.msra.mxu0 %v4931
    %4953 = vmatprep.subr.mxu0 0.0
    %4954 = vmatpush1.msra.mxu0 %v4930
    %4955 = vmatprep.subr.mxu0 0.0
    %4956 = vmatpush1.msra.mxu0 %v4929
    %4957 = vmatprep.subr.mxu0 0.0
    %4958 = vmatpush1.msra.mxu0 %v4928
    %4959 = vmatprep.subr.mxu0 0.0
    %4960 = vmatpush1.msra.mxu0 %v4927
    %4961 = vmatprep.subr.mxu0 0.0
    %4962 = vmatpush1.msra.mxu0 %v4926
    %4963 = vmatprep.subr.mxu0 0.0
    %4964 = vmatpush1.msra.mxu0 %v4925
    %4965 = vmatprep.subr.mxu0 0.0
    %4966 = vmatpush1.msra.mxu0 %v4924
    %4967 = vmatprep.subr.mxu0 0.0
    %4968 = vmatpush1.msra.mxu0 %v4923
    %4969 = vmatprep.subr.mxu0 0.0
    %4970 = vmatpush1.msra.mxu0 %v4922
    %4971 = vmatprep.subr.mxu0 0.0
    %4972 = vmatpush1.msra.mxu0 %v4921
    %4973 = vmatprep.subr.mxu0 0.0
    %4974 = vmatpush1.msra.mxu0 %v4920
    %4975 = vmatprep.subr.mxu0 0.0
    %4976 = vmatpush2.msra.mxu0 0.0
    %4977 = vmatprep.subr.mxu0 0.0
    %4978 = vmatpush2.msra.mxu0 0.0
    %4979 = vmatprep.subr.mxu0 0.0
    %4980 = vmatpush2.msra.mxu0 0.0
    %4981 = vmatprep.subr.mxu0 0.0
    %4982 = vmatpush2.msra.mxu0 0.0
    %4983 = vmatprep.subr.mxu0 0.0
    %4984 = vmatpush2.msra.mxu0 0.0
    %4985 = vmatprep.subr.mxu0 0.0
    %4986 = vmatpush2.msra.mxu0 0.0
    %4987 = vmatprep.subr.mxu0 0.0
    %4988 = vmatpush2.msra.mxu0 0.0
    %4989 = vmatprep.subr.mxu0 0.0
    %4990 = vmatpush2.msra.mxu0 0.0
    %4991 = vmatprep.subr.mxu0 0.0
    %4992 = vmatpush2.msra.mxu0 0.0
    %4993 = vmatprep.subr.mxu0 0.0
    %4994 = vmatpush2.msra.mxu0 0.0
    %4995 = vmatprep.subr.mxu0 0.0
    %4996 = vmatpush2.msra.mxu0 0.0
    %4997 = vmatprep.subr.mxu0 0.0
    %4998 = vmatpush2.msra.mxu0 0.0
    %4999 = vmatprep.subr.mxu0 0.0
    %5000 = vmatpush2.msra.mxu0 0.0
    %5001 = vmatprep.subr.mxu0 0.0
    %5002 = vmatpush2.msra.mxu0 0.0
    %5003 = vmatprep.subr.mxu0 0.0
    %5004 = vmatpush2.msra.mxu0 0.0
    %5005 = vmatprep.subr.mxu0 0.0
    %5006 = vmatpush2.msra.mxu0 0.0
    %5007 = vmatprep.mubr.f32.mxu0 0.0
    %5008 = vmatmul.mubr.f32.gmra.mxu0 %v4918
    %v5009 = vpop.f32.mrf.mxu0
    %v5010 = vadd.f32 %v4941, %v5009
    %v5011 = vpop.f32.mrf.mxu0
    %5012 = vmatprep.mubr.f32.mxu0 0.0
    %5013 = vmatmul.mubr.f32.gmra.mxu0 %v4919
    %v5014 = vpop.f32.mrf.mxu0
    %v5015 = vadd.f32 %v4941, %v5014
    %v5016 = vpop.f32.mrf.mxu0
    %5017 = vdwg.mxu0
    %v5018 = vadd.f32 %v4808, %v5010
    %v5019 = vadd.f32 %v4809, %v5015
    %v5020 = vld [vmem:[%s69] sm:$0x1]
    %v5021 = vld [vmem:[%s71] sm:$0x1]
    %v5022 = vsel %vm388, %v5018, 0.0
    %5023 = vadd.xlane.f32.xlu0 %v5022
    %v5024 = vpop.xlane.xlu0 %5023
    %v5025 = vsel %vm388, %v5019, 0.0
    %5026 = vadd.xlane.f32.xlu0 %v5025
    %v5027 = vpop.xlane.xlu0 %5026
    %v5028 = vmul.f32 %v5024, %v395
    %v5029 = vmul.f32 %v5027, %v395
    %v5030 = vsub.f32 %v5018, %v5028
    %v5031 = vsub.f32 %v5019, %v5029
    %v5032 = vmul.f32 %v5030, %v5030
    %v5033 = vmul.f32 %v5031, %v5031
    %v5034 = vsel %vm388, %v5032, 0.0
    %5035 = vadd.xlane.f32.xlu0 %v5034
    %v5036 = vpop.xlane.xlu0 %5035
    %v5037 = vsel %vm388, %v5033, 0.0
    %5038 = vadd.xlane.f32.xlu0 %v5037
    %v5039 = vpop.xlane.xlu0 %5038
    %v5040 = vmul.f32 %v5036, %v395
    %v5041 = vmul.f32 %v5039, %v395
    %v5042 = vadd.f32 %v5040, 1e-05
    %v5043 = vadd.f32 %v5041, 1e-05
    %v5044 = vrsqrt.pop %v5042
    %v5045 = vrsqrt.pop %v5043
    %v5046 = vmul.f32 %v5030, %v5044
    %v5047 = vmul.f32 %v5031, %v5045
    %v5049 = vlaneseq
    %v5050 = vshrl.u32 %v5049, 7
    %v5051 = vsub.s32 0, %v5050
    %v5052 = vrot.slane %v5020, %v5051
    %v5054 = vmul.f32 %v5046, %v5052
    %v5055 = vmul.f32 %v5047, %v5052
    %v5057 = vlaneseq
    %v5058 = vshrl.u32 %v5057, 7
    %v5059 = vsub.s32 0, %v5058
    %v5060 = vrot.slane %v5021, %v5059
    %v5062 = vadd.f32 %v5054, %v5060
    %v5063 = vadd.f32 %v5055, %v5060
    %v5065 = vrot.slane %v5063, 7
    %vm5067 = vcmask 1040384
    %v5068 = vsel %vm5067, %v5062, %v5065
    %v5069 = vld [vmem:[#allocation5] sm:$0xff]
    %v5070 = vld [vmem:[#allocation5 + $0x8] sm:$0xff]
    %v5071 = vld [vmem:[#allocation5 + $0x10] sm:$0xff]
    %v5072 = vld [vmem:[#allocation5 + $0x18] sm:$0xff]
    %v5073 = vld [vmem:[%s19] sm:$0x1]
    %v5075 = vlaneseq
    %v5076 = vshrl.u32 %v5075, 7
    %v5077 = vsub.s32 0, %v5076
    %v5078 = vrot.slane %v5073, %v5077
    %v5081 = vsel %vm388, %v5068, 0
    %5083 = vmatprep.subr.mxu0 0.0
    %5084 = vmatpush1.msra.mxu0 0.0
    %5085 = vmatprep.subr.mxu0 0.0
    %5086 = vmatpush1.msra.mxu0 0.0
    %5087 = vmatprep.subr.mxu0 0.0
    %5088 = vmatpush1.msra.mxu0 0.0
    %5089 = vmatprep.subr.mxu0 0.0
    %5090 = vmatpush1.msra.mxu0 0.0
    %5091 = vmatprep.subr.mxu0 0.0
    %5092 = vmatpush1.msra.mxu0 0.0
    %5093 = vmatprep.subr.mxu0 0.0
    %5094 = vmatpush1.msra.mxu0 0.0
    %5095 = vmatprep.subr.mxu0 0.0
    %5096 = vmatpush1.msra.mxu0 0.0
    %5097 = vmatprep.subr.mxu0 0.0
    %5098 = vmatpush1.msra.mxu0 0.0
    %5099 = vmatprep.subr.mxu0 0.0
    %5100 = vmatpush1.msra.mxu0 0.0
    %5101 = vmatprep.subr.mxu0 0.0
    %5102 = vmatpush1.msra.mxu0 0.0
    %5103 = vmatprep.subr.mxu0 0.0
    %5104 = vmatpush1.msra.mxu0 0.0
    %5105 = vmatprep.subr.mxu0 0.0
    %5106 = vmatpush1.msra.mxu0 0.0
    %5107 = vmatprep.subr.mxu0 0.0
    %5108 = vmatpush1.msra.mxu0 %v5072
    %5109 = vmatprep.subr.mxu0 0.0
    %5110 = vmatpush1.msra.mxu0 %v5071
    %5111 = vmatprep.subr.mxu0 0.0
    %5112 = vmatpush1.msra.mxu0 %v5070
    %5113 = vmatprep.subr.mxu0 0.0
    %5114 = vmatpush1.msra.mxu0 %v5069
    %5115 = vmatprep.subr.mxu0 0.0
    %5116 = vmatpush2.msra.mxu0 0.0
    %5117 = vmatprep.subr.mxu0 0.0
    %5118 = vmatpush2.msra.mxu0 0.0
    %5119 = vmatprep.subr.mxu0 0.0
    %5120 = vmatpush2.msra.mxu0 0.0
    %5121 = vmatprep.subr.mxu0 0.0
    %5122 = vmatpush2.msra.mxu0 0.0
    %5123 = vmatprep.subr.mxu0 0.0
    %5124 = vmatpush2.msra.mxu0 0.0
    %5125 = vmatprep.subr.mxu0 0.0
    %5126 = vmatpush2.msra.mxu0 0.0
    %5127 = vmatprep.subr.mxu0 0.0
    %5128 = vmatpush2.msra.mxu0 0.0
    %5129 = vmatprep.subr.mxu0 0.0
    %5130 = vmatpush2.msra.mxu0 0.0
    %5131 = vmatprep.subr.mxu0 0.0
    %5132 = vmatpush2.msra.mxu0 0.0
    %5133 = vmatprep.subr.mxu0 0.0
    %5134 = vmatpush2.msra.mxu0 0.0
    %5135 = vmatprep.subr.mxu0 0.0
    %5136 = vmatpush2.msra.mxu0 0.0
    %5137 = vmatprep.subr.mxu0 0.0
    %5138 = vmatpush2.msra.mxu0 0.0
    %5139 = vmatprep.subr.mxu0 0.0
    %5140 = vmatpush2.msra.mxu0 0.0
    %5141 = vmatprep.subr.mxu0 0.0
    %5142 = vmatpush2.msra.mxu0 0.0
    %5143 = vmatprep.subr.mxu0 0.0
    %5144 = vmatpush2.msra.mxu0 0.0
    %5145 = vmatprep.subr.mxu0 0.0
    %5146 = vmatpush2.msra.mxu0 0.0
    %5147 = vmatprep.mubr.f32.mxu0 0.0
    %5148 = vmatmul.mubr.f32.gmra.mxu0 %v5081
    %v5149 = vpop.f32.mrf.mxu0
    %v5150 = vadd.f32 %v5078, %v5149
    %v5151 = vpop.f32.mrf.mxu0
    %5152 = vdwg.mxu0
    %v5153 = vtanh.pop %v5150
    %v5154 = vld [vmem:[#allocation7] sm:$0xff]
    %v5155 = vld [vmem:[#allocation7 + $0x8] sm:$0xff]
    %v5156 = vld [vmem:[#allocation7 + $0x10] sm:$0xff]
    %v5157 = vld [vmem:[#allocation7 + $0x18] sm:$0xff]
    %v5158 = vld [vmem:[%s23] sm:$0x1]
    %v5160 = vlaneseq
    %v5161 = vshrl.u32 %v5160, 7
    %v5162 = vsub.s32 0, %v5161
    %v5163 = vrot.slane %v5158, %v5162
    %v5166 = vsel %vm388, %v5153, 0
    %5168 = vmatprep.subr.mxu0 0.0
    %5169 = vmatpush1.msra.mxu0 0.0
    %5170 = vmatprep.subr.mxu0 0.0
    %5171 = vmatpush1.msra.mxu0 0.0
    %5172 = vmatprep.subr.mxu0 0.0
    %5173 = vmatpush1.msra.mxu0 0.0
    %5174 = vmatprep.subr.mxu0 0.0
    %5175 = vmatpush1.msra.mxu0 0.0
    %5176 = vmatprep.subr.mxu0 0.0
    %5177 = vmatpush1.msra.mxu0 0.0
    %5178 = vmatprep.subr.mxu0 0.0
    %5179 = vmatpush1.msra.mxu0 0.0
    %5180 = vmatprep.subr.mxu0 0.0
    %5181 = vmatpush1.msra.mxu0 0.0
    %5182 = vmatprep.subr.mxu0 0.0
    %5183 = vmatpush1.msra.mxu0 0.0
    %5184 = vmatprep.subr.mxu0 0.0
    %5185 = vmatpush1.msra.mxu0 0.0
    %5186 = vmatprep.subr.mxu0 0.0
    %5187 = vmatpush1.msra.mxu0 0.0
    %5188 = vmatprep.subr.mxu0 0.0
    %5189 = vmatpush1.msra.mxu0 0.0
    %5190 = vmatprep.subr.mxu0 0.0
    %5191 = vmatpush1.msra.mxu0 0.0
    %5192 = vmatprep.subr.mxu0 0.0
    %5193 = vmatpush1.msra.mxu0 %v5157
    %5194 = vmatprep.subr.mxu0 0.0
    %5195 = vmatpush1.msra.mxu0 %v5156
    %5196 = vmatprep.subr.mxu0 0.0
    %5197 = vmatpush1.msra.mxu0 %v5155
    %5198 = vmatprep.subr.mxu0 0.0
    %5199 = vmatpush1.msra.mxu0 %v5154
    %5200 = vmatprep.subr.mxu0 0.0
    %5201 = vmatpush2.msra.mxu0 0.0
    %5202 = vmatprep.subr.mxu0 0.0
    %5203 = vmatpush2.msra.mxu0 0.0
    %5204 = vmatprep.subr.mxu0 0.0
    %5205 = vmatpush2.msra.mxu0 0.0
    %5206 = vmatprep.subr.mxu0 0.0
    %5207 = vmatpush2.msra.mxu0 0.0
    %5208 = vmatprep.subr.mxu0 0.0
    %5209 = vmatpush2.msra.mxu0 0.0
    %5210 = vmatprep.subr.mxu0 0.0
    %5211 = vmatpush2.msra.mxu0 0.0
    %5212 = vmatprep.subr.mxu0 0.0
    %5213 = vmatpush2.msra.mxu0 0.0
    %5214 = vmatprep.subr.mxu0 0.0
    %5215 = vmatpush2.msra.mxu0 0.0
    %5216 = vmatprep.subr.mxu0 0.0
    %5217 = vmatpush2.msra.mxu0 0.0
    %5218 = vmatprep.subr.mxu0 0.0
    %5219 = vmatpush2.msra.mxu0 0.0
    %5220 = vmatprep.subr.mxu0 0.0
    %5221 = vmatpush2.msra.mxu0 0.0
    %5222 = vmatprep.subr.mxu0 0.0
    %5223 = vmatpush2.msra.mxu0 0.0
    %5224 = vmatprep.subr.mxu0 0.0
    %5225 = vmatpush2.msra.mxu0 0.0
    %5226 = vmatprep.subr.mxu0 0.0
    %5227 = vmatpush2.msra.mxu0 0.0
    %5228 = vmatprep.subr.mxu0 0.0
    %5229 = vmatpush2.msra.mxu0 0.0
    %5230 = vmatprep.subr.mxu0 0.0
    %5231 = vmatpush2.msra.mxu0 0.0
    %5232 = vmatprep.mubr.f32.mxu0 0.0
    %5233 = vmatmul.mubr.f32.gmra.mxu0 %v5166
    %v5234 = vpop.f32.mrf.mxu0
    %v5235 = vadd.f32 %v5163, %v5234
    %v5236 = vpop.f32.mrf.mxu0
    %5237 = vdwg.mxu0
    %vm5238 = vcmask 17408
    %5239 = vst.msk [vmem:[#allocation18] sm:$0x3] %vm5238, %v5235
    %v5240 = vld [vmem:[%s13] sm:$0x3]
    %5241 = vset.pattern.permute.xlu0 0
    %5242 = vperm.xlu0 %5241, %v5240
    %v5243 = vpop.permute.xlu0 %5242
    %vm5244 = vcmp.eq.s32.totalorder %v280, %v5243
    %v5245 = vsel %vm5244, 1, 0
    %v5246 = vcvt.s32.f32 %v5245
    %v5247 = vld [vmem:[%s15] sm:$0x1]
    %v5248 = vsel %vm5238, %v5235, -inf
    %5249 = vmax.xlane.f32.xlu0 %v5248
    %v5250 = vpop.xlane.xlu0 %5249
    %v5251 = vsub.f32 %v5235, %v5250
    %v5252 = vmul.f32 %v5251, 1.442695
    %v5253 = vpow.pop %v5252
    %v5254 = vsel %vm5238, %v5253, 0.0
    %5255 = vadd.xlane.f32.xlu0 %v5254
    %v5256 = vpop.xlane.xlu0 %5255
    %v5257 = vlog2.pop %v5256
    %v5258 = vmul.f32 %v5257, 0.6931472
    %v5259 = vadd.f32 %v5250, %v5258
    %v5260 = vmul.f32 %v5235, %v5246
    %v5261 = vsel %vm5238, %v5260, 0.0
    %5262 = vadd.xlane.f32.xlu0 %v5261
    %v5263 = vpop.xlane.xlu0 %5262
    %v5265 = vlaneseq
    %v5266 = vshrl.u32 %v5265, 7
    %v5267 = vsub.s32 0, %v5266
    %v5268 = vrot.slane %v5247, %v5267
    %v5270 = vmul.f32 %v5246, %v5268
    %v5271 = vsel %vm5238, %v5270, 0.0
    %5272 = vadd.xlane.f32.xlu0 %v5271
    %v5273 = vpop.xlane.xlu0 %5272
    %v5274 = vsub.f32 %v5259, %v5263
    %v5275 = vmul.f32 %v5274, %v5273
    %vm5276 = vcmask 1041408
    %v5277 = vsel %vm5276, %v5275, 0.0
    %v5278 = vrot.slane %v5277, 4
    %v5279 = vadd.f32 %v5277, %v5278
    %v5280 = vrot.slane %v5279, 2
    %v5281 = vadd.f32 %v5279, %v5280
    %v5282 = vrot.slane %v5281, 1
    %v5283 = vadd.f32 %v5281, %v5282
    %v5284 = vsel %vm5276, %v5273, 0.0
    %v5285 = vrot.slane %v5284, 4
    %v5286 = vadd.f32 %v5284, %v5285
    %v5287 = vrot.slane %v5286, 2
    %v5288 = vadd.f32 %v5286, %v5287
    %v5289 = vrot.slane %v5288, 1
    %v5290 = vadd.f32 %v5288, %v5289
    %v5291 = vrcp.pop %v5290
    %v5292 = vmul.f32 %v5283, %v5291
    %vm5293 = vcmask 0
    %5294 = vst.msk [vmem:[#allocation17] sm:$0x1] %vm5293, %v5292
    // Predicated region
    $region182: #{transformer_classifier_forward.1} parent=1 // pred_check
      _
    $region183: #{transformer_classifier_forward.1} parent=1 // pred_check_branch
      %5296 = sbr.rel (0) target = $region185
    $region184: #{transformer_classifier_forward.1} parent=1 // pred_region
      %s5298 = ssub.s32 16, 16
      %5299 = vsyncadd [#allocation4], %s5298
      %s5301 = sshll.u32 [#allocation17], 4
      %s5302 = int_to_ptr.vmem [resolvable:$true] %s5301
      %5304 = dma.vmem_to_hbm [thread:$0]  %s5302, 16, %s73, [#allocation4]
    $region185: #{transformer_classifier_forward.1} parent=1 // pred_fallthru
      _
    // Predicated region
    $region186: #{transformer_classifier_forward.1} parent=1 // pred_check
      _
    $region187: #{transformer_classifier_forward.1} parent=1 // pred_check_branch
      %5306 = sbr.rel (0) target = $region189
    $region188: #{transformer_classifier_forward.1} parent=1 // pred_region
      %s5308 = ssub.s32 32, 32
      %5309 = vsyncadd [#allocation19], %s5308
      %s5311 = sshll.u32 [#allocation18], 4
      %s5312 = int_to_ptr.vmem [resolvable:$true] %s5311
      %5314 = dma.vmem_to_hbm [thread:$0]  %s5312, 32, %s75, [#allocation19]
    $region189: #{transformer_classifier_forward.1} parent=1 // pred_fallthru
      _
    // Predicated region
    $region190: #{transformer_classifier_forward.1} parent=1 // pred_check
      _
    $region191: #{transformer_classifier_forward.1} parent=1 // pred_check_branch
      %5316 = sbr.rel (0) target = $region193
    $region192: #{transformer_classifier_forward.1} parent=1 // pred_region
      %5317 = dma.done [#allocation4], 16
    $region193: #{transformer_classifier_forward.1} parent=1 // pred_fallthru
      _
    // Predicated region
    $region194: #{transformer_classifier_forward.1} parent=1 // pred_check
      _
    $region195: #{transformer_classifier_forward.1} parent=1 // pred_check_branch
      %5319 = sbr.rel (0) target = $region197
    $region196: #{transformer_classifier_forward.1} parent=1 // pred_region
      %5320 = dma.done [#allocation19], 32
    $region197: #{transformer_classifier_forward.1} parent=1 // pred_fallthru
      _
    %5321 = vsyncpa [#allocation3], 1
    %5322 = vsyncpa [#allocation6], 1
    %5323 = vsyncpa [#allocation9], 1
    %5324 = vsyncpa [#allocation12], 1
    %5325 = vsyncpa [#allocation15], 1
    %5326 = vsyncpa [#allocation4], 1
    %5327 = vsyncpa [#allocation19], 1

</llo_original>
